<compile_context>
chip_gen: v7x
topology: tpu7x:2x2x1
jax: 0.10.0
libtpu: 0.0.40
codegen_flags: <defaults>
</compile_context>

<pallas_src>
import functools

import jax
import jax.numpy as jnp
from jax.experimental import pallas as pl
from jax.experimental.pallas import tpu as pltpu

LRELU_SLOPE = 0.2
IN_EPS = 1e-5                     # nn.InstanceNorm2d default eps
VMEM_LIMIT = 48 * 1024 * 1024     # > default scoped limits, < v7x physical VMEM
M_TARGET = 256                    # target MXU row count per dot in fused blocks


def _round_up(x, m):
    return -(-x // m) * m


def _pick_tile(n, target, align=1):
    """Largest divisor of n that is <= target (preferring multiples of align)."""
    if n <= target:
        return n
    for d in range(target, 0, -1):
        if n % d == 0 and d % align == 0:
            return d
    for d in range(target, 0, -1):
        if n % d == 0:
            return d
    return n


def _pick_batch_tile(batch, hw, target=M_TARGET, max_bt=64):
    """Smallest divisor of `batch` whose folded dot-row count bt*hw hits target."""
    for bt in range(1, batch + 1):
        if batch % bt == 0 and (bt * hw >= target or bt >= max_bt):
            return bt
    return batch


# ---------------------------------------------------------------------------
# Block 1: im2col patches (K = 9 * C_in = 27) -> matmul + bias + LeakyReLU.
# ---------------------------------------------------------------------------
def _patch_matmul_kernel(p_ref, w_ref, b_ref, o_ref):
    y = jnp.dot(p_ref[...], w_ref[...], preferred_element_type=jnp.float32)
    y = y + b_ref[...]                                      # f32 bias
    y = jnp.where(y > 0, y, LRELU_SLOPE * y)                # LeakyReLU(0.2)
    o_ref[...] = y.astype(o_ref.dtype)


def conv_lrelu_block1(patches, w, b):
    """patches: (R, K) bf16, w: (K, Cout) bf16, b: (1, Cout) f32 -> (R, Cout) bf16."""
    R, K = patches.shape
    Cout = w.shape[1]
    tp = _pick_tile(R, 2048, align=8)
    return pl.pallas_call(
        _patch_matmul_kernel,
        out_shape=jax.ShapeDtypeStruct((R, Cout), jnp.bfloat16),
        grid=(R // tp,),
        in_specs=[
            pl.BlockSpec((tp, K), lambda i: (i, 0)),
            pl.BlockSpec((K, Cout), lambda i: (0, 0)),
            pl.BlockSpec((1, Cout), lambda i: (0, 0)),
        ],
        out_specs=pl.BlockSpec((tp, Cout), lambda i: (i, 0)),
        compiler_params=pltpu.CompilerParams(
            dimension_semantics=("parallel",),
            vmem_limit_bytes=VMEM_LIMIT),
    )(patches, w, b)


def im2col_s2p1k3(x):
    """x: (B, H, W, C) -> patches (B*Ho*Wo, 9*C) with K ordered (kh, kw, C)."""
    B, H, W, C = x.shape
    Ho, Wo = H // 2, W // 2
    xp = jnp.pad(x, ((0, 0), (1, 1), (1, 1), (0, 0)))
    cols = []
    for ky in range(3):
        for kx in range(3):
            cols.append(xp[:, ky:ky + 2 * Ho:2, kx:kx + 2 * Wo:2, :])
    patches = jnp.stack(cols, axis=3)                       # (B, Ho, Wo, 9, C)
    return patches.reshape(B * Ho * Wo, 9 * C), Ho, Wo


# ---------------------------------------------------------------------------
# Blocks 2-4: fused Conv2d(3, s=2, p=1) + bias + LeakyReLU + InstanceNorm2d.
#
# The wrapper builds 6 "tap window" arrays (phase parity x column offset),
# spatially flattened per sample (row-major over (phase_row, out_col)) and
# padded to Lpad rows per sample (multiple of 8).  For conv tap (ky, kx) the
# input needed by output pixel (b, oy, ox) sits at flat row
#     b*Lpad + (oy + dy)*Wo + ox       in array _TAP_ARR[(ky, kx)],
# so per tap ONE contiguous 2D row-slice covers all bt samples of the grid
# step (with small don't-care gaps between samples), and the conv becomes
# 9 large-M MXU dots.
# ---------------------------------------------------------------------------

# (phase row parity, phase col parity, column window offset) for the 6 arrays.
_TAP_WINDOWS = ((0, 0, 0), (0, 0, 1), (0, 1, 0), (1, 0, 0), (1, 0, 1), (1, 1, 0))
# tap index t = ky*3 + kx  ->  (tap-array index, row offset dy)
_TAPS = ((0, 0), (2, 0), (1, 0),     # ky = 0 : kx = 0, 1, 2
         (3, 0), (5, 0), (4, 0),     # ky = 1
         (0, 1), (2, 1), (1, 1))     # ky = 2


def _build_tap_arrays(x):
    """x: (B, H, W, C) bf16 -> 6 arrays (B*Lpad, C) bf16, plus (Ho, Wo, Lpad)."""
    B, H, W, C = x.shape
    Ho, Wo = H // 2, W // 2
    L = (Ho + 1) * Wo
    Lpad = _round_up(L, 8)
    xp = jnp.pad(x, ((0, 0), (1, 1), (1, 1), (0, 0)))
    arrs = []
    for py, px, dx in _TAP_WINDOWS:
        c0 = px + 2 * dx
        win = xp[:, py::2, c0:c0 + 2 * Wo:2, :]             # (B, Ho+1, Wo, C)
        flat = win.reshape(B, L, C)
        if Lpad != L:
            flat = jnp.pad(flat, ((0, 0), (0, Lpad - L), (0, 0)))
        arrs.append(flat.reshape(B * Lpad, C))
    return arrs, Ho, Wo, Lpad


def _fused_conv_in_kernel(a0, a1, a2, a3, a4, a5, w_ref, b_ref, o_ref, *,
                          bt, ho, wo, lpad, opad):
    """One batch-tile grid step: conv (9 big dots) -> bias -> LReLU -> IN."""
    arrs = (a0, a1, a2, a3, a4, a5)
    hw = ho * wo
    mspan = (bt - 1) * lpad + hw            # rows covering all bt samples
    cout = o_ref.shape[-1]

    acc = jnp.zeros((mspan, cout), jnp.float32)
    for t, (ai, dy) in enumerate(_TAPS):
        slab = arrs[ai][dy * wo:dy * wo + mspan, :]          # (mspan, Cin) bf16
        acc = acc + jnp.dot(slab, w_ref[t],
                            preferred_element_type=jnp.float32)

    acc = acc + b_ref[...]                                   # bias (hoisted, once)
    acc = jnp.where(acc > 0, acc, LRELU_SLOPE * acc)         # LeakyReLU(0.2)

    # Per-sample InstanceNorm2d (affine=False, biased variance), f32 stats.
    inv_n = 1.0 / float(hw)
    for s in range(bt):
        seg = acc[s * lpad:s * lpad + hw, :]                 # (hw, Cout) f32
        mean = jnp.sum(seg, axis=0, keepdims=True) * inv_n
        var = jnp.sum(seg * seg, axis=0, keepdims=True) * inv_n - mean * mean
        inv = jax.lax.rsqrt(jnp.maximum(var, 0.0) + IN_EPS)
        y = (seg - mean) * inv
        o_ref[s * opad:s * opad + hw, :] = y.astype(o_ref.dtype)
        if opad != hw:                                       # keep output deterministic
            o_ref[s * opad + hw:(s + 1) * opad, :] = jnp.zeros(
                (opad - hw, cout), o_ref.dtype)


def fused_conv_lrelu_in_block(x, w, b):
    """x: (B, H, W, Cin) bf16, w: (9, Cin, Cout) bf16, b: (1, Cout) f32
       -> (B, H//2, W//2, Cout) bf16."""
    B, H, W, Cin = x.shape
    Cout = w.shape[-1]
    arrs, Ho, Wo, Lpad = _build_tap_arrays(x)
    hw = Ho * Wo
    Opad = _round_up(hw, 8)
    bt = _pick_batch_tile(B, hw)

    kernel = functools.partial(_fused_conv_in_kernel, bt=bt, ho=Ho, wo=Wo,
                               lpad=Lpad, opad=Opad)
    arr_spec = pl.BlockSpec((bt * Lpad, Cin), lambda g: (g, 0))
    out = pl.pallas_call(
        kernel,
        out_shape=jax.ShapeDtypeStruct((B * Opad, Cout), jnp.bfloat16),
        grid=(B // bt,),
        in_specs=[arr_spec] * 6 + [
            pl.BlockSpec((9, Cin, Cout), lambda g: (0, 0, 0)),
            pl.BlockSpec((1, Cout), lambda g: (0, 0)),
        ],
        out_specs=pl.BlockSpec((bt * Opad, Cout), lambda g: (g, 0)),
        compiler_params=pltpu.CompilerParams(
            dimension_semantics=("parallel",),
            vmem_limit_bytes=VMEM_LIMIT),
    )(*arrs, w, b)

    out = out.reshape(B, Opad, Cout)
    if Opad != hw:
        out = out[:, :hw, :]
    return out.reshape(B, Ho, Wo, Cout)


# ---------------------------------------------------------------------------
# Final Linear: lane-dense (1, F) weight (pre-permuted to NHWC-flatten order),
# F-tiled accumulator grid.
# ---------------------------------------------------------------------------
def _linear_kernel(x_ref, w_ref, b_ref, o_ref):
    @pl.when(pl.program_id(0) == 0)
    def _init():
        o_ref[...] = b_ref[...] + jnp.zeros(o_ref.shape, jnp.float32)

    x = x_ref[...].astype(jnp.float32)                      # (B, TF)
    w = w_ref[...].astype(jnp.float32)                      # (1, TF)
    o_ref[...] += jnp.sum(x * w, axis=-1, keepdims=True)    # VPU mul + reduce


def linear(x, w, b):
    """x: (B, F) bf16, w: (1, F) f32 (lane-dense), b: (1, 1) f32 -> (B, 1) f32."""
    B, F = x.shape
    tf = _pick_tile(F, 8192, align=128)
    return pl.pallas_call(
        _linear_kernel,
        out_shape=jax.ShapeDtypeStruct((B, 1), jnp.float32),
        grid=(F // tf,),
        in_specs=[
            pl.BlockSpec((B, tf), lambda f: (0, f)),
            pl.BlockSpec((1, tf), lambda f: (0, f)),
            pl.BlockSpec((1, 1), lambda f: (0, 0)),
        ],
        out_specs=pl.BlockSpec((B, 1), lambda f: (0, 0)),
        compiler_params=pltpu.CompilerParams(
            dimension_semantics=("arbitrary",),
            vmem_limit_bytes=VMEM_LIMIT),
    )(x, w, b)


# ---------------------------------------------------------------------------
# Parameters + forward
# ---------------------------------------------------------------------------
def init_params(key, channels, img_size):
    # Weight layouts used by the kernels:
    #   block 1  : (3*3*Cin, Cout)   with K ordered (kh, kw, Cin)
    #   blocks2-4: (9, Cin, Cout)    with tap index = kh*3 + kw
    # To load real PyTorch Conv2d weights (Cout, Cin, kh, kw), permute them to
    # (kh, kw, Cin, Cout) first and then reshape as above.
    plan = [(channels, 64, False), (64, 128, True), (128, 256, True), (256, 512, True)]
    blocks = []
    for cin, cout, norm in plan:
        key, kw = jax.random.split(key)
        w_hwio = jax.random.normal(kw, (3, 3, cin, cout), dtype=jnp.float32) * 0.02
        if norm:
            w = w_hwio.reshape(9, cin, cout).astype(jnp.bfloat16)
        else:
            w = w_hwio.reshape(9 * cin, cout).astype(jnp.bfloat16)
        b = jnp.zeros((1, cout), dtype=jnp.float32)
        blocks.append((w, b))

    in_size = img_size // 16
    feat = 512 * in_size * in_size
    key, kl = jax.random.split(key)
    # torch.nn.Linear.weight is (1, F) over NCHW-flatten order (C, H, W).
    lin_w_torch = jax.random.normal(kl, (1, feat), dtype=jnp.float32) * 0.02
    # Pre-permute once to NHWC-flatten order so the forward pass needs no
    # activation transpose before the Linear layer (numerically identical).
    lin_w = (lin_w_torch.reshape(1, 512, in_size, in_size)
             .transpose(0, 2, 3, 1).reshape(1, feat))
    lin_b = jnp.zeros((1, 1), dtype=jnp.float32)
    return {"blocks": blocks, "lin_w": lin_w, "lin_b": lin_b}


def discriminator_forward(img_nchw, params):
    B = img_nchw.shape[0]
    # NCHW -> NHWC, bf16 activations for the MXU path (f32 accumulation inside).
    x = jnp.transpose(img_nchw, (0, 2, 3, 1)).astype(jnp.bfloat16)

    # Block 1: Conv(C->64, s2) + LeakyReLU (no InstanceNorm).
    patches, ho, wo = im2col_s2p1k3(x)                      # (B*P, 27) bf16
    w1, b1 = params["blocks"][0]
    y = conv_lrelu_block1(patches, w1, b1)                  # (B*P, 64) bf16
    x = y.reshape(B, ho, wo, y.shape[-1])

    # Blocks 2-4: fused Conv + LeakyReLU + InstanceNorm.
    for (w, b) in params["blocks"][1:]:
        x = fused_conv_lrelu_in_block(x, w, b)

    # NHWC flatten (free reshape); lin_w was pre-permuted to match.
    B2, Ho, Wo, C = x.shape
    feat = x.reshape(B2, Ho * Wo * C)
    return linear(feat, params["lin_w"], params["lin_b"])   # (B, 1) f32


if __name__ == "__main__":
    batch, channels, img_size = 2, 3, 32   # img_size must be divisible by 16
    assert img_size % 16 == 0

    key = jax.random.PRNGKey(0)
    key, kimg = jax.random.split(key)
    img = jax.random.normal(kimg, (batch, channels, img_size, img_size),
                            dtype=jnp.float32)
    params = init_params(key, channels, img_size)

    validity = jax.jit(discriminator_forward)(img, params)
    jax.block_until_ready(validity)
    assert validity.shape == (batch, 1), validity.shape
    print("KERNEL_OK")
</pallas_src>

<mosaic_0001>
module attributes {stable_mosaic.version = 11 : i64} {
  func.func @_patch_matmul_kernel(%arg0: i32, %arg1: memref<512x27xbf16, #tpu.memory_space<vmem>>, %arg2: memref<27x64xbf16, #tpu.memory_space<vmem>>, %arg3: memref<1x64xf32, #tpu.memory_space<vmem>>, %arg4: memref<512x64xbf16, #tpu.memory_space<vmem>>) attributes {dimension_semantics = [#tpu.dimension_semantics<parallel>], iteration_bounds = array<i64: 1>, scalar_prefetch = 0 : i64, scratch_operands = 0 : i64, tpu.core_type = #tpu.core_type<tc>, window_params = [{transform_indices = @transform_0, window_bounds = array<i64: 512, 27>}, {pipeline_mode = #tpu.pipeline_mode<synchronous>, transform_indices = @transform_1, window_bounds = array<i64: 27, 64>}, {pipeline_mode = #tpu.pipeline_mode<synchronous>, transform_indices = @transform_2, window_bounds = array<i64: 1, 64>}, {transform_indices = @transform_3, window_bounds = array<i64: 512, 64>}]} {
    %c0 = arith.constant 0 : index
    %c0_0 = arith.constant 0 : index
    %0 = vector.load %arg1[%c0, %c0_0] : memref<512x27xbf16, #tpu.memory_space<vmem>>, vector<512x27xbf16>
    %c0_1 = arith.constant 0 : index
    %c0_2 = arith.constant 0 : index
    %1 = vector.load %arg2[%c0_1, %c0_2] : memref<27x64xbf16, #tpu.memory_space<vmem>>, vector<27x64xbf16>
    %cst = arith.constant dense<0.000000e+00> : vector<512x64xf32>
    %2 = tpu.matmul %0, %1, %cst {dimension_numbers = #tpu.dot_dimension_numbers<[1], [0], [0], [1], [0, 0, 1, 1], [], []>} : vector<512x27xbf16>, vector<27x64xbf16>, vector<512x64xf32> -> vector<512x64xf32>
    %c0_3 = arith.constant 0 : index
    %c0_4 = arith.constant 0 : index
    %3 = vector.load %arg3[%c0_3, %c0_4] : memref<1x64xf32, #tpu.memory_space<vmem>>, vector<1x64xf32>
    %4 = vector.broadcast %3 : vector<1x64xf32> to vector<512x64xf32>
    %5 = arith.addf %2, %4 : vector<512x64xf32>
    %cst_5 = arith.constant 0.000000e+00 : f32
    %6 = vector.broadcast %cst_5 : f32 to vector<512x64xf32>
    %7 = arith.cmpf ogt, %5, %6 : vector<512x64xf32>
    %cst_6 = arith.constant 2.000000e-01 : f32
    %8 = vector.broadcast %cst_6 : f32 to vector<512x64xf32>
    %9 = arith.mulf %8, %5 : vector<512x64xf32>
    %10 = arith.select %7, %5, %9 : vector<512x64xi1>, vector<512x64xf32>
    %11 = arith.truncf %10 : vector<512x64xf32> to vector<512x64xbf16>
    %c0_7 = arith.constant 0 : index
    %c0_8 = arith.constant 0 : index
    %12 = vector.load %arg4[%c0_7, %c0_8] : memref<512x64xbf16, #tpu.memory_space<vmem>>, vector<512x64xbf16>
    tpu.vector_store %arg4[%c0_7, %c0_8], %11 {strides = array<i32>} : memref<512x64xbf16, #tpu.memory_space<vmem>>, vector<512x64xbf16>,
    return
  }
  func.func @transform_0(%arg0: i32) -> (i32, i32) {
    %c0_i32 = arith.constant 0 : i32
    %c0_i32_0 = arith.constant 0 : i32
    return %arg0, %c0_i32 : i32, i32
  }
  func.func @transform_1(%arg0: i32) -> (i32, i32) {
    %c0_i32 = arith.constant 0 : i32
    %c0_i32_0 = arith.constant 0 : i32
    %c0_i32_1 = arith.constant 0 : i32
    return %c0_i32, %c0_i32_0 : i32, i32
  }
  func.func @transform_2(%arg0: i32) -> (i32, i32) {
    %c0_i32 = arith.constant 0 : i32
    %c0_i32_0 = arith.constant 0 : i32
    %c0_i32_1 = arith.constant 0 : i32
    return %c0_i32, %c0_i32_0 : i32, i32
  }
  func.func @transform_3(%arg0: i32) -> (i32, i32) {
    %c0_i32 = arith.constant 0 : i32
    %c0_i32_0 = arith.constant 0 : i32
    return %arg0, %c0_i32 : i32, i32
  }
}

module attributes {stable_mosaic.version = 11 : i64} {
  func.func @_fused_conv_in_kernel(%arg0: i32, %arg1: memref<144x64xbf16, #tpu.memory_space<vmem>>, %arg2: memref<144x64xbf16, #tpu.memory_space<vmem>>, %arg3: memref<144x64xbf16, #tpu.memory_space<vmem>>, %arg4: memref<144x64xbf16, #tpu.memory_space<vmem>>, %arg5: memref<144x64xbf16, #tpu.memory_space<vmem>>, %arg6: memref<144x64xbf16, #tpu.memory_space<vmem>>, %arg7: memref<9x64x128xbf16, #tpu.memory_space<vmem>>, %arg8: memref<1x128xf32, #tpu.memory_space<vmem>>, %arg9: memref<128x128xbf16, #tpu.memory_space<vmem>>) attributes {dimension_semantics = [#tpu.dimension_semantics<parallel>], iteration_bounds = array<i64: 1>, scalar_prefetch = 0 : i64, scratch_operands = 0 : i64, tpu.core_type = #tpu.core_type<tc>, window_params = [{transform_indices = @transform_0, window_bounds = array<i64: 144, 64>}, {transform_indices = @transform_1, window_bounds = array<i64: 144, 64>}, {transform_indices = @transform_2, window_bounds = array<i64: 144, 64>}, {transform_indices = @transform_3, window_bounds = array<i64: 144, 64>}, {transform_indices = @transform_4, window_bounds = array<i64: 144, 64>}, {transform_indices = @transform_5, window_bounds = array<i64: 144, 64>}, {pipeline_mode = #tpu.pipeline_mode<synchronous>, transform_indices = @transform_6, window_bounds = array<i64: 9, 64, 128>}, {pipeline_mode = #tpu.pipeline_mode<synchronous>, transform_indices = @transform_7, window_bounds = array<i64: 1, 128>}, {transform_indices = @transform_8, window_bounds = array<i64: 128, 128>}]} {
    %cst = arith.constant 0.000000e+00 : f32
    %0 = vector.broadcast %cst : f32 to vector<136x128xf32>
    %c0 = arith.constant 0 : index
    %c0_0 = arith.constant 0 : index
    %1 = vector.load %arg1[%c0, %c0_0] : memref<144x64xbf16, #tpu.memory_space<vmem>>, vector<136x64xbf16>
    %c0_1 = arith.constant 0 : index
    %c0_2 = arith.constant 0 : index
    %c0_3 = arith.constant 0 : index
    %2 = vector.load %arg7[%c0_1, %c0_2, %c0_3] : memref<9x64x128xbf16, #tpu.memory_space<vmem>>, vector<1x64x128xbf16>
    %3 = vector.shape_cast %2 : vector<1x64x128xbf16> to vector<64x128xbf16>
    %cst_4 = arith.constant dense<0.000000e+00> : vector<136x128xf32>
    %4 = tpu.matmul %1, %3, %cst_4 {dimension_numbers = #tpu.dot_dimension_numbers<[1], [0], [0], [1], [0, 0, 1, 1], [], []>} : vector<136x64xbf16>, vector<64x128xbf16>, vector<136x128xf32> -> vector<136x128xf32>
    %5 = arith.addf %0, %4 : vector<136x128xf32>
    %c0_5 = arith.constant 0 : index
    %c0_6 = arith.constant 0 : index
    %6 = vector.load %arg3[%c0_5, %c0_6] : memref<144x64xbf16, #tpu.memory_space<vmem>>, vector<136x64xbf16>
    %c1 = arith.constant 1 : index
    %c0_7 = arith.constant 0 : index
    %c0_8 = arith.constant 0 : index
    %7 = vector.load %arg7[%c1, %c0_7, %c0_8] : memref<9x64x128xbf16, #tpu.memory_space<vmem>>, vector<1x64x128xbf16>
    %8 = vector.shape_cast %7 : vector<1x64x128xbf16> to vector<64x128xbf16>
    %cst_9 = arith.constant dense<0.000000e+00> : vector<136x128xf32>
    %9 = tpu.matmul %6, %8, %cst_9 {dimension_numbers = #tpu.dot_dimension_numbers<[1], [0], [0], [1], [0, 0, 1, 1], [], []>} : vector<136x64xbf16>, vector<64x128xbf16>, vector<136x128xf32> -> vector<136x128xf32>
    %10 = arith.addf %5, %9 : vector<136x128xf32>
    %c0_10 = arith.constant 0 : index
    %c0_11 = arith.constant 0 : index
    %11 = vector.load %arg2[%c0_10, %c0_11] : memref<144x64xbf16, #tpu.memory_space<vmem>>, vector<136x64xbf16>
    %c2 = arith.constant 2 : index
    %c0_12 = arith.constant 0 : index
    %c0_13 = arith.constant 0 : index
    %12 = vector.load %arg7[%c2, %c0_12, %c0_13] : memref<9x64x128xbf16, #tpu.memory_space<vmem>>, vector<1x64x128xbf16>
    %13 = vector.shape_cast %12 : vector<1x64x128xbf16> to vector<64x128xbf16>
    %cst_14 = arith.constant dense<0.000000e+00> : vector<136x128xf32>
    %14 = tpu.matmul %11, %13, %cst_14 {dimension_numbers = #tpu.dot_dimension_numbers<[1], [0], [0], [1], [0, 0, 1, 1], [], []>} : vector<136x64xbf16>, vector<64x128xbf16>, vector<136x128xf32> -> vector<136x128xf32>
    %15 = arith.addf %10, %14 : vector<136x128xf32>
    %c0_15 = arith.constant 0 : index
    %c0_16 = arith.constant 0 : index
    %16 = vector.load %arg4[%c0_15, %c0_16] : memref<144x64xbf16, #tpu.memory_space<vmem>>, vector<136x64xbf16>
    %c3 = arith.constant 3 : index
    %c0_17 = arith.constant 0 : index
    %c0_18 = arith.constant 0 : index
    %17 = vector.load %arg7[%c3, %c0_17, %c0_18] : memref<9x64x128xbf16, #tpu.memory_space<vmem>>, vector<1x64x128xbf16>
    %18 = vector.shape_cast %17 : vector<1x64x128xbf16> to vector<64x128xbf16>
    %cst_19 = arith.constant dense<0.000000e+00> : vector<136x128xf32>
    %19 = tpu.matmul %16, %18, %cst_19 {dimension_numbers = #tpu.dot_dimension_numbers<[1], [0], [0], [1], [0, 0, 1, 1], [], []>} : vector<136x64xbf16>, vector<64x128xbf16>, vector<136x128xf32> -> vector<136x128xf32>
    %20 = arith.addf %15, %19 : vector<136x128xf32>
    %c0_20 = arith.constant 0 : index
    %c0_21 = arith.constant 0 : index
    %21 = vector.load %arg6[%c0_20, %c0_21] : memref<144x64xbf16, #tpu.memory_space<vmem>>, vector<136x64xbf16>
    %c4 = arith.constant 4 : index
    %c0_22 = arith.constant 0 : index
    %c0_23 = arith.constant 0 : index
    %22 = vector.load %arg7[%c4, %c0_22, %c0_23] : memref<9x64x128xbf16, #tpu.memory_space<vmem>>, vector<1x64x128xbf16>
    %23 = vector.shape_cast %22 : vector<1x64x128xbf16> to vector<64x128xbf16>
    %cst_24 = arith.constant dense<0.000000e+00> : vector<136x128xf32>
    %24 = tpu.matmul %21, %23, %cst_24 {dimension_numbers = #tpu.dot_dimension_numbers<[1], [0], [0], [1], [0, 0, 1, 1], [], []>} : vector<136x64xbf16>, vector<64x128xbf16>, vector<136x128xf32> -> vector<136x128xf32>
    %25 = arith.addf %20, %24 : vector<136x128xf32>
    %c0_25 = arith.constant 0 : index
    %c0_26 = arith.constant 0 : index
    %26 = vector.load %arg5[%c0_25, %c0_26] : memref<144x64xbf16, #tpu.memory_space<vmem>>, vector<136x64xbf16>
    %c5 = arith.constant 5 : index
    %c0_27 = arith.constant 0 : index
    %c0_28 = arith.constant 0 : index
    %27 = vector.load %arg7[%c5, %c0_27, %c0_28] : memref<9x64x128xbf16, #tpu.memory_space<vmem>>, vector<1x64x128xbf16>
    %28 = vector.shape_cast %27 : vector<1x64x128xbf16> to vector<64x128xbf16>
    %cst_29 = arith.constant dense<0.000000e+00> : vector<136x128xf32>
    %29 = tpu.matmul %26, %28, %cst_29 {dimension_numbers = #tpu.dot_dimension_numbers<[1], [0], [0], [1], [0, 0, 1, 1], [], []>} : vector<136x64xbf16>, vector<64x128xbf16>, vector<136x128xf32> -> vector<136x128xf32>
    %30 = arith.addf %25, %29 : vector<136x128xf32>
    %c8 = arith.constant 8 : index
    %c0_30 = arith.constant 0 : index
    %31 = vector.load %arg1[%c8, %c0_30] : memref<144x64xbf16, #tpu.memory_space<vmem>>, vector<136x64xbf16>
    %c6 = arith.constant 6 : index
    %c0_31 = arith.constant 0 : index
    %c0_32 = arith.constant 0 : index
    %32 = vector.load %arg7[%c6, %c0_31, %c0_32] : memref<9x64x128xbf16, #tpu.memory_space<vmem>>, vector<1x64x128xbf16>
    %33 = vector.shape_cast %32 : vector<1x64x128xbf16> to vector<64x128xbf16>
    %cst_33 = arith.constant dense<0.000000e+00> : vector<136x128xf32>
    %34 = tpu.matmul %31, %33, %cst_33 {dimension_numbers = #tpu.dot_dimension_numbers<[1], [0], [0], [1], [0, 0, 1, 1], [], []>} : vector<136x64xbf16>, vector<64x128xbf16>, vector<136x128xf32> -> vector<136x128xf32>
    %35 = arith.addf %30, %34 : vector<136x128xf32>
    %c8_34 = arith.constant 8 : index
    %c0_35 = arith.constant 0 : index
    %36 = vector.load %arg3[%c8_34, %c0_35] : memref<144x64xbf16, #tpu.memory_space<vmem>>, vector<136x64xbf16>
    %c7 = arith.constant 7 : index
    %c0_36 = arith.constant 0 : index
    %c0_37 = arith.constant 0 : index
    %37 = vector.load %arg7[%c7, %c0_36, %c0_37] : memref<9x64x128xbf16, #tpu.memory_space<vmem>>, vector<1x64x128xbf16>
    %38 = vector.shape_cast %37 : vector<1x64x128xbf16> to vector<64x128xbf16>
    %cst_38 = arith.constant dense<0.000000e+00> : vector<136x128xf32>
    %39 = tpu.matmul %36, %38, %cst_38 {dimension_numbers = #tpu.dot_dimension_numbers<[1], [0], [0], [1], [0, 0, 1, 1], [], []>} : vector<136x64xbf16>, vector<64x128xbf16>, vector<136x128xf32> -> vector<136x128xf32>
    %40 = arith.addf %35, %39 : vector<136x128xf32>
    %c8_39 = arith.constant 8 : index
    %c0_40 = arith.constant 0 : index
    %41 = vector.load %arg2[%c8_39, %c0_40] : memref<144x64xbf16, #tpu.memory_space<vmem>>, vector<136x64xbf16>
    %c8_41 = arith.constant 8 : index
    %c0_42 = arith.constant 0 : index
    %c0_43 = arith.constant 0 : index
    %42 = vector.load %arg7[%c8_41, %c0_42, %c0_43] : memref<9x64x128xbf16, #tpu.memory_space<vmem>>, vector<1x64x128xbf16>
    %43 = vector.shape_cast %42 : vector<1x64x128xbf16> to vector<64x128xbf16>
    %cst_44 = arith.constant dense<0.000000e+00> : vector<136x128xf32>
    %44 = tpu.matmul %41, %43, %cst_44 {dimension_numbers = #tpu.dot_dimension_numbers<[1], [0], [0], [1], [0, 0, 1, 1], [], []>} : vector<136x64xbf16>, vector<64x128xbf16>, vector<136x128xf32> -> vector<136x128xf32>
    %45 = arith.addf %40, %44 : vector<136x128xf32>
    %c0_45 = arith.constant 0 : index
    %c0_46 = arith.constant 0 : index
    %46 = vector.load %arg8[%c0_45, %c0_46] : memref<1x128xf32, #tpu.memory_space<vmem>>, vector<1x128xf32>
    %47 = vector.broadcast %46 : vector<1x128xf32> to vector<136x128xf32>
    %48 = arith.addf %45, %47 : vector<136x128xf32>
    %cst_47 = arith.constant 0.000000e+00 : f32
    %49 = vector.broadcast %cst_47 : f32 to vector<136x128xf32>
    %50 = arith.cmpf ogt, %48, %49 : vector<136x128xf32>
    %cst_48 = arith.constant 2.000000e-01 : f32
    %51 = vector.broadcast %cst_48 : f32 to vector<136x128xf32>
    %52 = arith.mulf %51, %48 : vector<136x128xf32>
    %53 = arith.select %50, %48, %52 : vector<136x128xi1>, vector<136x128xf32>
    %54 = vector.extract_strided_slice %53 {offsets = [0, 0], sizes = [64, 128], strides = [1, 1]} : vector<136x128xf32> to vector<64x128xf32>
    %cst_49 = arith.constant dense<0.000000e+00> : vector<128xf32>
    %55 = vector.multi_reduction <add>, %54, %cst_49 [0] : vector<64x128xf32> to vector<128xf32>
    %56 = vector.shape_cast %55 : vector<128xf32> to vector<1x128xf32>
    %cst_50 = arith.constant 1.562500e-02 : f32
    %57 = vector.broadcast %cst_50 : f32 to vector<1x128xf32>
    %58 = arith.mulf %56, %57 : vector<1x128xf32>
    %59 = arith.mulf %54, %54 : vector<64x128xf32>
    %cst_51 = arith.constant dense<0.000000e+00> : vector<128xf32>
    %60 = vector.multi_reduction <add>, %59, %cst_51 [0] : vector<64x128xf32> to vector<128xf32>
    %61 = vector.shape_cast %60 : vector<128xf32> to vector<1x128xf32>
    %cst_52 = arith.constant 1.562500e-02 : f32
    %62 = vector.broadcast %cst_52 : f32 to vector<1x128xf32>
    %63 = arith.mulf %61, %62 : vector<1x128xf32>
    %64 = arith.mulf %58, %58 : vector<1x128xf32>
    %65 = arith.subf %63, %64 : vector<1x128xf32>
    %cst_53 = arith.constant 0.000000e+00 : f32
    %66 = vector.broadcast %cst_53 : f32 to vector<1x128xf32>
    %67 = arith.maximumf %65, %66 : vector<1x128xf32>
    %cst_54 = arith.constant 9.99999974E-6 : f32
    %68 = vector.broadcast %cst_54 : f32 to vector<1x128xf32>
    %69 = arith.addf %67, %68 : vector<1x128xf32>
    %70 = math.rsqrt %69 : vector<1x128xf32>
    %71 = vector.broadcast %58 : vector<1x128xf32> to vector<64x128xf32>
    %72 = arith.subf %54, %71 : vector<64x128xf32>
    %73 = vector.broadcast %70 : vector<1x128xf32> to vector<64x128xf32>
    %74 = arith.mulf %72, %73 : vector<64x128xf32>
    %75 = arith.truncf %74 : vector<64x128xf32> to vector<64x128xbf16>
    %c0_55 = arith.constant 0 : index
    %c0_56 = arith.constant 0 : index
    %76 = vector.load %arg9[%c0_55, %c0_56] : memref<128x128xbf16, #tpu.memory_space<vmem>>, vector<64x128xbf16>
    tpu.vector_store %arg9[%c0_55, %c0_56], %75 {strides = array<i32>} : memref<128x128xbf16, #tpu.memory_space<vmem>>, vector<64x128xbf16>,
    %77 = vector.extract_strided_slice %53 {offsets = [72, 0], sizes = [64, 128], strides = [1, 1]} : vector<136x128xf32> to vector<64x128xf32>
    %cst_57 = arith.constant dense<0.000000e+00> : vector<128xf32>
    %78 = vector.multi_reduction <add>, %77, %cst_57 [0] : vector<64x128xf32> to vector<128xf32>
    %79 = vector.shape_cast %78 : vector<128xf32> to vector<1x128xf32>
    %cst_58 = arith.constant 1.562500e-02 : f32
    %80 = vector.broadcast %cst_58 : f32 to vector<1x128xf32>
    %81 = arith.mulf %79, %80 : vector<1x128xf32>
    %82 = arith.mulf %77, %77 : vector<64x128xf32>
    %cst_59 = arith.constant dense<0.000000e+00> : vector<128xf32>
    %83 = vector.multi_reduction <add>, %82, %cst_59 [0] : vector<64x128xf32> to vector<128xf32>
    %84 = vector.shape_cast %83 : vector<128xf32> to vector<1x128xf32>
    %cst_60 = arith.constant 1.562500e-02 : f32
    %85 = vector.broadcast %cst_60 : f32 to vector<1x128xf32>
    %86 = arith.mulf %84, %85 : vector<1x128xf32>
    %87 = arith.mulf %81, %81 : vector<1x128xf32>
    %88 = arith.subf %86, %87 : vector<1x128xf32>
    %cst_61 = arith.constant 0.000000e+00 : f32
    %89 = vector.broadcast %cst_61 : f32 to vector<1x128xf32>
    %90 = arith.maximumf %88, %89 : vector<1x128xf32>
    %cst_62 = arith.constant 9.99999974E-6 : f32
    %91 = vector.broadcast %cst_62 : f32 to vector<1x128xf32>
    %92 = arith.addf %90, %91 : vector<1x128xf32>
    %93 = math.rsqrt %92 : vector<1x128xf32>
    %94 = vector.broadcast %81 : vector<1x128xf32> to vector<64x128xf32>
    %95 = arith.subf %77, %94 : vector<64x128xf32>
    %96 = vector.broadcast %93 : vector<1x128xf32> to vector<64x128xf32>
    %97 = arith.mulf %95, %96 : vector<64x128xf32>
    %98 = arith.truncf %97 : vector<64x128xf32> to vector<64x128xbf16>
    %c64 = arith.constant 64 : index
    %c0_63 = arith.constant 0 : index
    %99 = vector.load %arg9[%c64, %c0_63] : memref<128x128xbf16, #tpu.memory_space<vmem>>, vector<64x128xbf16>
    tpu.vector_store %arg9[%c64, %c0_63], %98 {strides = array<i32>} : memref<128x128xbf16, #tpu.memory_space<vmem>>, vector<64x128xbf16>,
    return
  }
  func.func @transform_0(%arg0: i32) -> (i32, i32) {
    %c0_i32 = arith.constant 0 : i32
    %c0_i32_0 = arith.constant 0 : i32
    return %arg0, %c0_i32 : i32, i32
  }
  func.func @transform_1(%arg0: i32) -> (i32, i32) {
    %c0_i32 = arith.constant 0 : i32
    %c0_i32_0 = arith.constant 0 : i32
    return %arg0, %c0_i32 : i32, i32
  }
  func.func @transform_2(%arg0: i32) -> (i32, i32) {
    %c0_i32 = arith.constant 0 : i32
    %c0_i32_0 = arith.constant 0 : i32
    return %arg0, %c0_i32 : i32, i32
  }
  func.func @transform_3(%arg0: i32) -> (i32, i32) {
    %c0_i32 = arith.constant 0 : i32
    %c0_i32_0 = arith.constant 0 : i32
    return %arg0, %c0_i32 : i32, i32
  }
  func.func @transform_4(%arg0: i32) -> (i32, i32) {
    %c0_i32 = arith.constant 0 : i32
    %c0_i32_0 = arith.constant 0 : i32
    return %arg0, %c0_i32 : i32, i32
  }
  func.func @transform_5(%arg0: i32) -> (i32, i32) {
    %c0_i32 = arith.constant 0 : i32
    %c0_i32_0 = arith.constant 0 : i32
    return %arg0, %c0_i32 : i32, i32
  }
  func.func @transform_6(%arg0: i32) -> (i32, i32, i32) {
    %c0_i32 = arith.constant 0 : i32
    %c0_i32_0 = arith.constant 0 : i32
    %c0_i32_1 = arith.constant 0 : i32
    %c0_i32_2 = arith.constant 0 : i32
    return %c0_i32, %c0_i32_0, %c0_i32_1 : i32, i32, i32
  }
  func.func @transform_7(%arg0: i32) -> (i32, i32) {
    %c0_i32 = arith.constant 0 : i32
    %c0_i32_0 = arith.constant 0 : i32
    %c0_i32_1 = arith.constant 0 : i32
    return %c0_i32, %c0_i32_0 : i32, i32
  }
  func.func @transform_8(%arg0: i32) -> (i32, i32) {
    %c0_i32 = arith.constant 0 : i32
    %c0_i32_0 = arith.constant 0 : i32
    return %arg0, %c0_i32 : i32, i32
  }
}

module attributes {stable_mosaic.version = 11 : i64} {
  func.func @_fused_conv_in_kernel(%arg0: i32, %arg1: memref<16x256xbf16, #tpu.memory_space<vmem>>, %arg2: memref<16x256xbf16, #tpu.memory_space<vmem>>, %arg3: memref<16x256xbf16, #tpu.memory_space<vmem>>, %arg4: memref<16x256xbf16, #tpu.memory_space<vmem>>, %arg5: memref<16x256xbf16, #tpu.memory_space<vmem>>, %arg6: memref<16x256xbf16, #tpu.memory_space<vmem>>, %arg7: memref<9x256x512xbf16, #tpu.memory_space<vmem>>, %arg8: memref<1x512xf32, #tpu.memory_space<vmem>>, %arg9: memref<16x512xbf16, #tpu.memory_space<vmem>>) attributes {dimension_semantics = [#tpu.dimension_semantics<parallel>], iteration_bounds = array<i64: 1>, scalar_prefetch = 0 : i64, scratch_operands = 0 : i64, tpu.core_type = #tpu.core_type<tc>, window_params = [{transform_indices = @transform_0, window_bounds = array<i64: 16, 256>}, {transform_indices = @transform_1, window_bounds = array<i64: 16, 256>}, {transform_indices = @transform_2, window_bounds = array<i64: 16, 256>}, {transform_indices = @transform_3, window_bounds = array<i64: 16, 256>}, {transform_indices = @transform_4, window_bounds = array<i64: 16, 256>}, {transform_indices = @transform_5, window_bounds = array<i64: 16, 256>}, {pipeline_mode = #tpu.pipeline_mode<synchronous>, transform_indices = @transform_6, window_bounds = array<i64: 9, 256, 512>}, {pipeline_mode = #tpu.pipeline_mode<synchronous>, transform_indices = @transform_7, window_bounds = array<i64: 1, 512>}, {transform_indices = @transform_8, window_bounds = array<i64: 16, 512>}]} {
    %cst = arith.constant 0.000000e+00 : f32
    %0 = vector.broadcast %cst : f32 to vector<12x512xf32>
    %c0 = arith.constant 0 : index
    %c0_0 = arith.constant 0 : index
    %1 = vector.load %arg1[%c0, %c0_0] : memref<16x256xbf16, #tpu.memory_space<vmem>>, vector<12x256xbf16>
    %c0_1 = arith.constant 0 : index
    %c0_2 = arith.constant 0 : index
    %c0_3 = arith.constant 0 : index
    %2 = vector.load %arg7[%c0_1, %c0_2, %c0_3] : memref<9x256x512xbf16, #tpu.memory_space<vmem>>, vector<1x256x512xbf16>
    %3 = vector.shape_cast %2 : vector<1x256x512xbf16> to vector<256x512xbf16>
    %cst_4 = arith.constant dense<0.000000e+00> : vector<12x512xf32>
    %4 = tpu.matmul %1, %3, %cst_4 {dimension_numbers = #tpu.dot_dimension_numbers<[1], [0], [0], [1], [0, 0, 1, 1], [], []>} : vector<12x256xbf16>, vector<256x512xbf16>, vector<12x512xf32> -> vector<12x512xf32>
    %5 = arith.addf %0, %4 : vector<12x512xf32>
    %c0_5 = arith.constant 0 : index
    %c0_6 = arith.constant 0 : index
    %6 = vector.load %arg3[%c0_5, %c0_6] : memref<16x256xbf16, #tpu.memory_space<vmem>>, vector<12x256xbf16>
    %c1 = arith.constant 1 : index
    %c0_7 = arith.constant 0 : index
    %c0_8 = arith.constant 0 : index
    %7 = vector.load %arg7[%c1, %c0_7, %c0_8] : memref<9x256x512xbf16, #tpu.memory_space<vmem>>, vector<1x256x512xbf16>
    %8 = vector.shape_cast %7 : vector<1x256x512xbf16> to vector<256x512xbf16>
    %cst_9 = arith.constant dense<0.000000e+00> : vector<12x512xf32>
    %9 = tpu.matmul %6, %8, %cst_9 {dimension_numbers = #tpu.dot_dimension_numbers<[1], [0], [0], [1], [0, 0, 1, 1], [], []>} : vector<12x256xbf16>, vector<256x512xbf16>, vector<12x512xf32> -> vector<12x512xf32>
    %10 = arith.addf %5, %9 : vector<12x512xf32>
    %c0_10 = arith.constant 0 : index
    %c0_11 = arith.constant 0 : index
    %11 = vector.load %arg2[%c0_10, %c0_11] : memref<16x256xbf16, #tpu.memory_space<vmem>>, vector<12x256xbf16>
    %c2 = arith.constant 2 : index
    %c0_12 = arith.constant 0 : index
    %c0_13 = arith.constant 0 : index
    %12 = vector.load %arg7[%c2, %c0_12, %c0_13] : memref<9x256x512xbf16, #tpu.memory_space<vmem>>, vector<1x256x512xbf16>
    %13 = vector.shape_cast %12 : vector<1x256x512xbf16> to vector<256x512xbf16>
    %cst_14 = arith.constant dense<0.000000e+00> : vector<12x512xf32>
    %14 = tpu.matmul %11, %13, %cst_14 {dimension_numbers = #tpu.dot_dimension_numbers<[1], [0], [0], [1], [0, 0, 1, 1], [], []>} : vector<12x256xbf16>, vector<256x512xbf16>, vector<12x512xf32> -> vector<12x512xf32>
    %15 = arith.addf %10, %14 : vector<12x512xf32>
    %c0_15 = arith.constant 0 : index
    %c0_16 = arith.constant 0 : index
    %16 = vector.load %arg4[%c0_15, %c0_16] : memref<16x256xbf16, #tpu.memory_space<vmem>>, vector<12x256xbf16>
    %c3 = arith.constant 3 : index
    %c0_17 = arith.constant 0 : index
    %c0_18 = arith.constant 0 : index
    %17 = vector.load %arg7[%c3, %c0_17, %c0_18] : memref<9x256x512xbf16, #tpu.memory_space<vmem>>, vector<1x256x512xbf16>
    %18 = vector.shape_cast %17 : vector<1x256x512xbf16> to vector<256x512xbf16>
    %cst_19 = arith.constant dense<0.000000e+00> : vector<12x512xf32>
    %19 = tpu.matmul %16, %18, %cst_19 {dimension_numbers = #tpu.dot_dimension_numbers<[1], [0], [0], [1], [0, 0, 1, 1], [], []>} : vector<12x256xbf16>, vector<256x512xbf16>, vector<12x512xf32> -> vector<12x512xf32>
    %20 = arith.addf %15, %19 : vector<12x512xf32>
    %c0_20 = arith.constant 0 : index
    %c0_21 = arith.constant 0 : index
    %21 = vector.load %arg6[%c0_20, %c0_21] : memref<16x256xbf16, #tpu.memory_space<vmem>>, vector<12x256xbf16>
    %c4 = arith.constant 4 : index
    %c0_22 = arith.constant 0 : index
    %c0_23 = arith.constant 0 : index
    %22 = vector.load %arg7[%c4, %c0_22, %c0_23] : memref<9x256x512xbf16, #tpu.memory_space<vmem>>, vector<1x256x512xbf16>
    %23 = vector.shape_cast %22 : vector<1x256x512xbf16> to vector<256x512xbf16>
    %cst_24 = arith.constant dense<0.000000e+00> : vector<12x512xf32>
    %24 = tpu.matmul %21, %23, %cst_24 {dimension_numbers = #tpu.dot_dimension_numbers<[1], [0], [0], [1], [0, 0, 1, 1], [], []>} : vector<12x256xbf16>, vector<256x512xbf16>, vector<12x512xf32> -> vector<12x512xf32>
    %25 = arith.addf %20, %24 : vector<12x512xf32>
    %c0_25 = arith.constant 0 : index
    %c0_26 = arith.constant 0 : index
    %26 = vector.load %arg5[%c0_25, %c0_26] : memref<16x256xbf16, #tpu.memory_space<vmem>>, vector<12x256xbf16>
    %c5 = arith.constant 5 : index
    %c0_27 = arith.constant 0 : index
    %c0_28 = arith.constant 0 : index
    %27 = vector.load %arg7[%c5, %c0_27, %c0_28] : memref<9x256x512xbf16, #tpu.memory_space<vmem>>, vector<1x256x512xbf16>
    %28 = vector.shape_cast %27 : vector<1x256x512xbf16> to vector<256x512xbf16>
    %cst_29 = arith.constant dense<0.000000e+00> : vector<12x512xf32>
    %29 = tpu.matmul %26, %28, %cst_29 {dimension_numbers = #tpu.dot_dimension_numbers<[1], [0], [0], [1], [0, 0, 1, 1], [], []>} : vector<12x256xbf16>, vector<256x512xbf16>, vector<12x512xf32> -> vector<12x512xf32>
    %30 = arith.addf %25, %29 : vector<12x512xf32>
    %c2_30 = arith.constant 2 : index
    %c0_31 = arith.constant 0 : index
    %31 = vector.load %arg1[%c2_30, %c0_31] : memref<16x256xbf16, #tpu.memory_space<vmem>>, vector<12x256xbf16>
    %c6 = arith.constant 6 : index
    %c0_32 = arith.constant 0 : index
    %c0_33 = arith.constant 0 : index
    %32 = vector.load %arg7[%c6, %c0_32, %c0_33] : memref<9x256x512xbf16, #tpu.memory_space<vmem>>, vector<1x256x512xbf16>
    %33 = vector.shape_cast %32 : vector<1x256x512xbf16> to vector<256x512xbf16>
    %cst_34 = arith.constant dense<0.000000e+00> : vector<12x512xf32>
    %34 = tpu.matmul %31, %33, %cst_34 {dimension_numbers = #tpu.dot_dimension_numbers<[1], [0], [0], [1], [0, 0, 1, 1], [], []>} : vector<12x256xbf16>, vector<256x512xbf16>, vector<12x512xf32> -> vector<12x512xf32>
    %35 = arith.addf %30, %34 : vector<12x512xf32>
    %c2_35 = arith.constant 2 : index
    %c0_36 = arith.constant 0 : index
    %36 = vector.load %arg3[%c2_35, %c0_36] : memref<16x256xbf16, #tpu.memory_space<vmem>>, vector<12x256xbf16>
    %c7 = arith.constant 7 : index
    %c0_37 = arith.constant 0 : index
    %c0_38 = arith.constant 0 : index
    %37 = vector.load %arg7[%c7, %c0_37, %c0_38] : memref<9x256x512xbf16, #tpu.memory_space<vmem>>, vector<1x256x512xbf16>
    %38 = vector.shape_cast %37 : vector<1x256x512xbf16> to vector<256x512xbf16>
    %cst_39 = arith.constant dense<0.000000e+00> : vector<12x512xf32>
    %39 = tpu.matmul %36, %38, %cst_39 {dimension_numbers = #tpu.dot_dimension_numbers<[1], [0], [0], [1], [0, 0, 1, 1], [], []>} : vector<12x256xbf16>, vector<256x512xbf16>, vector<12x512xf32> -> vector<12x512xf32>
    %40 = arith.addf %35, %39 : vector<12x512xf32>
    %c2_40 = arith.constant 2 : index
    %c0_41 = arith.constant 0 : index
    %41 = vector.load %arg2[%c2_40, %c0_41] : memref<16x256xbf16, #tpu.memory_space<vmem>>, vector<12x256xbf16>
    %c8 = arith.constant 8 : index
    %c0_42 = arith.constant 0 : index
    %c0_43 = arith.constant 0 : index
    %42 = vector.load %arg7[%c8, %c0_42, %c0_43] : memref<9x256x512xbf16, #tpu.memory_space<vmem>>, vector<1x256x512xbf16>
    %43 = vector.shape_cast %42 : vector<1x256x512xbf16> to vector<256x512xbf16>
    %cst_44 = arith.constant dense<0.000000e+00> : vector<12x512xf32>
    %44 = tpu.matmul %41, %43, %cst_44 {dimension_numbers = #tpu.dot_dimension_numbers<[1], [0], [0], [1], [0, 0, 1, 1], [], []>} : vector<12x256xbf16>, vector<256x512xbf16>, vector<12x512xf32> -> vector<12x512xf32>
    %45 = arith.addf %40, %44 : vector<12x512xf32>
    %c0_45 = arith.constant 0 : index
    %c0_46 = arith.constant 0 : index
    %46 = vector.load %arg8[%c0_45, %c0_46] : memref<1x512xf32, #tpu.memory_space<vmem>>, vector<1x512xf32>
    %47 = vector.broadcast %46 : vector<1x512xf32> to vector<12x512xf32>
    %48 = arith.addf %45, %47 : vector<12x512xf32>
    %cst_47 = arith.constant 0.000000e+00 : f32
    %49 = vector.broadcast %cst_47 : f32 to vector<12x512xf32>
    %50 = arith.cmpf ogt, %48, %49 : vector<12x512xf32>
    %cst_48 = arith.constant 2.000000e-01 : f32
    %51 = vector.broadcast %cst_48 : f32 to vector<12x512xf32>
    %52 = arith.mulf %51, %48 : vector<12x512xf32>
    %53 = arith.select %50, %48, %52 : vector<12x512xi1>, vector<12x512xf32>
    %54 = vector.extract_strided_slice %53 {offsets = [0, 0], sizes = [4, 512], strides = [1, 1]} : vector<12x512xf32> to vector<4x512xf32>
    %cst_49 = arith.constant dense<0.000000e+00> : vector<512xf32>
    %55 = vector.multi_reduction <add>, %54, %cst_49 [0] : vector<4x512xf32> to vector<512xf32>
    %56 = vector.shape_cast %55 : vector<512xf32> to vector<1x512xf32>
    %cst_50 = arith.constant 2.500000e-01 : f32
    %57 = vector.broadcast %cst_50 : f32 to vector<1x512xf32>
    %58 = arith.mulf %56, %57 : vector<1x512xf32>
    %59 = arith.mulf %54, %54 : vector<4x512xf32>
    %cst_51 = arith.constant dense<0.000000e+00> : vector<512xf32>
    %60 = vector.multi_reduction <add>, %59, %cst_51 [0] : vector<4x512xf32> to vector<512xf32>
    %61 = vector.shape_cast %60 : vector<512xf32> to vector<1x512xf32>
    %cst_52 = arith.constant 2.500000e-01 : f32
    %62 = vector.broadcast %cst_52 : f32 to vector<1x512xf32>
    %63 = arith.mulf %61, %62 : vector<1x512xf32>
    %64 = arith.mulf %58, %58 : vector<1x512xf32>
    %65 = arith.subf %63, %64 : vector<1x512xf32>
    %cst_53 = arith.constant 0.000000e+00 : f32
    %66 = vector.broadcast %cst_53 : f32 to vector<1x512xf32>
    %67 = arith.maximumf %65, %66 : vector<1x512xf32>
    %cst_54 = arith.constant 9.99999974E-6 : f32
    %68 = vector.broadcast %cst_54 : f32 to vector<1x512xf32>
    %69 = arith.addf %67, %68 : vector<1x512xf32>
    %70 = math.rsqrt %69 : vector<1x512xf32>
    %71 = vector.broadcast %58 : vector<1x512xf32> to vector<4x512xf32>
    %72 = arith.subf %54, %71 : vector<4x512xf32>
    %73 = vector.broadcast %70 : vector<1x512xf32> to vector<4x512xf32>
    %74 = arith.mulf %72, %73 : vector<4x512xf32>
    %75 = arith.truncf %74 : vector<4x512xf32> to vector<4x512xbf16>
    %c0_55 = arith.constant 0 : index
    %c0_56 = arith.constant 0 : index
    %76 = vector.load %arg9[%c0_55, %c0_56] : memref<16x512xbf16, #tpu.memory_space<vmem>>, vector<4x512xbf16>
    tpu.vector_store %arg9[%c0_55, %c0_56], %75 {strides = array<i32>} : memref<16x512xbf16, #tpu.memory_space<vmem>>, vector<4x512xbf16>,
    %cst_57 = arith.constant 0.000000e+00 : bf16
    %77 = vector.broadcast %cst_57 : bf16 to vector<4x512xbf16>
    %c4_58 = arith.constant 4 : index
    %c0_59 = arith.constant 0 : index
    %78 = vector.load %arg9[%c4_58, %c0_59] : memref<16x512xbf16, #tpu.memory_space<vmem>>, vector<4x512xbf16>
    tpu.vector_store %arg9[%c4_58, %c0_59], %77 {strides = array<i32>} : memref<16x512xbf16, #tpu.memory_space<vmem>>, vector<4x512xbf16>,
    %79 = vector.extract_strided_slice %53 {offsets = [8, 0], sizes = [4, 512], strides = [1, 1]} : vector<12x512xf32> to vector<4x512xf32>
    %cst_60 = arith.constant dense<0.000000e+00> : vector<512xf32>
    %80 = vector.multi_reduction <add>, %79, %cst_60 [0] : vector<4x512xf32> to vector<512xf32>
    %81 = vector.shape_cast %80 : vector<512xf32> to vector<1x512xf32>
    %cst_61 = arith.constant 2.500000e-01 : f32
    %82 = vector.broadcast %cst_61 : f32 to vector<1x512xf32>
    %83 = arith.mulf %81, %82 : vector<1x512xf32>
    %84 = arith.mulf %79, %79 : vector<4x512xf32>
    %cst_62 = arith.constant dense<0.000000e+00> : vector<512xf32>
    %85 = vector.multi_reduction <add>, %84, %cst_62 [0] : vector<4x512xf32> to vector<512xf32>
    %86 = vector.shape_cast %85 : vector<512xf32> to vector<1x512xf32>
    %cst_63 = arith.constant 2.500000e-01 : f32
    %87 = vector.broadcast %cst_63 : f32 to vector<1x512xf32>
    %88 = arith.mulf %86, %87 : vector<1x512xf32>
    %89 = arith.mulf %83, %83 : vector<1x512xf32>
    %90 = arith.subf %88, %89 : vector<1x512xf32>
    %cst_64 = arith.constant 0.000000e+00 : f32
    %91 = vector.broadcast %cst_64 : f32 to vector<1x512xf32>
    %92 = arith.maximumf %90, %91 : vector<1x512xf32>
    %cst_65 = arith.constant 9.99999974E-6 : f32
    %93 = vector.broadcast %cst_65 : f32 to vector<1x512xf32>
    %94 = arith.addf %92, %93 : vector<1x512xf32>
    %95 = math.rsqrt %94 : vector<1x512xf32>
    %96 = vector.broadcast %83 : vector<1x512xf32> to vector<4x512xf32>
    %97 = arith.subf %79, %96 : vector<4x512xf32>
    %98 = vector.broadcast %95 : vector<1x512xf32> to vector<4x512xf32>
    %99 = arith.mulf %97, %98 : vector<4x512xf32>
    %100 = arith.truncf %99 : vector<4x512xf32> to vector<4x512xbf16>
    %c8_66 = arith.constant 8 : index
    %c0_67 = arith.constant 0 : index
    %101 = vector.load %arg9[%c8_66, %c0_67] : memref<16x512xbf16, #tpu.memory_space<vmem>>, vector<4x512xbf16>
    tpu.vector_store %arg9[%c8_66, %c0_67], %100 {strides = array<i32>} : memref<16x512xbf16, #tpu.memory_space<vmem>>, vector<4x512xbf16>,
    %cst_68 = arith.constant 0.000000e+00 : bf16
    %102 = vector.broadcast %cst_68 : bf16 to vector<4x512xbf16>
    %c12 = arith.constant 12 : index
    %c0_69 = arith.constant 0 : index
    %103 = vector.load %arg9[%c12, %c0_69] : memref<16x512xbf16, #tpu.memory_space<vmem>>, vector<4x512xbf16>
    tpu.vector_store %arg9[%c12, %c0_69], %102 {strides = array<i32>} : memref<16x512xbf16, #tpu.memory_space<vmem>>, vector<4x512xbf16>,
    return
  }
  func.func @transform_0(%arg0: i32) -> (i32, i32) {
    %c0_i32 = arith.constant 0 : i32
    %c0_i32_0 = arith.constant 0 : i32
    return %arg0, %c0_i32 : i32, i32
  }
  func.func @transform_1(%arg0: i32) -> (i32, i32) {
    %c0_i32 = arith.constant 0 : i32
    %c0_i32_0 = arith.constant 0 : i32
    return %arg0, %c0_i32 : i32, i32
  }
  func.func @transform_2(%arg0: i32) -> (i32, i32) {
    %c0_i32 = arith.constant 0 : i32
    %c0_i32_0 = arith.constant 0 : i32
    return %arg0, %c0_i32 : i32, i32
  }
  func.func @transform_3(%arg0: i32) -> (i32, i32) {
    %c0_i32 = arith.constant 0 : i32
    %c0_i32_0 = arith.constant 0 : i32
    return %arg0, %c0_i32 : i32, i32
  }
  func.func @transform_4(%arg0: i32) -> (i32, i32) {
    %c0_i32 = arith.constant 0 : i32
    %c0_i32_0 = arith.constant 0 : i32
    return %arg0, %c0_i32 : i32, i32
  }
  func.func @transform_5(%arg0: i32) -> (i32, i32) {
    %c0_i32 = arith.constant 0 : i32
    %c0_i32_0 = arith.constant 0 : i32
    return %arg0, %c0_i32 : i32, i32
  }
  func.func @transform_6(%arg0: i32) -> (i32, i32, i32) {
    %c0_i32 = arith.constant 0 : i32
    %c0_i32_0 = arith.constant 0 : i32
    %c0_i32_1 = arith.constant 0 : i32
    %c0_i32_2 = arith.constant 0 : i32
    return %c0_i32, %c0_i32_0, %c0_i32_1 : i32, i32, i32
  }
  func.func @transform_7(%arg0: i32) -> (i32, i32) {
    %c0_i32 = arith.constant 0 : i32
    %c0_i32_0 = arith.constant 0 : i32
    %c0_i32_1 = arith.constant 0 : i32
    return %c0_i32, %c0_i32_0 : i32, i32
  }
  func.func @transform_8(%arg0: i32) -> (i32, i32) {
    %c0_i32 = arith.constant 0 : i32
    %c0_i32_0 = arith.constant 0 : i32
    return %arg0, %c0_i32 : i32, i32
  }
}

module attributes {stable_mosaic.version = 11 : i64} {
  func.func @_fused_conv_in_kernel(%arg0: i32, %arg1: memref<48x128xbf16, #tpu.memory_space<vmem>>, %arg2: memref<48x128xbf16, #tpu.memory_space<vmem>>, %arg3: memref<48x128xbf16, #tpu.memory_space<vmem>>, %arg4: memref<48x128xbf16, #tpu.memory_space<vmem>>, %arg5: memref<48x128xbf16, #tpu.memory_space<vmem>>, %arg6: memref<48x128xbf16, #tpu.memory_space<vmem>>, %arg7: memref<9x128x256xbf16, #tpu.memory_space<vmem>>, %arg8: memref<1x256xf32, #tpu.memory_space<vmem>>, %arg9: memref<32x256xbf16, #tpu.memory_space<vmem>>) attributes {dimension_semantics = [#tpu.dimension_semantics<parallel>], iteration_bounds = array<i64: 1>, scalar_prefetch = 0 : i64, scratch_operands = 0 : i64, tpu.core_type = #tpu.core_type<tc>, window_params = [{transform_indices = @transform_0, window_bounds = array<i64: 48, 128>}, {transform_indices = @transform_1, window_bounds = array<i64: 48, 128>}, {transform_indices = @transform_2, window_bounds = array<i64: 48, 128>}, {transform_indices = @transform_3, window_bounds = array<i64: 48, 128>}, {transform_indices = @transform_4, window_bounds = array<i64: 48, 128>}, {transform_indices = @transform_5, window_bounds = array<i64: 48, 128>}, {pipeline_mode = #tpu.pipeline_mode<synchronous>, transform_indices = @transform_6, window_bounds = array<i64: 9, 128, 256>}, {pipeline_mode = #tpu.pipeline_mode<synchronous>, transform_indices = @transform_7, window_bounds = array<i64: 1, 256>}, {transform_indices = @transform_8, window_bounds = array<i64: 32, 256>}]} {
    %cst = arith.constant 0.000000e+00 : f32
    %0 = vector.broadcast %cst : f32 to vector<40x256xf32>
    %c0 = arith.constant 0 : index
    %c0_0 = arith.constant 0 : index
    %1 = vector.load %arg1[%c0, %c0_0] : memref<48x128xbf16, #tpu.memory_space<vmem>>, vector<40x128xbf16>
    %c0_1 = arith.constant 0 : index
    %c0_2 = arith.constant 0 : index
    %c0_3 = arith.constant 0 : index
    %2 = vector.load %arg7[%c0_1, %c0_2, %c0_3] : memref<9x128x256xbf16, #tpu.memory_space<vmem>>, vector<1x128x256xbf16>
    %3 = vector.shape_cast %2 : vector<1x128x256xbf16> to vector<128x256xbf16>
    %cst_4 = arith.constant dense<0.000000e+00> : vector<40x256xf32>
    %4 = tpu.matmul %1, %3, %cst_4 {dimension_numbers = #tpu.dot_dimension_numbers<[1], [0], [0], [1], [0, 0, 1, 1], [], []>} : vector<40x128xbf16>, vector<128x256xbf16>, vector<40x256xf32> -> vector<40x256xf32>
    %5 = arith.addf %0, %4 : vector<40x256xf32>
    %c0_5 = arith.constant 0 : index
    %c0_6 = arith.constant 0 : index
    %6 = vector.load %arg3[%c0_5, %c0_6] : memref<48x128xbf16, #tpu.memory_space<vmem>>, vector<40x128xbf16>
    %c1 = arith.constant 1 : index
    %c0_7 = arith.constant 0 : index
    %c0_8 = arith.constant 0 : index
    %7 = vector.load %arg7[%c1, %c0_7, %c0_8] : memref<9x128x256xbf16, #tpu.memory_space<vmem>>, vector<1x128x256xbf16>
    %8 = vector.shape_cast %7 : vector<1x128x256xbf16> to vector<128x256xbf16>
    %cst_9 = arith.constant dense<0.000000e+00> : vector<40x256xf32>
    %9 = tpu.matmul %6, %8, %cst_9 {dimension_numbers = #tpu.dot_dimension_numbers<[1], [0], [0], [1], [0, 0, 1, 1], [], []>} : vector<40x128xbf16>, vector<128x256xbf16>, vector<40x256xf32> -> vector<40x256xf32>
    %10 = arith.addf %5, %9 : vector<40x256xf32>
    %c0_10 = arith.constant 0 : index
    %c0_11 = arith.constant 0 : index
    %11 = vector.load %arg2[%c0_10, %c0_11] : memref<48x128xbf16, #tpu.memory_space<vmem>>, vector<40x128xbf16>
    %c2 = arith.constant 2 : index
    %c0_12 = arith.constant 0 : index
    %c0_13 = arith.constant 0 : index
    %12 = vector.load %arg7[%c2, %c0_12, %c0_13] : memref<9x128x256xbf16, #tpu.memory_space<vmem>>, vector<1x128x256xbf16>
    %13 = vector.shape_cast %12 : vector<1x128x256xbf16> to vector<128x256xbf16>
    %cst_14 = arith.constant dense<0.000000e+00> : vector<40x256xf32>
    %14 = tpu.matmul %11, %13, %cst_14 {dimension_numbers = #tpu.dot_dimension_numbers<[1], [0], [0], [1], [0, 0, 1, 1], [], []>} : vector<40x128xbf16>, vector<128x256xbf16>, vector<40x256xf32> -> vector<40x256xf32>
    %15 = arith.addf %10, %14 : vector<40x256xf32>
    %c0_15 = arith.constant 0 : index
    %c0_16 = arith.constant 0 : index
    %16 = vector.load %arg4[%c0_15, %c0_16] : memref<48x128xbf16, #tpu.memory_space<vmem>>, vector<40x128xbf16>
    %c3 = arith.constant 3 : index
    %c0_17 = arith.constant 0 : index
    %c0_18 = arith.constant 0 : index
    %17 = vector.load %arg7[%c3, %c0_17, %c0_18] : memref<9x128x256xbf16, #tpu.memory_space<vmem>>, vector<1x128x256xbf16>
    %18 = vector.shape_cast %17 : vector<1x128x256xbf16> to vector<128x256xbf16>
    %cst_19 = arith.constant dense<0.000000e+00> : vector<40x256xf32>
    %19 = tpu.matmul %16, %18, %cst_19 {dimension_numbers = #tpu.dot_dimension_numbers<[1], [0], [0], [1], [0, 0, 1, 1], [], []>} : vector<40x128xbf16>, vector<128x256xbf16>, vector<40x256xf32> -> vector<40x256xf32>
    %20 = arith.addf %15, %19 : vector<40x256xf32>
    %c0_20 = arith.constant 0 : index
    %c0_21 = arith.constant 0 : index
    %21 = vector.load %arg6[%c0_20, %c0_21] : memref<48x128xbf16, #tpu.memory_space<vmem>>, vector<40x128xbf16>
    %c4 = arith.constant 4 : index
    %c0_22 = arith.constant 0 : index
    %c0_23 = arith.constant 0 : index
    %22 = vector.load %arg7[%c4, %c0_22, %c0_23] : memref<9x128x256xbf16, #tpu.memory_space<vmem>>, vector<1x128x256xbf16>
    %23 = vector.shape_cast %22 : vector<1x128x256xbf16> to vector<128x256xbf16>
    %cst_24 = arith.constant dense<0.000000e+00> : vector<40x256xf32>
    %24 = tpu.matmul %21, %23, %cst_24 {dimension_numbers = #tpu.dot_dimension_numbers<[1], [0], [0], [1], [0, 0, 1, 1], [], []>} : vector<40x128xbf16>, vector<128x256xbf16>, vector<40x256xf32> -> vector<40x256xf32>
    %25 = arith.addf %20, %24 : vector<40x256xf32>
    %c0_25 = arith.constant 0 : index
    %c0_26 = arith.constant 0 : index
    %26 = vector.load %arg5[%c0_25, %c0_26] : memref<48x128xbf16, #tpu.memory_space<vmem>>, vector<40x128xbf16>
    %c5 = arith.constant 5 : index
    %c0_27 = arith.constant 0 : index
    %c0_28 = arith.constant 0 : index
    %27 = vector.load %arg7[%c5, %c0_27, %c0_28] : memref<9x128x256xbf16, #tpu.memory_space<vmem>>, vector<1x128x256xbf16>
    %28 = vector.shape_cast %27 : vector<1x128x256xbf16> to vector<128x256xbf16>
    %cst_29 = arith.constant dense<0.000000e+00> : vector<40x256xf32>
    %29 = tpu.matmul %26, %28, %cst_29 {dimension_numbers = #tpu.dot_dimension_numbers<[1], [0], [0], [1], [0, 0, 1, 1], [], []>} : vector<40x128xbf16>, vector<128x256xbf16>, vector<40x256xf32> -> vector<40x256xf32>
    %30 = arith.addf %25, %29 : vector<40x256xf32>
    %c4_30 = arith.constant 4 : index
    %c0_31 = arith.constant 0 : index
    %31 = vector.load %arg1[%c4_30, %c0_31] : memref<48x128xbf16, #tpu.memory_space<vmem>>, vector<40x128xbf16>
    %c6 = arith.constant 6 : index
    %c0_32 = arith.constant 0 : index
    %c0_33 = arith.constant 0 : index
    %32 = vector.load %arg7[%c6, %c0_32, %c0_33] : memref<9x128x256xbf16, #tpu.memory_space<vmem>>, vector<1x128x256xbf16>
    %33 = vector.shape_cast %32 : vector<1x128x256xbf16> to vector<128x256xbf16>
    %cst_34 = arith.constant dense<0.000000e+00> : vector<40x256xf32>
    %34 = tpu.matmul %31, %33, %cst_34 {dimension_numbers = #tpu.dot_dimension_numbers<[1], [0], [0], [1], [0, 0, 1, 1], [], []>} : vector<40x128xbf16>, vector<128x256xbf16>, vector<40x256xf32> -> vector<40x256xf32>
    %35 = arith.addf %30, %34 : vector<40x256xf32>
    %c4_35 = arith.constant 4 : index
    %c0_36 = arith.constant 0 : index
    %36 = vector.load %arg3[%c4_35, %c0_36] : memref<48x128xbf16, #tpu.memory_space<vmem>>, vector<40x128xbf16>
    %c7 = arith.constant 7 : index
    %c0_37 = arith.constant 0 : index
    %c0_38 = arith.constant 0 : index
    %37 = vector.load %arg7[%c7, %c0_37, %c0_38] : memref<9x128x256xbf16, #tpu.memory_space<vmem>>, vector<1x128x256xbf16>
    %38 = vector.shape_cast %37 : vector<1x128x256xbf16> to vector<128x256xbf16>
    %cst_39 = arith.constant dense<0.000000e+00> : vector<40x256xf32>
    %39 = tpu.matmul %36, %38, %cst_39 {dimension_numbers = #tpu.dot_dimension_numbers<[1], [0], [0], [1], [0, 0, 1, 1], [], []>} : vector<40x128xbf16>, vector<128x256xbf16>, vector<40x256xf32> -> vector<40x256xf32>
    %40 = arith.addf %35, %39 : vector<40x256xf32>
    %c4_40 = arith.constant 4 : index
    %c0_41 = arith.constant 0 : index
    %41 = vector.load %arg2[%c4_40, %c0_41] : memref<48x128xbf16, #tpu.memory_space<vmem>>, vector<40x128xbf16>
    %c8 = arith.constant 8 : index
    %c0_42 = arith.constant 0 : index
    %c0_43 = arith.constant 0 : index
    %42 = vector.load %arg7[%c8, %c0_42, %c0_43] : memref<9x128x256xbf16, #tpu.memory_space<vmem>>, vector<1x128x256xbf16>
    %43 = vector.shape_cast %42 : vector<1x128x256xbf16> to vector<128x256xbf16>
    %cst_44 = arith.constant dense<0.000000e+00> : vector<40x256xf32>
    %44 = tpu.matmul %41, %43, %cst_44 {dimension_numbers = #tpu.dot_dimension_numbers<[1], [0], [0], [1], [0, 0, 1, 1], [], []>} : vector<40x128xbf16>, vector<128x256xbf16>, vector<40x256xf32> -> vector<40x256xf32>
    %45 = arith.addf %40, %44 : vector<40x256xf32>
    %c0_45 = arith.constant 0 : index
    %c0_46 = arith.constant 0 : index
    %46 = vector.load %arg8[%c0_45, %c0_46] : memref<1x256xf32, #tpu.memory_space<vmem>>, vector<1x256xf32>
    %47 = vector.broadcast %46 : vector<1x256xf32> to vector<40x256xf32>
    %48 = arith.addf %45, %47 : vector<40x256xf32>
    %cst_47 = arith.constant 0.000000e+00 : f32
    %49 = vector.broadcast %cst_47 : f32 to vector<40x256xf32>
    %50 = arith.cmpf ogt, %48, %49 : vector<40x256xf32>
    %cst_48 = arith.constant 2.000000e-01 : f32
    %51 = vector.broadcast %cst_48 : f32 to vector<40x256xf32>
    %52 = arith.mulf %51, %48 : vector<40x256xf32>
    %53 = arith.select %50, %48, %52 : vector<40x256xi1>, vector<40x256xf32>
    %54 = vector.extract_strided_slice %53 {offsets = [0, 0], sizes = [16, 256], strides = [1, 1]} : vector<40x256xf32> to vector<16x256xf32>
    %cst_49 = arith.constant dense<0.000000e+00> : vector<256xf32>
    %55 = vector.multi_reduction <add>, %54, %cst_49 [0] : vector<16x256xf32> to vector<256xf32>
    %56 = vector.shape_cast %55 : vector<256xf32> to vector<1x256xf32>
    %cst_50 = arith.constant 6.250000e-02 : f32
    %57 = vector.broadcast %cst_50 : f32 to vector<1x256xf32>
    %58 = arith.mulf %56, %57 : vector<1x256xf32>
    %59 = arith.mulf %54, %54 : vector<16x256xf32>
    %cst_51 = arith.constant dense<0.000000e+00> : vector<256xf32>
    %60 = vector.multi_reduction <add>, %59, %cst_51 [0] : vector<16x256xf32> to vector<256xf32>
    %61 = vector.shape_cast %60 : vector<256xf32> to vector<1x256xf32>
    %cst_52 = arith.constant 6.250000e-02 : f32
    %62 = vector.broadcast %cst_52 : f32 to vector<1x256xf32>
    %63 = arith.mulf %61, %62 : vector<1x256xf32>
    %64 = arith.mulf %58, %58 : vector<1x256xf32>
    %65 = arith.subf %63, %64 : vector<1x256xf32>
    %cst_53 = arith.constant 0.000000e+00 : f32
    %66 = vector.broadcast %cst_53 : f32 to vector<1x256xf32>
    %67 = arith.maximumf %65, %66 : vector<1x256xf32>
    %cst_54 = arith.constant 9.99999974E-6 : f32
    %68 = vector.broadcast %cst_54 : f32 to vector<1x256xf32>
    %69 = arith.addf %67, %68 : vector<1x256xf32>
    %70 = math.rsqrt %69 : vector<1x256xf32>
    %71 = vector.broadcast %58 : vector<1x256xf32> to vector<16x256xf32>
    %72 = arith.subf %54, %71 : vector<16x256xf32>
    %73 = vector.broadcast %70 : vector<1x256xf32> to vector<16x256xf32>
    %74 = arith.mulf %72, %73 : vector<16x256xf32>
    %75 = arith.truncf %74 : vector<16x256xf32> to vector<16x256xbf16>
    %c0_55 = arith.constant 0 : index
    %c0_56 = arith.constant 0 : index
    %76 = vector.load %arg9[%c0_55, %c0_56] : memref<32x256xbf16, #tpu.memory_space<vmem>>, vector<16x256xbf16>
    tpu.vector_store %arg9[%c0_55, %c0_56], %75 {strides = array<i32>} : memref<32x256xbf16, #tpu.memory_space<vmem>>, vector<16x256xbf16>,
    %77 = vector.extract_strided_slice %53 {offsets = [24, 0], sizes = [16, 256], strides = [1, 1]} : vector<40x256xf32> to vector<16x256xf32>
    %cst_57 = arith.constant dense<0.000000e+00> : vector<256xf32>
    %78 = vector.multi_reduction <add>, %77, %cst_57 [0] : vector<16x256xf32> to vector<256xf32>
    %79 = vector.shape_cast %78 : vector<256xf32> to vector<1x256xf32>
    %cst_58 = arith.constant 6.250000e-02 : f32
    %80 = vector.broadcast %cst_58 : f32 to vector<1x256xf32>
    %81 = arith.mulf %79, %80 : vector<1x256xf32>
    %82 = arith.mulf %77, %77 : vector<16x256xf32>
    %cst_59 = arith.constant dense<0.000000e+00> : vector<256xf32>
    %83 = vector.multi_reduction <add>, %82, %cst_59 [0] : vector<16x256xf32> to vector<256xf32>
    %84 = vector.shape_cast %83 : vector<256xf32> to vector<1x256xf32>
    %cst_60 = arith.constant 6.250000e-02 : f32
    %85 = vector.broadcast %cst_60 : f32 to vector<1x256xf32>
    %86 = arith.mulf %84, %85 : vector<1x256xf32>
    %87 = arith.mulf %81, %81 : vector<1x256xf32>
    %88 = arith.subf %86, %87 : vector<1x256xf32>
    %cst_61 = arith.constant 0.000000e+00 : f32
    %89 = vector.broadcast %cst_61 : f32 to vector<1x256xf32>
    %90 = arith.maximumf %88, %89 : vector<1x256xf32>
    %cst_62 = arith.constant 9.99999974E-6 : f32
    %91 = vector.broadcast %cst_62 : f32 to vector<1x256xf32>
    %92 = arith.addf %90, %91 : vector<1x256xf32>
    %93 = math.rsqrt %92 : vector<1x256xf32>
    %94 = vector.broadcast %81 : vector<1x256xf32> to vector<16x256xf32>
    %95 = arith.subf %77, %94 : vector<16x256xf32>
    %96 = vector.broadcast %93 : vector<1x256xf32> to vector<16x256xf32>
    %97 = arith.mulf %95, %96 : vector<16x256xf32>
    %98 = arith.truncf %97 : vector<16x256xf32> to vector<16x256xbf16>
    %c16 = arith.constant 16 : index
    %c0_63 = arith.constant 0 : index
    %99 = vector.load %arg9[%c16, %c0_63] : memref<32x256xbf16, #tpu.memory_space<vmem>>, vector<16x256xbf16>
    tpu.vector_store %arg9[%c16, %c0_63], %98 {strides = array<i32>} : memref<32x256xbf16, #tpu.memory_space<vmem>>, vector<16x256xbf16>,
    return
  }
  func.func @transform_0(%arg0: i32) -> (i32, i32) {
    %c0_i32 = arith.constant 0 : i32
    %c0_i32_0 = arith.constant 0 : i32
    return %arg0, %c0_i32 : i32, i32
  }
  func.func @transform_1(%arg0: i32) -> (i32, i32) {
    %c0_i32 = arith.constant 0 : i32
    %c0_i32_0 = arith.constant 0 : i32
    return %arg0, %c0_i32 : i32, i32
  }
  func.func @transform_2(%arg0: i32) -> (i32, i32) {
    %c0_i32 = arith.constant 0 : i32
    %c0_i32_0 = arith.constant 0 : i32
    return %arg0, %c0_i32 : i32, i32
  }
  func.func @transform_3(%arg0: i32) -> (i32, i32) {
    %c0_i32 = arith.constant 0 : i32
    %c0_i32_0 = arith.constant 0 : i32
    return %arg0, %c0_i32 : i32, i32
  }
  func.func @transform_4(%arg0: i32) -> (i32, i32) {
    %c0_i32 = arith.constant 0 : i32
    %c0_i32_0 = arith.constant 0 : i32
    return %arg0, %c0_i32 : i32, i32
  }
  func.func @transform_5(%arg0: i32) -> (i32, i32) {
    %c0_i32 = arith.constant 0 : i32
    %c0_i32_0 = arith.constant 0 : i32
    return %arg0, %c0_i32 : i32, i32
  }
  func.func @transform_6(%arg0: i32) -> (i32, i32, i32) {
    %c0_i32 = arith.constant 0 : i32
    %c0_i32_0 = arith.constant 0 : i32
    %c0_i32_1 = arith.constant 0 : i32
    %c0_i32_2 = arith.constant 0 : i32
    return %c0_i32, %c0_i32_0, %c0_i32_1 : i32, i32, i32
  }
  func.func @transform_7(%arg0: i32) -> (i32, i32) {
    %c0_i32 = arith.constant 0 : i32
    %c0_i32_0 = arith.constant 0 : i32
    %c0_i32_1 = arith.constant 0 : i32
    return %c0_i32, %c0_i32_0 : i32, i32
  }
  func.func @transform_8(%arg0: i32) -> (i32, i32) {
    %c0_i32 = arith.constant 0 : i32
    %c0_i32_0 = arith.constant 0 : i32
    return %arg0, %c0_i32 : i32, i32
  }
}

module attributes {stable_mosaic.version = 11 : i64} {
  func.func @_linear_kernel(%arg0: i32, %arg1: memref<2x2048xbf16, #tpu.memory_space<vmem>>, %arg2: memref<1x2048xf32, #tpu.memory_space<vmem>>, %arg3: memref<1x1xf32, #tpu.memory_space<vmem>>, %arg4: memref<2x1xf32, #tpu.memory_space<vmem>>) attributes {dimension_semantics = [#tpu.dimension_semantics<arbitrary>], iteration_bounds = array<i64: 1>, scalar_prefetch = 0 : i64, scratch_operands = 0 : i64, tpu.core_type = #tpu.core_type<tc>, window_params = [{transform_indices = @transform_0, window_bounds = array<i64: 2, 2048>}, {transform_indices = @transform_1, window_bounds = array<i64: 1, 2048>}, {pipeline_mode = #tpu.pipeline_mode<synchronous>, transform_indices = @transform_2, window_bounds = array<i64: 1, 1>}, {pipeline_mode = #tpu.pipeline_mode<synchronous>, transform_indices = @transform_3, window_bounds = array<i64: 2, 1>}]} {
    %c0_i32 = arith.constant 0 : i32
    %0 = arith.cmpi eq, %arg0, %c0_i32 : i32
    %1 = arith.extui %0 : i1 to i32
    %c0_i32_0 = arith.constant 0 : i32
    %2 = arith.cmpi ne, %1, %c0_i32_0 : i32
    scf.if %2 {
      %c0_8 = arith.constant 0 : index
      %c0_9 = arith.constant 0 : index
      %13 = vector.load %arg3[%c0_8, %c0_9] : memref<1x1xf32, #tpu.memory_space<vmem>>, vector<1x1xf32>
      %cst_10 = arith.constant 0.000000e+00 : f32
      %14 = vector.broadcast %cst_10 : f32 to vector<2x1xf32>
      %15 = vector.broadcast %13 : vector<1x1xf32> to vector<2x1xf32>
      %16 = arith.addf %15, %14 : vector<2x1xf32>
      %c0_11 = arith.constant 0 : index
      %c0_12 = arith.constant 0 : index
      %17 = vector.load %arg4[%c0_11, %c0_12] : memref<2x1xf32, #tpu.memory_space<vmem>>, vector<2x1xf32>
      tpu.vector_store %arg4[%c0_11, %c0_12], %16 {strides = array<i32>} : memref<2x1xf32, #tpu.memory_space<vmem>>, vector<2x1xf32>,
    } else {
    }
    %c0 = arith.constant 0 : index
    %c0_1 = arith.constant 0 : index
    %3 = vector.load %arg1[%c0, %c0_1] : memref<2x2048xbf16, #tpu.memory_space<vmem>>, vector<2x2048xbf16>
    %4 = arith.extf %3 : vector<2x2048xbf16> to vector<2x2048xf32>
    %c0_2 = arith.constant 0 : index
    %c0_3 = arith.constant 0 : index
    %5 = vector.load %arg2[%c0_2, %c0_3] : memref<1x2048xf32, #tpu.memory_space<vmem>>, vector<1x2048xf32>
    %c0_4 = arith.constant 0 : index
    %c0_5 = arith.constant 0 : index
    %6 = vector.load %arg4[%c0_4, %c0_5] : memref<2x1xf32, #tpu.memory_space<vmem>>, vector<2x1xf32>
    %7 = vector.broadcast %5 : vector<1x2048xf32> to vector<2x2048xf32>
    %8 = arith.mulf %4, %7 : vector<2x2048xf32>
    %cst = arith.constant dense<0.000000e+00> : vector<2xf32>
    %9 = vector.multi_reduction <add>, %8, %cst [1] : vector<2x2048xf32> to vector<2xf32>
    %10 = vector.shape_cast %9 : vector<2xf32> to vector<2x1xf32>
    %11 = arith.addf %6, %10 : vector<2x1xf32>
    %c0_6 = arith.constant 0 : index
    %c0_7 = arith.constant 0 : index
    %12 = vector.load %arg4[%c0_6, %c0_7] : memref<2x1xf32, #tpu.memory_space<vmem>>, vector<2x1xf32>
    tpu.vector_store %arg4[%c0_6, %c0_7], %11 {strides = array<i32>} : memref<2x1xf32, #tpu.memory_space<vmem>>, vector<2x1xf32>,
    return
  }
  func.func @transform_0(%arg0: i32) -> (i32, i32) {
    %c0_i32 = arith.constant 0 : i32
    %c0_i32_0 = arith.constant 0 : i32
    return %c0_i32, %arg0 : i32, i32
  }
  func.func @transform_1(%arg0: i32) -> (i32, i32) {
    %c0_i32 = arith.constant 0 : i32
    %c0_i32_0 = arith.constant 0 : i32
    return %c0_i32, %arg0 : i32, i32
  }
  func.func @transform_2(%arg0: i32) -> (i32, i32) {
    %c0_i32 = arith.constant 0 : i32
    %c0_i32_0 = arith.constant 0 : i32
    %c0_i32_1 = arith.constant 0 : i32
    return %c0_i32, %c0_i32_0 : i32, i32
  }
  func.func @transform_3(%arg0: i32) -> (i32, i32) {
    %c0_i32 = arith.constant 0 : i32
    %c0_i32_0 = arith.constant 0 : i32
    %c0_i32_1 = arith.constant 0 : i32
    return %c0_i32, %c0_i32_0 : i32, i32
  }
}

</mosaic_0001>

<llo_original>
// kernel: discriminator_forward.5
$region0: #{discriminator_forward.5}
  #allocation0 [shape = 'u32[]', space=smem, size = 0x4, offset = 0x4, fixed_abs, tag = 'smem constant byte address 0x4 - core index']
  #allocation1 [shape = 'u32[144,128]{1,0:T(1,128)}', space=vmem, size = 0x12000, scoped, tag = 'internal scratch']
  %s0 = inlined_call_operand.vmem [shape: bf16[512,27], index: 0, kind: input, shape index: {}]
  %s1 = inlined_call_operand.hbm [shape: bf16[27,64], index: 1, kind: input, shape index: {}]
  %s2 = inlined_call_operand.hbm [shape: f32[1,64], index: 2, kind: input, shape index: {}]
  %s3 = inlined_call_operand.vmem [shape: bf16[512,64], index: 3, kind: output, shape index: {}]
  %s4 = sld [smem:[#allocation0]]
  $region30: #{discriminator_forward.5} parent=0
    _
  %s6 = ssub.s32 1, %s4
  %s7 = scalar_select 0, %s6, %s4
  $region1: #{discriminator_forward.5} parent=0
    #allocation2 [shape = 'u8[8192]{0}', space=vmem, size = 0x2000, scoped, tag = 'input window, operand 1, single buffered']
    #allocation3 [shape = 's32[1]{0}', space=sflag, size = 0x4, scoped, tag = 'scoped memory for discriminator_forward.5']
    #allocation4 [shape = 'u8[512]{0}', space=vmem, size = 0x400, scoped, tag = 'input window, operand 2, single buffered']
    #allocation5 [shape = 's32[1]{0}', space=sflag, size = 0x4, scoped, tag = 'scoped memory for discriminator_forward.5']
    %8 = vsyncpa [#allocation3], 0
    %9 = vsyncpa [#allocation5], 0
    // Predicated region
    $region2: #{discriminator_forward.5} parent=1 // pred_check
      _
    $region3: #{discriminator_forward.5} parent=1 // pred_check_branch
      %11 = sbr.rel (0) target = $region5
    $region4: #{discriminator_forward.5} parent=1 // pred_region
      _
    $region5: #{discriminator_forward.5} parent=1 // pred_fallthru
      _
    // Predicated region
    $region6: #{discriminator_forward.5} parent=1 // pred_check
      _
    $region7: #{discriminator_forward.5} parent=1 // pred_check_branch
      %13 = sbr.rel (0) target = $region9
    $region8: #{discriminator_forward.5} parent=1 // pred_region
      %s15 = ssub.s32 256, 256
      %16 = vsyncadd [#allocation3], %s15
      %s17 = sshll.u32 [#allocation2], 4
      %s18 = int_to_ptr.vmem [resolvable:$true] %s17
      %23 = dma.hbm_to_vmem [thread:$0]  %s1, 256, %s18, [#allocation3], 64, 64, 4
    $region9: #{discriminator_forward.5} parent=1 // pred_fallthru
      _
    // Predicated region
    $region10: #{discriminator_forward.5} parent=1 // pred_check
      _
    $region11: #{discriminator_forward.5} parent=1 // pred_check_branch
      %25 = sbr.rel (0) target = $region13
    $region12: #{discriminator_forward.5} parent=1 // pred_region
      %s27 = ssub.s32 16, 16
      %28 = vsyncadd [#allocation5], %s27
      %s30 = sshll.u32 [#allocation4], 4
      %s31 = int_to_ptr.vmem [resolvable:$true] %s30
      %33 = dma.hbm_to_vmem [thread:$0]  %s2, 16, %s31, [#allocation5]
    $region13: #{discriminator_forward.5} parent=1 // pred_fallthru
      _
    // Predicated region
    $region14: #{discriminator_forward.5} parent=1 // pred_check
      _
    $region15: #{discriminator_forward.5} parent=1 // pred_check_branch
      %35 = sbr.rel (0) target = $region17
    $region16: #{discriminator_forward.5} parent=1 // pred_region
      %36 = dma.done [#allocation3], 256
    $region17: #{discriminator_forward.5} parent=1 // pred_fallthru
      _
    // Predicated region
    $region18: #{discriminator_forward.5} parent=1 // pred_check
      _
    $region19: #{discriminator_forward.5} parent=1 // pred_check_branch
      %38 = sbr.rel (0) target = $region21
    $region20: #{discriminator_forward.5} parent=1 // pred_region
      %39 = dma.done [#allocation5], 16
    $region21: #{discriminator_forward.5} parent=1 // pred_fallthru
      _
    %v41 = vld [vmem:[%s0] sm:$0xf]
    %v42 = vld [vmem:[%s0 + $0x4] sm:$0xf]
    %v43 = vld [vmem:[%s0 + $0x8] sm:$0xf]
    %v44 = vld [vmem:[%s0 + $0xc] sm:$0xf]
    %v45 = vld [vmem:[%s0 + $0x10] sm:$0xf]
    %v46 = vld [vmem:[%s0 + $0x14] sm:$0xf]
    %v47 = vld [vmem:[%s0 + $0x18] sm:$0xf]
    %v48 = vld [vmem:[%s0 + $0x1c] sm:$0xf]
    %v49 = vld [vmem:[%s0 + $0x20] sm:$0xf]
    %v50 = vld [vmem:[%s0 + $0x24] sm:$0xf]
    %v51 = vld [vmem:[%s0 + $0x28] sm:$0xf]
    %v52 = vld [vmem:[%s0 + $0x2c] sm:$0xf]
    %v53 = vld [vmem:[%s0 + $0x30] sm:$0xf]
    %v54 = vld [vmem:[%s0 + $0x34] sm:$0xf]
    %v55 = vld [vmem:[%s0 + $0x38] sm:$0xf]
    %v56 = vld [vmem:[%s0 + $0x3c] sm:$0xf]
    %v57 = vld [vmem:[%s0 + $0x40] sm:$0xf]
    %v58 = vld [vmem:[%s0 + $0x44] sm:$0xf]
    %v59 = vld [vmem:[%s0 + $0x48] sm:$0xf]
    %v60 = vld [vmem:[%s0 + $0x4c] sm:$0xf]
    %v61 = vld [vmem:[%s0 + $0x50] sm:$0xf]
    %v62 = vld [vmem:[%s0 + $0x54] sm:$0xf]
    %v63 = vld [vmem:[%s0 + $0x58] sm:$0xf]
    %v64 = vld [vmem:[%s0 + $0x5c] sm:$0xf]
    %v65 = vld [vmem:[%s0 + $0x60] sm:$0xf]
    %v66 = vld [vmem:[%s0 + $0x64] sm:$0xf]
    %v67 = vld [vmem:[%s0 + $0x68] sm:$0xf]
    %v68 = vld [vmem:[%s0 + $0x6c] sm:$0xf]
    %v69 = vld [vmem:[%s0 + $0x70] sm:$0xf]
    %v70 = vld [vmem:[%s0 + $0x74] sm:$0xf]
    %v71 = vld [vmem:[%s0 + $0x78] sm:$0xf]
    %v72 = vld [vmem:[%s0 + $0x7c] sm:$0xf]
    %v73 = vld [vmem:[%s0 + $0x80] sm:$0xf]
    %v74 = vld [vmem:[%s0 + $0x84] sm:$0xf]
    %v75 = vld [vmem:[%s0 + $0x88] sm:$0xf]
    %v76 = vld [vmem:[%s0 + $0x8c] sm:$0xf]
    %v77 = vld [vmem:[%s0 + $0x90] sm:$0xf]
    %v78 = vld [vmem:[%s0 + $0x94] sm:$0xf]
    %v79 = vld [vmem:[%s0 + $0x98] sm:$0xf]
    %v80 = vld [vmem:[%s0 + $0x9c] sm:$0xf]
    %v81 = vld [vmem:[%s0 + $0xa0] sm:$0xf]
    %v82 = vld [vmem:[%s0 + $0xa4] sm:$0xf]
    %v83 = vld [vmem:[%s0 + $0xa8] sm:$0xf]
    %v84 = vld [vmem:[%s0 + $0xac] sm:$0xf]
    %v85 = vld [vmem:[%s0 + $0xb0] sm:$0xf]
    %v86 = vld [vmem:[%s0 + $0xb4] sm:$0xf]
    %v87 = vld [vmem:[%s0 + $0xb8] sm:$0xf]
    %v88 = vld [vmem:[%s0 + $0xbc] sm:$0xf]
    %v89 = vld [vmem:[%s0 + $0xc0] sm:$0xf]
    %v90 = vld [vmem:[%s0 + $0xc4] sm:$0xf]
    %v91 = vld [vmem:[%s0 + $0xc8] sm:$0xf]
    %v92 = vld [vmem:[%s0 + $0xcc] sm:$0xf]
    %v93 = vld [vmem:[%s0 + $0xd0] sm:$0xf]
    %v94 = vld [vmem:[%s0 + $0xd4] sm:$0xf]
    %v95 = vld [vmem:[%s0 + $0xd8] sm:$0xf]
    %v96 = vld [vmem:[%s0 + $0xdc] sm:$0xf]
    %v97 = vld [vmem:[%s0 + $0xe0] sm:$0xf]
    %v98 = vld [vmem:[%s0 + $0xe4] sm:$0xf]
    %v99 = vld [vmem:[%s0 + $0xe8] sm:$0xf]
    %v100 = vld [vmem:[%s0 + $0xec] sm:$0xf]
    %v101 = vld [vmem:[%s0 + $0xf0] sm:$0xf]
    %v102 = vld [vmem:[%s0 + $0xf4] sm:$0xf]
    %v103 = vld [vmem:[%s0 + $0xf8] sm:$0xf]
    %v104 = vld [vmem:[%s0 + $0xfc] sm:$0xf]
    %v105 = vld [vmem:[#allocation2] sm:$0xf]
    %v106 = vld [vmem:[#allocation2 + $0x4] sm:$0xf]
    %v107 = vld [vmem:[#allocation2 + $0x8] sm:$0xf]
    %v108 = vld [vmem:[#allocation2 + $0xc] sm:$0x3]
    %v109 = vld [vmem:[#allocation4] sm:$0x1]
    %v111 = vlaneseq
    %v112 = vshrl.u32 %v111, 7
    %v113 = vsub.s32 0, %v112
    %v114 = vrot.slane %v109, %v113
    %v180 = vunpack.c.l.b16 %v41
    %v181 = vunpack.c.l.b16 %v42
    %v182 = vunpack.c.l.b16 %v43
    %v183 = vunpack.c.l.b16 %v44
    %v184 = vunpack.c.l.b16 %v45
    %v185 = vunpack.c.l.b16 %v46
    %v186 = vunpack.c.l.b16 %v47
    %v187 = vunpack.c.l.b16 %v48
    %v188 = vunpack.c.l.b16 %v49
    %v189 = vunpack.c.l.b16 %v50
    %v190 = vunpack.c.l.b16 %v51
    %v191 = vunpack.c.l.b16 %v52
    %v192 = vunpack.c.l.b16 %v53
    %v193 = vunpack.c.l.b16 %v54
    %v194 = vunpack.c.l.b16 %v55
    %v195 = vunpack.c.l.b16 %v56
    %v196 = vunpack.c.l.b16 %v57
    %v197 = vunpack.c.l.b16 %v58
    %v198 = vunpack.c.l.b16 %v59
    %v199 = vunpack.c.l.b16 %v60
    %v200 = vunpack.c.l.b16 %v61
    %v201 = vunpack.c.l.b16 %v62
    %v202 = vunpack.c.l.b16 %v63
    %v203 = vunpack.c.l.b16 %v64
    %v204 = vunpack.c.l.b16 %v65
    %v205 = vunpack.c.l.b16 %v66
    %v206 = vunpack.c.l.b16 %v67
    %v207 = vunpack.c.l.b16 %v68
    %v208 = vunpack.c.l.b16 %v69
    %v209 = vunpack.c.l.b16 %v70
    %v210 = vunpack.c.l.b16 %v71
    %v211 = vunpack.c.l.b16 %v72
    %v212 = vunpack.c.l.b16 %v73
    %v213 = vunpack.c.l.b16 %v74
    %v214 = vunpack.c.l.b16 %v75
    %v215 = vunpack.c.l.b16 %v76
    %v216 = vunpack.c.l.b16 %v77
    %v217 = vunpack.c.l.b16 %v78
    %v218 = vunpack.c.l.b16 %v79
    %v219 = vunpack.c.l.b16 %v80
    %v220 = vunpack.c.l.b16 %v81
    %v221 = vunpack.c.l.b16 %v82
    %v222 = vunpack.c.l.b16 %v83
    %v223 = vunpack.c.l.b16 %v84
    %v224 = vunpack.c.l.b16 %v85
    %v225 = vunpack.c.l.b16 %v86
    %v226 = vunpack.c.l.b16 %v87
    %v227 = vunpack.c.l.b16 %v88
    %v228 = vunpack.c.l.b16 %v89
    %v229 = vunpack.c.l.b16 %v90
    %v230 = vunpack.c.l.b16 %v91
    %v231 = vunpack.c.l.b16 %v92
    %v232 = vunpack.c.l.b16 %v93
    %v233 = vunpack.c.l.b16 %v94
    %v234 = vunpack.c.l.b16 %v95
    %v235 = vunpack.c.l.b16 %v96
    %v236 = vunpack.c.l.b16 %v97
    %v237 = vunpack.c.l.b16 %v98
    %v238 = vunpack.c.l.b16 %v99
    %v239 = vunpack.c.l.b16 %v100
    %v240 = vunpack.c.l.b16 %v101
    %v241 = vunpack.c.l.b16 %v102
    %v242 = vunpack.c.l.b16 %v103
    %v243 = vunpack.c.l.b16 %v104
    %v244 = vpack.c.b16 %v181, %v180
    %v245 = vpack.c.b16 %v183, %v182
    %v246 = vpack.c.b16 %v185, %v184
    %v247 = vpack.c.b16 %v187, %v186
    %v248 = vpack.c.b16 %v189, %v188
    %v249 = vpack.c.b16 %v191, %v190
    %v250 = vpack.c.b16 %v193, %v192
    %v251 = vpack.c.b16 %v195, %v194
    %v252 = vpack.c.b16 %v197, %v196
    %v253 = vpack.c.b16 %v199, %v198
    %v254 = vpack.c.b16 %v201, %v200
    %v255 = vpack.c.b16 %v203, %v202
    %v256 = vpack.c.b16 %v205, %v204
    %v257 = vpack.c.b16 %v207, %v206
    %v258 = vpack.c.b16 %v209, %v208
    %v259 = vpack.c.b16 %v211, %v210
    %v260 = vpack.c.b16 %v213, %v212
    %v261 = vpack.c.b16 %v215, %v214
    %v262 = vpack.c.b16 %v217, %v216
    %v263 = vpack.c.b16 %v219, %v218
    %v264 = vpack.c.b16 %v221, %v220
    %v265 = vpack.c.b16 %v223, %v222
    %v266 = vpack.c.b16 %v225, %v224
    %v267 = vpack.c.b16 %v227, %v226
    %v268 = vpack.c.b16 %v229, %v228
    %v269 = vpack.c.b16 %v231, %v230
    %v270 = vpack.c.b16 %v233, %v232
    %v271 = vpack.c.b16 %v235, %v234
    %v272 = vpack.c.b16 %v237, %v236
    %v273 = vpack.c.b16 %v239, %v238
    %v274 = vpack.c.b16 %v241, %v240
    %v275 = vpack.c.b16 %v243, %v242
    %v280 = vunpack.c.l.b16 %v105
    %v281 = vunpack.c.l.b16 %v106
    %v282 = vunpack.c.l.b16 %v107
    %v283 = vunpack.c.l.b16 %v108
    %v284 = vpack.c.b16 %v281, %v280
    %v285 = vpack.c.b16 %v283, %v282
    %vm287 = vcmask 220160
    %v289 = vsel %vm287, %v244, 0
    %v292 = vsel %vm287, %v245, 0
    %v295 = vsel %vm287, %v246, 0
    %v298 = vsel %vm287, %v247, 0
    %v301 = vsel %vm287, %v248, 0
    %v304 = vsel %vm287, %v249, 0
    %v307 = vsel %vm287, %v250, 0
    %v310 = vsel %vm287, %v251, 0
    %v313 = vsel %vm287, %v252, 0
    %v316 = vsel %vm287, %v253, 0
    %v319 = vsel %vm287, %v254, 0
    %v322 = vsel %vm287, %v255, 0
    %v325 = vsel %vm287, %v256, 0
    %v328 = vsel %vm287, %v257, 0
    %v331 = vsel %vm287, %v258, 0
    %v334 = vsel %vm287, %v259, 0
    %v337 = vsel %vm287, %v260, 0
    %v340 = vsel %vm287, %v261, 0
    %v343 = vsel %vm287, %v262, 0
    %v346 = vsel %vm287, %v263, 0
    %v349 = vsel %vm287, %v264, 0
    %v352 = vsel %vm287, %v265, 0
    %v355 = vsel %vm287, %v266, 0
    %v358 = vsel %vm287, %v267, 0
    %v361 = vsel %vm287, %v268, 0
    %v364 = vsel %vm287, %v269, 0
    %v367 = vsel %vm287, %v270, 0
    %v370 = vsel %vm287, %v271, 0
    %v373 = vsel %vm287, %v272, 0
    %v376 = vsel %vm287, %v273, 0
    %v379 = vsel %vm287, %v274, 0
    %v382 = vsel %vm287, %v275, 0
    %vm384 = vcmask 1044480
    %vm385 = vcmask 1045504
    %v386 = vsel %vm384, 4294967295, 65535
    %v387 = vsel %vm385, %v386, 0
    %v389 = vand.u32 %v285, %v387
    %391 = vmatprep.subr.bf16.mxu0 0
    %392 = vmatpush1.bf16.msra.mxu0 %v284
    %393 = vmatprep.subr.bf16.mxu0 0
    %394 = vmatpush1.bf16.msra.mxu0 %v389
    %395 = vmatprep.subr.bf16.mxu0 0
    %396 = vmatpush1.bf16.msra.mxu0 0
    %397 = vmatprep.subr.bf16.mxu0 0
    %398 = vmatpush1.bf16.msra.mxu0 0
    %399 = vmatprep.subr.bf16.mxu0 0
    %400 = vmatpush1.bf16.msra.mxu0 0
    %401 = vmatprep.subr.bf16.mxu0 0
    %402 = vmatpush1.bf16.msra.mxu0 0
    %403 = vmatprep.subr.bf16.mxu0 0
    %404 = vmatpush1.bf16.msra.mxu0 0
    %405 = vmatprep.subr.bf16.mxu0 0
    %406 = vmatpush1.bf16.msra.mxu0 0
    %407 = vmatprep.subr.bf16.mxu0 0
    %408 = vmatpush1.bf16.msra.mxu0 0
    %409 = vmatprep.subr.bf16.mxu0 0
    %410 = vmatpush1.bf16.msra.mxu0 0
    %411 = vmatprep.subr.bf16.mxu0 0
    %412 = vmatpush1.bf16.msra.mxu0 0
    %413 = vmatprep.subr.bf16.mxu0 0
    %414 = vmatpush1.bf16.msra.mxu0 0
    %415 = vmatprep.subr.bf16.mxu0 0
    %416 = vmatpush1.bf16.msra.mxu0 0
    %417 = vmatprep.subr.bf16.mxu0 0
    %418 = vmatpush1.bf16.msra.mxu0 0
    %419 = vmatprep.subr.bf16.mxu0 0
    %420 = vmatpush1.bf16.msra.mxu0 0
    %421 = vmatprep.subr.bf16.mxu0 0
    %422 = vmatpush1.bf16.msra.mxu0 0
    %423 = vmatprep.mubr.bf16.mxu0 0
    %424 = vmatmul.mubr.bf16.gmra.mrb[0].mxu0 %v289
    %v425 = vpop.f32.mrb[0].mxu0
    %v426 = vadd.f32 %v114, %v425
    %v427 = vpop.f32.mrb[0].mxu0
    %v428 = vpop.f32.mrb[0].mxu0
    %v429 = vadd.f32 %v114, %v428
    %v430 = vpop.f32.mrb[0].mxu0
    %431 = vmatprep.mubr.bf16.mxu0 0
    %432 = vmatmul.mubr.bf16.gmra.mrb[0].mxu0 %v292
    %v433 = vpop.f32.mrb[0].mxu0
    %v434 = vadd.f32 %v114, %v433
    %v435 = vpop.f32.mrb[0].mxu0
    %v436 = vpop.f32.mrb[0].mxu0
    %v437 = vadd.f32 %v114, %v436
    %v438 = vpop.f32.mrb[0].mxu0
    %439 = vmatprep.mubr.bf16.mxu0 0
    %440 = vmatmul.mubr.bf16.gmra.mrb[0].mxu0 %v295
    %v441 = vpop.f32.mrb[0].mxu0
    %v442 = vadd.f32 %v114, %v441
    %v443 = vpop.f32.mrb[0].mxu0
    %v444 = vpop.f32.mrb[0].mxu0
    %v445 = vadd.f32 %v114, %v444
    %v446 = vpop.f32.mrb[0].mxu0
    %447 = vmatprep.mubr.bf16.mxu0 0
    %448 = vmatmul.mubr.bf16.gmra.mrb[0].mxu0 %v298
    %v449 = vpop.f32.mrb[0].mxu0
    %v450 = vadd.f32 %v114, %v449
    %v451 = vpop.f32.mrb[0].mxu0
    %v452 = vpop.f32.mrb[0].mxu0
    %v453 = vadd.f32 %v114, %v452
    %v454 = vpop.f32.mrb[0].mxu0
    %455 = vmatprep.mubr.bf16.mxu0 0
    %456 = vmatmul.mubr.bf16.gmra.mrb[0].mxu0 %v301
    %v457 = vpop.f32.mrb[0].mxu0
    %v458 = vadd.f32 %v114, %v457
    %v459 = vpop.f32.mrb[0].mxu0
    %v460 = vpop.f32.mrb[0].mxu0
    %v461 = vadd.f32 %v114, %v460
    %v462 = vpop.f32.mrb[0].mxu0
    %463 = vmatprep.mubr.bf16.mxu0 0
    %464 = vmatmul.mubr.bf16.gmra.mrb[0].mxu0 %v304
    %v465 = vpop.f32.mrb[0].mxu0
    %v466 = vadd.f32 %v114, %v465
    %v467 = vpop.f32.mrb[0].mxu0
    %v468 = vpop.f32.mrb[0].mxu0
    %v469 = vadd.f32 %v114, %v468
    %v470 = vpop.f32.mrb[0].mxu0
    %471 = vmatprep.mubr.bf16.mxu0 0
    %472 = vmatmul.mubr.bf16.gmra.mrb[0].mxu0 %v307
    %v473 = vpop.f32.mrb[0].mxu0
    %v474 = vadd.f32 %v114, %v473
    %v475 = vpop.f32.mrb[0].mxu0
    %v476 = vpop.f32.mrb[0].mxu0
    %v477 = vadd.f32 %v114, %v476
    %v478 = vpop.f32.mrb[0].mxu0
    %479 = vmatprep.mubr.bf16.mxu0 0
    %480 = vmatmul.mubr.bf16.gmra.mrb[0].mxu0 %v310
    %v481 = vpop.f32.mrb[0].mxu0
    %v482 = vadd.f32 %v114, %v481
    %v483 = vpop.f32.mrb[0].mxu0
    %v484 = vpop.f32.mrb[0].mxu0
    %v485 = vadd.f32 %v114, %v484
    %v486 = vpop.f32.mrb[0].mxu0
    %487 = vmatprep.mubr.bf16.mxu0 0
    %488 = vmatmul.mubr.bf16.gmra.mrb[0].mxu0 %v313
    %v489 = vpop.f32.mrb[0].mxu0
    %v490 = vadd.f32 %v114, %v489
    %v491 = vpop.f32.mrb[0].mxu0
    %v492 = vpop.f32.mrb[0].mxu0
    %v493 = vadd.f32 %v114, %v492
    %v494 = vpop.f32.mrb[0].mxu0
    %495 = vmatprep.mubr.bf16.mxu0 0
    %496 = vmatmul.mubr.bf16.gmra.mrb[0].mxu0 %v316
    %v497 = vpop.f32.mrb[0].mxu0
    %v498 = vadd.f32 %v114, %v497
    %v499 = vpop.f32.mrb[0].mxu0
    %v500 = vpop.f32.mrb[0].mxu0
    %v501 = vadd.f32 %v114, %v500
    %v502 = vpop.f32.mrb[0].mxu0
    %503 = vmatprep.mubr.bf16.mxu0 0
    %504 = vmatmul.mubr.bf16.gmra.mrb[0].mxu0 %v319
    %v505 = vpop.f32.mrb[0].mxu0
    %v506 = vadd.f32 %v114, %v505
    %v507 = vpop.f32.mrb[0].mxu0
    %v508 = vpop.f32.mrb[0].mxu0
    %v509 = vadd.f32 %v114, %v508
    %v510 = vpop.f32.mrb[0].mxu0
    %511 = vmatprep.mubr.bf16.mxu0 0
    %512 = vmatmul.mubr.bf16.gmra.mrb[0].mxu0 %v322
    %v513 = vpop.f32.mrb[0].mxu0
    %v514 = vadd.f32 %v114, %v513
    %v515 = vpop.f32.mrb[0].mxu0
    %v516 = vpop.f32.mrb[0].mxu0
    %v517 = vadd.f32 %v114, %v516
    %v518 = vpop.f32.mrb[0].mxu0
    %519 = vmatprep.mubr.bf16.mxu0 0
    %520 = vmatmul.mubr.bf16.gmra.mrb[0].mxu0 %v325
    %v521 = vpop.f32.mrb[0].mxu0
    %v522 = vadd.f32 %v114, %v521
    %v523 = vpop.f32.mrb[0].mxu0
    %v524 = vpop.f32.mrb[0].mxu0
    %v525 = vadd.f32 %v114, %v524
    %v526 = vpop.f32.mrb[0].mxu0
    %527 = vmatprep.mubr.bf16.mxu0 0
    %528 = vmatmul.mubr.bf16.gmra.mrb[0].mxu0 %v328
    %v529 = vpop.f32.mrb[0].mxu0
    %v530 = vadd.f32 %v114, %v529
    %v531 = vpop.f32.mrb[0].mxu0
    %v532 = vpop.f32.mrb[0].mxu0
    %v533 = vadd.f32 %v114, %v532
    %v534 = vpop.f32.mrb[0].mxu0
    %535 = vmatprep.mubr.bf16.mxu0 0
    %536 = vmatmul.mubr.bf16.gmra.mrb[0].mxu0 %v331
    %v537 = vpop.f32.mrb[0].mxu0
    %v538 = vadd.f32 %v114, %v537
    %v539 = vpop.f32.mrb[0].mxu0
    %v540 = vpop.f32.mrb[0].mxu0
    %v541 = vadd.f32 %v114, %v540
    %v542 = vpop.f32.mrb[0].mxu0
    %543 = vmatprep.mubr.bf16.mxu0 0
    %544 = vmatmul.mubr.bf16.gmra.mrb[0].mxu0 %v334
    %v545 = vpop.f32.mrb[0].mxu0
    %v546 = vadd.f32 %v114, %v545
    %v547 = vpop.f32.mrb[0].mxu0
    %v548 = vpop.f32.mrb[0].mxu0
    %v549 = vadd.f32 %v114, %v548
    %v550 = vpop.f32.mrb[0].mxu0
    %551 = vmatprep.mubr.bf16.mxu0 0
    %552 = vmatmul.mubr.bf16.gmra.mrb[0].mxu0 %v337
    %v553 = vpop.f32.mrb[0].mxu0
    %v554 = vadd.f32 %v114, %v553
    %v555 = vpop.f32.mrb[0].mxu0
    %v556 = vpop.f32.mrb[0].mxu0
    %v557 = vadd.f32 %v114, %v556
    %v558 = vpop.f32.mrb[0].mxu0
    %559 = vmatprep.mubr.bf16.mxu0 0
    %560 = vmatmul.mubr.bf16.gmra.mrb[0].mxu0 %v340
    %v561 = vpop.f32.mrb[0].mxu0
    %v562 = vadd.f32 %v114, %v561
    %v563 = vpop.f32.mrb[0].mxu0
    %v564 = vpop.f32.mrb[0].mxu0
    %v565 = vadd.f32 %v114, %v564
    %v566 = vpop.f32.mrb[0].mxu0
    %567 = vmatprep.mubr.bf16.mxu0 0
    %568 = vmatmul.mubr.bf16.gmra.mrb[0].mxu0 %v343
    %v569 = vpop.f32.mrb[0].mxu0
    %v570 = vadd.f32 %v114, %v569
    %v571 = vpop.f32.mrb[0].mxu0
    %v572 = vpop.f32.mrb[0].mxu0
    %v573 = vadd.f32 %v114, %v572
    %v574 = vpop.f32.mrb[0].mxu0
    %575 = vmatprep.mubr.bf16.mxu0 0
    %576 = vmatmul.mubr.bf16.gmra.mrb[0].mxu0 %v346
    %v577 = vpop.f32.mrb[0].mxu0
    %v578 = vadd.f32 %v114, %v577
    %v579 = vpop.f32.mrb[0].mxu0
    %v580 = vpop.f32.mrb[0].mxu0
    %v581 = vadd.f32 %v114, %v580
    %v582 = vpop.f32.mrb[0].mxu0
    %583 = vmatprep.mubr.bf16.mxu0 0
    %584 = vmatmul.mubr.bf16.gmra.mrb[0].mxu0 %v349
    %v585 = vpop.f32.mrb[0].mxu0
    %v586 = vadd.f32 %v114, %v585
    %v587 = vpop.f32.mrb[0].mxu0
    %v588 = vpop.f32.mrb[0].mxu0
    %v589 = vadd.f32 %v114, %v588
    %v590 = vpop.f32.mrb[0].mxu0
    %591 = vmatprep.mubr.bf16.mxu0 0
    %592 = vmatmul.mubr.bf16.gmra.mrb[0].mxu0 %v352
    %v593 = vpop.f32.mrb[0].mxu0
    %v594 = vadd.f32 %v114, %v593
    %v595 = vpop.f32.mrb[0].mxu0
    %v596 = vpop.f32.mrb[0].mxu0
    %v597 = vadd.f32 %v114, %v596
    %v598 = vpop.f32.mrb[0].mxu0
    %599 = vmatprep.mubr.bf16.mxu0 0
    %600 = vmatmul.mubr.bf16.gmra.mrb[0].mxu0 %v355
    %v601 = vpop.f32.mrb[0].mxu0
    %v602 = vadd.f32 %v114, %v601
    %v603 = vpop.f32.mrb[0].mxu0
    %v604 = vpop.f32.mrb[0].mxu0
    %v605 = vadd.f32 %v114, %v604
    %v606 = vpop.f32.mrb[0].mxu0
    %607 = vmatprep.mubr.bf16.mxu0 0
    %608 = vmatmul.mubr.bf16.gmra.mrb[0].mxu0 %v358
    %v609 = vpop.f32.mrb[0].mxu0
    %v610 = vadd.f32 %v114, %v609
    %v611 = vpop.f32.mrb[0].mxu0
    %v612 = vpop.f32.mrb[0].mxu0
    %v613 = vadd.f32 %v114, %v612
    %v614 = vpop.f32.mrb[0].mxu0
    %615 = vmatprep.mubr.bf16.mxu0 0
    %616 = vmatmul.mubr.bf16.gmra.mrb[0].mxu0 %v361
    %v617 = vpop.f32.mrb[0].mxu0
    %v618 = vadd.f32 %v114, %v617
    %v619 = vpop.f32.mrb[0].mxu0
    %v620 = vpop.f32.mrb[0].mxu0
    %v621 = vadd.f32 %v114, %v620
    %v622 = vpop.f32.mrb[0].mxu0
    %623 = vmatprep.mubr.bf16.mxu0 0
    %624 = vmatmul.mubr.bf16.gmra.mrb[0].mxu0 %v364
    %v625 = vpop.f32.mrb[0].mxu0
    %v626 = vadd.f32 %v114, %v625
    %v627 = vpop.f32.mrb[0].mxu0
    %v628 = vpop.f32.mrb[0].mxu0
    %v629 = vadd.f32 %v114, %v628
    %v630 = vpop.f32.mrb[0].mxu0
    %631 = vmatprep.mubr.bf16.mxu0 0
    %632 = vmatmul.mubr.bf16.gmra.mrb[0].mxu0 %v367
    %v633 = vpop.f32.mrb[0].mxu0
    %v634 = vadd.f32 %v114, %v633
    %v635 = vpop.f32.mrb[0].mxu0
    %v636 = vpop.f32.mrb[0].mxu0
    %v637 = vadd.f32 %v114, %v636
    %v638 = vpop.f32.mrb[0].mxu0
    %639 = vmatprep.mubr.bf16.mxu0 0
    %640 = vmatmul.mubr.bf16.gmra.mrb[0].mxu0 %v370
    %v641 = vpop.f32.mrb[0].mxu0
    %v642 = vadd.f32 %v114, %v641
    %v643 = vpop.f32.mrb[0].mxu0
    %v644 = vpop.f32.mrb[0].mxu0
    %v645 = vadd.f32 %v114, %v644
    %v646 = vpop.f32.mrb[0].mxu0
    %647 = vmatprep.mubr.bf16.mxu0 0
    %648 = vmatmul.mubr.bf16.gmra.mrb[0].mxu0 %v373
    %v649 = vpop.f32.mrb[0].mxu0
    %v650 = vadd.f32 %v114, %v649
    %v651 = vpop.f32.mrb[0].mxu0
    %v652 = vpop.f32.mrb[0].mxu0
    %v653 = vadd.f32 %v114, %v652
    %v654 = vpop.f32.mrb[0].mxu0
    %655 = vmatprep.mubr.bf16.mxu0 0
    %656 = vmatmul.mubr.bf16.gmra.mrb[0].mxu0 %v376
    %v657 = vpop.f32.mrb[0].mxu0
    %v658 = vadd.f32 %v114, %v657
    %v659 = vpop.f32.mrb[0].mxu0
    %v660 = vpop.f32.mrb[0].mxu0
    %v661 = vadd.f32 %v114, %v660
    %v662 = vpop.f32.mrb[0].mxu0
    %663 = vmatprep.mubr.bf16.mxu0 0
    %664 = vmatmul.mubr.bf16.gmra.mrb[0].mxu0 %v379
    %v665 = vpop.f32.mrb[0].mxu0
    %v666 = vadd.f32 %v114, %v665
    %v667 = vpop.f32.mrb[0].mxu0
    %v668 = vpop.f32.mrb[0].mxu0
    %v669 = vadd.f32 %v114, %v668
    %v670 = vpop.f32.mrb[0].mxu0
    %671 = vmatprep.mubr.bf16.mxu0 0
    %672 = vmatmul.mubr.bf16.gmra.mrb[0].mxu0 %v382
    %v673 = vpop.f32.mrb[0].mxu0
    %v674 = vadd.f32 %v114, %v673
    %v675 = vpop.f32.mrb[0].mxu0
    %v676 = vpop.f32.mrb[0].mxu0
    %v677 = vadd.f32 %v114, %v676
    %v678 = vpop.f32.mrb[0].mxu0
    %679 = vdwg.mxu0
    %vm680 = vcmp.gt.f32.partialorder %v426, 0.0
    %vm681 = vcmp.gt.f32.partialorder %v429, 0.0
    %vm682 = vcmp.gt.f32.partialorder %v434, 0.0
    %vm683 = vcmp.gt.f32.partialorder %v437, 0.0
    %vm684 = vcmp.gt.f32.partialorder %v442, 0.0
    %vm685 = vcmp.gt.f32.partialorder %v445, 0.0
    %vm686 = vcmp.gt.f32.partialorder %v450, 0.0
    %vm687 = vcmp.gt.f32.partialorder %v453, 0.0
    %vm688 = vcmp.gt.f32.partialorder %v458, 0.0
    %vm689 = vcmp.gt.f32.partialorder %v461, 0.0
    %vm690 = vcmp.gt.f32.partialorder %v466, 0.0
    %vm691 = vcmp.gt.f32.partialorder %v469, 0.0
    %vm692 = vcmp.gt.f32.partialorder %v474, 0.0
    %vm693 = vcmp.gt.f32.partialorder %v477, 0.0
    %vm694 = vcmp.gt.f32.partialorder %v482, 0.0
    %vm695 = vcmp.gt.f32.partialorder %v485, 0.0
    %vm696 = vcmp.gt.f32.partialorder %v490, 0.0
    %vm697 = vcmp.gt.f32.partialorder %v493, 0.0
    %vm698 = vcmp.gt.f32.partialorder %v498, 0.0
    %vm699 = vcmp.gt.f32.partialorder %v501, 0.0
    %vm700 = vcmp.gt.f32.partialorder %v506, 0.0
    %vm701 = vcmp.gt.f32.partialorder %v509, 0.0
    %vm702 = vcmp.gt.f32.partialorder %v514, 0.0
    %vm703 = vcmp.gt.f32.partialorder %v517, 0.0
    %vm704 = vcmp.gt.f32.partialorder %v522, 0.0
    %vm705 = vcmp.gt.f32.partialorder %v525, 0.0
    %vm706 = vcmp.gt.f32.partialorder %v530, 0.0
    %vm707 = vcmp.gt.f32.partialorder %v533, 0.0
    %vm708 = vcmp.gt.f32.partialorder %v538, 0.0
    %vm709 = vcmp.gt.f32.partialorder %v541, 0.0
    %vm710 = vcmp.gt.f32.partialorder %v546, 0.0
    %vm711 = vcmp.gt.f32.partialorder %v549, 0.0
    %vm712 = vcmp.gt.f32.partialorder %v554, 0.0
    %vm713 = vcmp.gt.f32.partialorder %v557, 0.0
    %vm714 = vcmp.gt.f32.partialorder %v562, 0.0
    %vm715 = vcmp.gt.f32.partialorder %v565, 0.0
    %vm716 = vcmp.gt.f32.partialorder %v570, 0.0
    %vm717 = vcmp.gt.f32.partialorder %v573, 0.0
    %vm718 = vcmp.gt.f32.partialorder %v578, 0.0
    %vm719 = vcmp.gt.f32.partialorder %v581, 0.0
    %vm720 = vcmp.gt.f32.partialorder %v586, 0.0
    %vm721 = vcmp.gt.f32.partialorder %v589, 0.0
    %vm722 = vcmp.gt.f32.partialorder %v594, 0.0
    %vm723 = vcmp.gt.f32.partialorder %v597, 0.0
    %vm724 = vcmp.gt.f32.partialorder %v602, 0.0
    %vm725 = vcmp.gt.f32.partialorder %v605, 0.0
    %vm726 = vcmp.gt.f32.partialorder %v610, 0.0
    %vm727 = vcmp.gt.f32.partialorder %v613, 0.0
    %vm728 = vcmp.gt.f32.partialorder %v618, 0.0
    %vm729 = vcmp.gt.f32.partialorder %v621, 0.0
    %vm730 = vcmp.gt.f32.partialorder %v626, 0.0
    %vm731 = vcmp.gt.f32.partialorder %v629, 0.0
    %vm732 = vcmp.gt.f32.partialorder %v634, 0.0
    %vm733 = vcmp.gt.f32.partialorder %v637, 0.0
    %vm734 = vcmp.gt.f32.partialorder %v642, 0.0
    %vm735 = vcmp.gt.f32.partialorder %v645, 0.0
    %vm736 = vcmp.gt.f32.partialorder %v650, 0.0
    %vm737 = vcmp.gt.f32.partialorder %v653, 0.0
    %vm738 = vcmp.gt.f32.partialorder %v658, 0.0
    %vm739 = vcmp.gt.f32.partialorder %v661, 0.0
    %vm740 = vcmp.gt.f32.partialorder %v666, 0.0
    %vm741 = vcmp.gt.f32.partialorder %v669, 0.0
    %vm742 = vcmp.gt.f32.partialorder %v674, 0.0
    %vm743 = vcmp.gt.f32.partialorder %v677, 0.0
    %v744 = vmul.f32 %v426, 0.2
    %v745 = vmul.f32 %v429, 0.2
    %v746 = vmul.f32 %v434, 0.2
    %v747 = vmul.f32 %v437, 0.2
    %v748 = vmul.f32 %v442, 0.2
    %v749 = vmul.f32 %v445, 0.2
    %v750 = vmul.f32 %v450, 0.2
    %v751 = vmul.f32 %v453, 0.2
    %v752 = vmul.f32 %v458, 0.2
    %v753 = vmul.f32 %v461, 0.2
    %v754 = vmul.f32 %v466, 0.2
    %v755 = vmul.f32 %v469, 0.2
    %v756 = vmul.f32 %v474, 0.2
    %v757 = vmul.f32 %v477, 0.2
    %v758 = vmul.f32 %v482, 0.2
    %v759 = vmul.f32 %v485, 0.2
    %v760 = vmul.f32 %v490, 0.2
    %v761 = vmul.f32 %v493, 0.2
    %v762 = vmul.f32 %v498, 0.2
    %v763 = vmul.f32 %v501, 0.2
    %v764 = vmul.f32 %v506, 0.2
    %v765 = vmul.f32 %v509, 0.2
    %v766 = vmul.f32 %v514, 0.2
    %v767 = vmul.f32 %v517, 0.2
    %v768 = vmul.f32 %v522, 0.2
    %v769 = vmul.f32 %v525, 0.2
    %v770 = vmul.f32 %v530, 0.2
    %v771 = vmul.f32 %v533, 0.2
    %v772 = vmul.f32 %v538, 0.2
    %v773 = vmul.f32 %v541, 0.2
    %v774 = vmul.f32 %v546, 0.2
    %v775 = vmul.f32 %v549, 0.2
    %v776 = vmul.f32 %v554, 0.2
    %v777 = vmul.f32 %v557, 0.2
    %v778 = vmul.f32 %v562, 0.2
    %v779 = vmul.f32 %v565, 0.2
    %v780 = vmul.f32 %v570, 0.2
    %v781 = vmul.f32 %v573, 0.2
    %v782 = vmul.f32 %v578, 0.2
    %v783 = vmul.f32 %v581, 0.2
    %v784 = vmul.f32 %v586, 0.2
    %v785 = vmul.f32 %v589, 0.2
    %v786 = vmul.f32 %v594, 0.2
    %v787 = vmul.f32 %v597, 0.2
    %v788 = vmul.f32 %v602, 0.2
    %v789 = vmul.f32 %v605, 0.2
    %v790 = vmul.f32 %v610, 0.2
    %v791 = vmul.f32 %v613, 0.2
    %v792 = vmul.f32 %v618, 0.2
    %v793 = vmul.f32 %v621, 0.2
    %v794 = vmul.f32 %v626, 0.2
    %v795 = vmul.f32 %v629, 0.2
    %v796 = vmul.f32 %v634, 0.2
    %v797 = vmul.f32 %v637, 0.2
    %v798 = vmul.f32 %v642, 0.2
    %v799 = vmul.f32 %v645, 0.2
    %v800 = vmul.f32 %v650, 0.2
    %v801 = vmul.f32 %v653, 0.2
    %v802 = vmul.f32 %v658, 0.2
    %v803 = vmul.f32 %v661, 0.2
    %v804 = vmul.f32 %v666, 0.2
    %v805 = vmul.f32 %v669, 0.2
    %v806 = vmul.f32 %v674, 0.2
    %v807 = vmul.f32 %v677, 0.2
    %v808 = vsel %vm680, %v426, %v744
    %v809 = vsel %vm681, %v429, %v745
    %v810 = vsel %vm682, %v434, %v746
    %v811 = vsel %vm683, %v437, %v747
    %v812 = vsel %vm684, %v442, %v748
    %v813 = vsel %vm685, %v445, %v749
    %v814 = vsel %vm686, %v450, %v750
    %v815 = vsel %vm687, %v453, %v751
    %v816 = vsel %vm688, %v458, %v752
    %v817 = vsel %vm689, %v461, %v753
    %v818 = vsel %vm690, %v466, %v754
    %v819 = vsel %vm691, %v469, %v755
    %v820 = vsel %vm692, %v474, %v756
    %v821 = vsel %vm693, %v477, %v757
    %v822 = vsel %vm694, %v482, %v758
    %v823 = vsel %vm695, %v485, %v759
    %v824 = vsel %vm696, %v490, %v760
    %v825 = vsel %vm697, %v493, %v761
    %v826 = vsel %vm698, %v498, %v762
    %v827 = vsel %vm699, %v501, %v763
    %v828 = vsel %vm700, %v506, %v764
    %v829 = vsel %vm701, %v509, %v765
    %v830 = vsel %vm702, %v514, %v766
    %v831 = vsel %vm703, %v517, %v767
    %v832 = vsel %vm704, %v522, %v768
    %v833 = vsel %vm705, %v525, %v769
    %v834 = vsel %vm706, %v530, %v770
    %v835 = vsel %vm707, %v533, %v771
    %v836 = vsel %vm708, %v538, %v772
    %v837 = vsel %vm709, %v541, %v773
    %v838 = vsel %vm710, %v546, %v774
    %v839 = vsel %vm711, %v549, %v775
    %v840 = vsel %vm712, %v554, %v776
    %v841 = vsel %vm713, %v557, %v777
    %v842 = vsel %vm714, %v562, %v778
    %v843 = vsel %vm715, %v565, %v779
    %v844 = vsel %vm716, %v570, %v780
    %v845 = vsel %vm717, %v573, %v781
    %v846 = vsel %vm718, %v578, %v782
    %v847 = vsel %vm719, %v581, %v783
    %v848 = vsel %vm720, %v586, %v784
    %v849 = vsel %vm721, %v589, %v785
    %v850 = vsel %vm722, %v594, %v786
    %v851 = vsel %vm723, %v597, %v787
    %v852 = vsel %vm724, %v602, %v788
    %v853 = vsel %vm725, %v605, %v789
    %v854 = vsel %vm726, %v610, %v790
    %v855 = vsel %vm727, %v613, %v791
    %v856 = vsel %vm728, %v618, %v792
    %v857 = vsel %vm729, %v621, %v793
    %v858 = vsel %vm730, %v626, %v794
    %v859 = vsel %vm731, %v629, %v795
    %v860 = vsel %vm732, %v634, %v796
    %v861 = vsel %vm733, %v637, %v797
    %v862 = vsel %vm734, %v642, %v798
    %v863 = vsel %vm735, %v645, %v799
    %v864 = vsel %vm736, %v650, %v800
    %v865 = vsel %vm737, %v653, %v801
    %v866 = vsel %vm738, %v658, %v802
    %v867 = vsel %vm739, %v661, %v803
    %v868 = vsel %vm740, %v666, %v804
    %v869 = vsel %vm741, %v669, %v805
    %v870 = vsel %vm742, %v674, %v806
    %v871 = vsel %vm743, %v677, %v807
    %v872 = vpack.c.bf16 %v809, %v808
    %v873 = vpack.c.bf16 %v811, %v810
    %v874 = vpack.c.bf16 %v813, %v812
    %v875 = vpack.c.bf16 %v815, %v814
    %v876 = vpack.c.bf16 %v817, %v816
    %v877 = vpack.c.bf16 %v819, %v818
    %v878 = vpack.c.bf16 %v821, %v820
    %v879 = vpack.c.bf16 %v823, %v822
    %v880 = vpack.c.bf16 %v825, %v824
    %v881 = vpack.c.bf16 %v827, %v826
    %v882 = vpack.c.bf16 %v829, %v828
    %v883 = vpack.c.bf16 %v831, %v830
    %v884 = vpack.c.bf16 %v833, %v832
    %v885 = vpack.c.bf16 %v835, %v834
    %v886 = vpack.c.bf16 %v837, %v836
    %v887 = vpack.c.bf16 %v839, %v838
    %v888 = vpack.c.bf16 %v841, %v840
    %v889 = vpack.c.bf16 %v843, %v842
    %v890 = vpack.c.bf16 %v845, %v844
    %v891 = vpack.c.bf16 %v847, %v846
    %v892 = vpack.c.bf16 %v849, %v848
    %v893 = vpack.c.bf16 %v851, %v850
    %v894 = vpack.c.bf16 %v853, %v852
    %v895 = vpack.c.bf16 %v855, %v854
    %v896 = vpack.c.bf16 %v857, %v856
    %v897 = vpack.c.bf16 %v859, %v858
    %v898 = vpack.c.bf16 %v861, %v860
    %v899 = vpack.c.bf16 %v863, %v862
    %v900 = vpack.c.bf16 %v865, %v864
    %v901 = vpack.c.bf16 %v867, %v866
    %v902 = vpack.c.bf16 %v869, %v868
    %v903 = vpack.c.bf16 %v871, %v870
    %v936 = vunpack.c.l.b16 %v872
    %v937 = vunpack.c.h.b16 %v872
    %v938 = vunpack.c.l.b16 %v873
    %v939 = vunpack.c.h.b16 %v873
    %v940 = vunpack.c.l.b16 %v874
    %v941 = vunpack.c.h.b16 %v874
    %v942 = vunpack.c.l.b16 %v875
    %v943 = vunpack.c.h.b16 %v875
    %v944 = vunpack.c.l.b16 %v876
    %v945 = vunpack.c.h.b16 %v876
    %v946 = vunpack.c.l.b16 %v877
    %v947 = vunpack.c.h.b16 %v877
    %v948 = vunpack.c.l.b16 %v878
    %v949 = vunpack.c.h.b16 %v878
    %v950 = vunpack.c.l.b16 %v879
    %v951 = vunpack.c.h.b16 %v879
    %v952 = vunpack.c.l.b16 %v880
    %v953 = vunpack.c.h.b16 %v880
    %v954 = vunpack.c.l.b16 %v881
    %v955 = vunpack.c.h.b16 %v881
    %v956 = vunpack.c.l.b16 %v882
    %v957 = vunpack.c.h.b16 %v882
    %v958 = vunpack.c.l.b16 %v883
    %v959 = vunpack.c.h.b16 %v883
    %v960 = vunpack.c.l.b16 %v884
    %v961 = vunpack.c.h.b16 %v884
    %v962 = vunpack.c.l.b16 %v885
    %v963 = vunpack.c.h.b16 %v885
    %v964 = vunpack.c.l.b16 %v886
    %v965 = vunpack.c.h.b16 %v886
    %v966 = vunpack.c.l.b16 %v887
    %v967 = vunpack.c.h.b16 %v887
    %v968 = vunpack.c.l.b16 %v888
    %v969 = vunpack.c.h.b16 %v888
    %v970 = vunpack.c.l.b16 %v889
    %v971 = vunpack.c.h.b16 %v889
    %v972 = vunpack.c.l.b16 %v890
    %v973 = vunpack.c.h.b16 %v890
    %v974 = vunpack.c.l.b16 %v891
    %v975 = vunpack.c.h.b16 %v891
    %v976 = vunpack.c.l.b16 %v892
    %v977 = vunpack.c.h.b16 %v892
    %v978 = vunpack.c.l.b16 %v893
    %v979 = vunpack.c.h.b16 %v893
    %v980 = vunpack.c.l.b16 %v894
    %v981 = vunpack.c.h.b16 %v894
    %v982 = vunpack.c.l.b16 %v895
    %v983 = vunpack.c.h.b16 %v895
    %v984 = vunpack.c.l.b16 %v896
    %v985 = vunpack.c.h.b16 %v896
    %v986 = vunpack.c.l.b16 %v897
    %v987 = vunpack.c.h.b16 %v897
    %v988 = vunpack.c.l.b16 %v898
    %v989 = vunpack.c.h.b16 %v898
    %v990 = vunpack.c.l.b16 %v899
    %v991 = vunpack.c.h.b16 %v899
    %v992 = vunpack.c.l.b16 %v900
    %v993 = vunpack.c.h.b16 %v900
    %v994 = vunpack.c.l.b16 %v901
    %v995 = vunpack.c.h.b16 %v901
    %v996 = vunpack.c.l.b16 %v902
    %v997 = vunpack.c.h.b16 %v902
    %v998 = vunpack.c.l.b16 %v903
    %v999 = vunpack.c.h.b16 %v903
    %v1000 = vpack.c.b16 %v936, %v936
    %v1001 = vpack.c.b16 %v937, %v937
    %v1002 = vpack.c.b16 %v938, %v938
    %v1003 = vpack.c.b16 %v939, %v939
    %v1004 = vpack.c.b16 %v940, %v940
    %v1005 = vpack.c.b16 %v941, %v941
    %v1006 = vpack.c.b16 %v942, %v942
    %v1007 = vpack.c.b16 %v943, %v943
    %v1008 = vpack.c.b16 %v944, %v944
    %v1009 = vpack.c.b16 %v945, %v945
    %v1010 = vpack.c.b16 %v946, %v946
    %v1011 = vpack.c.b16 %v947, %v947
    %v1012 = vpack.c.b16 %v948, %v948
    %v1013 = vpack.c.b16 %v949, %v949
    %v1014 = vpack.c.b16 %v950, %v950
    %v1015 = vpack.c.b16 %v951, %v951
    %v1016 = vpack.c.b16 %v952, %v952
    %v1017 = vpack.c.b16 %v953, %v953
    %v1018 = vpack.c.b16 %v954, %v954
    %v1019 = vpack.c.b16 %v955, %v955
    %v1020 = vpack.c.b16 %v956, %v956
    %v1021 = vpack.c.b16 %v957, %v957
    %v1022 = vpack.c.b16 %v958, %v958
    %v1023 = vpack.c.b16 %v959, %v959
    %v1024 = vpack.c.b16 %v960, %v960
    %v1025 = vpack.c.b16 %v961, %v961
    %v1026 = vpack.c.b16 %v962, %v962
    %v1027 = vpack.c.b16 %v963, %v963
    %v1028 = vpack.c.b16 %v964, %v964
    %v1029 = vpack.c.b16 %v965, %v965
    %v1030 = vpack.c.b16 %v966, %v966
    %v1031 = vpack.c.b16 %v967, %v967
    %v1032 = vpack.c.b16 %v968, %v968
    %v1033 = vpack.c.b16 %v969, %v969
    %v1034 = vpack.c.b16 %v970, %v970
    %v1035 = vpack.c.b16 %v971, %v971
    %v1036 = vpack.c.b16 %v972, %v972
    %v1037 = vpack.c.b16 %v973, %v973
    %v1038 = vpack.c.b16 %v974, %v974
    %v1039 = vpack.c.b16 %v975, %v975
    %v1040 = vpack.c.b16 %v976, %v976
    %v1041 = vpack.c.b16 %v977, %v977
    %v1042 = vpack.c.b16 %v978, %v978
    %v1043 = vpack.c.b16 %v979, %v979
    %v1044 = vpack.c.b16 %v980, %v980
    %v1045 = vpack.c.b16 %v981, %v981
    %v1046 = vpack.c.b16 %v982, %v982
    %v1047 = vpack.c.b16 %v983, %v983
    %v1048 = vpack.c.b16 %v984, %v984
    %v1049 = vpack.c.b16 %v985, %v985
    %v1050 = vpack.c.b16 %v986, %v986
    %v1051 = vpack.c.b16 %v987, %v987
    %v1052 = vpack.c.b16 %v988, %v988
    %v1053 = vpack.c.b16 %v989, %v989
    %v1054 = vpack.c.b16 %v990, %v990
    %v1055 = vpack.c.b16 %v991, %v991
    %v1056 = vpack.c.b16 %v992, %v992
    %v1057 = vpack.c.b16 %v993, %v993
    %v1058 = vpack.c.b16 %v994, %v994
    %v1059 = vpack.c.b16 %v995, %v995
    %v1060 = vpack.c.b16 %v996, %v996
    %v1061 = vpack.c.b16 %v997, %v997
    %v1062 = vpack.c.b16 %v998, %v998
    %v1063 = vpack.c.b16 %v999, %v999
    %vm1128 = vcmask 519168
    %1129 = vst.msk [vmem:[%s3] sm:$0xf] %vm1128, %v1000
    %1130 = vst.msk [vmem:[%s3 + $0x4] sm:$0xf] %vm1128, %v1001
    %1131 = vst.msk [vmem:[%s3 + $0x8] sm:$0xf] %vm1128, %v1002
    %1132 = vst.msk [vmem:[%s3 + $0xc] sm:$0xf] %vm1128, %v1003
    %1133 = vst.msk [vmem:[%s3 + $0x10] sm:$0xf] %vm1128, %v1004
    %1134 = vst.msk [vmem:[%s3 + $0x14] sm:$0xf] %vm1128, %v1005
    %1135 = vst.msk [vmem:[%s3 + $0x18] sm:$0xf] %vm1128, %v1006
    %1136 = vst.msk [vmem:[%s3 + $0x1c] sm:$0xf] %vm1128, %v1007
    %1137 = vst.msk [vmem:[%s3 + $0x20] sm:$0xf] %vm1128, %v1008
    %1138 = vst.msk [vmem:[%s3 + $0x24] sm:$0xf] %vm1128, %v1009
    %1139 = vst.msk [vmem:[%s3 + $0x28] sm:$0xf] %vm1128, %v1010
    %1140 = vst.msk [vmem:[%s3 + $0x2c] sm:$0xf] %vm1128, %v1011
    %1141 = vst.msk [vmem:[%s3 + $0x30] sm:$0xf] %vm1128, %v1012
    %1142 = vst.msk [vmem:[%s3 + $0x34] sm:$0xf] %vm1128, %v1013
    %1143 = vst.msk [vmem:[%s3 + $0x38] sm:$0xf] %vm1128, %v1014
    %1144 = vst.msk [vmem:[%s3 + $0x3c] sm:$0xf] %vm1128, %v1015
    %1145 = vst.msk [vmem:[%s3 + $0x40] sm:$0xf] %vm1128, %v1016
    %1146 = vst.msk [vmem:[%s3 + $0x44] sm:$0xf] %vm1128, %v1017
    %1147 = vst.msk [vmem:[%s3 + $0x48] sm:$0xf] %vm1128, %v1018
    %1148 = vst.msk [vmem:[%s3 + $0x4c] sm:$0xf] %vm1128, %v1019
    %1149 = vst.msk [vmem:[%s3 + $0x50] sm:$0xf] %vm1128, %v1020
    %1150 = vst.msk [vmem:[%s3 + $0x54] sm:$0xf] %vm1128, %v1021
    %1151 = vst.msk [vmem:[%s3 + $0x58] sm:$0xf] %vm1128, %v1022
    %1152 = vst.msk [vmem:[%s3 + $0x5c] sm:$0xf] %vm1128, %v1023
    %1153 = vst.msk [vmem:[%s3 + $0x60] sm:$0xf] %vm1128, %v1024
    %1154 = vst.msk [vmem:[%s3 + $0x64] sm:$0xf] %vm1128, %v1025
    %1155 = vst.msk [vmem:[%s3 + $0x68] sm:$0xf] %vm1128, %v1026
    %1156 = vst.msk [vmem:[%s3 + $0x6c] sm:$0xf] %vm1128, %v1027
    %1157 = vst.msk [vmem:[%s3 + $0x70] sm:$0xf] %vm1128, %v1028
    %1158 = vst.msk [vmem:[%s3 + $0x74] sm:$0xf] %vm1128, %v1029
    %1159 = vst.msk [vmem:[%s3 + $0x78] sm:$0xf] %vm1128, %v1030
    %1160 = vst.msk [vmem:[%s3 + $0x7c] sm:$0xf] %vm1128, %v1031
    %1161 = vst.msk [vmem:[%s3 + $0x80] sm:$0xf] %vm1128, %v1032
    %1162 = vst.msk [vmem:[%s3 + $0x84] sm:$0xf] %vm1128, %v1033
    %1163 = vst.msk [vmem:[%s3 + $0x88] sm:$0xf] %vm1128, %v1034
    %1164 = vst.msk [vmem:[%s3 + $0x8c] sm:$0xf] %vm1128, %v1035
    %1165 = vst.msk [vmem:[%s3 + $0x90] sm:$0xf] %vm1128, %v1036
    %1166 = vst.msk [vmem:[%s3 + $0x94] sm:$0xf] %vm1128, %v1037
    %1167 = vst.msk [vmem:[%s3 + $0x98] sm:$0xf] %vm1128, %v1038
    %1168 = vst.msk [vmem:[%s3 + $0x9c] sm:$0xf] %vm1128, %v1039
    %1169 = vst.msk [vmem:[%s3 + $0xa0] sm:$0xf] %vm1128, %v1040
    %1170 = vst.msk [vmem:[%s3 + $0xa4] sm:$0xf] %vm1128, %v1041
    %1171 = vst.msk [vmem:[%s3 + $0xa8] sm:$0xf] %vm1128, %v1042
    %1172 = vst.msk [vmem:[%s3 + $0xac] sm:$0xf] %vm1128, %v1043
    %1173 = vst.msk [vmem:[%s3 + $0xb0] sm:$0xf] %vm1128, %v1044
    %1174 = vst.msk [vmem:[%s3 + $0xb4] sm:$0xf] %vm1128, %v1045
    %1175 = vst.msk [vmem:[%s3 + $0xb8] sm:$0xf] %vm1128, %v1046
    %1176 = vst.msk [vmem:[%s3 + $0xbc] sm:$0xf] %vm1128, %v1047
    %1177 = vst.msk [vmem:[%s3 + $0xc0] sm:$0xf] %vm1128, %v1048
    %1178 = vst.msk [vmem:[%s3 + $0xc4] sm:$0xf] %vm1128, %v1049
    %1179 = vst.msk [vmem:[%s3 + $0xc8] sm:$0xf] %vm1128, %v1050
    %1180 = vst.msk [vmem:[%s3 + $0xcc] sm:$0xf] %vm1128, %v1051
    %1181 = vst.msk [vmem:[%s3 + $0xd0] sm:$0xf] %vm1128, %v1052
    %1182 = vst.msk [vmem:[%s3 + $0xd4] sm:$0xf] %vm1128, %v1053
    %1183 = vst.msk [vmem:[%s3 + $0xd8] sm:$0xf] %vm1128, %v1054
    %1184 = vst.msk [vmem:[%s3 + $0xdc] sm:$0xf] %vm1128, %v1055
    %1185 = vst.msk [vmem:[%s3 + $0xe0] sm:$0xf] %vm1128, %v1056
    %1186 = vst.msk [vmem:[%s3 + $0xe4] sm:$0xf] %vm1128, %v1057
    %1187 = vst.msk [vmem:[%s3 + $0xe8] sm:$0xf] %vm1128, %v1058
    %1188 = vst.msk [vmem:[%s3 + $0xec] sm:$0xf] %vm1128, %v1059
    %1189 = vst.msk [vmem:[%s3 + $0xf0] sm:$0xf] %vm1128, %v1060
    %1190 = vst.msk [vmem:[%s3 + $0xf4] sm:$0xf] %vm1128, %v1061
    %1191 = vst.msk [vmem:[%s3 + $0xf8] sm:$0xf] %vm1128, %v1062
    %1192 = vst.msk [vmem:[%s3 + $0xfc] sm:$0xf] %vm1128, %v1063
    // Predicated region
    $region22: #{discriminator_forward.5} parent=1 // pred_check
      _
    $region23: #{discriminator_forward.5} parent=1 // pred_check_branch
      %1194 = sbr.rel (0) target = $region25
    $region24: #{discriminator_forward.5} parent=1 // pred_region
      _
    $region25: #{discriminator_forward.5} parent=1 // pred_fallthru
      _
    // Predicated region
    $region26: #{discriminator_forward.5} parent=1 // pred_check
      _
    $region27: #{discriminator_forward.5} parent=1 // pred_check_branch
      %1196 = sbr.rel (0) target = $region29
    $region28: #{discriminator_forward.5} parent=1 // pred_region
      _
    $region29: #{discriminator_forward.5} parent=1 // pred_fallthru
      _
    %1197 = vsyncpa [#allocation3], 1
    %1198 = vsyncpa [#allocation5], 1

// kernel: discriminator_forward.6
$region0: #{discriminator_forward.6}
  #allocation0 [shape = 'u32[]', space=smem, size = 0x4, offset = 0x4, fixed_abs, tag = 'smem constant byte address 0x4 - core index']
  #allocation1 [shape = 'u32[144,128]{1,0:T(1,128)}', space=vmem, size = 0x12000, scoped, tag = 'internal scratch']
  %s0 = inlined_call_operand.vmem [shape: bf16[144,64], index: 0, kind: input, shape index: {}]
  %s1 = inlined_call_operand.vmem [shape: bf16[144,64], index: 1, kind: input, shape index: {}]
  %s2 = inlined_call_operand.vmem [shape: bf16[144,64], index: 2, kind: input, shape index: {}]
  %s3 = inlined_call_operand.vmem [shape: bf16[144,64], index: 3, kind: input, shape index: {}]
  %s4 = inlined_call_operand.vmem [shape: bf16[144,64], index: 4, kind: input, shape index: {}]
  %s5 = inlined_call_operand.vmem [shape: bf16[144,64], index: 5, kind: input, shape index: {}]
  %s6 = inlined_call_operand.vmem [shape: bf16[9,64,128], index: 6, kind: input, shape index: {}]
  %s7 = inlined_call_operand.vmem [shape: f32[1,128], index: 7, kind: input, shape index: {}]
  %s8 = inlined_call_operand.vmem [shape: bf16[128,128], index: 8, kind: output, shape index: {}]
  %s9 = sld [smem:[#allocation0]]
  $region42: #{discriminator_forward.6} parent=0
    _
  %s11 = ssub.s32 1, %s9
  %s12 = scalar_select 0, %s11, %s9
  // Predicated region
  $region2: #{discriminator_forward.6} parent=0 // pred_check
    _
  $region3: #{discriminator_forward.6} parent=0 // pred_check_branch
    %14 = sbr.rel (0) target = $region5
  $region4: #{discriminator_forward.6} parent=0 // pred_region
    _
  $region5: #{discriminator_forward.6} parent=0 // pred_fallthru
    _
  // Predicated region
  $region6: #{discriminator_forward.6} parent=0 // pred_check
    _
  $region7: #{discriminator_forward.6} parent=0 // pred_check_branch
    %16 = sbr.rel (0) target = $region9
  $region8: #{discriminator_forward.6} parent=0 // pred_region
    _
  $region9: #{discriminator_forward.6} parent=0 // pred_fallthru
    _
  // Predicated region
  $region10: #{discriminator_forward.6} parent=0 // pred_check
    _
  $region11: #{discriminator_forward.6} parent=0 // pred_check_branch
    %18 = sbr.rel (0) target = $region13
  $region12: #{discriminator_forward.6} parent=0 // pred_region
    _
  $region13: #{discriminator_forward.6} parent=0 // pred_fallthru
    _
  // Predicated region
  $region14: #{discriminator_forward.6} parent=0 // pred_check
    _
  $region15: #{discriminator_forward.6} parent=0 // pred_check_branch
    %20 = sbr.rel (0) target = $region17
  $region16: #{discriminator_forward.6} parent=0 // pred_region
    _
  $region17: #{discriminator_forward.6} parent=0 // pred_fallthru
    _
  // Predicated region
  $region18: #{discriminator_forward.6} parent=0 // pred_check
    _
  $region19: #{discriminator_forward.6} parent=0 // pred_check_branch
    %22 = sbr.rel (0) target = $region21
  $region20: #{discriminator_forward.6} parent=0 // pred_region
    _
  $region21: #{discriminator_forward.6} parent=0 // pred_fallthru
    _
  // Predicated region
  $region22: #{discriminator_forward.6} parent=0 // pred_check
    _
  $region23: #{discriminator_forward.6} parent=0 // pred_check_branch
    %24 = sbr.rel (0) target = $region25
  $region24: #{discriminator_forward.6} parent=0 // pred_region
    _
  $region25: #{discriminator_forward.6} parent=0 // pred_fallthru
    _
  // Predicated region
  $region26: #{discriminator_forward.6} parent=0 // pred_check
    _
  $region27: #{discriminator_forward.6} parent=0 // pred_check_branch
    %26 = sbr.rel (0) target = $region29
  $region28: #{discriminator_forward.6} parent=0 // pred_region
    _
  $region29: #{discriminator_forward.6} parent=0 // pred_fallthru
    _
  // Predicated region
  $region30: #{discriminator_forward.6} parent=0 // pred_check
    _
  $region31: #{discriminator_forward.6} parent=0 // pred_check_branch
    %28 = sbr.rel (0) target = $region33
  $region32: #{discriminator_forward.6} parent=0 // pred_region
    _
  $region33: #{discriminator_forward.6} parent=0 // pred_fallthru
    _
  %v30 = vld [vmem:[%s0] sm:$0xf]
  %v31 = vld [vmem:[%s0 + $0x4] sm:$0xf]
  %v32 = vld [vmem:[%s0 + $0x8] sm:$0xf]
  %v33 = vld [vmem:[%s0 + $0xc] sm:$0xf]
  %v34 = vld [vmem:[%s0 + $0x10] sm:$0xf]
  %v35 = vld [vmem:[%s0 + $0x14] sm:$0xf]
  %v36 = vld [vmem:[%s0 + $0x18] sm:$0xf]
  %v37 = vld [vmem:[%s0 + $0x1c] sm:$0xf]
  %v38 = vld [vmem:[%s0 + $0x20] sm:$0xf]
  %v39 = vld [vmem:[%s0 + $0x24] sm:$0xf]
  %v40 = vld [vmem:[%s0 + $0x28] sm:$0xf]
  %v41 = vld [vmem:[%s0 + $0x2c] sm:$0xf]
  %v42 = vld [vmem:[%s0 + $0x30] sm:$0xf]
  %v43 = vld [vmem:[%s0 + $0x34] sm:$0xf]
  %v44 = vld [vmem:[%s0 + $0x38] sm:$0xf]
  %v45 = vld [vmem:[%s0 + $0x3c] sm:$0xf]
  %v46 = vld [vmem:[%s0 + $0x40] sm:$0xf]
  %v47 = vld [vmem:[%s6] sm:$0xf]
  %v48 = vld [vmem:[%s6 + $0x4] sm:$0xf]
  %v49 = vld [vmem:[%s6 + $0x8] sm:$0xf]
  %v50 = vld [vmem:[%s6 + $0xc] sm:$0xf]
  %v51 = vld [vmem:[%s6 + $0x10] sm:$0xf]
  %v52 = vld [vmem:[%s6 + $0x14] sm:$0xf]
  %v53 = vld [vmem:[%s6 + $0x18] sm:$0xf]
  %v54 = vld [vmem:[%s6 + $0x1c] sm:$0xf]
  %v55 = vld [vmem:[%s2] sm:$0xf]
  %v56 = vld [vmem:[%s2 + $0x4] sm:$0xf]
  %v57 = vld [vmem:[%s2 + $0x8] sm:$0xf]
  %v58 = vld [vmem:[%s2 + $0xc] sm:$0xf]
  %v59 = vld [vmem:[%s2 + $0x10] sm:$0xf]
  %v60 = vld [vmem:[%s2 + $0x14] sm:$0xf]
  %v61 = vld [vmem:[%s2 + $0x18] sm:$0xf]
  %v62 = vld [vmem:[%s2 + $0x1c] sm:$0xf]
  %v63 = vld [vmem:[%s2 + $0x20] sm:$0xf]
  %v64 = vld [vmem:[%s2 + $0x24] sm:$0xf]
  %v65 = vld [vmem:[%s2 + $0x28] sm:$0xf]
  %v66 = vld [vmem:[%s2 + $0x2c] sm:$0xf]
  %v67 = vld [vmem:[%s2 + $0x30] sm:$0xf]
  %v68 = vld [vmem:[%s2 + $0x34] sm:$0xf]
  %v69 = vld [vmem:[%s2 + $0x38] sm:$0xf]
  %v70 = vld [vmem:[%s2 + $0x3c] sm:$0xf]
  %v71 = vld [vmem:[%s2 + $0x40] sm:$0xf]
  %s72 = scalar_lea.vmem %s6, 32
  %v73 = vld [vmem:[%s72] sm:$0xf]
  %v74 = vld [vmem:[%s72 + $0x4] sm:$0xf]
  %v75 = vld [vmem:[%s72 + $0x8] sm:$0xf]
  %v76 = vld [vmem:[%s72 + $0xc] sm:$0xf]
  %v77 = vld [vmem:[%s72 + $0x10] sm:$0xf]
  %v78 = vld [vmem:[%s72 + $0x14] sm:$0xf]
  %v79 = vld [vmem:[%s72 + $0x18] sm:$0xf]
  %v80 = vld [vmem:[%s72 + $0x1c] sm:$0xf]
  %v98 = vunpack.c.l.b16 %v55
  %v99 = vunpack.c.l.b16 %v56
  %v100 = vunpack.c.l.b16 %v57
  %v101 = vunpack.c.l.b16 %v58
  %v102 = vunpack.c.l.b16 %v59
  %v103 = vunpack.c.l.b16 %v60
  %v104 = vunpack.c.l.b16 %v61
  %v105 = vunpack.c.l.b16 %v62
  %v106 = vunpack.c.l.b16 %v63
  %v107 = vunpack.c.l.b16 %v64
  %v108 = vunpack.c.l.b16 %v65
  %v109 = vunpack.c.l.b16 %v66
  %v110 = vunpack.c.l.b16 %v67
  %v111 = vunpack.c.l.b16 %v68
  %v112 = vunpack.c.l.b16 %v69
  %v113 = vunpack.c.l.b16 %v70
  %v114 = vunpack.c.l.b16 %v71
  %v115 = vpack.c.b16 %v99, %v98
  %v116 = vpack.c.b16 %v101, %v100
  %v117 = vpack.c.b16 %v103, %v102
  %v118 = vpack.c.b16 %v105, %v104
  %v119 = vpack.c.b16 %v107, %v106
  %v120 = vpack.c.b16 %v109, %v108
  %v121 = vpack.c.b16 %v111, %v110
  %v122 = vpack.c.b16 %v113, %v112
  %v123 = vpack.c.b16 %v114, %v114
  %v132 = vunpack.c.l.b16 %v73
  %v133 = vunpack.c.l.b16 %v74
  %v134 = vunpack.c.l.b16 %v75
  %v135 = vunpack.c.l.b16 %v76
  %v136 = vunpack.c.l.b16 %v77
  %v137 = vunpack.c.l.b16 %v78
  %v138 = vunpack.c.l.b16 %v79
  %v139 = vunpack.c.l.b16 %v80
  %v140 = vpack.c.b16 %v133, %v132
  %v141 = vpack.c.b16 %v135, %v134
  %v142 = vpack.c.b16 %v137, %v136
  %v143 = vpack.c.b16 %v139, %v138
  %vm148 = vcmask 523264
  %v150 = vsel %vm148, %v115, 0
  %v153 = vsel %vm148, %v116, 0
  %v156 = vsel %vm148, %v117, 0
  %v159 = vsel %vm148, %v118, 0
  %v162 = vsel %vm148, %v119, 0
  %v165 = vsel %vm148, %v120, 0
  %v168 = vsel %vm148, %v121, 0
  %v171 = vsel %vm148, %v122, 0
  %v174 = vsel %vm148, %v123, 0
  %176 = vmatprep.subr.bf16.mxu0 0
  %177 = vmatpush1.bf16.msra.mxu0 %v140
  %178 = vmatprep.subr.bf16.mxu0 0
  %179 = vmatpush1.bf16.msra.mxu0 %v141
  %180 = vmatprep.subr.bf16.mxu0 0
  %181 = vmatpush1.bf16.msra.mxu0 %v142
  %182 = vmatprep.subr.bf16.mxu0 0
  %183 = vmatpush1.bf16.msra.mxu0 %v143
  %184 = vmatprep.subr.bf16.mxu0 0
  %185 = vmatpush1.bf16.msra.mxu0 0
  %186 = vmatprep.subr.bf16.mxu0 0
  %187 = vmatpush1.bf16.msra.mxu0 0
  %188 = vmatprep.subr.bf16.mxu0 0
  %189 = vmatpush1.bf16.msra.mxu0 0
  %190 = vmatprep.subr.bf16.mxu0 0
  %191 = vmatpush1.bf16.msra.mxu0 0
  %192 = vmatprep.subr.bf16.mxu0 0
  %193 = vmatpush1.bf16.msra.mxu0 0
  %194 = vmatprep.subr.bf16.mxu0 0
  %195 = vmatpush1.bf16.msra.mxu0 0
  %196 = vmatprep.subr.bf16.mxu0 0
  %197 = vmatpush1.bf16.msra.mxu0 0
  %198 = vmatprep.subr.bf16.mxu0 0
  %199 = vmatpush1.bf16.msra.mxu0 0
  %200 = vmatprep.subr.bf16.mxu0 0
  %201 = vmatpush1.bf16.msra.mxu0 0
  %202 = vmatprep.subr.bf16.mxu0 0
  %203 = vmatpush1.bf16.msra.mxu0 0
  %204 = vmatprep.subr.bf16.mxu0 0
  %205 = vmatpush1.bf16.msra.mxu0 0
  %206 = vmatprep.subr.bf16.mxu0 0
  %207 = vmatpush1.bf16.msra.mxu0 0
  %208 = vmatprep.mubr.bf16.mxu0 0
  %209 = vmatmul.mubr.bf16.gmra.mrb[0].mxu0 %v150
  %v210 = vpop.f32.mrb[0].mxu0
  %v211 = vadd.f32 0.0, %v210
  %v212 = vpop.f32.mrb[0].mxu0
  %v213 = vpop.f32.mrb[0].mxu0
  %v214 = vadd.f32 0.0, %v213
  %v215 = vpop.f32.mrb[0].mxu0
  %216 = vmatprep.mubr.bf16.mxu0 0
  %217 = vmatmul.mubr.bf16.gmra.mrb[0].mxu0 %v153
  %v218 = vpop.f32.mrb[0].mxu0
  %v219 = vadd.f32 0.0, %v218
  %v220 = vpop.f32.mrb[0].mxu0
  %v221 = vpop.f32.mrb[0].mxu0
  %v222 = vadd.f32 0.0, %v221
  %v223 = vpop.f32.mrb[0].mxu0
  %224 = vmatprep.mubr.bf16.mxu0 0
  %225 = vmatmul.mubr.bf16.gmra.mrb[0].mxu0 %v156
  %v226 = vpop.f32.mrb[0].mxu0
  %v227 = vadd.f32 0.0, %v226
  %v228 = vpop.f32.mrb[0].mxu0
  %v229 = vpop.f32.mrb[0].mxu0
  %v230 = vadd.f32 0.0, %v229
  %v231 = vpop.f32.mrb[0].mxu0
  %232 = vmatprep.mubr.bf16.mxu0 0
  %233 = vmatmul.mubr.bf16.gmra.mrb[0].mxu0 %v159
  %v234 = vpop.f32.mrb[0].mxu0
  %v235 = vadd.f32 0.0, %v234
  %v236 = vpop.f32.mrb[0].mxu0
  %v237 = vpop.f32.mrb[0].mxu0
  %v238 = vadd.f32 0.0, %v237
  %v239 = vpop.f32.mrb[0].mxu0
  %240 = vmatprep.mubr.bf16.mxu0 0
  %241 = vmatmul.mubr.bf16.gmra.mrb[0].mxu0 %v162
  %v242 = vpop.f32.mrb[0].mxu0
  %v243 = vpop.f32.mrb[0].mxu0
  %v244 = vpop.f32.mrb[0].mxu0
  %v245 = vadd.f32 0.0, %v244
  %v246 = vpop.f32.mrb[0].mxu0
  %247 = vmatprep.mubr.bf16.mxu0 0
  %248 = vmatmul.mubr.bf16.gmra.mrb[0].mxu0 %v165
  %v249 = vpop.f32.mrb[0].mxu0
  %v250 = vadd.f32 0.0, %v249
  %v251 = vpop.f32.mrb[0].mxu0
  %v252 = vpop.f32.mrb[0].mxu0
  %v253 = vadd.f32 0.0, %v252
  %v254 = vpop.f32.mrb[0].mxu0
  %255 = vmatprep.mubr.bf16.mxu0 0
  %256 = vmatmul.mubr.bf16.gmra.mrb[0].mxu0 %v168
  %v257 = vpop.f32.mrb[0].mxu0
  %v258 = vadd.f32 0.0, %v257
  %v259 = vpop.f32.mrb[0].mxu0
  %v260 = vpop.f32.mrb[0].mxu0
  %v261 = vadd.f32 0.0, %v260
  %v262 = vpop.f32.mrb[0].mxu0
  %263 = vmatprep.mubr.bf16.mxu0 0
  %264 = vmatmul.mubr.bf16.gmra.mrb[0].mxu0 %v171
  %v265 = vpop.f32.mrb[0].mxu0
  %v266 = vadd.f32 0.0, %v265
  %v267 = vpop.f32.mrb[0].mxu0
  %v268 = vpop.f32.mrb[0].mxu0
  %v269 = vadd.f32 0.0, %v268
  %v270 = vpop.f32.mrb[0].mxu0
  %271 = vmatprep.mubr.bf16.mxu0 0
  %272 = vmatmul.mubr.bf16.gmra.mrb[0].mxu0 %v174
  %v273 = vpop.f32.mrb[0].mxu0
  %v274 = vadd.f32 0.0, %v273
  %v275 = vpop.f32.mrb[0].mxu0
  %v276 = vpop.f32.mrb[0].mxu0
  %v277 = vpop.f32.mrb[0].mxu0
  %278 = vdwg.mxu0
  %v296 = vunpack.c.l.b16 %v30
  %v297 = vunpack.c.l.b16 %v31
  %v298 = vunpack.c.l.b16 %v32
  %v299 = vunpack.c.l.b16 %v33
  %v300 = vunpack.c.l.b16 %v34
  %v301 = vunpack.c.l.b16 %v35
  %v302 = vunpack.c.l.b16 %v36
  %v303 = vunpack.c.l.b16 %v37
  %v304 = vunpack.c.l.b16 %v38
  %v305 = vunpack.c.l.b16 %v39
  %v306 = vunpack.c.l.b16 %v40
  %v307 = vunpack.c.l.b16 %v41
  %v308 = vunpack.c.l.b16 %v42
  %v309 = vunpack.c.l.b16 %v43
  %v310 = vunpack.c.l.b16 %v44
  %v311 = vunpack.c.l.b16 %v45
  %v312 = vunpack.c.l.b16 %v46
  %v313 = vpack.c.b16 %v297, %v296
  %v314 = vpack.c.b16 %v299, %v298
  %v315 = vpack.c.b16 %v301, %v300
  %v316 = vpack.c.b16 %v303, %v302
  %v317 = vpack.c.b16 %v305, %v304
  %v318 = vpack.c.b16 %v307, %v306
  %v319 = vpack.c.b16 %v309, %v308
  %v320 = vpack.c.b16 %v311, %v310
  %v321 = vpack.c.b16 %v312, %v312
  %v330 = vunpack.c.l.b16 %v47
  %v331 = vunpack.c.l.b16 %v48
  %v332 = vunpack.c.l.b16 %v49
  %v333 = vunpack.c.l.b16 %v50
  %v334 = vunpack.c.l.b16 %v51
  %v335 = vunpack.c.l.b16 %v52
  %v336 = vunpack.c.l.b16 %v53
  %v337 = vunpack.c.l.b16 %v54
  %v338 = vpack.c.b16 %v331, %v330
  %v339 = vpack.c.b16 %v333, %v332
  %v340 = vpack.c.b16 %v335, %v334
  %v341 = vpack.c.b16 %v337, %v336
  %v347 = vsel %vm148, %v313, 0
  %v350 = vsel %vm148, %v314, 0
  %v353 = vsel %vm148, %v315, 0
  %v356 = vsel %vm148, %v316, 0
  %v359 = vsel %vm148, %v317, 0
  %v362 = vsel %vm148, %v318, 0
  %v365 = vsel %vm148, %v319, 0
  %v368 = vsel %vm148, %v320, 0
  %v371 = vsel %vm148, %v321, 0
  %373 = vmatprep.subr.bf16.mxu0 0
  %374 = vmatpush1.bf16.msra.mxu0 %v338
  %375 = vmatprep.subr.bf16.mxu0 0
  %376 = vmatpush1.bf16.msra.mxu0 %v339
  %377 = vmatprep.subr.bf16.mxu0 0
  %378 = vmatpush1.bf16.msra.mxu0 %v340
  %379 = vmatprep.subr.bf16.mxu0 0
  %380 = vmatpush1.bf16.msra.mxu0 %v341
  %381 = vmatprep.subr.bf16.mxu0 0
  %382 = vmatpush1.bf16.msra.mxu0 0
  %383 = vmatprep.subr.bf16.mxu0 0
  %384 = vmatpush1.bf16.msra.mxu0 0
  %385 = vmatprep.subr.bf16.mxu0 0
  %386 = vmatpush1.bf16.msra.mxu0 0
  %387 = vmatprep.subr.bf16.mxu0 0
  %388 = vmatpush1.bf16.msra.mxu0 0
  %389 = vmatprep.subr.bf16.mxu0 0
  %390 = vmatpush1.bf16.msra.mxu0 0
  %391 = vmatprep.subr.bf16.mxu0 0
  %392 = vmatpush1.bf16.msra.mxu0 0
  %393 = vmatprep.subr.bf16.mxu0 0
  %394 = vmatpush1.bf16.msra.mxu0 0
  %395 = vmatprep.subr.bf16.mxu0 0
  %396 = vmatpush1.bf16.msra.mxu0 0
  %397 = vmatprep.subr.bf16.mxu0 0
  %398 = vmatpush1.bf16.msra.mxu0 0
  %399 = vmatprep.subr.bf16.mxu0 0
  %400 = vmatpush1.bf16.msra.mxu0 0
  %401 = vmatprep.subr.bf16.mxu0 0
  %402 = vmatpush1.bf16.msra.mxu0 0
  %403 = vmatprep.subr.bf16.mxu0 0
  %404 = vmatpush1.bf16.msra.mxu0 0
  %405 = vmatprep.mubr.bf16.mxu0 0
  %406 = vmatmul.mubr.bf16.gmra.mrb[0].mxu0 %v347
  %v407 = vpop.f32.mrb[0].mxu0
  %v408 = vadd.f32 %v211, %v407
  %v409 = vpop.f32.mrb[0].mxu0
  %v410 = vpop.f32.mrb[0].mxu0
  %v411 = vadd.f32 %v214, %v410
  %v412 = vpop.f32.mrb[0].mxu0
  %413 = vmatprep.mubr.bf16.mxu0 0
  %414 = vmatmul.mubr.bf16.gmra.mrb[0].mxu0 %v350
  %v415 = vpop.f32.mrb[0].mxu0
  %v416 = vadd.f32 %v219, %v415
  %v417 = vpop.f32.mrb[0].mxu0
  %v418 = vpop.f32.mrb[0].mxu0
  %v419 = vadd.f32 %v222, %v418
  %v420 = vpop.f32.mrb[0].mxu0
  %421 = vmatprep.mubr.bf16.mxu0 0
  %422 = vmatmul.mubr.bf16.gmra.mrb[0].mxu0 %v353
  %v423 = vpop.f32.mrb[0].mxu0
  %v424 = vadd.f32 %v227, %v423
  %v425 = vpop.f32.mrb[0].mxu0
  %v426 = vpop.f32.mrb[0].mxu0
  %v427 = vadd.f32 %v230, %v426
  %v428 = vpop.f32.mrb[0].mxu0
  %429 = vmatprep.mubr.bf16.mxu0 0
  %430 = vmatmul.mubr.bf16.gmra.mrb[0].mxu0 %v356
  %v431 = vpop.f32.mrb[0].mxu0
  %v432 = vadd.f32 %v235, %v431
  %v433 = vpop.f32.mrb[0].mxu0
  %v434 = vpop.f32.mrb[0].mxu0
  %v435 = vadd.f32 %v238, %v434
  %v436 = vpop.f32.mrb[0].mxu0
  %437 = vmatprep.mubr.bf16.mxu0 0
  %438 = vmatmul.mubr.bf16.gmra.mrb[0].mxu0 %v359
  %v439 = vpop.f32.mrb[0].mxu0
  %v440 = vpop.f32.mrb[0].mxu0
  %v441 = vpop.f32.mrb[0].mxu0
  %v442 = vadd.f32 %v245, %v441
  %v443 = vpop.f32.mrb[0].mxu0
  %444 = vmatprep.mubr.bf16.mxu0 0
  %445 = vmatmul.mubr.bf16.gmra.mrb[0].mxu0 %v362
  %v446 = vpop.f32.mrb[0].mxu0
  %v447 = vadd.f32 %v250, %v446
  %v448 = vpop.f32.mrb[0].mxu0
  %v449 = vpop.f32.mrb[0].mxu0
  %v450 = vadd.f32 %v253, %v449
  %v451 = vpop.f32.mrb[0].mxu0
  %452 = vmatprep.mubr.bf16.mxu0 0
  %453 = vmatmul.mubr.bf16.gmra.mrb[0].mxu0 %v365
  %v454 = vpop.f32.mrb[0].mxu0
  %v455 = vadd.f32 %v258, %v454
  %v456 = vpop.f32.mrb[0].mxu0
  %v457 = vpop.f32.mrb[0].mxu0
  %v458 = vadd.f32 %v261, %v457
  %v459 = vpop.f32.mrb[0].mxu0
  %460 = vmatprep.mubr.bf16.mxu0 0
  %461 = vmatmul.mubr.bf16.gmra.mrb[0].mxu0 %v368
  %v462 = vpop.f32.mrb[0].mxu0
  %v463 = vadd.f32 %v266, %v462
  %v464 = vpop.f32.mrb[0].mxu0
  %v465 = vpop.f32.mrb[0].mxu0
  %v466 = vadd.f32 %v269, %v465
  %v467 = vpop.f32.mrb[0].mxu0
  %468 = vmatprep.mubr.bf16.mxu0 0
  %469 = vmatmul.mubr.bf16.gmra.mrb[0].mxu0 %v371
  %v470 = vpop.f32.mrb[0].mxu0
  %v471 = vadd.f32 %v274, %v470
  %v472 = vpop.f32.mrb[0].mxu0
  %v473 = vpop.f32.mrb[0].mxu0
  %v474 = vpop.f32.mrb[0].mxu0
  %475 = vdwg.mxu0
  %v476 = vld [vmem:[%s1] sm:$0xf]
  %v477 = vld [vmem:[%s1 + $0x4] sm:$0xf]
  %v478 = vld [vmem:[%s1 + $0x8] sm:$0xf]
  %v479 = vld [vmem:[%s1 + $0xc] sm:$0xf]
  %v480 = vld [vmem:[%s1 + $0x10] sm:$0xf]
  %v481 = vld [vmem:[%s1 + $0x14] sm:$0xf]
  %v482 = vld [vmem:[%s1 + $0x18] sm:$0xf]
  %v483 = vld [vmem:[%s1 + $0x1c] sm:$0xf]
  %v484 = vld [vmem:[%s1 + $0x20] sm:$0xf]
  %v485 = vld [vmem:[%s1 + $0x24] sm:$0xf]
  %v486 = vld [vmem:[%s1 + $0x28] sm:$0xf]
  %v487 = vld [vmem:[%s1 + $0x2c] sm:$0xf]
  %v488 = vld [vmem:[%s1 + $0x30] sm:$0xf]
  %v489 = vld [vmem:[%s1 + $0x34] sm:$0xf]
  %v490 = vld [vmem:[%s1 + $0x38] sm:$0xf]
  %v491 = vld [vmem:[%s1 + $0x3c] sm:$0xf]
  %v492 = vld [vmem:[%s1 + $0x40] sm:$0xf]
  %s493 = scalar_lea.vmem %s6, 64
  %v494 = vld [vmem:[%s493] sm:$0xf]
  %v495 = vld [vmem:[%s493 + $0x4] sm:$0xf]
  %v496 = vld [vmem:[%s493 + $0x8] sm:$0xf]
  %v497 = vld [vmem:[%s493 + $0xc] sm:$0xf]
  %v498 = vld [vmem:[%s493 + $0x10] sm:$0xf]
  %v499 = vld [vmem:[%s493 + $0x14] sm:$0xf]
  %v500 = vld [vmem:[%s493 + $0x18] sm:$0xf]
  %v501 = vld [vmem:[%s493 + $0x1c] sm:$0xf]
  %v519 = vunpack.c.l.b16 %v476
  %v520 = vunpack.c.l.b16 %v477
  %v521 = vunpack.c.l.b16 %v478
  %v522 = vunpack.c.l.b16 %v479
  %v523 = vunpack.c.l.b16 %v480
  %v524 = vunpack.c.l.b16 %v481
  %v525 = vunpack.c.l.b16 %v482
  %v526 = vunpack.c.l.b16 %v483
  %v527 = vunpack.c.l.b16 %v484
  %v528 = vunpack.c.l.b16 %v485
  %v529 = vunpack.c.l.b16 %v486
  %v530 = vunpack.c.l.b16 %v487
  %v531 = vunpack.c.l.b16 %v488
  %v532 = vunpack.c.l.b16 %v489
  %v533 = vunpack.c.l.b16 %v490
  %v534 = vunpack.c.l.b16 %v491
  %v535 = vunpack.c.l.b16 %v492
  %v536 = vpack.c.b16 %v520, %v519
  %v537 = vpack.c.b16 %v522, %v521
  %v538 = vpack.c.b16 %v524, %v523
  %v539 = vpack.c.b16 %v526, %v525
  %v540 = vpack.c.b16 %v528, %v527
  %v541 = vpack.c.b16 %v530, %v529
  %v542 = vpack.c.b16 %v532, %v531
  %v543 = vpack.c.b16 %v534, %v533
  %v544 = vpack.c.b16 %v535, %v535
  %v553 = vunpack.c.l.b16 %v494
  %v554 = vunpack.c.l.b16 %v495
  %v555 = vunpack.c.l.b16 %v496
  %v556 = vunpack.c.l.b16 %v497
  %v557 = vunpack.c.l.b16 %v498
  %v558 = vunpack.c.l.b16 %v499
  %v559 = vunpack.c.l.b16 %v500
  %v560 = vunpack.c.l.b16 %v501
  %v561 = vpack.c.b16 %v554, %v553
  %v562 = vpack.c.b16 %v556, %v555
  %v563 = vpack.c.b16 %v558, %v557
  %v564 = vpack.c.b16 %v560, %v559
  %v570 = vsel %vm148, %v536, 0
  %v573 = vsel %vm148, %v537, 0
  %v576 = vsel %vm148, %v538, 0
  %v579 = vsel %vm148, %v539, 0
  %v582 = vsel %vm148, %v540, 0
  %v585 = vsel %vm148, %v541, 0
  %v588 = vsel %vm148, %v542, 0
  %v591 = vsel %vm148, %v543, 0
  %v594 = vsel %vm148, %v544, 0
  %596 = vmatprep.subr.bf16.mxu0 0
  %597 = vmatpush1.bf16.msra.mxu0 %v561
  %598 = vmatprep.subr.bf16.mxu0 0
  %599 = vmatpush1.bf16.msra.mxu0 %v562
  %600 = vmatprep.subr.bf16.mxu0 0
  %601 = vmatpush1.bf16.msra.mxu0 %v563
  %602 = vmatprep.subr.bf16.mxu0 0
  %603 = vmatpush1.bf16.msra.mxu0 %v564
  %604 = vmatprep.subr.bf16.mxu0 0
  %605 = vmatpush1.bf16.msra.mxu0 0
  %606 = vmatprep.subr.bf16.mxu0 0
  %607 = vmatpush1.bf16.msra.mxu0 0
  %608 = vmatprep.subr.bf16.mxu0 0
  %609 = vmatpush1.bf16.msra.mxu0 0
  %610 = vmatprep.subr.bf16.mxu0 0
  %611 = vmatpush1.bf16.msra.mxu0 0
  %612 = vmatprep.subr.bf16.mxu0 0
  %613 = vmatpush1.bf16.msra.mxu0 0
  %614 = vmatprep.subr.bf16.mxu0 0
  %615 = vmatpush1.bf16.msra.mxu0 0
  %616 = vmatprep.subr.bf16.mxu0 0
  %617 = vmatpush1.bf16.msra.mxu0 0
  %618 = vmatprep.subr.bf16.mxu0 0
  %619 = vmatpush1.bf16.msra.mxu0 0
  %620 = vmatprep.subr.bf16.mxu0 0
  %621 = vmatpush1.bf16.msra.mxu0 0
  %622 = vmatprep.subr.bf16.mxu0 0
  %623 = vmatpush1.bf16.msra.mxu0 0
  %624 = vmatprep.subr.bf16.mxu0 0
  %625 = vmatpush1.bf16.msra.mxu0 0
  %626 = vmatprep.subr.bf16.mxu0 0
  %627 = vmatpush1.bf16.msra.mxu0 0
  %628 = vmatprep.mubr.bf16.mxu0 0
  %629 = vmatmul.mubr.bf16.gmra.mrb[0].mxu0 %v570
  %v630 = vpop.f32.mrb[0].mxu0
  %v631 = vadd.f32 0.0, %v630
  %v632 = vpop.f32.mrb[0].mxu0
  %v633 = vpop.f32.mrb[0].mxu0
  %v634 = vadd.f32 0.0, %v633
  %v635 = vpop.f32.mrb[0].mxu0
  %636 = vmatprep.mubr.bf16.mxu0 0
  %637 = vmatmul.mubr.bf16.gmra.mrb[0].mxu0 %v573
  %v638 = vpop.f32.mrb[0].mxu0
  %v639 = vadd.f32 0.0, %v638
  %v640 = vpop.f32.mrb[0].mxu0
  %v641 = vpop.f32.mrb[0].mxu0
  %v642 = vadd.f32 0.0, %v641
  %v643 = vpop.f32.mrb[0].mxu0
  %644 = vmatprep.mubr.bf16.mxu0 0
  %645 = vmatmul.mubr.bf16.gmra.mrb[0].mxu0 %v576
  %v646 = vpop.f32.mrb[0].mxu0
  %v647 = vadd.f32 0.0, %v646
  %v648 = vpop.f32.mrb[0].mxu0
  %v649 = vpop.f32.mrb[0].mxu0
  %v650 = vadd.f32 0.0, %v649
  %v651 = vpop.f32.mrb[0].mxu0
  %652 = vmatprep.mubr.bf16.mxu0 0
  %653 = vmatmul.mubr.bf16.gmra.mrb[0].mxu0 %v579
  %v654 = vpop.f32.mrb[0].mxu0
  %v655 = vadd.f32 0.0, %v654
  %v656 = vpop.f32.mrb[0].mxu0
  %v657 = vpop.f32.mrb[0].mxu0
  %v658 = vadd.f32 0.0, %v657
  %v659 = vpop.f32.mrb[0].mxu0
  %660 = vmatprep.mubr.bf16.mxu0 0
  %661 = vmatmul.mubr.bf16.gmra.mrb[0].mxu0 %v582
  %v662 = vpop.f32.mrb[0].mxu0
  %v663 = vpop.f32.mrb[0].mxu0
  %v664 = vpop.f32.mrb[0].mxu0
  %v665 = vadd.f32 0.0, %v664
  %v666 = vpop.f32.mrb[0].mxu0
  %667 = vmatprep.mubr.bf16.mxu0 0
  %668 = vmatmul.mubr.bf16.gmra.mrb[0].mxu0 %v585
  %v669 = vpop.f32.mrb[0].mxu0
  %v670 = vadd.f32 0.0, %v669
  %v671 = vpop.f32.mrb[0].mxu0
  %v672 = vpop.f32.mrb[0].mxu0
  %v673 = vadd.f32 0.0, %v672
  %v674 = vpop.f32.mrb[0].mxu0
  %675 = vmatprep.mubr.bf16.mxu0 0
  %676 = vmatmul.mubr.bf16.gmra.mrb[0].mxu0 %v588
  %v677 = vpop.f32.mrb[0].mxu0
  %v678 = vadd.f32 0.0, %v677
  %v679 = vpop.f32.mrb[0].mxu0
  %v680 = vpop.f32.mrb[0].mxu0
  %v681 = vadd.f32 0.0, %v680
  %v682 = vpop.f32.mrb[0].mxu0
  %683 = vmatprep.mubr.bf16.mxu0 0
  %684 = vmatmul.mubr.bf16.gmra.mrb[0].mxu0 %v591
  %v685 = vpop.f32.mrb[0].mxu0
  %v686 = vadd.f32 0.0, %v685
  %v687 = vpop.f32.mrb[0].mxu0
  %v688 = vpop.f32.mrb[0].mxu0
  %v689 = vadd.f32 0.0, %v688
  %v690 = vpop.f32.mrb[0].mxu0
  %691 = vmatprep.mubr.bf16.mxu0 0
  %692 = vmatmul.mubr.bf16.gmra.mrb[0].mxu0 %v594
  %v693 = vpop.f32.mrb[0].mxu0
  %v694 = vadd.f32 0.0, %v693
  %v695 = vpop.f32.mrb[0].mxu0
  %v696 = vpop.f32.mrb[0].mxu0
  %v697 = vpop.f32.mrb[0].mxu0
  %698 = vdwg.mxu0
  %v699 = vadd.f32 %v408, %v631
  %v700 = vadd.f32 %v411, %v634
  %v701 = vadd.f32 %v416, %v639
  %v702 = vadd.f32 %v419, %v642
  %v703 = vadd.f32 %v424, %v647
  %v704 = vadd.f32 %v427, %v650
  %v705 = vadd.f32 %v432, %v655
  %v706 = vadd.f32 %v435, %v658
  %v707 = vadd.f32 %v442, %v665
  %v708 = vadd.f32 %v447, %v670
  %v709 = vadd.f32 %v450, %v673
  %v710 = vadd.f32 %v455, %v678
  %v711 = vadd.f32 %v458, %v681
  %v712 = vadd.f32 %v463, %v686
  %v713 = vadd.f32 %v466, %v689
  %v714 = vadd.f32 %v471, %v694
  %v715 = vld [vmem:[%s3] sm:$0xf]
  %v716 = vld [vmem:[%s3 + $0x4] sm:$0xf]
  %v717 = vld [vmem:[%s3 + $0x8] sm:$0xf]
  %v718 = vld [vmem:[%s3 + $0xc] sm:$0xf]
  %v719 = vld [vmem:[%s3 + $0x10] sm:$0xf]
  %v720 = vld [vmem:[%s3 + $0x14] sm:$0xf]
  %v721 = vld [vmem:[%s3 + $0x18] sm:$0xf]
  %v722 = vld [vmem:[%s3 + $0x1c] sm:$0xf]
  %v723 = vld [vmem:[%s3 + $0x20] sm:$0xf]
  %v724 = vld [vmem:[%s3 + $0x24] sm:$0xf]
  %v725 = vld [vmem:[%s3 + $0x28] sm:$0xf]
  %v726 = vld [vmem:[%s3 + $0x2c] sm:$0xf]
  %v727 = vld [vmem:[%s3 + $0x30] sm:$0xf]
  %v728 = vld [vmem:[%s3 + $0x34] sm:$0xf]
  %v729 = vld [vmem:[%s3 + $0x38] sm:$0xf]
  %v730 = vld [vmem:[%s3 + $0x3c] sm:$0xf]
  %v731 = vld [vmem:[%s3 + $0x40] sm:$0xf]
  %s732 = scalar_lea.vmem %s6, 96
  %v733 = vld [vmem:[%s732] sm:$0xf]
  %v734 = vld [vmem:[%s732 + $0x4] sm:$0xf]
  %v735 = vld [vmem:[%s732 + $0x8] sm:$0xf]
  %v736 = vld [vmem:[%s732 + $0xc] sm:$0xf]
  %v737 = vld [vmem:[%s732 + $0x10] sm:$0xf]
  %v738 = vld [vmem:[%s732 + $0x14] sm:$0xf]
  %v739 = vld [vmem:[%s732 + $0x18] sm:$0xf]
  %v740 = vld [vmem:[%s732 + $0x1c] sm:$0xf]
  %v758 = vunpack.c.l.b16 %v715
  %v759 = vunpack.c.l.b16 %v716
  %v760 = vunpack.c.l.b16 %v717
  %v761 = vunpack.c.l.b16 %v718
  %v762 = vunpack.c.l.b16 %v719
  %v763 = vunpack.c.l.b16 %v720
  %v764 = vunpack.c.l.b16 %v721
  %v765 = vunpack.c.l.b16 %v722
  %v766 = vunpack.c.l.b16 %v723
  %v767 = vunpack.c.l.b16 %v724
  %v768 = vunpack.c.l.b16 %v725
  %v769 = vunpack.c.l.b16 %v726
  %v770 = vunpack.c.l.b16 %v727
  %v771 = vunpack.c.l.b16 %v728
  %v772 = vunpack.c.l.b16 %v729
  %v773 = vunpack.c.l.b16 %v730
  %v774 = vunpack.c.l.b16 %v731
  %v775 = vpack.c.b16 %v759, %v758
  %v776 = vpack.c.b16 %v761, %v760
  %v777 = vpack.c.b16 %v763, %v762
  %v778 = vpack.c.b16 %v765, %v764
  %v779 = vpack.c.b16 %v767, %v766
  %v780 = vpack.c.b16 %v769, %v768
  %v781 = vpack.c.b16 %v771, %v770
  %v782 = vpack.c.b16 %v773, %v772
  %v783 = vpack.c.b16 %v774, %v774
  %v792 = vunpack.c.l.b16 %v733
  %v793 = vunpack.c.l.b16 %v734
  %v794 = vunpack.c.l.b16 %v735
  %v795 = vunpack.c.l.b16 %v736
  %v796 = vunpack.c.l.b16 %v737
  %v797 = vunpack.c.l.b16 %v738
  %v798 = vunpack.c.l.b16 %v739
  %v799 = vunpack.c.l.b16 %v740
  %v800 = vpack.c.b16 %v793, %v792
  %v801 = vpack.c.b16 %v795, %v794
  %v802 = vpack.c.b16 %v797, %v796
  %v803 = vpack.c.b16 %v799, %v798
  %v809 = vsel %vm148, %v775, 0
  %v812 = vsel %vm148, %v776, 0
  %v815 = vsel %vm148, %v777, 0
  %v818 = vsel %vm148, %v778, 0
  %v821 = vsel %vm148, %v779, 0
  %v824 = vsel %vm148, %v780, 0
  %v827 = vsel %vm148, %v781, 0
  %v830 = vsel %vm148, %v782, 0
  %v833 = vsel %vm148, %v783, 0
  %835 = vmatprep.subr.bf16.mxu0 0
  %836 = vmatpush1.bf16.msra.mxu0 %v800
  %837 = vmatprep.subr.bf16.mxu0 0
  %838 = vmatpush1.bf16.msra.mxu0 %v801
  %839 = vmatprep.subr.bf16.mxu0 0
  %840 = vmatpush1.bf16.msra.mxu0 %v802
  %841 = vmatprep.subr.bf16.mxu0 0
  %842 = vmatpush1.bf16.msra.mxu0 %v803
  %843 = vmatprep.subr.bf16.mxu0 0
  %844 = vmatpush1.bf16.msra.mxu0 0
  %845 = vmatprep.subr.bf16.mxu0 0
  %846 = vmatpush1.bf16.msra.mxu0 0
  %847 = vmatprep.subr.bf16.mxu0 0
  %848 = vmatpush1.bf16.msra.mxu0 0
  %849 = vmatprep.subr.bf16.mxu0 0
  %850 = vmatpush1.bf16.msra.mxu0 0
  %851 = vmatprep.subr.bf16.mxu0 0
  %852 = vmatpush1.bf16.msra.mxu0 0
  %853 = vmatprep.subr.bf16.mxu0 0
  %854 = vmatpush1.bf16.msra.mxu0 0
  %855 = vmatprep.subr.bf16.mxu0 0
  %856 = vmatpush1.bf16.msra.mxu0 0
  %857 = vmatprep.subr.bf16.mxu0 0
  %858 = vmatpush1.bf16.msra.mxu0 0
  %859 = vmatprep.subr.bf16.mxu0 0
  %860 = vmatpush1.bf16.msra.mxu0 0
  %861 = vmatprep.subr.bf16.mxu0 0
  %862 = vmatpush1.bf16.msra.mxu0 0
  %863 = vmatprep.subr.bf16.mxu0 0
  %864 = vmatpush1.bf16.msra.mxu0 0
  %865 = vmatprep.subr.bf16.mxu0 0
  %866 = vmatpush1.bf16.msra.mxu0 0
  %867 = vmatprep.mubr.bf16.mxu0 0
  %868 = vmatmul.mubr.bf16.gmra.mrb[0].mxu0 %v809
  %v869 = vpop.f32.mrb[0].mxu0
  %v870 = vadd.f32 0.0, %v869
  %v871 = vpop.f32.mrb[0].mxu0
  %v872 = vpop.f32.mrb[0].mxu0
  %v873 = vadd.f32 0.0, %v872
  %v874 = vpop.f32.mrb[0].mxu0
  %875 = vmatprep.mubr.bf16.mxu0 0
  %876 = vmatmul.mubr.bf16.gmra.mrb[0].mxu0 %v812
  %v877 = vpop.f32.mrb[0].mxu0
  %v878 = vadd.f32 0.0, %v877
  %v879 = vpop.f32.mrb[0].mxu0
  %v880 = vpop.f32.mrb[0].mxu0
  %v881 = vadd.f32 0.0, %v880
  %v882 = vpop.f32.mrb[0].mxu0
  %883 = vmatprep.mubr.bf16.mxu0 0
  %884 = vmatmul.mubr.bf16.gmra.mrb[0].mxu0 %v815
  %v885 = vpop.f32.mrb[0].mxu0
  %v886 = vadd.f32 0.0, %v885
  %v887 = vpop.f32.mrb[0].mxu0
  %v888 = vpop.f32.mrb[0].mxu0
  %v889 = vadd.f32 0.0, %v888
  %v890 = vpop.f32.mrb[0].mxu0
  %891 = vmatprep.mubr.bf16.mxu0 0
  %892 = vmatmul.mubr.bf16.gmra.mrb[0].mxu0 %v818
  %v893 = vpop.f32.mrb[0].mxu0
  %v894 = vadd.f32 0.0, %v893
  %v895 = vpop.f32.mrb[0].mxu0
  %v896 = vpop.f32.mrb[0].mxu0
  %v897 = vadd.f32 0.0, %v896
  %v898 = vpop.f32.mrb[0].mxu0
  %899 = vmatprep.mubr.bf16.mxu0 0
  %900 = vmatmul.mubr.bf16.gmra.mrb[0].mxu0 %v821
  %v901 = vpop.f32.mrb[0].mxu0
  %v902 = vpop.f32.mrb[0].mxu0
  %v903 = vpop.f32.mrb[0].mxu0
  %v904 = vadd.f32 0.0, %v903
  %v905 = vpop.f32.mrb[0].mxu0
  %906 = vmatprep.mubr.bf16.mxu0 0
  %907 = vmatmul.mubr.bf16.gmra.mrb[0].mxu0 %v824
  %v908 = vpop.f32.mrb[0].mxu0
  %v909 = vadd.f32 0.0, %v908
  %v910 = vpop.f32.mrb[0].mxu0
  %v911 = vpop.f32.mrb[0].mxu0
  %v912 = vadd.f32 0.0, %v911
  %v913 = vpop.f32.mrb[0].mxu0
  %914 = vmatprep.mubr.bf16.mxu0 0
  %915 = vmatmul.mubr.bf16.gmra.mrb[0].mxu0 %v827
  %v916 = vpop.f32.mrb[0].mxu0
  %v917 = vadd.f32 0.0, %v916
  %v918 = vpop.f32.mrb[0].mxu0
  %v919 = vpop.f32.mrb[0].mxu0
  %v920 = vadd.f32 0.0, %v919
  %v921 = vpop.f32.mrb[0].mxu0
  %922 = vmatprep.mubr.bf16.mxu0 0
  %923 = vmatmul.mubr.bf16.gmra.mrb[0].mxu0 %v830
  %v924 = vpop.f32.mrb[0].mxu0
  %v925 = vadd.f32 0.0, %v924
  %v926 = vpop.f32.mrb[0].mxu0
  %v927 = vpop.f32.mrb[0].mxu0
  %v928 = vadd.f32 0.0, %v927
  %v929 = vpop.f32.mrb[0].mxu0
  %930 = vmatprep.mubr.bf16.mxu0 0
  %931 = vmatmul.mubr.bf16.gmra.mrb[0].mxu0 %v833
  %v932 = vpop.f32.mrb[0].mxu0
  %v933 = vadd.f32 0.0, %v932
  %v934 = vpop.f32.mrb[0].mxu0
  %v935 = vpop.f32.mrb[0].mxu0
  %v936 = vpop.f32.mrb[0].mxu0
  %937 = vdwg.mxu0
  %v938 = vadd.f32 %v699, %v870
  %v939 = vadd.f32 %v700, %v873
  %v940 = vadd.f32 %v701, %v878
  %v941 = vadd.f32 %v702, %v881
  %v942 = vadd.f32 %v703, %v886
  %v943 = vadd.f32 %v704, %v889
  %v944 = vadd.f32 %v705, %v894
  %v945 = vadd.f32 %v706, %v897
  %v946 = vadd.f32 %v707, %v904
  %v947 = vadd.f32 %v708, %v909
  %v948 = vadd.f32 %v709, %v912
  %v949 = vadd.f32 %v710, %v917
  %v950 = vadd.f32 %v711, %v920
  %v951 = vadd.f32 %v712, %v925
  %v952 = vadd.f32 %v713, %v928
  %v953 = vadd.f32 %v714, %v933
  %v954 = vld [vmem:[%s5] sm:$0xf]
  %v955 = vld [vmem:[%s5 + $0x4] sm:$0xf]
  %v956 = vld [vmem:[%s5 + $0x8] sm:$0xf]
  %v957 = vld [vmem:[%s5 + $0xc] sm:$0xf]
  %v958 = vld [vmem:[%s5 + $0x10] sm:$0xf]
  %v959 = vld [vmem:[%s5 + $0x14] sm:$0xf]
  %v960 = vld [vmem:[%s5 + $0x18] sm:$0xf]
  %v961 = vld [vmem:[%s5 + $0x1c] sm:$0xf]
  %v962 = vld [vmem:[%s5 + $0x20] sm:$0xf]
  %v963 = vld [vmem:[%s5 + $0x24] sm:$0xf]
  %v964 = vld [vmem:[%s5 + $0x28] sm:$0xf]
  %v965 = vld [vmem:[%s5 + $0x2c] sm:$0xf]
  %v966 = vld [vmem:[%s5 + $0x30] sm:$0xf]
  %v967 = vld [vmem:[%s5 + $0x34] sm:$0xf]
  %v968 = vld [vmem:[%s5 + $0x38] sm:$0xf]
  %v969 = vld [vmem:[%s5 + $0x3c] sm:$0xf]
  %v970 = vld [vmem:[%s5 + $0x40] sm:$0xf]
  %s971 = scalar_lea.vmem %s6, 128
  %v972 = vld [vmem:[%s971] sm:$0xf]
  %v973 = vld [vmem:[%s971 + $0x4] sm:$0xf]
  %v974 = vld [vmem:[%s971 + $0x8] sm:$0xf]
  %v975 = vld [vmem:[%s971 + $0xc] sm:$0xf]
  %v976 = vld [vmem:[%s971 + $0x10] sm:$0xf]
  %v977 = vld [vmem:[%s971 + $0x14] sm:$0xf]
  %v978 = vld [vmem:[%s971 + $0x18] sm:$0xf]
  %v979 = vld [vmem:[%s971 + $0x1c] sm:$0xf]
  %v997 = vunpack.c.l.b16 %v954
  %v998 = vunpack.c.l.b16 %v955
  %v999 = vunpack.c.l.b16 %v956
  %v1000 = vunpack.c.l.b16 %v957
  %v1001 = vunpack.c.l.b16 %v958
  %v1002 = vunpack.c.l.b16 %v959
  %v1003 = vunpack.c.l.b16 %v960
  %v1004 = vunpack.c.l.b16 %v961
  %v1005 = vunpack.c.l.b16 %v962
  %v1006 = vunpack.c.l.b16 %v963
  %v1007 = vunpack.c.l.b16 %v964
  %v1008 = vunpack.c.l.b16 %v965
  %v1009 = vunpack.c.l.b16 %v966
  %v1010 = vunpack.c.l.b16 %v967
  %v1011 = vunpack.c.l.b16 %v968
  %v1012 = vunpack.c.l.b16 %v969
  %v1013 = vunpack.c.l.b16 %v970
  %v1014 = vpack.c.b16 %v998, %v997
  %v1015 = vpack.c.b16 %v1000, %v999
  %v1016 = vpack.c.b16 %v1002, %v1001
  %v1017 = vpack.c.b16 %v1004, %v1003
  %v1018 = vpack.c.b16 %v1006, %v1005
  %v1019 = vpack.c.b16 %v1008, %v1007
  %v1020 = vpack.c.b16 %v1010, %v1009
  %v1021 = vpack.c.b16 %v1012, %v1011
  %v1022 = vpack.c.b16 %v1013, %v1013
  %v1031 = vunpack.c.l.b16 %v972
  %v1032 = vunpack.c.l.b16 %v973
  %v1033 = vunpack.c.l.b16 %v974
  %v1034 = vunpack.c.l.b16 %v975
  %v1035 = vunpack.c.l.b16 %v976
  %v1036 = vunpack.c.l.b16 %v977
  %v1037 = vunpack.c.l.b16 %v978
  %v1038 = vunpack.c.l.b16 %v979
  %v1039 = vpack.c.b16 %v1032, %v1031
  %v1040 = vpack.c.b16 %v1034, %v1033
  %v1041 = vpack.c.b16 %v1036, %v1035
  %v1042 = vpack.c.b16 %v1038, %v1037
  %v1048 = vsel %vm148, %v1014, 0
  %v1051 = vsel %vm148, %v1015, 0
  %v1054 = vsel %vm148, %v1016, 0
  %v1057 = vsel %vm148, %v1017, 0
  %v1060 = vsel %vm148, %v1018, 0
  %v1063 = vsel %vm148, %v1019, 0
  %v1066 = vsel %vm148, %v1020, 0
  %v1069 = vsel %vm148, %v1021, 0
  %v1072 = vsel %vm148, %v1022, 0
  %1074 = vmatprep.subr.bf16.mxu0 0
  %1075 = vmatpush1.bf16.msra.mxu0 %v1039
  %1076 = vmatprep.subr.bf16.mxu0 0
  %1077 = vmatpush1.bf16.msra.mxu0 %v1040
  %1078 = vmatprep.subr.bf16.mxu0 0
  %1079 = vmatpush1.bf16.msra.mxu0 %v1041
  %1080 = vmatprep.subr.bf16.mxu0 0
  %1081 = vmatpush1.bf16.msra.mxu0 %v1042
  %1082 = vmatprep.subr.bf16.mxu0 0
  %1083 = vmatpush1.bf16.msra.mxu0 0
  %1084 = vmatprep.subr.bf16.mxu0 0
  %1085 = vmatpush1.bf16.msra.mxu0 0
  %1086 = vmatprep.subr.bf16.mxu0 0
  %1087 = vmatpush1.bf16.msra.mxu0 0
  %1088 = vmatprep.subr.bf16.mxu0 0
  %1089 = vmatpush1.bf16.msra.mxu0 0
  %1090 = vmatprep.subr.bf16.mxu0 0
  %1091 = vmatpush1.bf16.msra.mxu0 0
  %1092 = vmatprep.subr.bf16.mxu0 0
  %1093 = vmatpush1.bf16.msra.mxu0 0
  %1094 = vmatprep.subr.bf16.mxu0 0
  %1095 = vmatpush1.bf16.msra.mxu0 0
  %1096 = vmatprep.subr.bf16.mxu0 0
  %1097 = vmatpush1.bf16.msra.mxu0 0
  %1098 = vmatprep.subr.bf16.mxu0 0
  %1099 = vmatpush1.bf16.msra.mxu0 0
  %1100 = vmatprep.subr.bf16.mxu0 0
  %1101 = vmatpush1.bf16.msra.mxu0 0
  %1102 = vmatprep.subr.bf16.mxu0 0
  %1103 = vmatpush1.bf16.msra.mxu0 0
  %1104 = vmatprep.subr.bf16.mxu0 0
  %1105 = vmatpush1.bf16.msra.mxu0 0
  %1106 = vmatprep.mubr.bf16.mxu0 0
  %1107 = vmatmul.mubr.bf16.gmra.mrb[0].mxu0 %v1048
  %v1108 = vpop.f32.mrb[0].mxu0
  %v1109 = vadd.f32 0.0, %v1108
  %v1110 = vpop.f32.mrb[0].mxu0
  %v1111 = vpop.f32.mrb[0].mxu0
  %v1112 = vadd.f32 0.0, %v1111
  %v1113 = vpop.f32.mrb[0].mxu0
  %1114 = vmatprep.mubr.bf16.mxu0 0
  %1115 = vmatmul.mubr.bf16.gmra.mrb[0].mxu0 %v1051
  %v1116 = vpop.f32.mrb[0].mxu0
  %v1117 = vadd.f32 0.0, %v1116
  %v1118 = vpop.f32.mrb[0].mxu0
  %v1119 = vpop.f32.mrb[0].mxu0
  %v1120 = vadd.f32 0.0, %v1119
  %v1121 = vpop.f32.mrb[0].mxu0
  %1122 = vmatprep.mubr.bf16.mxu0 0
  %1123 = vmatmul.mubr.bf16.gmra.mrb[0].mxu0 %v1054
  %v1124 = vpop.f32.mrb[0].mxu0
  %v1125 = vadd.f32 0.0, %v1124
  %v1126 = vpop.f32.mrb[0].mxu0
  %v1127 = vpop.f32.mrb[0].mxu0
  %v1128 = vadd.f32 0.0, %v1127
  %v1129 = vpop.f32.mrb[0].mxu0
  %1130 = vmatprep.mubr.bf16.mxu0 0
  %1131 = vmatmul.mubr.bf16.gmra.mrb[0].mxu0 %v1057
  %v1132 = vpop.f32.mrb[0].mxu0
  %v1133 = vadd.f32 0.0, %v1132
  %v1134 = vpop.f32.mrb[0].mxu0
  %v1135 = vpop.f32.mrb[0].mxu0
  %v1136 = vadd.f32 0.0, %v1135
  %v1137 = vpop.f32.mrb[0].mxu0
  %1138 = vmatprep.mubr.bf16.mxu0 0
  %1139 = vmatmul.mubr.bf16.gmra.mrb[0].mxu0 %v1060
  %v1140 = vpop.f32.mrb[0].mxu0
  %v1141 = vpop.f32.mrb[0].mxu0
  %v1142 = vpop.f32.mrb[0].mxu0
  %v1143 = vadd.f32 0.0, %v1142
  %v1144 = vpop.f32.mrb[0].mxu0
  %1145 = vmatprep.mubr.bf16.mxu0 0
  %1146 = vmatmul.mubr.bf16.gmra.mrb[0].mxu0 %v1063
  %v1147 = vpop.f32.mrb[0].mxu0
  %v1148 = vadd.f32 0.0, %v1147
  %v1149 = vpop.f32.mrb[0].mxu0
  %v1150 = vpop.f32.mrb[0].mxu0
  %v1151 = vadd.f32 0.0, %v1150
  %v1152 = vpop.f32.mrb[0].mxu0
  %1153 = vmatprep.mubr.bf16.mxu0 0
  %1154 = vmatmul.mubr.bf16.gmra.mrb[0].mxu0 %v1066
  %v1155 = vpop.f32.mrb[0].mxu0
  %v1156 = vadd.f32 0.0, %v1155
  %v1157 = vpop.f32.mrb[0].mxu0
  %v1158 = vpop.f32.mrb[0].mxu0
  %v1159 = vadd.f32 0.0, %v1158
  %v1160 = vpop.f32.mrb[0].mxu0
  %1161 = vmatprep.mubr.bf16.mxu0 0
  %1162 = vmatmul.mubr.bf16.gmra.mrb[0].mxu0 %v1069
  %v1163 = vpop.f32.mrb[0].mxu0
  %v1164 = vadd.f32 0.0, %v1163
  %v1165 = vpop.f32.mrb[0].mxu0
  %v1166 = vpop.f32.mrb[0].mxu0
  %v1167 = vadd.f32 0.0, %v1166
  %v1168 = vpop.f32.mrb[0].mxu0
  %1169 = vmatprep.mubr.bf16.mxu0 0
  %1170 = vmatmul.mubr.bf16.gmra.mrb[0].mxu0 %v1072
  %v1171 = vpop.f32.mrb[0].mxu0
  %v1172 = vadd.f32 0.0, %v1171
  %v1173 = vpop.f32.mrb[0].mxu0
  %v1174 = vpop.f32.mrb[0].mxu0
  %v1175 = vpop.f32.mrb[0].mxu0
  %1176 = vdwg.mxu0
  %v1177 = vadd.f32 %v938, %v1109
  %v1178 = vadd.f32 %v939, %v1112
  %v1179 = vadd.f32 %v940, %v1117
  %v1180 = vadd.f32 %v941, %v1120
  %v1181 = vadd.f32 %v942, %v1125
  %v1182 = vadd.f32 %v943, %v1128
  %v1183 = vadd.f32 %v944, %v1133
  %v1184 = vadd.f32 %v945, %v1136
  %v1185 = vadd.f32 %v946, %v1143
  %v1186 = vadd.f32 %v947, %v1148
  %v1187 = vadd.f32 %v948, %v1151
  %v1188 = vadd.f32 %v949, %v1156
  %v1189 = vadd.f32 %v950, %v1159
  %v1190 = vadd.f32 %v951, %v1164
  %v1191 = vadd.f32 %v952, %v1167
  %v1192 = vadd.f32 %v953, %v1172
  %v1193 = vld [vmem:[%s4] sm:$0xf]
  %v1194 = vld [vmem:[%s4 + $0x4] sm:$0xf]
  %v1195 = vld [vmem:[%s4 + $0x8] sm:$0xf]
  %v1196 = vld [vmem:[%s4 + $0xc] sm:$0xf]
  %v1197 = vld [vmem:[%s4 + $0x10] sm:$0xf]
  %v1198 = vld [vmem:[%s4 + $0x14] sm:$0xf]
  %v1199 = vld [vmem:[%s4 + $0x18] sm:$0xf]
  %v1200 = vld [vmem:[%s4 + $0x1c] sm:$0xf]
  %v1201 = vld [vmem:[%s4 + $0x20] sm:$0xf]
  %v1202 = vld [vmem:[%s4 + $0x24] sm:$0xf]
  %v1203 = vld [vmem:[%s4 + $0x28] sm:$0xf]
  %v1204 = vld [vmem:[%s4 + $0x2c] sm:$0xf]
  %v1205 = vld [vmem:[%s4 + $0x30] sm:$0xf]
  %v1206 = vld [vmem:[%s4 + $0x34] sm:$0xf]
  %v1207 = vld [vmem:[%s4 + $0x38] sm:$0xf]
  %v1208 = vld [vmem:[%s4 + $0x3c] sm:$0xf]
  %v1209 = vld [vmem:[%s4 + $0x40] sm:$0xf]
  %s1210 = scalar_lea.vmem %s6, 160
  %v1211 = vld [vmem:[%s1210] sm:$0xf]
  %v1212 = vld [vmem:[%s1210 + $0x4] sm:$0xf]
  %v1213 = vld [vmem:[%s1210 + $0x8] sm:$0xf]
  %v1214 = vld [vmem:[%s1210 + $0xc] sm:$0xf]
  %v1215 = vld [vmem:[%s1210 + $0x10] sm:$0xf]
  %v1216 = vld [vmem:[%s1210 + $0x14] sm:$0xf]
  %v1217 = vld [vmem:[%s1210 + $0x18] sm:$0xf]
  %v1218 = vld [vmem:[%s1210 + $0x1c] sm:$0xf]
  %v1236 = vunpack.c.l.b16 %v1193
  %v1237 = vunpack.c.l.b16 %v1194
  %v1238 = vunpack.c.l.b16 %v1195
  %v1239 = vunpack.c.l.b16 %v1196
  %v1240 = vunpack.c.l.b16 %v1197
  %v1241 = vunpack.c.l.b16 %v1198
  %v1242 = vunpack.c.l.b16 %v1199
  %v1243 = vunpack.c.l.b16 %v1200
  %v1244 = vunpack.c.l.b16 %v1201
  %v1245 = vunpack.c.l.b16 %v1202
  %v1246 = vunpack.c.l.b16 %v1203
  %v1247 = vunpack.c.l.b16 %v1204
  %v1248 = vunpack.c.l.b16 %v1205
  %v1249 = vunpack.c.l.b16 %v1206
  %v1250 = vunpack.c.l.b16 %v1207
  %v1251 = vunpack.c.l.b16 %v1208
  %v1252 = vunpack.c.l.b16 %v1209
  %v1253 = vpack.c.b16 %v1237, %v1236
  %v1254 = vpack.c.b16 %v1239, %v1238
  %v1255 = vpack.c.b16 %v1241, %v1240
  %v1256 = vpack.c.b16 %v1243, %v1242
  %v1257 = vpack.c.b16 %v1245, %v1244
  %v1258 = vpack.c.b16 %v1247, %v1246
  %v1259 = vpack.c.b16 %v1249, %v1248
  %v1260 = vpack.c.b16 %v1251, %v1250
  %v1261 = vpack.c.b16 %v1252, %v1252
  %v1270 = vunpack.c.l.b16 %v1211
  %v1271 = vunpack.c.l.b16 %v1212
  %v1272 = vunpack.c.l.b16 %v1213
  %v1273 = vunpack.c.l.b16 %v1214
  %v1274 = vunpack.c.l.b16 %v1215
  %v1275 = vunpack.c.l.b16 %v1216
  %v1276 = vunpack.c.l.b16 %v1217
  %v1277 = vunpack.c.l.b16 %v1218
  %v1278 = vpack.c.b16 %v1271, %v1270
  %v1279 = vpack.c.b16 %v1273, %v1272
  %v1280 = vpack.c.b16 %v1275, %v1274
  %v1281 = vpack.c.b16 %v1277, %v1276
  %v1287 = vsel %vm148, %v1253, 0
  %v1290 = vsel %vm148, %v1254, 0
  %v1293 = vsel %vm148, %v1255, 0
  %v1296 = vsel %vm148, %v1256, 0
  %v1299 = vsel %vm148, %v1257, 0
  %v1302 = vsel %vm148, %v1258, 0
  %v1305 = vsel %vm148, %v1259, 0
  %v1308 = vsel %vm148, %v1260, 0
  %v1311 = vsel %vm148, %v1261, 0
  %1313 = vmatprep.subr.bf16.mxu0 0
  %1314 = vmatpush1.bf16.msra.mxu0 %v1278
  %1315 = vmatprep.subr.bf16.mxu0 0
  %1316 = vmatpush1.bf16.msra.mxu0 %v1279
  %1317 = vmatprep.subr.bf16.mxu0 0
  %1318 = vmatpush1.bf16.msra.mxu0 %v1280
  %1319 = vmatprep.subr.bf16.mxu0 0
  %1320 = vmatpush1.bf16.msra.mxu0 %v1281
  %1321 = vmatprep.subr.bf16.mxu0 0
  %1322 = vmatpush1.bf16.msra.mxu0 0
  %1323 = vmatprep.subr.bf16.mxu0 0
  %1324 = vmatpush1.bf16.msra.mxu0 0
  %1325 = vmatprep.subr.bf16.mxu0 0
  %1326 = vmatpush1.bf16.msra.mxu0 0
  %1327 = vmatprep.subr.bf16.mxu0 0
  %1328 = vmatpush1.bf16.msra.mxu0 0
  %1329 = vmatprep.subr.bf16.mxu0 0
  %1330 = vmatpush1.bf16.msra.mxu0 0
  %1331 = vmatprep.subr.bf16.mxu0 0
  %1332 = vmatpush1.bf16.msra.mxu0 0
  %1333 = vmatprep.subr.bf16.mxu0 0
  %1334 = vmatpush1.bf16.msra.mxu0 0
  %1335 = vmatprep.subr.bf16.mxu0 0
  %1336 = vmatpush1.bf16.msra.mxu0 0
  %1337 = vmatprep.subr.bf16.mxu0 0
  %1338 = vmatpush1.bf16.msra.mxu0 0
  %1339 = vmatprep.subr.bf16.mxu0 0
  %1340 = vmatpush1.bf16.msra.mxu0 0
  %1341 = vmatprep.subr.bf16.mxu0 0
  %1342 = vmatpush1.bf16.msra.mxu0 0
  %1343 = vmatprep.subr.bf16.mxu0 0
  %1344 = vmatpush1.bf16.msra.mxu0 0
  %1345 = vmatprep.mubr.bf16.mxu0 0
  %1346 = vmatmul.mubr.bf16.gmra.mrb[0].mxu0 %v1287
  %v1347 = vpop.f32.mrb[0].mxu0
  %v1348 = vadd.f32 0.0, %v1347
  %v1349 = vpop.f32.mrb[0].mxu0
  %v1350 = vpop.f32.mrb[0].mxu0
  %v1351 = vadd.f32 0.0, %v1350
  %v1352 = vpop.f32.mrb[0].mxu0
  %1353 = vmatprep.mubr.bf16.mxu0 0
  %1354 = vmatmul.mubr.bf16.gmra.mrb[0].mxu0 %v1290
  %v1355 = vpop.f32.mrb[0].mxu0
  %v1356 = vadd.f32 0.0, %v1355
  %v1357 = vpop.f32.mrb[0].mxu0
  %v1358 = vpop.f32.mrb[0].mxu0
  %v1359 = vadd.f32 0.0, %v1358
  %v1360 = vpop.f32.mrb[0].mxu0
  %1361 = vmatprep.mubr.bf16.mxu0 0
  %1362 = vmatmul.mubr.bf16.gmra.mrb[0].mxu0 %v1293
  %v1363 = vpop.f32.mrb[0].mxu0
  %v1364 = vadd.f32 0.0, %v1363
  %v1365 = vpop.f32.mrb[0].mxu0
  %v1366 = vpop.f32.mrb[0].mxu0
  %v1367 = vadd.f32 0.0, %v1366
  %v1368 = vpop.f32.mrb[0].mxu0
  %1369 = vmatprep.mubr.bf16.mxu0 0
  %1370 = vmatmul.mubr.bf16.gmra.mrb[0].mxu0 %v1296
  %v1371 = vpop.f32.mrb[0].mxu0
  %v1372 = vadd.f32 0.0, %v1371
  %v1373 = vpop.f32.mrb[0].mxu0
  %v1374 = vpop.f32.mrb[0].mxu0
  %v1375 = vadd.f32 0.0, %v1374
  %v1376 = vpop.f32.mrb[0].mxu0
  %1377 = vmatprep.mubr.bf16.mxu0 0
  %1378 = vmatmul.mubr.bf16.gmra.mrb[0].mxu0 %v1299
  %v1379 = vpop.f32.mrb[0].mxu0
  %v1380 = vpop.f32.mrb[0].mxu0
  %v1381 = vpop.f32.mrb[0].mxu0
  %v1382 = vadd.f32 0.0, %v1381
  %v1383 = vpop.f32.mrb[0].mxu0
  %1384 = vmatprep.mubr.bf16.mxu0 0
  %1385 = vmatmul.mubr.bf16.gmra.mrb[0].mxu0 %v1302
  %v1386 = vpop.f32.mrb[0].mxu0
  %v1387 = vadd.f32 0.0, %v1386
  %v1388 = vpop.f32.mrb[0].mxu0
  %v1389 = vpop.f32.mrb[0].mxu0
  %v1390 = vadd.f32 0.0, %v1389
  %v1391 = vpop.f32.mrb[0].mxu0
  %1392 = vmatprep.mubr.bf16.mxu0 0
  %1393 = vmatmul.mubr.bf16.gmra.mrb[0].mxu0 %v1305
  %v1394 = vpop.f32.mrb[0].mxu0
  %v1395 = vadd.f32 0.0, %v1394
  %v1396 = vpop.f32.mrb[0].mxu0
  %v1397 = vpop.f32.mrb[0].mxu0
  %v1398 = vadd.f32 0.0, %v1397
  %v1399 = vpop.f32.mrb[0].mxu0
  %1400 = vmatprep.mubr.bf16.mxu0 0
  %1401 = vmatmul.mubr.bf16.gmra.mrb[0].mxu0 %v1308
  %v1402 = vpop.f32.mrb[0].mxu0
  %v1403 = vadd.f32 0.0, %v1402
  %v1404 = vpop.f32.mrb[0].mxu0
  %v1405 = vpop.f32.mrb[0].mxu0
  %v1406 = vadd.f32 0.0, %v1405
  %v1407 = vpop.f32.mrb[0].mxu0
  %1408 = vmatprep.mubr.bf16.mxu0 0
  %1409 = vmatmul.mubr.bf16.gmra.mrb[0].mxu0 %v1311
  %v1410 = vpop.f32.mrb[0].mxu0
  %v1411 = vadd.f32 0.0, %v1410
  %v1412 = vpop.f32.mrb[0].mxu0
  %v1413 = vpop.f32.mrb[0].mxu0
  %v1414 = vpop.f32.mrb[0].mxu0
  %1415 = vdwg.mxu0
  %v1416 = vadd.f32 %v1177, %v1348
  %v1417 = vadd.f32 %v1178, %v1351
  %v1418 = vadd.f32 %v1179, %v1356
  %v1419 = vadd.f32 %v1180, %v1359
  %v1420 = vadd.f32 %v1181, %v1364
  %v1421 = vadd.f32 %v1182, %v1367
  %v1422 = vadd.f32 %v1183, %v1372
  %v1423 = vadd.f32 %v1184, %v1375
  %v1424 = vadd.f32 %v1185, %v1382
  %v1425 = vadd.f32 %v1186, %v1387
  %v1426 = vadd.f32 %v1187, %v1390
  %v1427 = vadd.f32 %v1188, %v1395
  %v1428 = vadd.f32 %v1189, %v1398
  %v1429 = vadd.f32 %v1190, %v1403
  %v1430 = vadd.f32 %v1191, %v1406
  %v1431 = vadd.f32 %v1192, %v1411
  %v1432 = vld [vmem:[%s0 + $0x4] sm:$0xf]
  %v1433 = vld [vmem:[%s0 + $0x8] sm:$0xf]
  %v1434 = vld [vmem:[%s0 + $0xc] sm:$0xf]
  %v1435 = vld [vmem:[%s0 + $0x10] sm:$0xf]
  %v1436 = vld [vmem:[%s0 + $0x14] sm:$0xf]
  %v1437 = vld [vmem:[%s0 + $0x18] sm:$0xf]
  %v1438 = vld [vmem:[%s0 + $0x1c] sm:$0xf]
  %v1439 = vld [vmem:[%s0 + $0x20] sm:$0xf]
  %v1440 = vld [vmem:[%s0 + $0x24] sm:$0xf]
  %v1441 = vld [vmem:[%s0 + $0x28] sm:$0xf]
  %v1442 = vld [vmem:[%s0 + $0x2c] sm:$0xf]
  %v1443 = vld [vmem:[%s0 + $0x30] sm:$0xf]
  %v1444 = vld [vmem:[%s0 + $0x34] sm:$0xf]
  %v1445 = vld [vmem:[%s0 + $0x38] sm:$0xf]
  %v1446 = vld [vmem:[%s0 + $0x3c] sm:$0xf]
  %v1447 = vld [vmem:[%s0 + $0x40] sm:$0xf]
  %v1448 = vld [vmem:[%s0 + $0x44] sm:$0xf]
  %s1449 = scalar_lea.vmem %s6, 192
  %v1450 = vld [vmem:[%s1449] sm:$0xf]
  %v1451 = vld [vmem:[%s1449 + $0x4] sm:$0xf]
  %v1452 = vld [vmem:[%s1449 + $0x8] sm:$0xf]
  %v1453 = vld [vmem:[%s1449 + $0xc] sm:$0xf]
  %v1454 = vld [vmem:[%s1449 + $0x10] sm:$0xf]
  %v1455 = vld [vmem:[%s1449 + $0x14] sm:$0xf]
  %v1456 = vld [vmem:[%s1449 + $0x18] sm:$0xf]
  %v1457 = vld [vmem:[%s1449 + $0x1c] sm:$0xf]
  %v1475 = vunpack.c.l.b16 %v1432
  %v1476 = vunpack.c.l.b16 %v1433
  %v1477 = vunpack.c.l.b16 %v1434
  %v1478 = vunpack.c.l.b16 %v1435
  %v1479 = vunpack.c.l.b16 %v1436
  %v1480 = vunpack.c.l.b16 %v1437
  %v1481 = vunpack.c.l.b16 %v1438
  %v1482 = vunpack.c.l.b16 %v1439
  %v1483 = vunpack.c.l.b16 %v1440
  %v1484 = vunpack.c.l.b16 %v1441
  %v1485 = vunpack.c.l.b16 %v1442
  %v1486 = vunpack.c.l.b16 %v1443
  %v1487 = vunpack.c.l.b16 %v1444
  %v1488 = vunpack.c.l.b16 %v1445
  %v1489 = vunpack.c.l.b16 %v1446
  %v1490 = vunpack.c.l.b16 %v1447
  %v1491 = vunpack.c.l.b16 %v1448
  %v1492 = vpack.c.b16 %v1476, %v1475
  %v1493 = vpack.c.b16 %v1478, %v1477
  %v1494 = vpack.c.b16 %v1480, %v1479
  %v1495 = vpack.c.b16 %v1482, %v1481
  %v1496 = vpack.c.b16 %v1484, %v1483
  %v1497 = vpack.c.b16 %v1486, %v1485
  %v1498 = vpack.c.b16 %v1488, %v1487
  %v1499 = vpack.c.b16 %v1490, %v1489
  %v1500 = vpack.c.b16 %v1491, %v1491
  %v1509 = vunpack.c.l.b16 %v1450
  %v1510 = vunpack.c.l.b16 %v1451
  %v1511 = vunpack.c.l.b16 %v1452
  %v1512 = vunpack.c.l.b16 %v1453
  %v1513 = vunpack.c.l.b16 %v1454
  %v1514 = vunpack.c.l.b16 %v1455
  %v1515 = vunpack.c.l.b16 %v1456
  %v1516 = vunpack.c.l.b16 %v1457
  %v1517 = vpack.c.b16 %v1510, %v1509
  %v1518 = vpack.c.b16 %v1512, %v1511
  %v1519 = vpack.c.b16 %v1514, %v1513
  %v1520 = vpack.c.b16 %v1516, %v1515
  %v1526 = vsel %vm148, %v1492, 0
  %v1529 = vsel %vm148, %v1493, 0
  %v1532 = vsel %vm148, %v1494, 0
  %v1535 = vsel %vm148, %v1495, 0
  %v1538 = vsel %vm148, %v1496, 0
  %v1541 = vsel %vm148, %v1497, 0
  %v1544 = vsel %vm148, %v1498, 0
  %v1547 = vsel %vm148, %v1499, 0
  %v1550 = vsel %vm148, %v1500, 0
  %1552 = vmatprep.subr.bf16.mxu0 0
  %1553 = vmatpush1.bf16.msra.mxu0 %v1517
  %1554 = vmatprep.subr.bf16.mxu0 0
  %1555 = vmatpush1.bf16.msra.mxu0 %v1518
  %1556 = vmatprep.subr.bf16.mxu0 0
  %1557 = vmatpush1.bf16.msra.mxu0 %v1519
  %1558 = vmatprep.subr.bf16.mxu0 0
  %1559 = vmatpush1.bf16.msra.mxu0 %v1520
  %1560 = vmatprep.subr.bf16.mxu0 0
  %1561 = vmatpush1.bf16.msra.mxu0 0
  %1562 = vmatprep.subr.bf16.mxu0 0
  %1563 = vmatpush1.bf16.msra.mxu0 0
  %1564 = vmatprep.subr.bf16.mxu0 0
  %1565 = vmatpush1.bf16.msra.mxu0 0
  %1566 = vmatprep.subr.bf16.mxu0 0
  %1567 = vmatpush1.bf16.msra.mxu0 0
  %1568 = vmatprep.subr.bf16.mxu0 0
  %1569 = vmatpush1.bf16.msra.mxu0 0
  %1570 = vmatprep.subr.bf16.mxu0 0
  %1571 = vmatpush1.bf16.msra.mxu0 0
  %1572 = vmatprep.subr.bf16.mxu0 0
  %1573 = vmatpush1.bf16.msra.mxu0 0
  %1574 = vmatprep.subr.bf16.mxu0 0
  %1575 = vmatpush1.bf16.msra.mxu0 0
  %1576 = vmatprep.subr.bf16.mxu0 0
  %1577 = vmatpush1.bf16.msra.mxu0 0
  %1578 = vmatprep.subr.bf16.mxu0 0
  %1579 = vmatpush1.bf16.msra.mxu0 0
  %1580 = vmatprep.subr.bf16.mxu0 0
  %1581 = vmatpush1.bf16.msra.mxu0 0
  %1582 = vmatprep.subr.bf16.mxu0 0
  %1583 = vmatpush1.bf16.msra.mxu0 0
  %1584 = vmatprep.mubr.bf16.mxu0 0
  %1585 = vmatmul.mubr.bf16.gmra.mrb[0].mxu0 %v1526
  %v1586 = vpop.f32.mrb[0].mxu0
  %v1587 = vadd.f32 0.0, %v1586
  %v1588 = vpop.f32.mrb[0].mxu0
  %v1589 = vpop.f32.mrb[0].mxu0
  %v1590 = vadd.f32 0.0, %v1589
  %v1591 = vpop.f32.mrb[0].mxu0
  %1592 = vmatprep.mubr.bf16.mxu0 0
  %1593 = vmatmul.mubr.bf16.gmra.mrb[0].mxu0 %v1529
  %v1594 = vpop.f32.mrb[0].mxu0
  %v1595 = vadd.f32 0.0, %v1594
  %v1596 = vpop.f32.mrb[0].mxu0
  %v1597 = vpop.f32.mrb[0].mxu0
  %v1598 = vadd.f32 0.0, %v1597
  %v1599 = vpop.f32.mrb[0].mxu0
  %1600 = vmatprep.mubr.bf16.mxu0 0
  %1601 = vmatmul.mubr.bf16.gmra.mrb[0].mxu0 %v1532
  %v1602 = vpop.f32.mrb[0].mxu0
  %v1603 = vadd.f32 0.0, %v1602
  %v1604 = vpop.f32.mrb[0].mxu0
  %v1605 = vpop.f32.mrb[0].mxu0
  %v1606 = vadd.f32 0.0, %v1605
  %v1607 = vpop.f32.mrb[0].mxu0
  %1608 = vmatprep.mubr.bf16.mxu0 0
  %1609 = vmatmul.mubr.bf16.gmra.mrb[0].mxu0 %v1535
  %v1610 = vpop.f32.mrb[0].mxu0
  %v1611 = vadd.f32 0.0, %v1610
  %v1612 = vpop.f32.mrb[0].mxu0
  %v1613 = vpop.f32.mrb[0].mxu0
  %v1614 = vadd.f32 0.0, %v1613
  %v1615 = vpop.f32.mrb[0].mxu0
  %1616 = vmatprep.mubr.bf16.mxu0 0
  %1617 = vmatmul.mubr.bf16.gmra.mrb[0].mxu0 %v1538
  %v1618 = vpop.f32.mrb[0].mxu0
  %v1619 = vpop.f32.mrb[0].mxu0
  %v1620 = vpop.f32.mrb[0].mxu0
  %v1621 = vadd.f32 0.0, %v1620
  %v1622 = vpop.f32.mrb[0].mxu0
  %1623 = vmatprep.mubr.bf16.mxu0 0
  %1624 = vmatmul.mubr.bf16.gmra.mrb[0].mxu0 %v1541
  %v1625 = vpop.f32.mrb[0].mxu0
  %v1626 = vadd.f32 0.0, %v1625
  %v1627 = vpop.f32.mrb[0].mxu0
  %v1628 = vpop.f32.mrb[0].mxu0
  %v1629 = vadd.f32 0.0, %v1628
  %v1630 = vpop.f32.mrb[0].mxu0
  %1631 = vmatprep.mubr.bf16.mxu0 0
  %1632 = vmatmul.mubr.bf16.gmra.mrb[0].mxu0 %v1544
  %v1633 = vpop.f32.mrb[0].mxu0
  %v1634 = vadd.f32 0.0, %v1633
  %v1635 = vpop.f32.mrb[0].mxu0
  %v1636 = vpop.f32.mrb[0].mxu0
  %v1637 = vadd.f32 0.0, %v1636
  %v1638 = vpop.f32.mrb[0].mxu0
  %1639 = vmatprep.mubr.bf16.mxu0 0
  %1640 = vmatmul.mubr.bf16.gmra.mrb[0].mxu0 %v1547
  %v1641 = vpop.f32.mrb[0].mxu0
  %v1642 = vadd.f32 0.0, %v1641
  %v1643 = vpop.f32.mrb[0].mxu0
  %v1644 = vpop.f32.mrb[0].mxu0
  %v1645 = vadd.f32 0.0, %v1644
  %v1646 = vpop.f32.mrb[0].mxu0
  %1647 = vmatprep.mubr.bf16.mxu0 0
  %1648 = vmatmul.mubr.bf16.gmra.mrb[0].mxu0 %v1550
  %v1649 = vpop.f32.mrb[0].mxu0
  %v1650 = vadd.f32 0.0, %v1649
  %v1651 = vpop.f32.mrb[0].mxu0
  %v1652 = vpop.f32.mrb[0].mxu0
  %v1653 = vpop.f32.mrb[0].mxu0
  %1654 = vdwg.mxu0
  %v1655 = vadd.f32 %v1416, %v1587
  %v1656 = vadd.f32 %v1417, %v1590
  %v1657 = vadd.f32 %v1418, %v1595
  %v1658 = vadd.f32 %v1419, %v1598
  %v1659 = vadd.f32 %v1420, %v1603
  %v1660 = vadd.f32 %v1421, %v1606
  %v1661 = vadd.f32 %v1422, %v1611
  %v1662 = vadd.f32 %v1423, %v1614
  %v1663 = vadd.f32 %v1424, %v1621
  %v1664 = vadd.f32 %v1425, %v1626
  %v1665 = vadd.f32 %v1426, %v1629
  %v1666 = vadd.f32 %v1427, %v1634
  %v1667 = vadd.f32 %v1428, %v1637
  %v1668 = vadd.f32 %v1429, %v1642
  %v1669 = vadd.f32 %v1430, %v1645
  %v1670 = vadd.f32 %v1431, %v1650
  %v1671 = vld [vmem:[%s2 + $0x4] sm:$0xf]
  %v1672 = vld [vmem:[%s2 + $0x8] sm:$0xf]
  %v1673 = vld [vmem:[%s2 + $0xc] sm:$0xf]
  %v1674 = vld [vmem:[%s2 + $0x10] sm:$0xf]
  %v1675 = vld [vmem:[%s2 + $0x14] sm:$0xf]
  %v1676 = vld [vmem:[%s2 + $0x18] sm:$0xf]
  %v1677 = vld [vmem:[%s2 + $0x1c] sm:$0xf]
  %v1678 = vld [vmem:[%s2 + $0x20] sm:$0xf]
  %v1679 = vld [vmem:[%s2 + $0x24] sm:$0xf]
  %v1680 = vld [vmem:[%s2 + $0x28] sm:$0xf]
  %v1681 = vld [vmem:[%s2 + $0x2c] sm:$0xf]
  %v1682 = vld [vmem:[%s2 + $0x30] sm:$0xf]
  %v1683 = vld [vmem:[%s2 + $0x34] sm:$0xf]
  %v1684 = vld [vmem:[%s2 + $0x38] sm:$0xf]
  %v1685 = vld [vmem:[%s2 + $0x3c] sm:$0xf]
  %v1686 = vld [vmem:[%s2 + $0x40] sm:$0xf]
  %v1687 = vld [vmem:[%s2 + $0x44] sm:$0xf]
  %s1688 = scalar_lea.vmem %s6, 224
  %v1689 = vld [vmem:[%s1688] sm:$0xf]
  %v1690 = vld [vmem:[%s1688 + $0x4] sm:$0xf]
  %v1691 = vld [vmem:[%s1688 + $0x8] sm:$0xf]
  %v1692 = vld [vmem:[%s1688 + $0xc] sm:$0xf]
  %v1693 = vld [vmem:[%s1688 + $0x10] sm:$0xf]
  %v1694 = vld [vmem:[%s1688 + $0x14] sm:$0xf]
  %v1695 = vld [vmem:[%s1688 + $0x18] sm:$0xf]
  %v1696 = vld [vmem:[%s1688 + $0x1c] sm:$0xf]
  %v1714 = vunpack.c.l.b16 %v1671
  %v1715 = vunpack.c.l.b16 %v1672
  %v1716 = vunpack.c.l.b16 %v1673
  %v1717 = vunpack.c.l.b16 %v1674
  %v1718 = vunpack.c.l.b16 %v1675
  %v1719 = vunpack.c.l.b16 %v1676
  %v1720 = vunpack.c.l.b16 %v1677
  %v1721 = vunpack.c.l.b16 %v1678
  %v1722 = vunpack.c.l.b16 %v1679
  %v1723 = vunpack.c.l.b16 %v1680
  %v1724 = vunpack.c.l.b16 %v1681
  %v1725 = vunpack.c.l.b16 %v1682
  %v1726 = vunpack.c.l.b16 %v1683
  %v1727 = vunpack.c.l.b16 %v1684
  %v1728 = vunpack.c.l.b16 %v1685
  %v1729 = vunpack.c.l.b16 %v1686
  %v1730 = vunpack.c.l.b16 %v1687
  %v1731 = vpack.c.b16 %v1715, %v1714
  %v1732 = vpack.c.b16 %v1717, %v1716
  %v1733 = vpack.c.b16 %v1719, %v1718
  %v1734 = vpack.c.b16 %v1721, %v1720
  %v1735 = vpack.c.b16 %v1723, %v1722
  %v1736 = vpack.c.b16 %v1725, %v1724
  %v1737 = vpack.c.b16 %v1727, %v1726
  %v1738 = vpack.c.b16 %v1729, %v1728
  %v1739 = vpack.c.b16 %v1730, %v1730
  %v1748 = vunpack.c.l.b16 %v1689
  %v1749 = vunpack.c.l.b16 %v1690
  %v1750 = vunpack.c.l.b16 %v1691
  %v1751 = vunpack.c.l.b16 %v1692
  %v1752 = vunpack.c.l.b16 %v1693
  %v1753 = vunpack.c.l.b16 %v1694
  %v1754 = vunpack.c.l.b16 %v1695
  %v1755 = vunpack.c.l.b16 %v1696
  %v1756 = vpack.c.b16 %v1749, %v1748
  %v1757 = vpack.c.b16 %v1751, %v1750
  %v1758 = vpack.c.b16 %v1753, %v1752
  %v1759 = vpack.c.b16 %v1755, %v1754
  %v1765 = vsel %vm148, %v1731, 0
  %v1768 = vsel %vm148, %v1732, 0
  %v1771 = vsel %vm148, %v1733, 0
  %v1774 = vsel %vm148, %v1734, 0
  %v1777 = vsel %vm148, %v1735, 0
  %v1780 = vsel %vm148, %v1736, 0
  %v1783 = vsel %vm148, %v1737, 0
  %v1786 = vsel %vm148, %v1738, 0
  %v1789 = vsel %vm148, %v1739, 0
  %1791 = vmatprep.subr.bf16.mxu0 0
  %1792 = vmatpush1.bf16.msra.mxu0 %v1756
  %1793 = vmatprep.subr.bf16.mxu0 0
  %1794 = vmatpush1.bf16.msra.mxu0 %v1757
  %1795 = vmatprep.subr.bf16.mxu0 0
  %1796 = vmatpush1.bf16.msra.mxu0 %v1758
  %1797 = vmatprep.subr.bf16.mxu0 0
  %1798 = vmatpush1.bf16.msra.mxu0 %v1759
  %1799 = vmatprep.subr.bf16.mxu0 0
  %1800 = vmatpush1.bf16.msra.mxu0 0
  %1801 = vmatprep.subr.bf16.mxu0 0
  %1802 = vmatpush1.bf16.msra.mxu0 0
  %1803 = vmatprep.subr.bf16.mxu0 0
  %1804 = vmatpush1.bf16.msra.mxu0 0
  %1805 = vmatprep.subr.bf16.mxu0 0
  %1806 = vmatpush1.bf16.msra.mxu0 0
  %1807 = vmatprep.subr.bf16.mxu0 0
  %1808 = vmatpush1.bf16.msra.mxu0 0
  %1809 = vmatprep.subr.bf16.mxu0 0
  %1810 = vmatpush1.bf16.msra.mxu0 0
  %1811 = vmatprep.subr.bf16.mxu0 0
  %1812 = vmatpush1.bf16.msra.mxu0 0
  %1813 = vmatprep.subr.bf16.mxu0 0
  %1814 = vmatpush1.bf16.msra.mxu0 0
  %1815 = vmatprep.subr.bf16.mxu0 0
  %1816 = vmatpush1.bf16.msra.mxu0 0
  %1817 = vmatprep.subr.bf16.mxu0 0
  %1818 = vmatpush1.bf16.msra.mxu0 0
  %1819 = vmatprep.subr.bf16.mxu0 0
  %1820 = vmatpush1.bf16.msra.mxu0 0
  %1821 = vmatprep.subr.bf16.mxu0 0
  %1822 = vmatpush1.bf16.msra.mxu0 0
  %1823 = vmatprep.mubr.bf16.mxu0 0
  %1824 = vmatmul.mubr.bf16.gmra.mrb[0].mxu0 %v1765
  %v1825 = vpop.f32.mrb[0].mxu0
  %v1826 = vadd.f32 0.0, %v1825
  %v1827 = vpop.f32.mrb[0].mxu0
  %v1828 = vpop.f32.mrb[0].mxu0
  %v1829 = vadd.f32 0.0, %v1828
  %v1830 = vpop.f32.mrb[0].mxu0
  %1831 = vmatprep.mubr.bf16.mxu0 0
  %1832 = vmatmul.mubr.bf16.gmra.mrb[0].mxu0 %v1768
  %v1833 = vpop.f32.mrb[0].mxu0
  %v1834 = vadd.f32 0.0, %v1833
  %v1835 = vpop.f32.mrb[0].mxu0
  %v1836 = vpop.f32.mrb[0].mxu0
  %v1837 = vadd.f32 0.0, %v1836
  %v1838 = vpop.f32.mrb[0].mxu0
  %1839 = vmatprep.mubr.bf16.mxu0 0
  %1840 = vmatmul.mubr.bf16.gmra.mrb[0].mxu0 %v1771
  %v1841 = vpop.f32.mrb[0].mxu0
  %v1842 = vadd.f32 0.0, %v1841
  %v1843 = vpop.f32.mrb[0].mxu0
  %v1844 = vpop.f32.mrb[0].mxu0
  %v1845 = vadd.f32 0.0, %v1844
  %v1846 = vpop.f32.mrb[0].mxu0
  %1847 = vmatprep.mubr.bf16.mxu0 0
  %1848 = vmatmul.mubr.bf16.gmra.mrb[0].mxu0 %v1774
  %v1849 = vpop.f32.mrb[0].mxu0
  %v1850 = vadd.f32 0.0, %v1849
  %v1851 = vpop.f32.mrb[0].mxu0
  %v1852 = vpop.f32.mrb[0].mxu0
  %v1853 = vadd.f32 0.0, %v1852
  %v1854 = vpop.f32.mrb[0].mxu0
  %1855 = vmatprep.mubr.bf16.mxu0 0
  %1856 = vmatmul.mubr.bf16.gmra.mrb[0].mxu0 %v1777
  %v1857 = vpop.f32.mrb[0].mxu0
  %v1858 = vpop.f32.mrb[0].mxu0
  %v1859 = vpop.f32.mrb[0].mxu0
  %v1860 = vadd.f32 0.0, %v1859
  %v1861 = vpop.f32.mrb[0].mxu0
  %1862 = vmatprep.mubr.bf16.mxu0 0
  %1863 = vmatmul.mubr.bf16.gmra.mrb[0].mxu0 %v1780
  %v1864 = vpop.f32.mrb[0].mxu0
  %v1865 = vadd.f32 0.0, %v1864
  %v1866 = vpop.f32.mrb[0].mxu0
  %v1867 = vpop.f32.mrb[0].mxu0
  %v1868 = vadd.f32 0.0, %v1867
  %v1869 = vpop.f32.mrb[0].mxu0
  %1870 = vmatprep.mubr.bf16.mxu0 0
  %1871 = vmatmul.mubr.bf16.gmra.mrb[0].mxu0 %v1783
  %v1872 = vpop.f32.mrb[0].mxu0
  %v1873 = vadd.f32 0.0, %v1872
  %v1874 = vpop.f32.mrb[0].mxu0
  %v1875 = vpop.f32.mrb[0].mxu0
  %v1876 = vadd.f32 0.0, %v1875
  %v1877 = vpop.f32.mrb[0].mxu0
  %1878 = vmatprep.mubr.bf16.mxu0 0
  %1879 = vmatmul.mubr.bf16.gmra.mrb[0].mxu0 %v1786
  %v1880 = vpop.f32.mrb[0].mxu0
  %v1881 = vadd.f32 0.0, %v1880
  %v1882 = vpop.f32.mrb[0].mxu0
  %v1883 = vpop.f32.mrb[0].mxu0
  %v1884 = vadd.f32 0.0, %v1883
  %v1885 = vpop.f32.mrb[0].mxu0
  %1886 = vmatprep.mubr.bf16.mxu0 0
  %1887 = vmatmul.mubr.bf16.gmra.mrb[0].mxu0 %v1789
  %v1888 = vpop.f32.mrb[0].mxu0
  %v1889 = vadd.f32 0.0, %v1888
  %v1890 = vpop.f32.mrb[0].mxu0
  %v1891 = vpop.f32.mrb[0].mxu0
  %v1892 = vpop.f32.mrb[0].mxu0
  %1893 = vdwg.mxu0
  %v1894 = vadd.f32 %v1655, %v1826
  %v1895 = vadd.f32 %v1656, %v1829
  %v1896 = vadd.f32 %v1657, %v1834
  %v1897 = vadd.f32 %v1658, %v1837
  %v1898 = vadd.f32 %v1659, %v1842
  %v1899 = vadd.f32 %v1660, %v1845
  %v1900 = vadd.f32 %v1661, %v1850
  %v1901 = vadd.f32 %v1662, %v1853
  %v1902 = vadd.f32 %v1663, %v1860
  %v1903 = vadd.f32 %v1664, %v1865
  %v1904 = vadd.f32 %v1665, %v1868
  %v1905 = vadd.f32 %v1666, %v1873
  %v1906 = vadd.f32 %v1667, %v1876
  %v1907 = vadd.f32 %v1668, %v1881
  %v1908 = vadd.f32 %v1669, %v1884
  %v1909 = vadd.f32 %v1670, %v1889
  %v1910 = vld [vmem:[%s1 + $0x4] sm:$0xf]
  %v1911 = vld [vmem:[%s1 + $0x8] sm:$0xf]
  %v1912 = vld [vmem:[%s1 + $0xc] sm:$0xf]
  %v1913 = vld [vmem:[%s1 + $0x10] sm:$0xf]
  %v1914 = vld [vmem:[%s1 + $0x14] sm:$0xf]
  %v1915 = vld [vmem:[%s1 + $0x18] sm:$0xf]
  %v1916 = vld [vmem:[%s1 + $0x1c] sm:$0xf]
  %v1917 = vld [vmem:[%s1 + $0x20] sm:$0xf]
  %v1918 = vld [vmem:[%s1 + $0x24] sm:$0xf]
  %v1919 = vld [vmem:[%s1 + $0x28] sm:$0xf]
  %v1920 = vld [vmem:[%s1 + $0x2c] sm:$0xf]
  %v1921 = vld [vmem:[%s1 + $0x30] sm:$0xf]
  %v1922 = vld [vmem:[%s1 + $0x34] sm:$0xf]
  %v1923 = vld [vmem:[%s1 + $0x38] sm:$0xf]
  %v1924 = vld [vmem:[%s1 + $0x3c] sm:$0xf]
  %v1925 = vld [vmem:[%s1 + $0x40] sm:$0xf]
  %v1926 = vld [vmem:[%s1 + $0x44] sm:$0xf]
  %s1927 = scalar_lea.vmem %s6, 256
  %v1928 = vld [vmem:[%s1927] sm:$0xf]
  %v1929 = vld [vmem:[%s1927 + $0x4] sm:$0xf]
  %v1930 = vld [vmem:[%s1927 + $0x8] sm:$0xf]
  %v1931 = vld [vmem:[%s1927 + $0xc] sm:$0xf]
  %v1932 = vld [vmem:[%s1927 + $0x10] sm:$0xf]
  %v1933 = vld [vmem:[%s1927 + $0x14] sm:$0xf]
  %v1934 = vld [vmem:[%s1927 + $0x18] sm:$0xf]
  %v1935 = vld [vmem:[%s1927 + $0x1c] sm:$0xf]
  %v1953 = vunpack.c.l.b16 %v1910
  %v1954 = vunpack.c.l.b16 %v1911
  %v1955 = vunpack.c.l.b16 %v1912
  %v1956 = vunpack.c.l.b16 %v1913
  %v1957 = vunpack.c.l.b16 %v1914
  %v1958 = vunpack.c.l.b16 %v1915
  %v1959 = vunpack.c.l.b16 %v1916
  %v1960 = vunpack.c.l.b16 %v1917
  %v1961 = vunpack.c.l.b16 %v1918
  %v1962 = vunpack.c.l.b16 %v1919
  %v1963 = vunpack.c.l.b16 %v1920
  %v1964 = vunpack.c.l.b16 %v1921
  %v1965 = vunpack.c.l.b16 %v1922
  %v1966 = vunpack.c.l.b16 %v1923
  %v1967 = vunpack.c.l.b16 %v1924
  %v1968 = vunpack.c.l.b16 %v1925
  %v1969 = vunpack.c.l.b16 %v1926
  %v1970 = vpack.c.b16 %v1954, %v1953
  %v1971 = vpack.c.b16 %v1956, %v1955
  %v1972 = vpack.c.b16 %v1958, %v1957
  %v1973 = vpack.c.b16 %v1960, %v1959
  %v1974 = vpack.c.b16 %v1962, %v1961
  %v1975 = vpack.c.b16 %v1964, %v1963
  %v1976 = vpack.c.b16 %v1966, %v1965
  %v1977 = vpack.c.b16 %v1968, %v1967
  %v1978 = vpack.c.b16 %v1969, %v1969
  %v1987 = vunpack.c.l.b16 %v1928
  %v1988 = vunpack.c.l.b16 %v1929
  %v1989 = vunpack.c.l.b16 %v1930
  %v1990 = vunpack.c.l.b16 %v1931
  %v1991 = vunpack.c.l.b16 %v1932
  %v1992 = vunpack.c.l.b16 %v1933
  %v1993 = vunpack.c.l.b16 %v1934
  %v1994 = vunpack.c.l.b16 %v1935
  %v1995 = vpack.c.b16 %v1988, %v1987
  %v1996 = vpack.c.b16 %v1990, %v1989
  %v1997 = vpack.c.b16 %v1992, %v1991
  %v1998 = vpack.c.b16 %v1994, %v1993
  %v2004 = vsel %vm148, %v1970, 0
  %v2007 = vsel %vm148, %v1971, 0
  %v2010 = vsel %vm148, %v1972, 0
  %v2013 = vsel %vm148, %v1973, 0
  %v2016 = vsel %vm148, %v1974, 0
  %v2019 = vsel %vm148, %v1975, 0
  %v2022 = vsel %vm148, %v1976, 0
  %v2025 = vsel %vm148, %v1977, 0
  %v2028 = vsel %vm148, %v1978, 0
  %2030 = vmatprep.subr.bf16.mxu0 0
  %2031 = vmatpush1.bf16.msra.mxu0 %v1995
  %2032 = vmatprep.subr.bf16.mxu0 0
  %2033 = vmatpush1.bf16.msra.mxu0 %v1996
  %2034 = vmatprep.subr.bf16.mxu0 0
  %2035 = vmatpush1.bf16.msra.mxu0 %v1997
  %2036 = vmatprep.subr.bf16.mxu0 0
  %2037 = vmatpush1.bf16.msra.mxu0 %v1998
  %2038 = vmatprep.subr.bf16.mxu0 0
  %2039 = vmatpush1.bf16.msra.mxu0 0
  %2040 = vmatprep.subr.bf16.mxu0 0
  %2041 = vmatpush1.bf16.msra.mxu0 0
  %2042 = vmatprep.subr.bf16.mxu0 0
  %2043 = vmatpush1.bf16.msra.mxu0 0
  %2044 = vmatprep.subr.bf16.mxu0 0
  %2045 = vmatpush1.bf16.msra.mxu0 0
  %2046 = vmatprep.subr.bf16.mxu0 0
  %2047 = vmatpush1.bf16.msra.mxu0 0
  %2048 = vmatprep.subr.bf16.mxu0 0
  %2049 = vmatpush1.bf16.msra.mxu0 0
  %2050 = vmatprep.subr.bf16.mxu0 0
  %2051 = vmatpush1.bf16.msra.mxu0 0
  %2052 = vmatprep.subr.bf16.mxu0 0
  %2053 = vmatpush1.bf16.msra.mxu0 0
  %2054 = vmatprep.subr.bf16.mxu0 0
  %2055 = vmatpush1.bf16.msra.mxu0 0
  %2056 = vmatprep.subr.bf16.mxu0 0
  %2057 = vmatpush1.bf16.msra.mxu0 0
  %2058 = vmatprep.subr.bf16.mxu0 0
  %2059 = vmatpush1.bf16.msra.mxu0 0
  %2060 = vmatprep.subr.bf16.mxu0 0
  %2061 = vmatpush1.bf16.msra.mxu0 0
  %2062 = vmatprep.mubr.bf16.mxu0 0
  %2063 = vmatmul.mubr.bf16.gmra.mrb[0].mxu0 %v2004
  %v2064 = vpop.f32.mrb[0].mxu0
  %v2065 = vadd.f32 0.0, %v2064
  %v2066 = vpop.f32.mrb[0].mxu0
  %v2067 = vpop.f32.mrb[0].mxu0
  %v2068 = vadd.f32 0.0, %v2067
  %v2069 = vpop.f32.mrb[0].mxu0
  %2070 = vmatprep.mubr.bf16.mxu0 0
  %2071 = vmatmul.mubr.bf16.gmra.mrb[0].mxu0 %v2007
  %v2072 = vpop.f32.mrb[0].mxu0
  %v2073 = vadd.f32 0.0, %v2072
  %v2074 = vpop.f32.mrb[0].mxu0
  %v2075 = vpop.f32.mrb[0].mxu0
  %v2076 = vadd.f32 0.0, %v2075
  %v2077 = vpop.f32.mrb[0].mxu0
  %2078 = vmatprep.mubr.bf16.mxu0 0
  %2079 = vmatmul.mubr.bf16.gmra.mrb[0].mxu0 %v2010
  %v2080 = vpop.f32.mrb[0].mxu0
  %v2081 = vadd.f32 0.0, %v2080
  %v2082 = vpop.f32.mrb[0].mxu0
  %v2083 = vpop.f32.mrb[0].mxu0
  %v2084 = vadd.f32 0.0, %v2083
  %v2085 = vpop.f32.mrb[0].mxu0
  %2086 = vmatprep.mubr.bf16.mxu0 0
  %2087 = vmatmul.mubr.bf16.gmra.mrb[0].mxu0 %v2013
  %v2088 = vpop.f32.mrb[0].mxu0
  %v2089 = vadd.f32 0.0, %v2088
  %v2090 = vpop.f32.mrb[0].mxu0
  %v2091 = vpop.f32.mrb[0].mxu0
  %v2092 = vadd.f32 0.0, %v2091
  %v2093 = vpop.f32.mrb[0].mxu0
  %2094 = vmatprep.mubr.bf16.mxu0 0
  %2095 = vmatmul.mubr.bf16.gmra.mrb[0].mxu0 %v2016
  %v2096 = vpop.f32.mrb[0].mxu0
  %v2097 = vpop.f32.mrb[0].mxu0
  %v2098 = vpop.f32.mrb[0].mxu0
  %v2099 = vadd.f32 0.0, %v2098
  %v2100 = vpop.f32.mrb[0].mxu0
  %2101 = vmatprep.mubr.bf16.mxu0 0
  %2102 = vmatmul.mubr.bf16.gmra.mrb[0].mxu0 %v2019
  %v2103 = vpop.f32.mrb[0].mxu0
  %v2104 = vadd.f32 0.0, %v2103
  %v2105 = vpop.f32.mrb[0].mxu0
  %v2106 = vpop.f32.mrb[0].mxu0
  %v2107 = vadd.f32 0.0, %v2106
  %v2108 = vpop.f32.mrb[0].mxu0
  %2109 = vmatprep.mubr.bf16.mxu0 0
  %2110 = vmatmul.mubr.bf16.gmra.mrb[0].mxu0 %v2022
  %v2111 = vpop.f32.mrb[0].mxu0
  %v2112 = vadd.f32 0.0, %v2111
  %v2113 = vpop.f32.mrb[0].mxu0
  %v2114 = vpop.f32.mrb[0].mxu0
  %v2115 = vadd.f32 0.0, %v2114
  %v2116 = vpop.f32.mrb[0].mxu0
  %2117 = vmatprep.mubr.bf16.mxu0 0
  %2118 = vmatmul.mubr.bf16.gmra.mrb[0].mxu0 %v2025
  %v2119 = vpop.f32.mrb[0].mxu0
  %v2120 = vadd.f32 0.0, %v2119
  %v2121 = vpop.f32.mrb[0].mxu0
  %v2122 = vpop.f32.mrb[0].mxu0
  %v2123 = vadd.f32 0.0, %v2122
  %v2124 = vpop.f32.mrb[0].mxu0
  %2125 = vmatprep.mubr.bf16.mxu0 0
  %2126 = vmatmul.mubr.bf16.gmra.mrb[0].mxu0 %v2028
  %v2127 = vpop.f32.mrb[0].mxu0
  %v2128 = vadd.f32 0.0, %v2127
  %v2129 = vpop.f32.mrb[0].mxu0
  %v2130 = vpop.f32.mrb[0].mxu0
  %v2131 = vpop.f32.mrb[0].mxu0
  %2132 = vdwg.mxu0
  %v2133 = vadd.f32 %v1894, %v2065
  %v2134 = vadd.f32 %v1895, %v2068
  %v2135 = vadd.f32 %v1896, %v2073
  %v2136 = vadd.f32 %v1897, %v2076
  %v2137 = vadd.f32 %v1898, %v2081
  %v2138 = vadd.f32 %v1899, %v2084
  %v2139 = vadd.f32 %v1900, %v2089
  %v2140 = vadd.f32 %v1901, %v2092
  %v2141 = vadd.f32 %v1902, %v2099
  %v2142 = vadd.f32 %v1903, %v2104
  %v2143 = vadd.f32 %v1904, %v2107
  %v2144 = vadd.f32 %v1905, %v2112
  %v2145 = vadd.f32 %v1906, %v2115
  %v2146 = vadd.f32 %v1907, %v2120
  %v2147 = vadd.f32 %v1908, %v2123
  %v2148 = vadd.f32 %v1909, %v2128
  %v2149 = vld [vmem:[%s7] sm:$0x1]
  %v2151 = vlaneseq
  %v2152 = vshrl.u32 %v2151, 7
  %v2153 = vsub.s32 0, %v2152
  %v2154 = vrot.slane %v2149, %v2153
  %v2156 = vadd.f32 %v2133, %v2154
  %v2157 = vadd.f32 %v2134, %v2154
  %v2158 = vadd.f32 %v2135, %v2154
  %v2159 = vadd.f32 %v2136, %v2154
  %v2160 = vadd.f32 %v2137, %v2154
  %v2161 = vadd.f32 %v2138, %v2154
  %v2162 = vadd.f32 %v2139, %v2154
  %v2163 = vadd.f32 %v2140, %v2154
  %v2164 = vadd.f32 %v2141, %v2154
  %v2165 = vadd.f32 %v2142, %v2154
  %v2166 = vadd.f32 %v2143, %v2154
  %v2167 = vadd.f32 %v2144, %v2154
  %v2168 = vadd.f32 %v2145, %v2154
  %v2169 = vadd.f32 %v2146, %v2154
  %v2170 = vadd.f32 %v2147, %v2154
  %v2171 = vadd.f32 %v2148, %v2154
  %vm2172 = vcmp.gt.f32.partialorder %v2156, 0.0
  %vm2173 = vcmp.gt.f32.partialorder %v2157, 0.0
  %vm2174 = vcmp.gt.f32.partialorder %v2158, 0.0
  %vm2175 = vcmp.gt.f32.partialorder %v2159, 0.0
  %vm2176 = vcmp.gt.f32.partialorder %v2160, 0.0
  %vm2177 = vcmp.gt.f32.partialorder %v2161, 0.0
  %vm2178 = vcmp.gt.f32.partialorder %v2162, 0.0
  %vm2179 = vcmp.gt.f32.partialorder %v2163, 0.0
  %vm2180 = vcmp.gt.f32.partialorder %v2164, 0.0
  %vm2181 = vcmp.gt.f32.partialorder %v2165, 0.0
  %vm2182 = vcmp.gt.f32.partialorder %v2166, 0.0
  %vm2183 = vcmp.gt.f32.partialorder %v2167, 0.0
  %vm2184 = vcmp.gt.f32.partialorder %v2168, 0.0
  %vm2185 = vcmp.gt.f32.partialorder %v2169, 0.0
  %vm2186 = vcmp.gt.f32.partialorder %v2170, 0.0
  %vm2187 = vcmp.gt.f32.partialorder %v2171, 0.0
  %v2188 = vmul.f32 %v2156, 0.2
  %v2189 = vmul.f32 %v2157, 0.2
  %v2190 = vmul.f32 %v2158, 0.2
  %v2191 = vmul.f32 %v2159, 0.2
  %v2192 = vmul.f32 %v2160, 0.2
  %v2193 = vmul.f32 %v2161, 0.2
  %v2194 = vmul.f32 %v2162, 0.2
  %v2195 = vmul.f32 %v2163, 0.2
  %v2196 = vmul.f32 %v2164, 0.2
  %v2197 = vmul.f32 %v2165, 0.2
  %v2198 = vmul.f32 %v2166, 0.2
  %v2199 = vmul.f32 %v2167, 0.2
  %v2200 = vmul.f32 %v2168, 0.2
  %v2201 = vmul.f32 %v2169, 0.2
  %v2202 = vmul.f32 %v2170, 0.2
  %v2203 = vmul.f32 %v2171, 0.2
  %v2204 = vsel %vm2172, %v2156, %v2188
  %v2205 = vsel %vm2173, %v2157, %v2189
  %v2206 = vsel %vm2174, %v2158, %v2190
  %v2207 = vsel %vm2175, %v2159, %v2191
  %v2208 = vsel %vm2176, %v2160, %v2192
  %v2209 = vsel %vm2177, %v2161, %v2193
  %v2210 = vsel %vm2178, %v2162, %v2194
  %v2211 = vsel %vm2179, %v2163, %v2195
  %v2212 = vsel %vm2180, %v2164, %v2196
  %v2213 = vsel %vm2181, %v2165, %v2197
  %v2214 = vsel %vm2182, %v2166, %v2198
  %v2215 = vsel %vm2183, %v2167, %v2199
  %v2216 = vsel %vm2184, %v2168, %v2200
  %v2217 = vsel %vm2185, %v2169, %v2201
  %v2218 = vsel %vm2186, %v2170, %v2202
  %v2219 = vsel %vm2187, %v2171, %v2203
  %v2220 = vadd.f32 %v2204, %v2205
  %v2221 = vadd.f32 %v2220, %v2206
  %v2222 = vadd.f32 %v2221, %v2207
  %v2223 = vadd.f32 %v2222, %v2208
  %v2224 = vadd.f32 %v2223, %v2209
  %v2225 = vadd.f32 %v2224, %v2210
  %v2226 = vadd.f32 %v2225, %v2211
  %v2227 = vrot.slane %v2226, 4
  %v2228 = vadd.f32 %v2226, %v2227
  %v2229 = vrot.slane %v2228, 2
  %v2230 = vadd.f32 %v2228, %v2229
  %v2231 = vrot.slane %v2230, 1
  %v2232 = vadd.f32 %v2230, %v2231
  %v2233 = vmul.f32 %v2232, 0.015625
  %v2234 = vmul.f32 %v2204, %v2204
  %v2235 = vmul.f32 %v2205, %v2205
  %v2236 = vmul.f32 %v2206, %v2206
  %v2237 = vmul.f32 %v2207, %v2207
  %v2238 = vmul.f32 %v2208, %v2208
  %v2239 = vmul.f32 %v2209, %v2209
  %v2240 = vmul.f32 %v2210, %v2210
  %v2241 = vmul.f32 %v2211, %v2211
  %v2242 = vadd.f32 %v2234, %v2235
  %v2243 = vadd.f32 %v2242, %v2236
  %v2244 = vadd.f32 %v2243, %v2237
  %v2245 = vadd.f32 %v2244, %v2238
  %v2246 = vadd.f32 %v2245, %v2239
  %v2247 = vadd.f32 %v2246, %v2240
  %v2248 = vadd.f32 %v2247, %v2241
  %v2249 = vrot.slane %v2248, 4
  %v2250 = vadd.f32 %v2248, %v2249
  %v2251 = vrot.slane %v2250, 2
  %v2252 = vadd.f32 %v2250, %v2251
  %v2253 = vrot.slane %v2252, 1
  %v2254 = vadd.f32 %v2252, %v2253
  %v2255 = vmul.f32 %v2254, 0.015625
  %v2256 = vmul.f32 %v2233, %v2233
  %v2257 = vsub.f32 %v2255, %v2256
  %v2258 = vmax.f32 %v2257, 0.0
  %v2259 = vadd.f32 %v2258, 1e-05
  %v2260 = vrsqrt.pop %v2259
  %v2261 = vsub.f32 %v2204, %v2233
  %v2262 = vsub.f32 %v2205, %v2233
  %v2263 = vsub.f32 %v2206, %v2233
  %v2264 = vsub.f32 %v2207, %v2233
  %v2265 = vsub.f32 %v2208, %v2233
  %v2266 = vsub.f32 %v2209, %v2233
  %v2267 = vsub.f32 %v2210, %v2233
  %v2268 = vsub.f32 %v2211, %v2233
  %v2269 = vmul.f32 %v2261, %v2260
  %v2270 = vmul.f32 %v2262, %v2260
  %v2271 = vmul.f32 %v2263, %v2260
  %v2272 = vmul.f32 %v2264, %v2260
  %v2273 = vmul.f32 %v2265, %v2260
  %v2274 = vmul.f32 %v2266, %v2260
  %v2275 = vmul.f32 %v2267, %v2260
  %v2276 = vmul.f32 %v2268, %v2260
  %v2277 = vpack.c.bf16 %v2270, %v2269
  %v2278 = vpack.c.bf16 %v2272, %v2271
  %v2279 = vpack.c.bf16 %v2274, %v2273
  %v2280 = vpack.c.bf16 %v2276, %v2275
  %v2285 = vunpack.c.l.b16 %v2277
  %v2286 = vunpack.c.h.b16 %v2277
  %v2287 = vunpack.c.l.b16 %v2278
  %v2288 = vunpack.c.h.b16 %v2278
  %v2289 = vunpack.c.l.b16 %v2279
  %v2290 = vunpack.c.h.b16 %v2279
  %v2291 = vunpack.c.l.b16 %v2280
  %v2292 = vunpack.c.h.b16 %v2280
  %v2293 = vpack.c.b16 %v2285, %v2285
  %v2294 = vpack.c.b16 %v2286, %v2286
  %v2295 = vpack.c.b16 %v2287, %v2287
  %v2296 = vpack.c.b16 %v2288, %v2288
  %v2297 = vpack.c.b16 %v2289, %v2289
  %v2298 = vpack.c.b16 %v2290, %v2290
  %v2299 = vpack.c.b16 %v2291, %v2291
  %v2300 = vpack.c.b16 %v2292, %v2292
  %2309 = vst [vmem:[%s8] sm:$0xf] %v2293
  %2310 = vst [vmem:[%s8 + $0x4] sm:$0xf] %v2294
  %2311 = vst [vmem:[%s8 + $0x8] sm:$0xf] %v2295
  %2312 = vst [vmem:[%s8 + $0xc] sm:$0xf] %v2296
  %2313 = vst [vmem:[%s8 + $0x10] sm:$0xf] %v2297
  %2314 = vst [vmem:[%s8 + $0x14] sm:$0xf] %v2298
  %2315 = vst [vmem:[%s8 + $0x18] sm:$0xf] %v2299
  %2316 = vst [vmem:[%s8 + $0x1c] sm:$0xf] %v2300
  %v2317 = vadd.f32 %v2212, %v2213
  %v2318 = vadd.f32 %v2317, %v2214
  %v2319 = vadd.f32 %v2318, %v2215
  %v2320 = vadd.f32 %v2319, %v2216
  %v2321 = vadd.f32 %v2320, %v2217
  %v2322 = vadd.f32 %v2321, %v2218
  %v2323 = vadd.f32 %v2322, %v2219
  %v2324 = vrot.slane %v2323, 4
  %v2325 = vadd.f32 %v2323, %v2324
  %v2326 = vrot.slane %v2325, 2
  %v2327 = vadd.f32 %v2325, %v2326
  %v2328 = vrot.slane %v2327, 1
  %v2329 = vadd.f32 %v2327, %v2328
  %v2330 = vmul.f32 %v2329, 0.015625
  %v2331 = vmul.f32 %v2212, %v2212
  %v2332 = vmul.f32 %v2213, %v2213
  %v2333 = vmul.f32 %v2214, %v2214
  %v2334 = vmul.f32 %v2215, %v2215
  %v2335 = vmul.f32 %v2216, %v2216
  %v2336 = vmul.f32 %v2217, %v2217
  %v2337 = vmul.f32 %v2218, %v2218
  %v2338 = vmul.f32 %v2219, %v2219
  %v2339 = vadd.f32 %v2331, %v2332
  %v2340 = vadd.f32 %v2339, %v2333
  %v2341 = vadd.f32 %v2340, %v2334
  %v2342 = vadd.f32 %v2341, %v2335
  %v2343 = vadd.f32 %v2342, %v2336
  %v2344 = vadd.f32 %v2343, %v2337
  %v2345 = vadd.f32 %v2344, %v2338
  %v2346 = vrot.slane %v2345, 4
  %v2347 = vadd.f32 %v2345, %v2346
  %v2348 = vrot.slane %v2347, 2
  %v2349 = vadd.f32 %v2347, %v2348
  %v2350 = vrot.slane %v2349, 1
  %v2351 = vadd.f32 %v2349, %v2350
  %v2352 = vmul.f32 %v2351, 0.015625
  %v2353 = vmul.f32 %v2330, %v2330
  %v2354 = vsub.f32 %v2352, %v2353
  %v2355 = vmax.f32 %v2354, 0.0
  %v2356 = vadd.f32 %v2355, 1e-05
  %v2357 = vrsqrt.pop %v2356
  %v2358 = vsub.f32 %v2212, %v2330
  %v2359 = vsub.f32 %v2213, %v2330
  %v2360 = vsub.f32 %v2214, %v2330
  %v2361 = vsub.f32 %v2215, %v2330
  %v2362 = vsub.f32 %v2216, %v2330
  %v2363 = vsub.f32 %v2217, %v2330
  %v2364 = vsub.f32 %v2218, %v2330
  %v2365 = vsub.f32 %v2219, %v2330
  %v2366 = vmul.f32 %v2358, %v2357
  %v2367 = vmul.f32 %v2359, %v2357
  %v2368 = vmul.f32 %v2360, %v2357
  %v2369 = vmul.f32 %v2361, %v2357
  %v2370 = vmul.f32 %v2362, %v2357
  %v2371 = vmul.f32 %v2363, %v2357
  %v2372 = vmul.f32 %v2364, %v2357
  %v2373 = vmul.f32 %v2365, %v2357
  %v2374 = vpack.c.bf16 %v2367, %v2366
  %v2375 = vpack.c.bf16 %v2369, %v2368
  %v2376 = vpack.c.bf16 %v2371, %v2370
  %v2377 = vpack.c.bf16 %v2373, %v2372
  %v2382 = vunpack.c.l.b16 %v2374
  %v2383 = vunpack.c.h.b16 %v2374
  %v2384 = vunpack.c.l.b16 %v2375
  %v2385 = vunpack.c.h.b16 %v2375
  %v2386 = vunpack.c.l.b16 %v2376
  %v2387 = vunpack.c.h.b16 %v2376
  %v2388 = vunpack.c.l.b16 %v2377
  %v2389 = vunpack.c.h.b16 %v2377
  %v2390 = vpack.c.b16 %v2382, %v2382
  %v2391 = vpack.c.b16 %v2383, %v2383
  %v2392 = vpack.c.b16 %v2384, %v2384
  %v2393 = vpack.c.b16 %v2385, %v2385
  %v2394 = vpack.c.b16 %v2386, %v2386
  %v2395 = vpack.c.b16 %v2387, %v2387
  %v2396 = vpack.c.b16 %v2388, %v2388
  %v2397 = vpack.c.b16 %v2389, %v2389
  %2406 = vst [vmem:[%s8 + $0x20] sm:$0xf] %v2390
  %2407 = vst [vmem:[%s8 + $0x24] sm:$0xf] %v2391
  %2408 = vst [vmem:[%s8 + $0x28] sm:$0xf] %v2392
  %2409 = vst [vmem:[%s8 + $0x2c] sm:$0xf] %v2393
  %2410 = vst [vmem:[%s8 + $0x30] sm:$0xf] %v2394
  %2411 = vst [vmem:[%s8 + $0x34] sm:$0xf] %v2395
  %2412 = vst [vmem:[%s8 + $0x38] sm:$0xf] %v2396
  %2413 = vst [vmem:[%s8 + $0x3c] sm:$0xf] %v2397
  // Predicated region
  $region34: #{discriminator_forward.6} parent=0 // pred_check
    _
  $region35: #{discriminator_forward.6} parent=0 // pred_check_branch
    %2415 = sbr.rel (0) target = $region37
  $region36: #{discriminator_forward.6} parent=0 // pred_region
    _
  $region37: #{discriminator_forward.6} parent=0 // pred_fallthru
    _
  // Predicated region
  $region38: #{discriminator_forward.6} parent=0 // pred_check
    _
  $region39: #{discriminator_forward.6} parent=0 // pred_check_branch
    %2417 = sbr.rel (0) target = $region41
  $region40: #{discriminator_forward.6} parent=0 // pred_region
    _
  $region41: #{discriminator_forward.6} parent=0 // pred_fallthru
    _

// kernel: discriminator_forward.9
$region0: #{discriminator_forward.9}
  #allocation0 [shape = 'u32[]', space=smem, size = 0x4, offset = 0x4, fixed_abs, tag = 'smem constant byte address 0x4 - core index']
  #allocation1 [shape = 'u32[144,128]{1,0:T(1,128)}', space=vmem, size = 0x12000, scoped, tag = 'internal scratch']
  #allocation2 [shape = 'f32[1,1]{1,0:T(1,128)S(1)}', space=vmem, size = 0x200, scoped, tag = 'scoped memory for discriminator_forward.9']
  %s0 = inlined_call_operand.vmem [shape: bf16[2,2048], index: 0, kind: input, shape index: {}]
  %s1 = inlined_call_operand.vmem [shape: f32[1,2048], index: 1, kind: input, shape index: {}]
  %s2 = inlined_call_operand.<no memory space> [shape: f32[1,1], index: 2, kind: input, shape index: {}]
  %s3 = inlined_call_operand.vmem [shape: f32[2,1], index: 3, kind: output, shape index: {}]
  %s4 = sld [smem:[#allocation0]]
  $region26: #{discriminator_forward.9} parent=0
    _
  %s6 = ssub.s32 1, %s4
  %s7 = scalar_select 0, %s6, %s4
  %v8 = vstv %s2
  %9 = vst [vmem:[#allocation2] sm:$0x1] %v8
  // Predicated region
  $region2: #{discriminator_forward.9} parent=0 // pred_check
    _
  $region3: #{discriminator_forward.9} parent=0 // pred_check_branch
    %11 = sbr.rel (0) target = $region5
  $region4: #{discriminator_forward.9} parent=0 // pred_region
    _
  $region5: #{discriminator_forward.9} parent=0 // pred_fallthru
    _
  // Predicated region
  $region6: #{discriminator_forward.9} parent=0 // pred_check
    _
  $region7: #{discriminator_forward.9} parent=0 // pred_check_branch
    %13 = sbr.rel (0) target = $region9
  $region8: #{discriminator_forward.9} parent=0 // pred_region
    _
  $region9: #{discriminator_forward.9} parent=0 // pred_fallthru
    _
  // Predicated region
  $region10: #{discriminator_forward.9} parent=0 // pred_check
    _
  $region11: #{discriminator_forward.9} parent=0 // pred_check_branch
    %15 = sbr.rel (0) target = $region13
  $region12: #{discriminator_forward.9} parent=0 // pred_region
    _
  $region13: #{discriminator_forward.9} parent=0 // pred_fallthru
    _
  %p16 = scmp.eq.s32.totalorder 0, 0
  // Predicated region
  $region14: #{discriminator_forward.9} parent=0 // pred_check
    %p17 = pneg %p16
  $region15: #{discriminator_forward.9} parent=0 // pred_check_branch
    %19 = sbr.rel (%p17) target = $region17
  $region16: #{discriminator_forward.9} parent=0 // pred_region
    %v20 = vld [vmem:[#allocation2] sm:$0x1]
    %v22 = vlaneseq
    %v23 = vshrl.u32 %v22, 7
    %v24 = vsub.s32 0, %v23
    %v25 = vrot.slane %v20, %v24
    %v27 = vadd.f32 %v25, 0.0
    %vm28 = vcmask 1024
    %29 = vst.msk [vmem:[%s3] sm:$0x3] %vm28, %v27
  $region17: #{discriminator_forward.9} parent=0 // pred_fallthru
    _
  %v30 = vld [vmem:[%s0] sm:$0xff]
  %v31 = vld [vmem:[%s0 + $0x8] sm:$0xff]
  %v32 = vunpack.c.l.bf16 %v30
  %v33 = vunpack.c.h.bf16 %v30
  %v34 = vunpack.c.l.bf16 %v31
  %v35 = vunpack.c.h.bf16 %v31
  %v36 = vld [vmem:[%s1] sm:$0xff]
  %v37 = vld [vmem:[%s1 + $0x8] sm:$0xff]
  %v38 = vld [vmem:[%s3] sm:$0x3]
  %v41 = vlaneseq
  %v42 = vshrl.u32 %v41, 7
  %v43 = vsub.s32 0, %v42
  %v44 = vrot.slane %v36, %v43
  %v45 = vlaneseq
  %v46 = vshrl.u32 %v45, 7
  %v47 = vsub.s32 1, %v46
  %v48 = vrot.slane %v36, %v47
  %v49 = vlaneseq
  %v50 = vshrl.u32 %v49, 7
  %v51 = vsub.s32 2, %v50
  %v52 = vrot.slane %v36, %v51
  %v53 = vlaneseq
  %v54 = vshrl.u32 %v53, 7
  %v55 = vsub.s32 3, %v54
  %v56 = vrot.slane %v36, %v55
  %v57 = vlaneseq
  %v58 = vshrl.u32 %v57, 7
  %v59 = vsub.s32 4, %v58
  %v60 = vrot.slane %v36, %v59
  %v61 = vlaneseq
  %v62 = vshrl.u32 %v61, 7
  %v63 = vsub.s32 5, %v62
  %v64 = vrot.slane %v36, %v63
  %v65 = vlaneseq
  %v66 = vshrl.u32 %v65, 7
  %v67 = vsub.s32 6, %v66
  %v68 = vrot.slane %v36, %v67
  %v69 = vlaneseq
  %v70 = vshrl.u32 %v69, 7
  %v71 = vsub.s32 7, %v70
  %v72 = vrot.slane %v36, %v71
  %v73 = vlaneseq
  %v74 = vshrl.u32 %v73, 7
  %v75 = vsub.s32 0, %v74
  %v76 = vrot.slane %v37, %v75
  %v77 = vlaneseq
  %v78 = vshrl.u32 %v77, 7
  %v79 = vsub.s32 1, %v78
  %v80 = vrot.slane %v37, %v79
  %v81 = vlaneseq
  %v82 = vshrl.u32 %v81, 7
  %v83 = vsub.s32 2, %v82
  %v84 = vrot.slane %v37, %v83
  %v85 = vlaneseq
  %v86 = vshrl.u32 %v85, 7
  %v87 = vsub.s32 3, %v86
  %v88 = vrot.slane %v37, %v87
  %v89 = vlaneseq
  %v90 = vshrl.u32 %v89, 7
  %v91 = vsub.s32 4, %v90
  %v92 = vrot.slane %v37, %v91
  %v93 = vlaneseq
  %v94 = vshrl.u32 %v93, 7
  %v95 = vsub.s32 5, %v94
  %v96 = vrot.slane %v37, %v95
  %v97 = vlaneseq
  %v98 = vshrl.u32 %v97, 7
  %v99 = vsub.s32 6, %v98
  %v100 = vrot.slane %v37, %v99
  %v101 = vlaneseq
  %v102 = vshrl.u32 %v101, 7
  %v103 = vsub.s32 7, %v102
  %v104 = vrot.slane %v37, %v103
  %v105 = vcombine.low %v44, %v48
  %v106 = vcombine.low %v52, %v56
  %v108 = vunpack.c.l.s4 1983009808
  %v109 = vunpack.c.0.s8 %v108
  %v110 = vlaneseq
  %v111 = vshrl.u32 %v110, 7
  %v112 = vsub.s32 %v109, %v111
  %v113 = vrot.slane %v105, %v112
  %v115 = vunpack.c.l.s4 1983009808
  %v116 = vunpack.c.0.s8 %v115
  %v117 = vlaneseq
  %v118 = vshrl.u32 %v117, 7
  %v119 = vsub.s32 %v116, %v118
  %v120 = vrot.slane %v106, %v119
  %v121 = vcombine.low %v113, %v120
  %v122 = vcombine.low %v60, %v64
  %v123 = vcombine.low %v68, %v72
  %v125 = vunpack.c.l.s4 1983009808
  %v126 = vunpack.c.0.s8 %v125
  %v127 = vlaneseq
  %v128 = vshrl.u32 %v127, 7
  %v129 = vsub.s32 %v126, %v128
  %v130 = vrot.slane %v122, %v129
  %v132 = vunpack.c.l.s4 1983009808
  %v133 = vunpack.c.0.s8 %v132
  %v134 = vlaneseq
  %v135 = vshrl.u32 %v134, 7
  %v136 = vsub.s32 %v133, %v135
  %v137 = vrot.slane %v123, %v136
  %v138 = vcombine.low %v130, %v137
  %v139 = vcombine.low %v76, %v80
  %v140 = vcombine.low %v84, %v88
  %v142 = vunpack.c.l.s4 1983009808
  %v143 = vunpack.c.0.s8 %v142
  %v144 = vlaneseq
  %v145 = vshrl.u32 %v144, 7
  %v146 = vsub.s32 %v143, %v145
  %v147 = vrot.slane %v139, %v146
  %v149 = vunpack.c.l.s4 1983009808
  %v150 = vunpack.c.0.s8 %v149
  %v151 = vlaneseq
  %v152 = vshrl.u32 %v151, 7
  %v153 = vsub.s32 %v150, %v152
  %v154 = vrot.slane %v140, %v153
  %v155 = vcombine.low %v147, %v154
  %v156 = vcombine.low %v92, %v96
  %v157 = vcombine.low %v100, %v104
  %v159 = vunpack.c.l.s4 1983009808
  %v160 = vunpack.c.0.s8 %v159
  %v161 = vlaneseq
  %v162 = vshrl.u32 %v161, 7
  %v163 = vsub.s32 %v160, %v162
  %v164 = vrot.slane %v156, %v163
  %v166 = vunpack.c.l.s4 1983009808
  %v167 = vunpack.c.0.s8 %v166
  %v168 = vlaneseq
  %v169 = vshrl.u32 %v168, 7
  %v170 = vsub.s32 %v167, %v169
  %v171 = vrot.slane %v157, %v170
  %v172 = vcombine.low %v164, %v171
  %v177 = vmul.f32 %v32, %v121
  %v178 = vmul.f32 %v33, %v138
  %v179 = vmul.f32 %v34, %v155
  %v180 = vmul.f32 %v35, %v172
  %v185 = vcombine.high %v177, %v177
  %v187 = vunpack.c.l.s4 1983009808
  %v188 = vunpack.c.0.s8 %v187
  %v189 = vlaneseq
  %v190 = vshrl.u32 %v189, 7
  %v191 = vsub.s32 %v188, %v190
  %v192 = vrot.slane %v177, %v191
  %v194 = vunpack.c.l.s4 1983009808
  %v195 = vunpack.c.0.s8 %v194
  %v196 = vlaneseq
  %v197 = vshrl.u32 %v196, 7
  %v198 = vsub.s32 %v195, %v197
  %v199 = vrot.slane %v185, %v198
  %v200 = vcombine.high %v192, %v192
  %v201 = vcombine.high %v199, %v199
  %v202 = vcombine.high %v178, %v178
  %v204 = vunpack.c.l.s4 1983009808
  %v205 = vunpack.c.0.s8 %v204
  %v206 = vlaneseq
  %v207 = vshrl.u32 %v206, 7
  %v208 = vsub.s32 %v205, %v207
  %v209 = vrot.slane %v178, %v208
  %v211 = vunpack.c.l.s4 1983009808
  %v212 = vunpack.c.0.s8 %v211
  %v213 = vlaneseq
  %v214 = vshrl.u32 %v213, 7
  %v215 = vsub.s32 %v212, %v214
  %v216 = vrot.slane %v202, %v215
  %v217 = vcombine.high %v209, %v209
  %v218 = vcombine.high %v216, %v216
  %v219 = vcombine.high %v179, %v179
  %v221 = vunpack.c.l.s4 1983009808
  %v222 = vunpack.c.0.s8 %v221
  %v223 = vlaneseq
  %v224 = vshrl.u32 %v223, 7
  %v225 = vsub.s32 %v222, %v224
  %v226 = vrot.slane %v179, %v225
  %v228 = vunpack.c.l.s4 1983009808
  %v229 = vunpack.c.0.s8 %v228
  %v230 = vlaneseq
  %v231 = vshrl.u32 %v230, 7
  %v232 = vsub.s32 %v229, %v231
  %v233 = vrot.slane %v219, %v232
  %v234 = vcombine.high %v226, %v226
  %v235 = vcombine.high %v233, %v233
  %v236 = vcombine.high %v180, %v180
  %v238 = vunpack.c.l.s4 1983009808
  %v239 = vunpack.c.0.s8 %v238
  %v240 = vlaneseq
  %v241 = vshrl.u32 %v240, 7
  %v242 = vsub.s32 %v239, %v241
  %v243 = vrot.slane %v180, %v242
  %v245 = vunpack.c.l.s4 1983009808
  %v246 = vunpack.c.0.s8 %v245
  %v247 = vlaneseq
  %v248 = vshrl.u32 %v247, 7
  %v249 = vsub.s32 %v246, %v248
  %v250 = vrot.slane %v236, %v249
  %v251 = vcombine.high %v243, %v243
  %v252 = vcombine.high %v250, %v250
  %vm269 = vcmask 1041408
  %v270 = vsel %vm269, %v192, 0.0
  %v271 = vsel %vm269, %v200, 0.0
  %v272 = vadd.f32 %v270, %v271
  %v273 = vsel %vm269, %v199, 0.0
  %v274 = vadd.f32 %v272, %v273
  %v275 = vsel %vm269, %v201, 0.0
  %v276 = vadd.f32 %v274, %v275
  %v277 = vsel %vm269, %v209, 0.0
  %v278 = vadd.f32 %v276, %v277
  %v279 = vsel %vm269, %v217, 0.0
  %v280 = vadd.f32 %v278, %v279
  %v281 = vsel %vm269, %v216, 0.0
  %v282 = vadd.f32 %v280, %v281
  %v283 = vsel %vm269, %v218, 0.0
  %v284 = vadd.f32 %v282, %v283
  %v285 = vsel %vm269, %v226, 0.0
  %v286 = vadd.f32 %v284, %v285
  %v287 = vsel %vm269, %v234, 0.0
  %v288 = vadd.f32 %v286, %v287
  %v289 = vsel %vm269, %v233, 0.0
  %v290 = vadd.f32 %v288, %v289
  %v291 = vsel %vm269, %v235, 0.0
  %v292 = vadd.f32 %v290, %v291
  %v293 = vsel %vm269, %v243, 0.0
  %v294 = vadd.f32 %v292, %v293
  %v295 = vsel %vm269, %v251, 0.0
  %v296 = vadd.f32 %v294, %v295
  %v297 = vsel %vm269, %v250, 0.0
  %v298 = vadd.f32 %v296, %v297
  %v299 = vsel %vm269, %v252, 0.0
  %v300 = vadd.f32 %v298, %v299
  %301 = vadd.xlane.f32.xlu0 %v300
  %v302 = vpop.xlane.xlu0 %301
  %v303 = vadd.f32 %v38, %v302
  %vm304 = vcmask 1024
  %305 = vst.msk [vmem:[%s3] sm:$0x3] %vm304, %v303
  // Predicated region
  $region18: #{discriminator_forward.9} parent=0 // pred_check
    _
  $region19: #{discriminator_forward.9} parent=0 // pred_check_branch
    %307 = sbr.rel (0) target = $region21
  $region20: #{discriminator_forward.9} parent=0 // pred_region
    _
  $region21: #{discriminator_forward.9} parent=0 // pred_fallthru
    _
  // Predicated region
  $region22: #{discriminator_forward.9} parent=0 // pred_check
    _
  $region23: #{discriminator_forward.9} parent=0 // pred_check_branch
    %309 = sbr.rel (0) target = $region25
  $region24: #{discriminator_forward.9} parent=0 // pred_region
    _
  $region25: #{discriminator_forward.9} parent=0 // pred_fallthru
    _

// kernel: discriminator_forward.7
$region0: #{discriminator_forward.7}
  #allocation0 [shape = 'u32[]', space=smem, size = 0x4, offset = 0x4, fixed_abs, tag = 'smem constant byte address 0x4 - core index']
  #allocation1 [shape = 'u32[144,128]{1,0:T(1,128)}', space=vmem, size = 0x12000, scoped, tag = 'internal scratch']
  %s0 = inlined_call_operand.vmem [shape: bf16[48,128], index: 0, kind: input, shape index: {}]
  %s1 = inlined_call_operand.vmem [shape: bf16[48,128], index: 1, kind: input, shape index: {}]
  %s2 = inlined_call_operand.vmem [shape: bf16[48,128], index: 2, kind: input, shape index: {}]
  %s3 = inlined_call_operand.vmem [shape: bf16[48,128], index: 3, kind: input, shape index: {}]
  %s4 = inlined_call_operand.vmem [shape: bf16[48,128], index: 4, kind: input, shape index: {}]
  %s5 = inlined_call_operand.vmem [shape: bf16[48,128], index: 5, kind: input, shape index: {}]
  %s6 = inlined_call_operand.vmem [shape: bf16[9,128,256], index: 6, kind: input, shape index: {}]
  %s7 = inlined_call_operand.vmem [shape: f32[1,256], index: 7, kind: input, shape index: {}]
  %s8 = inlined_call_operand.vmem [shape: bf16[32,256], index: 8, kind: output, shape index: {}]
  %s9 = sld [smem:[#allocation0]]
  $region42: #{discriminator_forward.7} parent=0
    _
  %s11 = ssub.s32 1, %s9
  %s12 = scalar_select 0, %s11, %s9
  // Predicated region
  $region2: #{discriminator_forward.7} parent=0 // pred_check
    _
  $region3: #{discriminator_forward.7} parent=0 // pred_check_branch
    %14 = sbr.rel (0) target = $region5
  $region4: #{discriminator_forward.7} parent=0 // pred_region
    _
  $region5: #{discriminator_forward.7} parent=0 // pred_fallthru
    _
  // Predicated region
  $region6: #{discriminator_forward.7} parent=0 // pred_check
    _
  $region7: #{discriminator_forward.7} parent=0 // pred_check_branch
    %16 = sbr.rel (0) target = $region9
  $region8: #{discriminator_forward.7} parent=0 // pred_region
    _
  $region9: #{discriminator_forward.7} parent=0 // pred_fallthru
    _
  // Predicated region
  $region10: #{discriminator_forward.7} parent=0 // pred_check
    _
  $region11: #{discriminator_forward.7} parent=0 // pred_check_branch
    %18 = sbr.rel (0) target = $region13
  $region12: #{discriminator_forward.7} parent=0 // pred_region
    _
  $region13: #{discriminator_forward.7} parent=0 // pred_fallthru
    _
  // Predicated region
  $region14: #{discriminator_forward.7} parent=0 // pred_check
    _
  $region15: #{discriminator_forward.7} parent=0 // pred_check_branch
    %20 = sbr.rel (0) target = $region17
  $region16: #{discriminator_forward.7} parent=0 // pred_region
    _
  $region17: #{discriminator_forward.7} parent=0 // pred_fallthru
    _
  // Predicated region
  $region18: #{discriminator_forward.7} parent=0 // pred_check
    _
  $region19: #{discriminator_forward.7} parent=0 // pred_check_branch
    %22 = sbr.rel (0) target = $region21
  $region20: #{discriminator_forward.7} parent=0 // pred_region
    _
  $region21: #{discriminator_forward.7} parent=0 // pred_fallthru
    _
  // Predicated region
  $region22: #{discriminator_forward.7} parent=0 // pred_check
    _
  $region23: #{discriminator_forward.7} parent=0 // pred_check_branch
    %24 = sbr.rel (0) target = $region25
  $region24: #{discriminator_forward.7} parent=0 // pred_region
    _
  $region25: #{discriminator_forward.7} parent=0 // pred_fallthru
    _
  // Predicated region
  $region26: #{discriminator_forward.7} parent=0 // pred_check
    _
  $region27: #{discriminator_forward.7} parent=0 // pred_check_branch
    %26 = sbr.rel (0) target = $region29
  $region28: #{discriminator_forward.7} parent=0 // pred_region
    _
  $region29: #{discriminator_forward.7} parent=0 // pred_fallthru
    _
  // Predicated region
  $region30: #{discriminator_forward.7} parent=0 // pred_check
    _
  $region31: #{discriminator_forward.7} parent=0 // pred_check_branch
    %28 = sbr.rel (0) target = $region33
  $region32: #{discriminator_forward.7} parent=0 // pred_region
    _
  $region33: #{discriminator_forward.7} parent=0 // pred_fallthru
    _
  %v30 = vld [vmem:[%s0] sm:$0xf]
  %v31 = vld [vmem:[%s0 + $0x4] sm:$0xf]
  %v32 = vld [vmem:[%s0 + $0x8] sm:$0xf]
  %v33 = vld [vmem:[%s0 + $0xc] sm:$0xf]
  %v34 = vld [vmem:[%s0 + $0x10] sm:$0xf]
  %v35 = vld [vmem:[%s6] sm:$0xff]
  %v36 = vld [vmem:[%s6 + $0x8] sm:$0xff]
  %v37 = vld [vmem:[%s6 + $0x10] sm:$0xff]
  %v38 = vld [vmem:[%s6 + $0x18] sm:$0xff]
  %v39 = vld [vmem:[%s6 + $0x20] sm:$0xff]
  %v40 = vld [vmem:[%s6 + $0x28] sm:$0xff]
  %v41 = vld [vmem:[%s6 + $0x30] sm:$0xff]
  %v42 = vld [vmem:[%s6 + $0x38] sm:$0xff]
  %v43 = vld [vmem:[%s6 + $0x40] sm:$0xff]
  %v44 = vld [vmem:[%s6 + $0x48] sm:$0xff]
  %v45 = vld [vmem:[%s6 + $0x50] sm:$0xff]
  %v46 = vld [vmem:[%s6 + $0x58] sm:$0xff]
  %v47 = vld [vmem:[%s6 + $0x60] sm:$0xff]
  %v48 = vld [vmem:[%s6 + $0x68] sm:$0xff]
  %v49 = vld [vmem:[%s6 + $0x70] sm:$0xff]
  %v50 = vld [vmem:[%s6 + $0x78] sm:$0xff]
  %v51 = vld [vmem:[%s2] sm:$0xf]
  %v52 = vld [vmem:[%s2 + $0x4] sm:$0xf]
  %v53 = vld [vmem:[%s2 + $0x8] sm:$0xf]
  %v54 = vld [vmem:[%s2 + $0xc] sm:$0xf]
  %v55 = vld [vmem:[%s2 + $0x10] sm:$0xf]
  %s56 = scalar_lea.vmem %s6, 128
  %v57 = vld [vmem:[%s56] sm:$0xff]
  %v58 = vld [vmem:[%s56 + $0x8] sm:$0xff]
  %v59 = vld [vmem:[%s56 + $0x10] sm:$0xff]
  %v60 = vld [vmem:[%s56 + $0x18] sm:$0xff]
  %v61 = vld [vmem:[%s56 + $0x20] sm:$0xff]
  %v62 = vld [vmem:[%s56 + $0x28] sm:$0xff]
  %v63 = vld [vmem:[%s56 + $0x30] sm:$0xff]
  %v64 = vld [vmem:[%s56 + $0x38] sm:$0xff]
  %v65 = vld [vmem:[%s56 + $0x40] sm:$0xff]
  %v66 = vld [vmem:[%s56 + $0x48] sm:$0xff]
  %v67 = vld [vmem:[%s56 + $0x50] sm:$0xff]
  %v68 = vld [vmem:[%s56 + $0x58] sm:$0xff]
  %v69 = vld [vmem:[%s56 + $0x60] sm:$0xff]
  %v70 = vld [vmem:[%s56 + $0x68] sm:$0xff]
  %v71 = vld [vmem:[%s56 + $0x70] sm:$0xff]
  %v72 = vld [vmem:[%s56 + $0x78] sm:$0xff]
  %v78 = vunpack.c.l.b16 %v51
  %v79 = vunpack.c.l.b16 %v52
  %v80 = vunpack.c.l.b16 %v53
  %v81 = vunpack.c.l.b16 %v54
  %v82 = vunpack.c.l.b16 %v55
  %v83 = vpack.c.b16 %v79, %v78
  %v84 = vpack.c.b16 %v81, %v80
  %v85 = vpack.c.b16 %v82, %v82
  %v105 = vunpack.c.l.b16 %v57
  %v106 = vunpack.c.h.b16 %v57
  %v107 = vunpack.c.l.b16 %v58
  %v108 = vunpack.c.h.b16 %v58
  %v109 = vunpack.c.l.b16 %v59
  %v110 = vunpack.c.h.b16 %v59
  %v111 = vunpack.c.l.b16 %v60
  %v112 = vunpack.c.h.b16 %v60
  %v113 = vunpack.c.l.b16 %v61
  %v114 = vunpack.c.h.b16 %v61
  %v115 = vunpack.c.l.b16 %v62
  %v116 = vunpack.c.h.b16 %v62
  %v117 = vunpack.c.l.b16 %v63
  %v118 = vunpack.c.h.b16 %v63
  %v119 = vunpack.c.l.b16 %v64
  %v120 = vunpack.c.h.b16 %v64
  %v121 = vunpack.c.l.b16 %v65
  %v122 = vunpack.c.h.b16 %v65
  %v123 = vunpack.c.l.b16 %v66
  %v124 = vunpack.c.h.b16 %v66
  %v125 = vunpack.c.l.b16 %v67
  %v126 = vunpack.c.h.b16 %v67
  %v127 = vunpack.c.l.b16 %v68
  %v128 = vunpack.c.h.b16 %v68
  %v129 = vunpack.c.l.b16 %v69
  %v130 = vunpack.c.h.b16 %v69
  %v131 = vunpack.c.l.b16 %v70
  %v132 = vunpack.c.h.b16 %v70
  %v133 = vunpack.c.l.b16 %v71
  %v134 = vunpack.c.h.b16 %v71
  %v135 = vunpack.c.l.b16 %v72
  %v136 = vunpack.c.h.b16 %v72
  %v137 = vpack.c.b16 %v107, %v105
  %v138 = vpack.c.b16 %v108, %v106
  %v139 = vpack.c.b16 %v111, %v109
  %v140 = vpack.c.b16 %v112, %v110
  %v141 = vpack.c.b16 %v115, %v113
  %v142 = vpack.c.b16 %v116, %v114
  %v143 = vpack.c.b16 %v119, %v117
  %v144 = vpack.c.b16 %v120, %v118
  %v145 = vpack.c.b16 %v123, %v121
  %v146 = vpack.c.b16 %v124, %v122
  %v147 = vpack.c.b16 %v127, %v125
  %v148 = vpack.c.b16 %v128, %v126
  %v149 = vpack.c.b16 %v131, %v129
  %v150 = vpack.c.b16 %v132, %v130
  %v151 = vpack.c.b16 %v135, %v133
  %v152 = vpack.c.b16 %v136, %v134
  %169 = vmatprep.subr.bf16.mxu0 %v138
  %170 = vmatpush1.bf16.msra.mxu0 %v137
  %171 = vmatprep.subr.bf16.mxu0 %v140
  %172 = vmatpush1.bf16.msra.mxu0 %v139
  %173 = vmatprep.subr.bf16.mxu0 %v142
  %174 = vmatpush1.bf16.msra.mxu0 %v141
  %175 = vmatprep.subr.bf16.mxu0 %v144
  %176 = vmatpush1.bf16.msra.mxu0 %v143
  %177 = vmatprep.subr.bf16.mxu0 %v146
  %178 = vmatpush1.bf16.msra.mxu0 %v145
  %179 = vmatprep.subr.bf16.mxu0 %v148
  %180 = vmatpush1.bf16.msra.mxu0 %v147
  %181 = vmatprep.subr.bf16.mxu0 %v150
  %182 = vmatpush1.bf16.msra.mxu0 %v149
  %183 = vmatprep.subr.bf16.mxu0 %v152
  %184 = vmatpush1.bf16.msra.mxu0 %v151
  %185 = vmatprep.subr.bf16.mxu0 0
  %186 = vmatpush1.bf16.msra.mxu0 0
  %187 = vmatprep.subr.bf16.mxu0 0
  %188 = vmatpush1.bf16.msra.mxu0 0
  %189 = vmatprep.subr.bf16.mxu0 0
  %190 = vmatpush1.bf16.msra.mxu0 0
  %191 = vmatprep.subr.bf16.mxu0 0
  %192 = vmatpush1.bf16.msra.mxu0 0
  %193 = vmatprep.subr.bf16.mxu0 0
  %194 = vmatpush1.bf16.msra.mxu0 0
  %195 = vmatprep.subr.bf16.mxu0 0
  %196 = vmatpush1.bf16.msra.mxu0 0
  %197 = vmatprep.subr.bf16.mxu0 0
  %198 = vmatpush1.bf16.msra.mxu0 0
  %199 = vmatprep.subr.bf16.mxu0 0
  %200 = vmatpush1.bf16.msra.mxu0 0
  %201 = vmatprep.mubr.bf16.mxu0 0
  %202 = vmatmul.mubr.bf16.gmra.mrb[0].mxu0 %v83
  %v203 = vpop.f32.mrb[0].mxu0
  %v204 = vadd.f32 0.0, %v203
  %v205 = vpop.f32.mrb[0].mxu0
  %v206 = vadd.f32 0.0, %v205
  %v207 = vpop.f32.mrb[0].mxu0
  %v208 = vadd.f32 0.0, %v207
  %v209 = vpop.f32.mrb[0].mxu0
  %v210 = vadd.f32 0.0, %v209
  %211 = vmatprep.mubr.bf16.mxu0 0
  %212 = vmatmul.mubr.bf16.gmra.mrb[0].mxu0 %v84
  %v213 = vpop.f32.mrb[0].mxu0
  %v214 = vpop.f32.mrb[0].mxu0
  %v215 = vpop.f32.mrb[0].mxu0
  %v216 = vadd.f32 0.0, %v215
  %v217 = vpop.f32.mrb[0].mxu0
  %v218 = vadd.f32 0.0, %v217
  %219 = vmatprep.mubr.bf16.mxu0 0
  %220 = vmatmul.mubr.bf16.gmra.mrb[0].mxu0 %v85
  %v221 = vpop.f32.mrb[0].mxu0
  %v222 = vadd.f32 0.0, %v221
  %v223 = vpop.f32.mrb[0].mxu0
  %v224 = vadd.f32 0.0, %v223
  %v225 = vpop.f32.mrb[0].mxu0
  %v226 = vpop.f32.mrb[0].mxu0
  %227 = vdwg.mxu0
  %v233 = vunpack.c.l.b16 %v30
  %v234 = vunpack.c.l.b16 %v31
  %v235 = vunpack.c.l.b16 %v32
  %v236 = vunpack.c.l.b16 %v33
  %v237 = vunpack.c.l.b16 %v34
  %v238 = vpack.c.b16 %v234, %v233
  %v239 = vpack.c.b16 %v236, %v235
  %v240 = vpack.c.b16 %v237, %v237
  %v260 = vunpack.c.l.b16 %v35
  %v261 = vunpack.c.h.b16 %v35
  %v262 = vunpack.c.l.b16 %v36
  %v263 = vunpack.c.h.b16 %v36
  %v264 = vunpack.c.l.b16 %v37
  %v265 = vunpack.c.h.b16 %v37
  %v266 = vunpack.c.l.b16 %v38
  %v267 = vunpack.c.h.b16 %v38
  %v268 = vunpack.c.l.b16 %v39
  %v269 = vunpack.c.h.b16 %v39
  %v270 = vunpack.c.l.b16 %v40
  %v271 = vunpack.c.h.b16 %v40
  %v272 = vunpack.c.l.b16 %v41
  %v273 = vunpack.c.h.b16 %v41
  %v274 = vunpack.c.l.b16 %v42
  %v275 = vunpack.c.h.b16 %v42
  %v276 = vunpack.c.l.b16 %v43
  %v277 = vunpack.c.h.b16 %v43
  %v278 = vunpack.c.l.b16 %v44
  %v279 = vunpack.c.h.b16 %v44
  %v280 = vunpack.c.l.b16 %v45
  %v281 = vunpack.c.h.b16 %v45
  %v282 = vunpack.c.l.b16 %v46
  %v283 = vunpack.c.h.b16 %v46
  %v284 = vunpack.c.l.b16 %v47
  %v285 = vunpack.c.h.b16 %v47
  %v286 = vunpack.c.l.b16 %v48
  %v287 = vunpack.c.h.b16 %v48
  %v288 = vunpack.c.l.b16 %v49
  %v289 = vunpack.c.h.b16 %v49
  %v290 = vunpack.c.l.b16 %v50
  %v291 = vunpack.c.h.b16 %v50
  %v292 = vpack.c.b16 %v262, %v260
  %v293 = vpack.c.b16 %v263, %v261
  %v294 = vpack.c.b16 %v266, %v264
  %v295 = vpack.c.b16 %v267, %v265
  %v296 = vpack.c.b16 %v270, %v268
  %v297 = vpack.c.b16 %v271, %v269
  %v298 = vpack.c.b16 %v274, %v272
  %v299 = vpack.c.b16 %v275, %v273
  %v300 = vpack.c.b16 %v278, %v276
  %v301 = vpack.c.b16 %v279, %v277
  %v302 = vpack.c.b16 %v282, %v280
  %v303 = vpack.c.b16 %v283, %v281
  %v304 = vpack.c.b16 %v286, %v284
  %v305 = vpack.c.b16 %v287, %v285
  %v306 = vpack.c.b16 %v290, %v288
  %v307 = vpack.c.b16 %v291, %v289
  %324 = vmatprep.subr.bf16.mxu0 %v293
  %325 = vmatpush1.bf16.msra.mxu0 %v292
  %326 = vmatprep.subr.bf16.mxu0 %v295
  %327 = vmatpush1.bf16.msra.mxu0 %v294
  %328 = vmatprep.subr.bf16.mxu0 %v297
  %329 = vmatpush1.bf16.msra.mxu0 %v296
  %330 = vmatprep.subr.bf16.mxu0 %v299
  %331 = vmatpush1.bf16.msra.mxu0 %v298
  %332 = vmatprep.subr.bf16.mxu0 %v301
  %333 = vmatpush1.bf16.msra.mxu0 %v300
  %334 = vmatprep.subr.bf16.mxu0 %v303
  %335 = vmatpush1.bf16.msra.mxu0 %v302
  %336 = vmatprep.subr.bf16.mxu0 %v305
  %337 = vmatpush1.bf16.msra.mxu0 %v304
  %338 = vmatprep.subr.bf16.mxu0 %v307
  %339 = vmatpush1.bf16.msra.mxu0 %v306
  %340 = vmatprep.subr.bf16.mxu0 0
  %341 = vmatpush1.bf16.msra.mxu0 0
  %342 = vmatprep.subr.bf16.mxu0 0
  %343 = vmatpush1.bf16.msra.mxu0 0
  %344 = vmatprep.subr.bf16.mxu0 0
  %345 = vmatpush1.bf16.msra.mxu0 0
  %346 = vmatprep.subr.bf16.mxu0 0
  %347 = vmatpush1.bf16.msra.mxu0 0
  %348 = vmatprep.subr.bf16.mxu0 0
  %349 = vmatpush1.bf16.msra.mxu0 0
  %350 = vmatprep.subr.bf16.mxu0 0
  %351 = vmatpush1.bf16.msra.mxu0 0
  %352 = vmatprep.subr.bf16.mxu0 0
  %353 = vmatpush1.bf16.msra.mxu0 0
  %354 = vmatprep.subr.bf16.mxu0 0
  %355 = vmatpush1.bf16.msra.mxu0 0
  %356 = vmatprep.mubr.bf16.mxu0 0
  %357 = vmatmul.mubr.bf16.gmra.mrb[0].mxu0 %v238
  %v358 = vpop.f32.mrb[0].mxu0
  %v359 = vadd.f32 %v204, %v358
  %v360 = vpop.f32.mrb[0].mxu0
  %v361 = vadd.f32 %v206, %v360
  %v362 = vpop.f32.mrb[0].mxu0
  %v363 = vadd.f32 %v208, %v362
  %v364 = vpop.f32.mrb[0].mxu0
  %v365 = vadd.f32 %v210, %v364
  %366 = vmatprep.mubr.bf16.mxu0 0
  %367 = vmatmul.mubr.bf16.gmra.mrb[0].mxu0 %v239
  %v368 = vpop.f32.mrb[0].mxu0
  %v369 = vpop.f32.mrb[0].mxu0
  %v370 = vpop.f32.mrb[0].mxu0
  %v371 = vadd.f32 %v216, %v370
  %v372 = vpop.f32.mrb[0].mxu0
  %v373 = vadd.f32 %v218, %v372
  %374 = vmatprep.mubr.bf16.mxu0 0
  %375 = vmatmul.mubr.bf16.gmra.mrb[0].mxu0 %v240
  %v376 = vpop.f32.mrb[0].mxu0
  %v377 = vadd.f32 %v222, %v376
  %v378 = vpop.f32.mrb[0].mxu0
  %v379 = vadd.f32 %v224, %v378
  %v380 = vpop.f32.mrb[0].mxu0
  %v381 = vpop.f32.mrb[0].mxu0
  %382 = vdwg.mxu0
  %v383 = vld [vmem:[%s1] sm:$0xf]
  %v384 = vld [vmem:[%s1 + $0x4] sm:$0xf]
  %v385 = vld [vmem:[%s1 + $0x8] sm:$0xf]
  %v386 = vld [vmem:[%s1 + $0xc] sm:$0xf]
  %v387 = vld [vmem:[%s1 + $0x10] sm:$0xf]
  %s388 = scalar_lea.vmem %s6, 256
  %v389 = vld [vmem:[%s388] sm:$0xff]
  %v390 = vld [vmem:[%s388 + $0x8] sm:$0xff]
  %v391 = vld [vmem:[%s388 + $0x10] sm:$0xff]
  %v392 = vld [vmem:[%s388 + $0x18] sm:$0xff]
  %v393 = vld [vmem:[%s388 + $0x20] sm:$0xff]
  %v394 = vld [vmem:[%s388 + $0x28] sm:$0xff]
  %v395 = vld [vmem:[%s388 + $0x30] sm:$0xff]
  %v396 = vld [vmem:[%s388 + $0x38] sm:$0xff]
  %v397 = vld [vmem:[%s388 + $0x40] sm:$0xff]
  %v398 = vld [vmem:[%s388 + $0x48] sm:$0xff]
  %v399 = vld [vmem:[%s388 + $0x50] sm:$0xff]
  %v400 = vld [vmem:[%s388 + $0x58] sm:$0xff]
  %v401 = vld [vmem:[%s388 + $0x60] sm:$0xff]
  %v402 = vld [vmem:[%s388 + $0x68] sm:$0xff]
  %v403 = vld [vmem:[%s388 + $0x70] sm:$0xff]
  %v404 = vld [vmem:[%s388 + $0x78] sm:$0xff]
  %v410 = vunpack.c.l.b16 %v383
  %v411 = vunpack.c.l.b16 %v384
  %v412 = vunpack.c.l.b16 %v385
  %v413 = vunpack.c.l.b16 %v386
  %v414 = vunpack.c.l.b16 %v387
  %v415 = vpack.c.b16 %v411, %v410
  %v416 = vpack.c.b16 %v413, %v412
  %v417 = vpack.c.b16 %v414, %v414
  %v437 = vunpack.c.l.b16 %v389
  %v438 = vunpack.c.h.b16 %v389
  %v439 = vunpack.c.l.b16 %v390
  %v440 = vunpack.c.h.b16 %v390
  %v441 = vunpack.c.l.b16 %v391
  %v442 = vunpack.c.h.b16 %v391
  %v443 = vunpack.c.l.b16 %v392
  %v444 = vunpack.c.h.b16 %v392
  %v445 = vunpack.c.l.b16 %v393
  %v446 = vunpack.c.h.b16 %v393
  %v447 = vunpack.c.l.b16 %v394
  %v448 = vunpack.c.h.b16 %v394
  %v449 = vunpack.c.l.b16 %v395
  %v450 = vunpack.c.h.b16 %v395
  %v451 = vunpack.c.l.b16 %v396
  %v452 = vunpack.c.h.b16 %v396
  %v453 = vunpack.c.l.b16 %v397
  %v454 = vunpack.c.h.b16 %v397
  %v455 = vunpack.c.l.b16 %v398
  %v456 = vunpack.c.h.b16 %v398
  %v457 = vunpack.c.l.b16 %v399
  %v458 = vunpack.c.h.b16 %v399
  %v459 = vunpack.c.l.b16 %v400
  %v460 = vunpack.c.h.b16 %v400
  %v461 = vunpack.c.l.b16 %v401
  %v462 = vunpack.c.h.b16 %v401
  %v463 = vunpack.c.l.b16 %v402
  %v464 = vunpack.c.h.b16 %v402
  %v465 = vunpack.c.l.b16 %v403
  %v466 = vunpack.c.h.b16 %v403
  %v467 = vunpack.c.l.b16 %v404
  %v468 = vunpack.c.h.b16 %v404
  %v469 = vpack.c.b16 %v439, %v437
  %v470 = vpack.c.b16 %v440, %v438
  %v471 = vpack.c.b16 %v443, %v441
  %v472 = vpack.c.b16 %v444, %v442
  %v473 = vpack.c.b16 %v447, %v445
  %v474 = vpack.c.b16 %v448, %v446
  %v475 = vpack.c.b16 %v451, %v449
  %v476 = vpack.c.b16 %v452, %v450
  %v477 = vpack.c.b16 %v455, %v453
  %v478 = vpack.c.b16 %v456, %v454
  %v479 = vpack.c.b16 %v459, %v457
  %v480 = vpack.c.b16 %v460, %v458
  %v481 = vpack.c.b16 %v463, %v461
  %v482 = vpack.c.b16 %v464, %v462
  %v483 = vpack.c.b16 %v467, %v465
  %v484 = vpack.c.b16 %v468, %v466
  %501 = vmatprep.subr.bf16.mxu0 %v470
  %502 = vmatpush1.bf16.msra.mxu0 %v469
  %503 = vmatprep.subr.bf16.mxu0 %v472
  %504 = vmatpush1.bf16.msra.mxu0 %v471
  %505 = vmatprep.subr.bf16.mxu0 %v474
  %506 = vmatpush1.bf16.msra.mxu0 %v473
  %507 = vmatprep.subr.bf16.mxu0 %v476
  %508 = vmatpush1.bf16.msra.mxu0 %v475
  %509 = vmatprep.subr.bf16.mxu0 %v478
  %510 = vmatpush1.bf16.msra.mxu0 %v477
  %511 = vmatprep.subr.bf16.mxu0 %v480
  %512 = vmatpush1.bf16.msra.mxu0 %v479
  %513 = vmatprep.subr.bf16.mxu0 %v482
  %514 = vmatpush1.bf16.msra.mxu0 %v481
  %515 = vmatprep.subr.bf16.mxu0 %v484
  %516 = vmatpush1.bf16.msra.mxu0 %v483
  %517 = vmatprep.subr.bf16.mxu0 0
  %518 = vmatpush1.bf16.msra.mxu0 0
  %519 = vmatprep.subr.bf16.mxu0 0
  %520 = vmatpush1.bf16.msra.mxu0 0
  %521 = vmatprep.subr.bf16.mxu0 0
  %522 = vmatpush1.bf16.msra.mxu0 0
  %523 = vmatprep.subr.bf16.mxu0 0
  %524 = vmatpush1.bf16.msra.mxu0 0
  %525 = vmatprep.subr.bf16.mxu0 0
  %526 = vmatpush1.bf16.msra.mxu0 0
  %527 = vmatprep.subr.bf16.mxu0 0
  %528 = vmatpush1.bf16.msra.mxu0 0
  %529 = vmatprep.subr.bf16.mxu0 0
  %530 = vmatpush1.bf16.msra.mxu0 0
  %531 = vmatprep.subr.bf16.mxu0 0
  %532 = vmatpush1.bf16.msra.mxu0 0
  %533 = vmatprep.mubr.bf16.mxu0 0
  %534 = vmatmul.mubr.bf16.gmra.mrb[0].mxu0 %v415
  %v535 = vpop.f32.mrb[0].mxu0
  %v536 = vadd.f32 0.0, %v535
  %v537 = vpop.f32.mrb[0].mxu0
  %v538 = vadd.f32 0.0, %v537
  %v539 = vpop.f32.mrb[0].mxu0
  %v540 = vadd.f32 0.0, %v539
  %v541 = vpop.f32.mrb[0].mxu0
  %v542 = vadd.f32 0.0, %v541
  %543 = vmatprep.mubr.bf16.mxu0 0
  %544 = vmatmul.mubr.bf16.gmra.mrb[0].mxu0 %v416
  %v545 = vpop.f32.mrb[0].mxu0
  %v546 = vpop.f32.mrb[0].mxu0
  %v547 = vpop.f32.mrb[0].mxu0
  %v548 = vadd.f32 0.0, %v547
  %v549 = vpop.f32.mrb[0].mxu0
  %v550 = vadd.f32 0.0, %v549
  %551 = vmatprep.mubr.bf16.mxu0 0
  %552 = vmatmul.mubr.bf16.gmra.mrb[0].mxu0 %v417
  %v553 = vpop.f32.mrb[0].mxu0
  %v554 = vadd.f32 0.0, %v553
  %v555 = vpop.f32.mrb[0].mxu0
  %v556 = vadd.f32 0.0, %v555
  %v557 = vpop.f32.mrb[0].mxu0
  %v558 = vpop.f32.mrb[0].mxu0
  %559 = vdwg.mxu0
  %v560 = vadd.f32 %v359, %v536
  %v561 = vadd.f32 %v361, %v538
  %v562 = vadd.f32 %v363, %v540
  %v563 = vadd.f32 %v365, %v542
  %v564 = vadd.f32 %v371, %v548
  %v565 = vadd.f32 %v373, %v550
  %v566 = vadd.f32 %v377, %v554
  %v567 = vadd.f32 %v379, %v556
  %v568 = vld [vmem:[%s3] sm:$0xf]
  %v569 = vld [vmem:[%s3 + $0x4] sm:$0xf]
  %v570 = vld [vmem:[%s3 + $0x8] sm:$0xf]
  %v571 = vld [vmem:[%s3 + $0xc] sm:$0xf]
  %v572 = vld [vmem:[%s3 + $0x10] sm:$0xf]
  %s573 = scalar_lea.vmem %s6, 384
  %v574 = vld [vmem:[%s573] sm:$0xff]
  %v575 = vld [vmem:[%s573 + $0x8] sm:$0xff]
  %v576 = vld [vmem:[%s573 + $0x10] sm:$0xff]
  %v577 = vld [vmem:[%s573 + $0x18] sm:$0xff]
  %v578 = vld [vmem:[%s573 + $0x20] sm:$0xff]
  %v579 = vld [vmem:[%s573 + $0x28] sm:$0xff]
  %v580 = vld [vmem:[%s573 + $0x30] sm:$0xff]
  %v581 = vld [vmem:[%s573 + $0x38] sm:$0xff]
  %v582 = vld [vmem:[%s573 + $0x40] sm:$0xff]
  %v583 = vld [vmem:[%s573 + $0x48] sm:$0xff]
  %v584 = vld [vmem:[%s573 + $0x50] sm:$0xff]
  %v585 = vld [vmem:[%s573 + $0x58] sm:$0xff]
  %v586 = vld [vmem:[%s573 + $0x60] sm:$0xff]
  %v587 = vld [vmem:[%s573 + $0x68] sm:$0xff]
  %v588 = vld [vmem:[%s573 + $0x70] sm:$0xff]
  %v589 = vld [vmem:[%s573 + $0x78] sm:$0xff]
  %v595 = vunpack.c.l.b16 %v568
  %v596 = vunpack.c.l.b16 %v569
  %v597 = vunpack.c.l.b16 %v570
  %v598 = vunpack.c.l.b16 %v571
  %v599 = vunpack.c.l.b16 %v572
  %v600 = vpack.c.b16 %v596, %v595
  %v601 = vpack.c.b16 %v598, %v597
  %v602 = vpack.c.b16 %v599, %v599
  %v622 = vunpack.c.l.b16 %v574
  %v623 = vunpack.c.h.b16 %v574
  %v624 = vunpack.c.l.b16 %v575
  %v625 = vunpack.c.h.b16 %v575
  %v626 = vunpack.c.l.b16 %v576
  %v627 = vunpack.c.h.b16 %v576
  %v628 = vunpack.c.l.b16 %v577
  %v629 = vunpack.c.h.b16 %v577
  %v630 = vunpack.c.l.b16 %v578
  %v631 = vunpack.c.h.b16 %v578
  %v632 = vunpack.c.l.b16 %v579
  %v633 = vunpack.c.h.b16 %v579
  %v634 = vunpack.c.l.b16 %v580
  %v635 = vunpack.c.h.b16 %v580
  %v636 = vunpack.c.l.b16 %v581
  %v637 = vunpack.c.h.b16 %v581
  %v638 = vunpack.c.l.b16 %v582
  %v639 = vunpack.c.h.b16 %v582
  %v640 = vunpack.c.l.b16 %v583
  %v641 = vunpack.c.h.b16 %v583
  %v642 = vunpack.c.l.b16 %v584
  %v643 = vunpack.c.h.b16 %v584
  %v644 = vunpack.c.l.b16 %v585
  %v645 = vunpack.c.h.b16 %v585
  %v646 = vunpack.c.l.b16 %v586
  %v647 = vunpack.c.h.b16 %v586
  %v648 = vunpack.c.l.b16 %v587
  %v649 = vunpack.c.h.b16 %v587
  %v650 = vunpack.c.l.b16 %v588
  %v651 = vunpack.c.h.b16 %v588
  %v652 = vunpack.c.l.b16 %v589
  %v653 = vunpack.c.h.b16 %v589
  %v654 = vpack.c.b16 %v624, %v622
  %v655 = vpack.c.b16 %v625, %v623
  %v656 = vpack.c.b16 %v628, %v626
  %v657 = vpack.c.b16 %v629, %v627
  %v658 = vpack.c.b16 %v632, %v630
  %v659 = vpack.c.b16 %v633, %v631
  %v660 = vpack.c.b16 %v636, %v634
  %v661 = vpack.c.b16 %v637, %v635
  %v662 = vpack.c.b16 %v640, %v638
  %v663 = vpack.c.b16 %v641, %v639
  %v664 = vpack.c.b16 %v644, %v642
  %v665 = vpack.c.b16 %v645, %v643
  %v666 = vpack.c.b16 %v648, %v646
  %v667 = vpack.c.b16 %v649, %v647
  %v668 = vpack.c.b16 %v652, %v650
  %v669 = vpack.c.b16 %v653, %v651
  %686 = vmatprep.subr.bf16.mxu0 %v655
  %687 = vmatpush1.bf16.msra.mxu0 %v654
  %688 = vmatprep.subr.bf16.mxu0 %v657
  %689 = vmatpush1.bf16.msra.mxu0 %v656
  %690 = vmatprep.subr.bf16.mxu0 %v659
  %691 = vmatpush1.bf16.msra.mxu0 %v658
  %692 = vmatprep.subr.bf16.mxu0 %v661
  %693 = vmatpush1.bf16.msra.mxu0 %v660
  %694 = vmatprep.subr.bf16.mxu0 %v663
  %695 = vmatpush1.bf16.msra.mxu0 %v662
  %696 = vmatprep.subr.bf16.mxu0 %v665
  %697 = vmatpush1.bf16.msra.mxu0 %v664
  %698 = vmatprep.subr.bf16.mxu0 %v667
  %699 = vmatpush1.bf16.msra.mxu0 %v666
  %700 = vmatprep.subr.bf16.mxu0 %v669
  %701 = vmatpush1.bf16.msra.mxu0 %v668
  %702 = vmatprep.subr.bf16.mxu0 0
  %703 = vmatpush1.bf16.msra.mxu0 0
  %704 = vmatprep.subr.bf16.mxu0 0
  %705 = vmatpush1.bf16.msra.mxu0 0
  %706 = vmatprep.subr.bf16.mxu0 0
  %707 = vmatpush1.bf16.msra.mxu0 0
  %708 = vmatprep.subr.bf16.mxu0 0
  %709 = vmatpush1.bf16.msra.mxu0 0
  %710 = vmatprep.subr.bf16.mxu0 0
  %711 = vmatpush1.bf16.msra.mxu0 0
  %712 = vmatprep.subr.bf16.mxu0 0
  %713 = vmatpush1.bf16.msra.mxu0 0
  %714 = vmatprep.subr.bf16.mxu0 0
  %715 = vmatpush1.bf16.msra.mxu0 0
  %716 = vmatprep.subr.bf16.mxu0 0
  %717 = vmatpush1.bf16.msra.mxu0 0
  %718 = vmatprep.mubr.bf16.mxu0 0
  %719 = vmatmul.mubr.bf16.gmra.mrb[0].mxu0 %v600
  %v720 = vpop.f32.mrb[0].mxu0
  %v721 = vadd.f32 0.0, %v720
  %v722 = vpop.f32.mrb[0].mxu0
  %v723 = vadd.f32 0.0, %v722
  %v724 = vpop.f32.mrb[0].mxu0
  %v725 = vadd.f32 0.0, %v724
  %v726 = vpop.f32.mrb[0].mxu0
  %v727 = vadd.f32 0.0, %v726
  %728 = vmatprep.mubr.bf16.mxu0 0
  %729 = vmatmul.mubr.bf16.gmra.mrb[0].mxu0 %v601
  %v730 = vpop.f32.mrb[0].mxu0
  %v731 = vpop.f32.mrb[0].mxu0
  %v732 = vpop.f32.mrb[0].mxu0
  %v733 = vadd.f32 0.0, %v732
  %v734 = vpop.f32.mrb[0].mxu0
  %v735 = vadd.f32 0.0, %v734
  %736 = vmatprep.mubr.bf16.mxu0 0
  %737 = vmatmul.mubr.bf16.gmra.mrb[0].mxu0 %v602
  %v738 = vpop.f32.mrb[0].mxu0
  %v739 = vadd.f32 0.0, %v738
  %v740 = vpop.f32.mrb[0].mxu0
  %v741 = vadd.f32 0.0, %v740
  %v742 = vpop.f32.mrb[0].mxu0
  %v743 = vpop.f32.mrb[0].mxu0
  %744 = vdwg.mxu0
  %v745 = vadd.f32 %v560, %v721
  %v746 = vadd.f32 %v561, %v723
  %v747 = vadd.f32 %v562, %v725
  %v748 = vadd.f32 %v563, %v727
  %v749 = vadd.f32 %v564, %v733
  %v750 = vadd.f32 %v565, %v735
  %v751 = vadd.f32 %v566, %v739
  %v752 = vadd.f32 %v567, %v741
  %v753 = vld [vmem:[%s5] sm:$0xf]
  %v754 = vld [vmem:[%s5 + $0x4] sm:$0xf]
  %v755 = vld [vmem:[%s5 + $0x8] sm:$0xf]
  %v756 = vld [vmem:[%s5 + $0xc] sm:$0xf]
  %v757 = vld [vmem:[%s5 + $0x10] sm:$0xf]
  %s758 = scalar_lea.vmem %s6, 512
  %v759 = vld [vmem:[%s758] sm:$0xff]
  %v760 = vld [vmem:[%s758 + $0x8] sm:$0xff]
  %v761 = vld [vmem:[%s758 + $0x10] sm:$0xff]
  %v762 = vld [vmem:[%s758 + $0x18] sm:$0xff]
  %v763 = vld [vmem:[%s758 + $0x20] sm:$0xff]
  %v764 = vld [vmem:[%s758 + $0x28] sm:$0xff]
  %v765 = vld [vmem:[%s758 + $0x30] sm:$0xff]
  %v766 = vld [vmem:[%s758 + $0x38] sm:$0xff]
  %v767 = vld [vmem:[%s758 + $0x40] sm:$0xff]
  %v768 = vld [vmem:[%s758 + $0x48] sm:$0xff]
  %v769 = vld [vmem:[%s758 + $0x50] sm:$0xff]
  %v770 = vld [vmem:[%s758 + $0x58] sm:$0xff]
  %v771 = vld [vmem:[%s758 + $0x60] sm:$0xff]
  %v772 = vld [vmem:[%s758 + $0x68] sm:$0xff]
  %v773 = vld [vmem:[%s758 + $0x70] sm:$0xff]
  %v774 = vld [vmem:[%s758 + $0x78] sm:$0xff]
  %v780 = vunpack.c.l.b16 %v753
  %v781 = vunpack.c.l.b16 %v754
  %v782 = vunpack.c.l.b16 %v755
  %v783 = vunpack.c.l.b16 %v756
  %v784 = vunpack.c.l.b16 %v757
  %v785 = vpack.c.b16 %v781, %v780
  %v786 = vpack.c.b16 %v783, %v782
  %v787 = vpack.c.b16 %v784, %v784
  %v807 = vunpack.c.l.b16 %v759
  %v808 = vunpack.c.h.b16 %v759
  %v809 = vunpack.c.l.b16 %v760
  %v810 = vunpack.c.h.b16 %v760
  %v811 = vunpack.c.l.b16 %v761
  %v812 = vunpack.c.h.b16 %v761
  %v813 = vunpack.c.l.b16 %v762
  %v814 = vunpack.c.h.b16 %v762
  %v815 = vunpack.c.l.b16 %v763
  %v816 = vunpack.c.h.b16 %v763
  %v817 = vunpack.c.l.b16 %v764
  %v818 = vunpack.c.h.b16 %v764
  %v819 = vunpack.c.l.b16 %v765
  %v820 = vunpack.c.h.b16 %v765
  %v821 = vunpack.c.l.b16 %v766
  %v822 = vunpack.c.h.b16 %v766
  %v823 = vunpack.c.l.b16 %v767
  %v824 = vunpack.c.h.b16 %v767
  %v825 = vunpack.c.l.b16 %v768
  %v826 = vunpack.c.h.b16 %v768
  %v827 = vunpack.c.l.b16 %v769
  %v828 = vunpack.c.h.b16 %v769
  %v829 = vunpack.c.l.b16 %v770
  %v830 = vunpack.c.h.b16 %v770
  %v831 = vunpack.c.l.b16 %v771
  %v832 = vunpack.c.h.b16 %v771
  %v833 = vunpack.c.l.b16 %v772
  %v834 = vunpack.c.h.b16 %v772
  %v835 = vunpack.c.l.b16 %v773
  %v836 = vunpack.c.h.b16 %v773
  %v837 = vunpack.c.l.b16 %v774
  %v838 = vunpack.c.h.b16 %v774
  %v839 = vpack.c.b16 %v809, %v807
  %v840 = vpack.c.b16 %v810, %v808
  %v841 = vpack.c.b16 %v813, %v811
  %v842 = vpack.c.b16 %v814, %v812
  %v843 = vpack.c.b16 %v817, %v815
  %v844 = vpack.c.b16 %v818, %v816
  %v845 = vpack.c.b16 %v821, %v819
  %v846 = vpack.c.b16 %v822, %v820
  %v847 = vpack.c.b16 %v825, %v823
  %v848 = vpack.c.b16 %v826, %v824
  %v849 = vpack.c.b16 %v829, %v827
  %v850 = vpack.c.b16 %v830, %v828
  %v851 = vpack.c.b16 %v833, %v831
  %v852 = vpack.c.b16 %v834, %v832
  %v853 = vpack.c.b16 %v837, %v835
  %v854 = vpack.c.b16 %v838, %v836
  %871 = vmatprep.subr.bf16.mxu0 %v840
  %872 = vmatpush1.bf16.msra.mxu0 %v839
  %873 = vmatprep.subr.bf16.mxu0 %v842
  %874 = vmatpush1.bf16.msra.mxu0 %v841
  %875 = vmatprep.subr.bf16.mxu0 %v844
  %876 = vmatpush1.bf16.msra.mxu0 %v843
  %877 = vmatprep.subr.bf16.mxu0 %v846
  %878 = vmatpush1.bf16.msra.mxu0 %v845
  %879 = vmatprep.subr.bf16.mxu0 %v848
  %880 = vmatpush1.bf16.msra.mxu0 %v847
  %881 = vmatprep.subr.bf16.mxu0 %v850
  %882 = vmatpush1.bf16.msra.mxu0 %v849
  %883 = vmatprep.subr.bf16.mxu0 %v852
  %884 = vmatpush1.bf16.msra.mxu0 %v851
  %885 = vmatprep.subr.bf16.mxu0 %v854
  %886 = vmatpush1.bf16.msra.mxu0 %v853
  %887 = vmatprep.subr.bf16.mxu0 0
  %888 = vmatpush1.bf16.msra.mxu0 0
  %889 = vmatprep.subr.bf16.mxu0 0
  %890 = vmatpush1.bf16.msra.mxu0 0
  %891 = vmatprep.subr.bf16.mxu0 0
  %892 = vmatpush1.bf16.msra.mxu0 0
  %893 = vmatprep.subr.bf16.mxu0 0
  %894 = vmatpush1.bf16.msra.mxu0 0
  %895 = vmatprep.subr.bf16.mxu0 0
  %896 = vmatpush1.bf16.msra.mxu0 0
  %897 = vmatprep.subr.bf16.mxu0 0
  %898 = vmatpush1.bf16.msra.mxu0 0
  %899 = vmatprep.subr.bf16.mxu0 0
  %900 = vmatpush1.bf16.msra.mxu0 0
  %901 = vmatprep.subr.bf16.mxu0 0
  %902 = vmatpush1.bf16.msra.mxu0 0
  %903 = vmatprep.mubr.bf16.mxu0 0
  %904 = vmatmul.mubr.bf16.gmra.mrb[0].mxu0 %v785
  %v905 = vpop.f32.mrb[0].mxu0
  %v906 = vadd.f32 0.0, %v905
  %v907 = vpop.f32.mrb[0].mxu0
  %v908 = vadd.f32 0.0, %v907
  %v909 = vpop.f32.mrb[0].mxu0
  %v910 = vadd.f32 0.0, %v909
  %v911 = vpop.f32.mrb[0].mxu0
  %v912 = vadd.f32 0.0, %v911
  %913 = vmatprep.mubr.bf16.mxu0 0
  %914 = vmatmul.mubr.bf16.gmra.mrb[0].mxu0 %v786
  %v915 = vpop.f32.mrb[0].mxu0
  %v916 = vpop.f32.mrb[0].mxu0
  %v917 = vpop.f32.mrb[0].mxu0
  %v918 = vadd.f32 0.0, %v917
  %v919 = vpop.f32.mrb[0].mxu0
  %v920 = vadd.f32 0.0, %v919
  %921 = vmatprep.mubr.bf16.mxu0 0
  %922 = vmatmul.mubr.bf16.gmra.mrb[0].mxu0 %v787
  %v923 = vpop.f32.mrb[0].mxu0
  %v924 = vadd.f32 0.0, %v923
  %v925 = vpop.f32.mrb[0].mxu0
  %v926 = vadd.f32 0.0, %v925
  %v927 = vpop.f32.mrb[0].mxu0
  %v928 = vpop.f32.mrb[0].mxu0
  %929 = vdwg.mxu0
  %v930 = vadd.f32 %v745, %v906
  %v931 = vadd.f32 %v746, %v908
  %v932 = vadd.f32 %v747, %v910
  %v933 = vadd.f32 %v748, %v912
  %v934 = vadd.f32 %v749, %v918
  %v935 = vadd.f32 %v750, %v920
  %v936 = vadd.f32 %v751, %v924
  %v937 = vadd.f32 %v752, %v926
  %v938 = vld [vmem:[%s4] sm:$0xf]
  %v939 = vld [vmem:[%s4 + $0x4] sm:$0xf]
  %v940 = vld [vmem:[%s4 + $0x8] sm:$0xf]
  %v941 = vld [vmem:[%s4 + $0xc] sm:$0xf]
  %v942 = vld [vmem:[%s4 + $0x10] sm:$0xf]
  %s943 = scalar_lea.vmem %s6, 640
  %v944 = vld [vmem:[%s943] sm:$0xff]
  %v945 = vld [vmem:[%s943 + $0x8] sm:$0xff]
  %v946 = vld [vmem:[%s943 + $0x10] sm:$0xff]
  %v947 = vld [vmem:[%s943 + $0x18] sm:$0xff]
  %v948 = vld [vmem:[%s943 + $0x20] sm:$0xff]
  %v949 = vld [vmem:[%s943 + $0x28] sm:$0xff]
  %v950 = vld [vmem:[%s943 + $0x30] sm:$0xff]
  %v951 = vld [vmem:[%s943 + $0x38] sm:$0xff]
  %v952 = vld [vmem:[%s943 + $0x40] sm:$0xff]
  %v953 = vld [vmem:[%s943 + $0x48] sm:$0xff]
  %v954 = vld [vmem:[%s943 + $0x50] sm:$0xff]
  %v955 = vld [vmem:[%s943 + $0x58] sm:$0xff]
  %v956 = vld [vmem:[%s943 + $0x60] sm:$0xff]
  %v957 = vld [vmem:[%s943 + $0x68] sm:$0xff]
  %v958 = vld [vmem:[%s943 + $0x70] sm:$0xff]
  %v959 = vld [vmem:[%s943 + $0x78] sm:$0xff]
  %v965 = vunpack.c.l.b16 %v938
  %v966 = vunpack.c.l.b16 %v939
  %v967 = vunpack.c.l.b16 %v940
  %v968 = vunpack.c.l.b16 %v941
  %v969 = vunpack.c.l.b16 %v942
  %v970 = vpack.c.b16 %v966, %v965
  %v971 = vpack.c.b16 %v968, %v967
  %v972 = vpack.c.b16 %v969, %v969
  %v992 = vunpack.c.l.b16 %v944
  %v993 = vunpack.c.h.b16 %v944
  %v994 = vunpack.c.l.b16 %v945
  %v995 = vunpack.c.h.b16 %v945
  %v996 = vunpack.c.l.b16 %v946
  %v997 = vunpack.c.h.b16 %v946
  %v998 = vunpack.c.l.b16 %v947
  %v999 = vunpack.c.h.b16 %v947
  %v1000 = vunpack.c.l.b16 %v948
  %v1001 = vunpack.c.h.b16 %v948
  %v1002 = vunpack.c.l.b16 %v949
  %v1003 = vunpack.c.h.b16 %v949
  %v1004 = vunpack.c.l.b16 %v950
  %v1005 = vunpack.c.h.b16 %v950
  %v1006 = vunpack.c.l.b16 %v951
  %v1007 = vunpack.c.h.b16 %v951
  %v1008 = vunpack.c.l.b16 %v952
  %v1009 = vunpack.c.h.b16 %v952
  %v1010 = vunpack.c.l.b16 %v953
  %v1011 = vunpack.c.h.b16 %v953
  %v1012 = vunpack.c.l.b16 %v954
  %v1013 = vunpack.c.h.b16 %v954
  %v1014 = vunpack.c.l.b16 %v955
  %v1015 = vunpack.c.h.b16 %v955
  %v1016 = vunpack.c.l.b16 %v956
  %v1017 = vunpack.c.h.b16 %v956
  %v1018 = vunpack.c.l.b16 %v957
  %v1019 = vunpack.c.h.b16 %v957
  %v1020 = vunpack.c.l.b16 %v958
  %v1021 = vunpack.c.h.b16 %v958
  %v1022 = vunpack.c.l.b16 %v959
  %v1023 = vunpack.c.h.b16 %v959
  %v1024 = vpack.c.b16 %v994, %v992
  %v1025 = vpack.c.b16 %v995, %v993
  %v1026 = vpack.c.b16 %v998, %v996
  %v1027 = vpack.c.b16 %v999, %v997
  %v1028 = vpack.c.b16 %v1002, %v1000
  %v1029 = vpack.c.b16 %v1003, %v1001
  %v1030 = vpack.c.b16 %v1006, %v1004
  %v1031 = vpack.c.b16 %v1007, %v1005
  %v1032 = vpack.c.b16 %v1010, %v1008
  %v1033 = vpack.c.b16 %v1011, %v1009
  %v1034 = vpack.c.b16 %v1014, %v1012
  %v1035 = vpack.c.b16 %v1015, %v1013
  %v1036 = vpack.c.b16 %v1018, %v1016
  %v1037 = vpack.c.b16 %v1019, %v1017
  %v1038 = vpack.c.b16 %v1022, %v1020
  %v1039 = vpack.c.b16 %v1023, %v1021
  %1056 = vmatprep.subr.bf16.mxu0 %v1025
  %1057 = vmatpush1.bf16.msra.mxu0 %v1024
  %1058 = vmatprep.subr.bf16.mxu0 %v1027
  %1059 = vmatpush1.bf16.msra.mxu0 %v1026
  %1060 = vmatprep.subr.bf16.mxu0 %v1029
  %1061 = vmatpush1.bf16.msra.mxu0 %v1028
  %1062 = vmatprep.subr.bf16.mxu0 %v1031
  %1063 = vmatpush1.bf16.msra.mxu0 %v1030
  %1064 = vmatprep.subr.bf16.mxu0 %v1033
  %1065 = vmatpush1.bf16.msra.mxu0 %v1032
  %1066 = vmatprep.subr.bf16.mxu0 %v1035
  %1067 = vmatpush1.bf16.msra.mxu0 %v1034
  %1068 = vmatprep.subr.bf16.mxu0 %v1037
  %1069 = vmatpush1.bf16.msra.mxu0 %v1036
  %1070 = vmatprep.subr.bf16.mxu0 %v1039
  %1071 = vmatpush1.bf16.msra.mxu0 %v1038
  %1072 = vmatprep.subr.bf16.mxu0 0
  %1073 = vmatpush1.bf16.msra.mxu0 0
  %1074 = vmatprep.subr.bf16.mxu0 0
  %1075 = vmatpush1.bf16.msra.mxu0 0
  %1076 = vmatprep.subr.bf16.mxu0 0
  %1077 = vmatpush1.bf16.msra.mxu0 0
  %1078 = vmatprep.subr.bf16.mxu0 0
  %1079 = vmatpush1.bf16.msra.mxu0 0
  %1080 = vmatprep.subr.bf16.mxu0 0
  %1081 = vmatpush1.bf16.msra.mxu0 0
  %1082 = vmatprep.subr.bf16.mxu0 0
  %1083 = vmatpush1.bf16.msra.mxu0 0
  %1084 = vmatprep.subr.bf16.mxu0 0
  %1085 = vmatpush1.bf16.msra.mxu0 0
  %1086 = vmatprep.subr.bf16.mxu0 0
  %1087 = vmatpush1.bf16.msra.mxu0 0
  %1088 = vmatprep.mubr.bf16.mxu0 0
  %1089 = vmatmul.mubr.bf16.gmra.mrb[0].mxu0 %v970
  %v1090 = vpop.f32.mrb[0].mxu0
  %v1091 = vadd.f32 0.0, %v1090
  %v1092 = vpop.f32.mrb[0].mxu0
  %v1093 = vadd.f32 0.0, %v1092
  %v1094 = vpop.f32.mrb[0].mxu0
  %v1095 = vadd.f32 0.0, %v1094
  %v1096 = vpop.f32.mrb[0].mxu0
  %v1097 = vadd.f32 0.0, %v1096
  %1098 = vmatprep.mubr.bf16.mxu0 0
  %1099 = vmatmul.mubr.bf16.gmra.mrb[0].mxu0 %v971
  %v1100 = vpop.f32.mrb[0].mxu0
  %v1101 = vpop.f32.mrb[0].mxu0
  %v1102 = vpop.f32.mrb[0].mxu0
  %v1103 = vadd.f32 0.0, %v1102
  %v1104 = vpop.f32.mrb[0].mxu0
  %v1105 = vadd.f32 0.0, %v1104
  %1106 = vmatprep.mubr.bf16.mxu0 0
  %1107 = vmatmul.mubr.bf16.gmra.mrb[0].mxu0 %v972
  %v1108 = vpop.f32.mrb[0].mxu0
  %v1109 = vadd.f32 0.0, %v1108
  %v1110 = vpop.f32.mrb[0].mxu0
  %v1111 = vadd.f32 0.0, %v1110
  %v1112 = vpop.f32.mrb[0].mxu0
  %v1113 = vpop.f32.mrb[0].mxu0
  %1114 = vdwg.mxu0
  %v1115 = vadd.f32 %v930, %v1091
  %v1116 = vadd.f32 %v931, %v1093
  %v1117 = vadd.f32 %v932, %v1095
  %v1118 = vadd.f32 %v933, %v1097
  %v1119 = vadd.f32 %v934, %v1103
  %v1120 = vadd.f32 %v935, %v1105
  %v1121 = vadd.f32 %v936, %v1109
  %v1122 = vadd.f32 %v937, %v1111
  %v1123 = vld [vmem:[%s0] sm:$0xc]
  %v1124 = vld [vmem:[%s0 + $0x4] sm:$0xf]
  %v1125 = vld [vmem:[%s0 + $0x8] sm:$0xf]
  %v1126 = vld [vmem:[%s0 + $0xc] sm:$0xf]
  %v1127 = vld [vmem:[%s0 + $0x10] sm:$0xf]
  %v1128 = vld [vmem:[%s0 + $0x14] sm:$0x3]
  %s1129 = scalar_lea.vmem %s6, 768
  %v1130 = vld [vmem:[%s1129] sm:$0xff]
  %v1131 = vld [vmem:[%s1129 + $0x8] sm:$0xff]
  %v1132 = vld [vmem:[%s1129 + $0x10] sm:$0xff]
  %v1133 = vld [vmem:[%s1129 + $0x18] sm:$0xff]
  %v1134 = vld [vmem:[%s1129 + $0x20] sm:$0xff]
  %v1135 = vld [vmem:[%s1129 + $0x28] sm:$0xff]
  %v1136 = vld [vmem:[%s1129 + $0x30] sm:$0xff]
  %v1137 = vld [vmem:[%s1129 + $0x38] sm:$0xff]
  %v1138 = vld [vmem:[%s1129 + $0x40] sm:$0xff]
  %v1139 = vld [vmem:[%s1129 + $0x48] sm:$0xff]
  %v1140 = vld [vmem:[%s1129 + $0x50] sm:$0xff]
  %v1141 = vld [vmem:[%s1129 + $0x58] sm:$0xff]
  %v1142 = vld [vmem:[%s1129 + $0x60] sm:$0xff]
  %v1143 = vld [vmem:[%s1129 + $0x68] sm:$0xff]
  %v1144 = vld [vmem:[%s1129 + $0x70] sm:$0xff]
  %v1145 = vld [vmem:[%s1129 + $0x78] sm:$0xff]
  %v1152 = vunpack.c.l.b16 %v1123
  %v1153 = vunpack.c.l.b16 %v1124
  %v1154 = vunpack.c.l.b16 %v1125
  %v1155 = vunpack.c.l.b16 %v1126
  %v1156 = vunpack.c.l.b16 %v1127
  %v1157 = vunpack.c.l.b16 %v1128
  %v1158 = vpack.c.b16 %v1153, %v1152
  %v1159 = vpack.c.b16 %v1155, %v1154
  %v1160 = vpack.c.b16 %v1157, %v1156
  %vm1161 = vcmask 1045504
  %v1162 = vrot.slane %v1158, 2
  %v1163 = vrot.slane %v1159, 2
  %v1164 = vsel %vm1161, %v1162, %v1163
  %v1165 = vrot.slane %v1160, 2
  %v1166 = vsel %vm1161, %v1163, %v1165
  %v1186 = vunpack.c.l.b16 %v1130
  %v1187 = vunpack.c.h.b16 %v1130
  %v1188 = vunpack.c.l.b16 %v1131
  %v1189 = vunpack.c.h.b16 %v1131
  %v1190 = vunpack.c.l.b16 %v1132
  %v1191 = vunpack.c.h.b16 %v1132
  %v1192 = vunpack.c.l.b16 %v1133
  %v1193 = vunpack.c.h.b16 %v1133
  %v1194 = vunpack.c.l.b16 %v1134
  %v1195 = vunpack.c.h.b16 %v1134
  %v1196 = vunpack.c.l.b16 %v1135
  %v1197 = vunpack.c.h.b16 %v1135
  %v1198 = vunpack.c.l.b16 %v1136
  %v1199 = vunpack.c.h.b16 %v1136
  %v1200 = vunpack.c.l.b16 %v1137
  %v1201 = vunpack.c.h.b16 %v1137
  %v1202 = vunpack.c.l.b16 %v1138
  %v1203 = vunpack.c.h.b16 %v1138
  %v1204 = vunpack.c.l.b16 %v1139
  %v1205 = vunpack.c.h.b16 %v1139
  %v1206 = vunpack.c.l.b16 %v1140
  %v1207 = vunpack.c.h.b16 %v1140
  %v1208 = vunpack.c.l.b16 %v1141
  %v1209 = vunpack.c.h.b16 %v1141
  %v1210 = vunpack.c.l.b16 %v1142
  %v1211 = vunpack.c.h.b16 %v1142
  %v1212 = vunpack.c.l.b16 %v1143
  %v1213 = vunpack.c.h.b16 %v1143
  %v1214 = vunpack.c.l.b16 %v1144
  %v1215 = vunpack.c.h.b16 %v1144
  %v1216 = vunpack.c.l.b16 %v1145
  %v1217 = vunpack.c.h.b16 %v1145
  %v1218 = vpack.c.b16 %v1188, %v1186
  %v1219 = vpack.c.b16 %v1189, %v1187
  %v1220 = vpack.c.b16 %v1192, %v1190
  %v1221 = vpack.c.b16 %v1193, %v1191
  %v1222 = vpack.c.b16 %v1196, %v1194
  %v1223 = vpack.c.b16 %v1197, %v1195
  %v1224 = vpack.c.b16 %v1200, %v1198
  %v1225 = vpack.c.b16 %v1201, %v1199
  %v1226 = vpack.c.b16 %v1204, %v1202
  %v1227 = vpack.c.b16 %v1205, %v1203
  %v1228 = vpack.c.b16 %v1208, %v1206
  %v1229 = vpack.c.b16 %v1209, %v1207
  %v1230 = vpack.c.b16 %v1212, %v1210
  %v1231 = vpack.c.b16 %v1213, %v1211
  %v1232 = vpack.c.b16 %v1216, %v1214
  %v1233 = vpack.c.b16 %v1217, %v1215
  %1250 = vmatprep.subr.bf16.mxu0 %v1219
  %1251 = vmatpush1.bf16.msra.mxu0 %v1218
  %1252 = vmatprep.subr.bf16.mxu0 %v1221
  %1253 = vmatpush1.bf16.msra.mxu0 %v1220
  %1254 = vmatprep.subr.bf16.mxu0 %v1223
  %1255 = vmatpush1.bf16.msra.mxu0 %v1222
  %1256 = vmatprep.subr.bf16.mxu0 %v1225
  %1257 = vmatpush1.bf16.msra.mxu0 %v1224
  %1258 = vmatprep.subr.bf16.mxu0 %v1227
  %1259 = vmatpush1.bf16.msra.mxu0 %v1226
  %1260 = vmatprep.subr.bf16.mxu0 %v1229
  %1261 = vmatpush1.bf16.msra.mxu0 %v1228
  %1262 = vmatprep.subr.bf16.mxu0 %v1231
  %1263 = vmatpush1.bf16.msra.mxu0 %v1230
  %1264 = vmatprep.subr.bf16.mxu0 %v1233
  %1265 = vmatpush1.bf16.msra.mxu0 %v1232
  %1266 = vmatprep.subr.bf16.mxu0 0
  %1267 = vmatpush1.bf16.msra.mxu0 0
  %1268 = vmatprep.subr.bf16.mxu0 0
  %1269 = vmatpush1.bf16.msra.mxu0 0
  %1270 = vmatprep.subr.bf16.mxu0 0
  %1271 = vmatpush1.bf16.msra.mxu0 0
  %1272 = vmatprep.subr.bf16.mxu0 0
  %1273 = vmatpush1.bf16.msra.mxu0 0
  %1274 = vmatprep.subr.bf16.mxu0 0
  %1275 = vmatpush1.bf16.msra.mxu0 0
  %1276 = vmatprep.subr.bf16.mxu0 0
  %1277 = vmatpush1.bf16.msra.mxu0 0
  %1278 = vmatprep.subr.bf16.mxu0 0
  %1279 = vmatpush1.bf16.msra.mxu0 0
  %1280 = vmatprep.subr.bf16.mxu0 0
  %1281 = vmatpush1.bf16.msra.mxu0 0
  %1282 = vmatprep.mubr.bf16.mxu0 0
  %1283 = vmatmul.mubr.bf16.gmra.mrb[0].mxu0 %v1164
  %v1284 = vpop.f32.mrb[0].mxu0
  %v1285 = vadd.f32 0.0, %v1284
  %v1286 = vpop.f32.mrb[0].mxu0
  %v1287 = vadd.f32 0.0, %v1286
  %v1288 = vpop.f32.mrb[0].mxu0
  %v1289 = vadd.f32 0.0, %v1288
  %v1290 = vpop.f32.mrb[0].mxu0
  %v1291 = vadd.f32 0.0, %v1290
  %1292 = vmatprep.mubr.bf16.mxu0 0
  %1293 = vmatmul.mubr.bf16.gmra.mrb[0].mxu0 %v1166
  %v1294 = vpop.f32.mrb[0].mxu0
  %v1295 = vpop.f32.mrb[0].mxu0
  %v1296 = vpop.f32.mrb[0].mxu0
  %v1297 = vadd.f32 0.0, %v1296
  %v1298 = vpop.f32.mrb[0].mxu0
  %v1299 = vadd.f32 0.0, %v1298
  %1300 = vmatprep.mubr.bf16.mxu0 0
  %1301 = vmatmul.mubr.bf16.gmra.mrb[0].mxu0 %v1165
  %v1302 = vpop.f32.mrb[0].mxu0
  %v1303 = vadd.f32 0.0, %v1302
  %v1304 = vpop.f32.mrb[0].mxu0
  %v1305 = vadd.f32 0.0, %v1304
  %v1306 = vpop.f32.mrb[0].mxu0
  %v1307 = vpop.f32.mrb[0].mxu0
  %1308 = vdwg.mxu0
  %v1309 = vadd.f32 %v1115, %v1285
  %v1310 = vadd.f32 %v1116, %v1287
  %v1311 = vadd.f32 %v1117, %v1289
  %v1312 = vadd.f32 %v1118, %v1291
  %v1313 = vadd.f32 %v1119, %v1297
  %v1314 = vadd.f32 %v1120, %v1299
  %v1315 = vadd.f32 %v1121, %v1303
  %v1316 = vadd.f32 %v1122, %v1305
  %v1317 = vld [vmem:[%s2] sm:$0xc]
  %v1318 = vld [vmem:[%s2 + $0x4] sm:$0xf]
  %v1319 = vld [vmem:[%s2 + $0x8] sm:$0xf]
  %v1320 = vld [vmem:[%s2 + $0xc] sm:$0xf]
  %v1321 = vld [vmem:[%s2 + $0x10] sm:$0xf]
  %v1322 = vld [vmem:[%s2 + $0x14] sm:$0x3]
  %s1323 = scalar_lea.vmem %s6, 896
  %v1324 = vld [vmem:[%s1323] sm:$0xff]
  %v1325 = vld [vmem:[%s1323 + $0x8] sm:$0xff]
  %v1326 = vld [vmem:[%s1323 + $0x10] sm:$0xff]
  %v1327 = vld [vmem:[%s1323 + $0x18] sm:$0xff]
  %v1328 = vld [vmem:[%s1323 + $0x20] sm:$0xff]
  %v1329 = vld [vmem:[%s1323 + $0x28] sm:$0xff]
  %v1330 = vld [vmem:[%s1323 + $0x30] sm:$0xff]
  %v1331 = vld [vmem:[%s1323 + $0x38] sm:$0xff]
  %v1332 = vld [vmem:[%s1323 + $0x40] sm:$0xff]
  %v1333 = vld [vmem:[%s1323 + $0x48] sm:$0xff]
  %v1334 = vld [vmem:[%s1323 + $0x50] sm:$0xff]
  %v1335 = vld [vmem:[%s1323 + $0x58] sm:$0xff]
  %v1336 = vld [vmem:[%s1323 + $0x60] sm:$0xff]
  %v1337 = vld [vmem:[%s1323 + $0x68] sm:$0xff]
  %v1338 = vld [vmem:[%s1323 + $0x70] sm:$0xff]
  %v1339 = vld [vmem:[%s1323 + $0x78] sm:$0xff]
  %v1346 = vunpack.c.l.b16 %v1317
  %v1347 = vunpack.c.l.b16 %v1318
  %v1348 = vunpack.c.l.b16 %v1319
  %v1349 = vunpack.c.l.b16 %v1320
  %v1350 = vunpack.c.l.b16 %v1321
  %v1351 = vunpack.c.l.b16 %v1322
  %v1352 = vpack.c.b16 %v1347, %v1346
  %v1353 = vpack.c.b16 %v1349, %v1348
  %v1354 = vpack.c.b16 %v1351, %v1350
  %v1355 = vrot.slane %v1352, 2
  %v1356 = vrot.slane %v1353, 2
  %v1357 = vsel %vm1161, %v1355, %v1356
  %v1358 = vrot.slane %v1354, 2
  %v1359 = vsel %vm1161, %v1356, %v1358
  %v1379 = vunpack.c.l.b16 %v1324
  %v1380 = vunpack.c.h.b16 %v1324
  %v1381 = vunpack.c.l.b16 %v1325
  %v1382 = vunpack.c.h.b16 %v1325
  %v1383 = vunpack.c.l.b16 %v1326
  %v1384 = vunpack.c.h.b16 %v1326
  %v1385 = vunpack.c.l.b16 %v1327
  %v1386 = vunpack.c.h.b16 %v1327
  %v1387 = vunpack.c.l.b16 %v1328
  %v1388 = vunpack.c.h.b16 %v1328
  %v1389 = vunpack.c.l.b16 %v1329
  %v1390 = vunpack.c.h.b16 %v1329
  %v1391 = vunpack.c.l.b16 %v1330
  %v1392 = vunpack.c.h.b16 %v1330
  %v1393 = vunpack.c.l.b16 %v1331
  %v1394 = vunpack.c.h.b16 %v1331
  %v1395 = vunpack.c.l.b16 %v1332
  %v1396 = vunpack.c.h.b16 %v1332
  %v1397 = vunpack.c.l.b16 %v1333
  %v1398 = vunpack.c.h.b16 %v1333
  %v1399 = vunpack.c.l.b16 %v1334
  %v1400 = vunpack.c.h.b16 %v1334
  %v1401 = vunpack.c.l.b16 %v1335
  %v1402 = vunpack.c.h.b16 %v1335
  %v1403 = vunpack.c.l.b16 %v1336
  %v1404 = vunpack.c.h.b16 %v1336
  %v1405 = vunpack.c.l.b16 %v1337
  %v1406 = vunpack.c.h.b16 %v1337
  %v1407 = vunpack.c.l.b16 %v1338
  %v1408 = vunpack.c.h.b16 %v1338
  %v1409 = vunpack.c.l.b16 %v1339
  %v1410 = vunpack.c.h.b16 %v1339
  %v1411 = vpack.c.b16 %v1381, %v1379
  %v1412 = vpack.c.b16 %v1382, %v1380
  %v1413 = vpack.c.b16 %v1385, %v1383
  %v1414 = vpack.c.b16 %v1386, %v1384
  %v1415 = vpack.c.b16 %v1389, %v1387
  %v1416 = vpack.c.b16 %v1390, %v1388
  %v1417 = vpack.c.b16 %v1393, %v1391
  %v1418 = vpack.c.b16 %v1394, %v1392
  %v1419 = vpack.c.b16 %v1397, %v1395
  %v1420 = vpack.c.b16 %v1398, %v1396
  %v1421 = vpack.c.b16 %v1401, %v1399
  %v1422 = vpack.c.b16 %v1402, %v1400
  %v1423 = vpack.c.b16 %v1405, %v1403
  %v1424 = vpack.c.b16 %v1406, %v1404
  %v1425 = vpack.c.b16 %v1409, %v1407
  %v1426 = vpack.c.b16 %v1410, %v1408
  %1443 = vmatprep.subr.bf16.mxu0 %v1412
  %1444 = vmatpush1.bf16.msra.mxu0 %v1411
  %1445 = vmatprep.subr.bf16.mxu0 %v1414
  %1446 = vmatpush1.bf16.msra.mxu0 %v1413
  %1447 = vmatprep.subr.bf16.mxu0 %v1416
  %1448 = vmatpush1.bf16.msra.mxu0 %v1415
  %1449 = vmatprep.subr.bf16.mxu0 %v1418
  %1450 = vmatpush1.bf16.msra.mxu0 %v1417
  %1451 = vmatprep.subr.bf16.mxu0 %v1420
  %1452 = vmatpush1.bf16.msra.mxu0 %v1419
  %1453 = vmatprep.subr.bf16.mxu0 %v1422
  %1454 = vmatpush1.bf16.msra.mxu0 %v1421
  %1455 = vmatprep.subr.bf16.mxu0 %v1424
  %1456 = vmatpush1.bf16.msra.mxu0 %v1423
  %1457 = vmatprep.subr.bf16.mxu0 %v1426
  %1458 = vmatpush1.bf16.msra.mxu0 %v1425
  %1459 = vmatprep.subr.bf16.mxu0 0
  %1460 = vmatpush1.bf16.msra.mxu0 0
  %1461 = vmatprep.subr.bf16.mxu0 0
  %1462 = vmatpush1.bf16.msra.mxu0 0
  %1463 = vmatprep.subr.bf16.mxu0 0
  %1464 = vmatpush1.bf16.msra.mxu0 0
  %1465 = vmatprep.subr.bf16.mxu0 0
  %1466 = vmatpush1.bf16.msra.mxu0 0
  %1467 = vmatprep.subr.bf16.mxu0 0
  %1468 = vmatpush1.bf16.msra.mxu0 0
  %1469 = vmatprep.subr.bf16.mxu0 0
  %1470 = vmatpush1.bf16.msra.mxu0 0
  %1471 = vmatprep.subr.bf16.mxu0 0
  %1472 = vmatpush1.bf16.msra.mxu0 0
  %1473 = vmatprep.subr.bf16.mxu0 0
  %1474 = vmatpush1.bf16.msra.mxu0 0
  %1475 = vmatprep.mubr.bf16.mxu0 0
  %1476 = vmatmul.mubr.bf16.gmra.mrb[0].mxu0 %v1357
  %v1477 = vpop.f32.mrb[0].mxu0
  %v1478 = vadd.f32 0.0, %v1477
  %v1479 = vpop.f32.mrb[0].mxu0
  %v1480 = vadd.f32 0.0, %v1479
  %v1481 = vpop.f32.mrb[0].mxu0
  %v1482 = vadd.f32 0.0, %v1481
  %v1483 = vpop.f32.mrb[0].mxu0
  %v1484 = vadd.f32 0.0, %v1483
  %1485 = vmatprep.mubr.bf16.mxu0 0
  %1486 = vmatmul.mubr.bf16.gmra.mrb[0].mxu0 %v1359
  %v1487 = vpop.f32.mrb[0].mxu0
  %v1488 = vpop.f32.mrb[0].mxu0
  %v1489 = vpop.f32.mrb[0].mxu0
  %v1490 = vadd.f32 0.0, %v1489
  %v1491 = vpop.f32.mrb[0].mxu0
  %v1492 = vadd.f32 0.0, %v1491
  %1493 = vmatprep.mubr.bf16.mxu0 0
  %1494 = vmatmul.mubr.bf16.gmra.mrb[0].mxu0 %v1358
  %v1495 = vpop.f32.mrb[0].mxu0
  %v1496 = vadd.f32 0.0, %v1495
  %v1497 = vpop.f32.mrb[0].mxu0
  %v1498 = vadd.f32 0.0, %v1497
  %v1499 = vpop.f32.mrb[0].mxu0
  %v1500 = vpop.f32.mrb[0].mxu0
  %1501 = vdwg.mxu0
  %v1502 = vadd.f32 %v1309, %v1478
  %v1503 = vadd.f32 %v1310, %v1480
  %v1504 = vadd.f32 %v1311, %v1482
  %v1505 = vadd.f32 %v1312, %v1484
  %v1506 = vadd.f32 %v1313, %v1490
  %v1507 = vadd.f32 %v1314, %v1492
  %v1508 = vadd.f32 %v1315, %v1496
  %v1509 = vadd.f32 %v1316, %v1498
  %v1510 = vld [vmem:[%s1] sm:$0xc]
  %v1511 = vld [vmem:[%s1 + $0x4] sm:$0xf]
  %v1512 = vld [vmem:[%s1 + $0x8] sm:$0xf]
  %v1513 = vld [vmem:[%s1 + $0xc] sm:$0xf]
  %v1514 = vld [vmem:[%s1 + $0x10] sm:$0xf]
  %v1515 = vld [vmem:[%s1 + $0x14] sm:$0x3]
  %s1516 = scalar_lea.vmem %s6, 1024
  %v1517 = vld [vmem:[%s1516] sm:$0xff]
  %v1518 = vld [vmem:[%s1516 + $0x8] sm:$0xff]
  %v1519 = vld [vmem:[%s1516 + $0x10] sm:$0xff]
  %v1520 = vld [vmem:[%s1516 + $0x18] sm:$0xff]
  %v1521 = vld [vmem:[%s1516 + $0x20] sm:$0xff]
  %v1522 = vld [vmem:[%s1516 + $0x28] sm:$0xff]
  %v1523 = vld [vmem:[%s1516 + $0x30] sm:$0xff]
  %v1524 = vld [vmem:[%s1516 + $0x38] sm:$0xff]
  %v1525 = vld [vmem:[%s1516 + $0x40] sm:$0xff]
  %v1526 = vld [vmem:[%s1516 + $0x48] sm:$0xff]
  %v1527 = vld [vmem:[%s1516 + $0x50] sm:$0xff]
  %v1528 = vld [vmem:[%s1516 + $0x58] sm:$0xff]
  %v1529 = vld [vmem:[%s1516 + $0x60] sm:$0xff]
  %v1530 = vld [vmem:[%s1516 + $0x68] sm:$0xff]
  %v1531 = vld [vmem:[%s1516 + $0x70] sm:$0xff]
  %v1532 = vld [vmem:[%s1516 + $0x78] sm:$0xff]
  %v1539 = vunpack.c.l.b16 %v1510
  %v1540 = vunpack.c.l.b16 %v1511
  %v1541 = vunpack.c.l.b16 %v1512
  %v1542 = vunpack.c.l.b16 %v1513
  %v1543 = vunpack.c.l.b16 %v1514
  %v1544 = vunpack.c.l.b16 %v1515
  %v1545 = vpack.c.b16 %v1540, %v1539
  %v1546 = vpack.c.b16 %v1542, %v1541
  %v1547 = vpack.c.b16 %v1544, %v1543
  %v1548 = vrot.slane %v1545, 2
  %v1549 = vrot.slane %v1546, 2
  %v1550 = vsel %vm1161, %v1548, %v1549
  %v1551 = vrot.slane %v1547, 2
  %v1552 = vsel %vm1161, %v1549, %v1551
  %v1572 = vunpack.c.l.b16 %v1517
  %v1573 = vunpack.c.h.b16 %v1517
  %v1574 = vunpack.c.l.b16 %v1518
  %v1575 = vunpack.c.h.b16 %v1518
  %v1576 = vunpack.c.l.b16 %v1519
  %v1577 = vunpack.c.h.b16 %v1519
  %v1578 = vunpack.c.l.b16 %v1520
  %v1579 = vunpack.c.h.b16 %v1520
  %v1580 = vunpack.c.l.b16 %v1521
  %v1581 = vunpack.c.h.b16 %v1521
  %v1582 = vunpack.c.l.b16 %v1522
  %v1583 = vunpack.c.h.b16 %v1522
  %v1584 = vunpack.c.l.b16 %v1523
  %v1585 = vunpack.c.h.b16 %v1523
  %v1586 = vunpack.c.l.b16 %v1524
  %v1587 = vunpack.c.h.b16 %v1524
  %v1588 = vunpack.c.l.b16 %v1525
  %v1589 = vunpack.c.h.b16 %v1525
  %v1590 = vunpack.c.l.b16 %v1526
  %v1591 = vunpack.c.h.b16 %v1526
  %v1592 = vunpack.c.l.b16 %v1527
  %v1593 = vunpack.c.h.b16 %v1527
  %v1594 = vunpack.c.l.b16 %v1528
  %v1595 = vunpack.c.h.b16 %v1528
  %v1596 = vunpack.c.l.b16 %v1529
  %v1597 = vunpack.c.h.b16 %v1529
  %v1598 = vunpack.c.l.b16 %v1530
  %v1599 = vunpack.c.h.b16 %v1530
  %v1600 = vunpack.c.l.b16 %v1531
  %v1601 = vunpack.c.h.b16 %v1531
  %v1602 = vunpack.c.l.b16 %v1532
  %v1603 = vunpack.c.h.b16 %v1532
  %v1604 = vpack.c.b16 %v1574, %v1572
  %v1605 = vpack.c.b16 %v1575, %v1573
  %v1606 = vpack.c.b16 %v1578, %v1576
  %v1607 = vpack.c.b16 %v1579, %v1577
  %v1608 = vpack.c.b16 %v1582, %v1580
  %v1609 = vpack.c.b16 %v1583, %v1581
  %v1610 = vpack.c.b16 %v1586, %v1584
  %v1611 = vpack.c.b16 %v1587, %v1585
  %v1612 = vpack.c.b16 %v1590, %v1588
  %v1613 = vpack.c.b16 %v1591, %v1589
  %v1614 = vpack.c.b16 %v1594, %v1592
  %v1615 = vpack.c.b16 %v1595, %v1593
  %v1616 = vpack.c.b16 %v1598, %v1596
  %v1617 = vpack.c.b16 %v1599, %v1597
  %v1618 = vpack.c.b16 %v1602, %v1600
  %v1619 = vpack.c.b16 %v1603, %v1601
  %1636 = vmatprep.subr.bf16.mxu0 %v1605
  %1637 = vmatpush1.bf16.msra.mxu0 %v1604
  %1638 = vmatprep.subr.bf16.mxu0 %v1607
  %1639 = vmatpush1.bf16.msra.mxu0 %v1606
  %1640 = vmatprep.subr.bf16.mxu0 %v1609
  %1641 = vmatpush1.bf16.msra.mxu0 %v1608
  %1642 = vmatprep.subr.bf16.mxu0 %v1611
  %1643 = vmatpush1.bf16.msra.mxu0 %v1610
  %1644 = vmatprep.subr.bf16.mxu0 %v1613
  %1645 = vmatpush1.bf16.msra.mxu0 %v1612
  %1646 = vmatprep.subr.bf16.mxu0 %v1615
  %1647 = vmatpush1.bf16.msra.mxu0 %v1614
  %1648 = vmatprep.subr.bf16.mxu0 %v1617
  %1649 = vmatpush1.bf16.msra.mxu0 %v1616
  %1650 = vmatprep.subr.bf16.mxu0 %v1619
  %1651 = vmatpush1.bf16.msra.mxu0 %v1618
  %1652 = vmatprep.subr.bf16.mxu0 0
  %1653 = vmatpush1.bf16.msra.mxu0 0
  %1654 = vmatprep.subr.bf16.mxu0 0
  %1655 = vmatpush1.bf16.msra.mxu0 0
  %1656 = vmatprep.subr.bf16.mxu0 0
  %1657 = vmatpush1.bf16.msra.mxu0 0
  %1658 = vmatprep.subr.bf16.mxu0 0
  %1659 = vmatpush1.bf16.msra.mxu0 0
  %1660 = vmatprep.subr.bf16.mxu0 0
  %1661 = vmatpush1.bf16.msra.mxu0 0
  %1662 = vmatprep.subr.bf16.mxu0 0
  %1663 = vmatpush1.bf16.msra.mxu0 0
  %1664 = vmatprep.subr.bf16.mxu0 0
  %1665 = vmatpush1.bf16.msra.mxu0 0
  %1666 = vmatprep.subr.bf16.mxu0 0
  %1667 = vmatpush1.bf16.msra.mxu0 0
  %1668 = vmatprep.mubr.bf16.mxu0 0
  %1669 = vmatmul.mubr.bf16.gmra.mrb[0].mxu0 %v1550
  %v1670 = vpop.f32.mrb[0].mxu0
  %v1671 = vadd.f32 0.0, %v1670
  %v1672 = vpop.f32.mrb[0].mxu0
  %v1673 = vadd.f32 0.0, %v1672
  %v1674 = vpop.f32.mrb[0].mxu0
  %v1675 = vadd.f32 0.0, %v1674
  %v1676 = vpop.f32.mrb[0].mxu0
  %v1677 = vadd.f32 0.0, %v1676
  %1678 = vmatprep.mubr.bf16.mxu0 0
  %1679 = vmatmul.mubr.bf16.gmra.mrb[0].mxu0 %v1552
  %v1680 = vpop.f32.mrb[0].mxu0
  %v1681 = vpop.f32.mrb[0].mxu0
  %v1682 = vpop.f32.mrb[0].mxu0
  %v1683 = vadd.f32 0.0, %v1682
  %v1684 = vpop.f32.mrb[0].mxu0
  %v1685 = vadd.f32 0.0, %v1684
  %1686 = vmatprep.mubr.bf16.mxu0 0
  %1687 = vmatmul.mubr.bf16.gmra.mrb[0].mxu0 %v1551
  %v1688 = vpop.f32.mrb[0].mxu0
  %v1689 = vadd.f32 0.0, %v1688
  %v1690 = vpop.f32.mrb[0].mxu0
  %v1691 = vadd.f32 0.0, %v1690
  %v1692 = vpop.f32.mrb[0].mxu0
  %v1693 = vpop.f32.mrb[0].mxu0
  %1694 = vdwg.mxu0
  %v1695 = vadd.f32 %v1502, %v1671
  %v1696 = vadd.f32 %v1503, %v1673
  %v1697 = vadd.f32 %v1504, %v1675
  %v1698 = vadd.f32 %v1505, %v1677
  %v1699 = vadd.f32 %v1506, %v1683
  %v1700 = vadd.f32 %v1507, %v1685
  %v1701 = vadd.f32 %v1508, %v1689
  %v1702 = vadd.f32 %v1509, %v1691
  %v1703 = vld [vmem:[%s7] sm:$0x3]
  %v1705 = vlaneseq
  %v1706 = vshrl.u32 %v1705, 7
  %v1707 = vsub.s32 0, %v1706
  %v1708 = vrot.slane %v1703, %v1707
  %v1709 = vlaneseq
  %v1710 = vshrl.u32 %v1709, 7
  %v1711 = vsub.s32 1, %v1710
  %v1712 = vrot.slane %v1703, %v1711
  %v1715 = vadd.f32 %v1695, %v1708
  %v1716 = vadd.f32 %v1696, %v1712
  %v1717 = vadd.f32 %v1697, %v1708
  %v1718 = vadd.f32 %v1698, %v1712
  %v1719 = vadd.f32 %v1699, %v1708
  %v1720 = vadd.f32 %v1700, %v1712
  %v1721 = vadd.f32 %v1701, %v1708
  %v1722 = vadd.f32 %v1702, %v1712
  %vm1723 = vcmp.gt.f32.partialorder %v1715, 0.0
  %vm1724 = vcmp.gt.f32.partialorder %v1716, 0.0
  %vm1725 = vcmp.gt.f32.partialorder %v1717, 0.0
  %vm1726 = vcmp.gt.f32.partialorder %v1718, 0.0
  %vm1727 = vcmp.gt.f32.partialorder %v1719, 0.0
  %vm1728 = vcmp.gt.f32.partialorder %v1720, 0.0
  %vm1729 = vcmp.gt.f32.partialorder %v1721, 0.0
  %vm1730 = vcmp.gt.f32.partialorder %v1722, 0.0
  %v1731 = vmul.f32 %v1715, 0.2
  %v1732 = vmul.f32 %v1716, 0.2
  %v1733 = vmul.f32 %v1717, 0.2
  %v1734 = vmul.f32 %v1718, 0.2
  %v1735 = vmul.f32 %v1719, 0.2
  %v1736 = vmul.f32 %v1720, 0.2
  %v1737 = vmul.f32 %v1721, 0.2
  %v1738 = vmul.f32 %v1722, 0.2
  %v1739 = vsel %vm1723, %v1715, %v1731
  %v1740 = vsel %vm1724, %v1716, %v1732
  %v1741 = vsel %vm1725, %v1717, %v1733
  %v1742 = vsel %vm1726, %v1718, %v1734
  %v1743 = vsel %vm1727, %v1719, %v1735
  %v1744 = vsel %vm1728, %v1720, %v1736
  %v1745 = vsel %vm1729, %v1721, %v1737
  %v1746 = vsel %vm1730, %v1722, %v1738
  %v1747 = vadd.f32 %v1739, %v1741
  %v1748 = vrot.slane %v1747, 4
  %v1749 = vadd.f32 %v1747, %v1748
  %v1750 = vrot.slane %v1749, 2
  %v1751 = vadd.f32 %v1749, %v1750
  %v1752 = vrot.slane %v1751, 1
  %v1753 = vadd.f32 %v1751, %v1752
  %v1754 = vadd.f32 %v1740, %v1742
  %v1755 = vrot.slane %v1754, 4
  %v1756 = vadd.f32 %v1754, %v1755
  %v1757 = vrot.slane %v1756, 2
  %v1758 = vadd.f32 %v1756, %v1757
  %v1759 = vrot.slane %v1758, 1
  %v1760 = vadd.f32 %v1758, %v1759
  %v1761 = vmul.f32 %v1753, 0.0625
  %v1762 = vmul.f32 %v1760, 0.0625
  %v1763 = vmul.f32 %v1739, %v1739
  %v1764 = vmul.f32 %v1740, %v1740
  %v1765 = vmul.f32 %v1741, %v1741
  %v1766 = vmul.f32 %v1742, %v1742
  %v1767 = vadd.f32 %v1763, %v1765
  %v1768 = vrot.slane %v1767, 4
  %v1769 = vadd.f32 %v1767, %v1768
  %v1770 = vrot.slane %v1769, 2
  %v1771 = vadd.f32 %v1769, %v1770
  %v1772 = vrot.slane %v1771, 1
  %v1773 = vadd.f32 %v1771, %v1772
  %v1774 = vadd.f32 %v1764, %v1766
  %v1775 = vrot.slane %v1774, 4
  %v1776 = vadd.f32 %v1774, %v1775
  %v1777 = vrot.slane %v1776, 2
  %v1778 = vadd.f32 %v1776, %v1777
  %v1779 = vrot.slane %v1778, 1
  %v1780 = vadd.f32 %v1778, %v1779
  %v1781 = vmul.f32 %v1773, 0.0625
  %v1782 = vmul.f32 %v1780, 0.0625
  %v1783 = vmul.f32 %v1761, %v1761
  %v1784 = vmul.f32 %v1762, %v1762
  %v1785 = vsub.f32 %v1781, %v1783
  %v1786 = vsub.f32 %v1782, %v1784
  %v1787 = vmax.f32 %v1785, 0.0
  %v1788 = vmax.f32 %v1786, 0.0
  %v1789 = vadd.f32 %v1787, 1e-05
  %v1790 = vadd.f32 %v1788, 1e-05
  %v1791 = vrsqrt.pop %v1789
  %v1792 = vrsqrt.pop %v1790
  %v1793 = vsub.f32 %v1739, %v1761
  %v1794 = vsub.f32 %v1740, %v1762
  %v1795 = vsub.f32 %v1741, %v1761
  %v1796 = vsub.f32 %v1742, %v1762
  %v1797 = vmul.f32 %v1793, %v1791
  %v1798 = vmul.f32 %v1794, %v1792
  %v1799 = vmul.f32 %v1795, %v1791
  %v1800 = vmul.f32 %v1796, %v1792
  %v1801 = vpack.c.bf16 %v1799, %v1797
  %v1802 = vpack.c.bf16 %v1800, %v1798
  %v1805 = vunpack.c.l.b16 %v1801
  %v1806 = vunpack.c.l.b16 %v1802
  %v1807 = vunpack.c.h.b16 %v1801
  %v1808 = vunpack.c.h.b16 %v1802
  %v1809 = vpack.c.b16 %v1806, %v1805
  %v1810 = vpack.c.b16 %v1808, %v1807
  %1813 = vst [vmem:[%s8] sm:$0xff] %v1809
  %1814 = vst [vmem:[%s8 + $0x8] sm:$0xff] %v1810
  %v1815 = vadd.f32 %v1743, %v1745
  %v1816 = vrot.slane %v1815, 4
  %v1817 = vadd.f32 %v1815, %v1816
  %v1818 = vrot.slane %v1817, 2
  %v1819 = vadd.f32 %v1817, %v1818
  %v1820 = vrot.slane %v1819, 1
  %v1821 = vadd.f32 %v1819, %v1820
  %v1822 = vadd.f32 %v1744, %v1746
  %v1823 = vrot.slane %v1822, 4
  %v1824 = vadd.f32 %v1822, %v1823
  %v1825 = vrot.slane %v1824, 2
  %v1826 = vadd.f32 %v1824, %v1825
  %v1827 = vrot.slane %v1826, 1
  %v1828 = vadd.f32 %v1826, %v1827
  %v1829 = vmul.f32 %v1821, 0.0625
  %v1830 = vmul.f32 %v1828, 0.0625
  %v1831 = vmul.f32 %v1743, %v1743
  %v1832 = vmul.f32 %v1744, %v1744
  %v1833 = vmul.f32 %v1745, %v1745
  %v1834 = vmul.f32 %v1746, %v1746
  %v1835 = vadd.f32 %v1831, %v1833
  %v1836 = vrot.slane %v1835, 4
  %v1837 = vadd.f32 %v1835, %v1836
  %v1838 = vrot.slane %v1837, 2
  %v1839 = vadd.f32 %v1837, %v1838
  %v1840 = vrot.slane %v1839, 1
  %v1841 = vadd.f32 %v1839, %v1840
  %v1842 = vadd.f32 %v1832, %v1834
  %v1843 = vrot.slane %v1842, 4
  %v1844 = vadd.f32 %v1842, %v1843
  %v1845 = vrot.slane %v1844, 2
  %v1846 = vadd.f32 %v1844, %v1845
  %v1847 = vrot.slane %v1846, 1
  %v1848 = vadd.f32 %v1846, %v1847
  %v1849 = vmul.f32 %v1841, 0.0625
  %v1850 = vmul.f32 %v1848, 0.0625
  %v1851 = vmul.f32 %v1829, %v1829
  %v1852 = vmul.f32 %v1830, %v1830
  %v1853 = vsub.f32 %v1849, %v1851
  %v1854 = vsub.f32 %v1850, %v1852
  %v1855 = vmax.f32 %v1853, 0.0
  %v1856 = vmax.f32 %v1854, 0.0
  %v1857 = vadd.f32 %v1855, 1e-05
  %v1858 = vadd.f32 %v1856, 1e-05
  %v1859 = vrsqrt.pop %v1857
  %v1860 = vrsqrt.pop %v1858
  %v1861 = vsub.f32 %v1743, %v1829
  %v1862 = vsub.f32 %v1744, %v1830
  %v1863 = vsub.f32 %v1745, %v1829
  %v1864 = vsub.f32 %v1746, %v1830
  %v1865 = vmul.f32 %v1861, %v1859
  %v1866 = vmul.f32 %v1862, %v1860
  %v1867 = vmul.f32 %v1863, %v1859
  %v1868 = vmul.f32 %v1864, %v1860
  %v1869 = vpack.c.bf16 %v1867, %v1865
  %v1870 = vpack.c.bf16 %v1868, %v1866
  %v1873 = vunpack.c.l.b16 %v1869
  %v1874 = vunpack.c.l.b16 %v1870
  %v1875 = vunpack.c.h.b16 %v1869
  %v1876 = vunpack.c.h.b16 %v1870
  %v1877 = vpack.c.b16 %v1874, %v1873
  %v1878 = vpack.c.b16 %v1876, %v1875
  %1881 = vst [vmem:[%s8 + $0x10] sm:$0xff] %v1877
  %1882 = vst [vmem:[%s8 + $0x18] sm:$0xff] %v1878
  // Predicated region
  $region34: #{discriminator_forward.7} parent=0 // pred_check
    _
  $region35: #{discriminator_forward.7} parent=0 // pred_check_branch
    %1884 = sbr.rel (0) target = $region37
  $region36: #{discriminator_forward.7} parent=0 // pred_region
    _
  $region37: #{discriminator_forward.7} parent=0 // pred_fallthru
    _
  // Predicated region
  $region38: #{discriminator_forward.7} parent=0 // pred_check
    _
  $region39: #{discriminator_forward.7} parent=0 // pred_check_branch
    %1886 = sbr.rel (0) target = $region41
  $region40: #{discriminator_forward.7} parent=0 // pred_region
    _
  $region41: #{discriminator_forward.7} parent=0 // pred_fallthru
    _

// kernel: discriminator_forward.8
$region0: #{discriminator_forward.8}
  #allocation0 [shape = 'u32[]', space=smem, size = 0x4, offset = 0x4, fixed_abs, tag = 'smem constant byte address 0x4 - core index']
  #allocation1 [shape = 'u32[144,128]{1,0:T(1,128)}', space=vmem, size = 0x12000, scoped, tag = 'internal scratch']
  %s0 = inlined_call_operand.vmem [shape: bf16[16,256], index: 0, kind: input, shape index: {}]
  %s1 = inlined_call_operand.vmem [shape: bf16[16,256], index: 1, kind: input, shape index: {}]
  %s2 = inlined_call_operand.vmem [shape: bf16[16,256], index: 2, kind: input, shape index: {}]
  %s3 = inlined_call_operand.vmem [shape: bf16[16,256], index: 3, kind: input, shape index: {}]
  %s4 = inlined_call_operand.vmem [shape: bf16[16,256], index: 4, kind: input, shape index: {}]
  %s5 = inlined_call_operand.vmem [shape: bf16[16,256], index: 5, kind: input, shape index: {}]
  %s6 = inlined_call_operand.vmem [shape: bf16[9,256,512], index: 6, kind: input, shape index: {}]
  %s7 = inlined_call_operand.vmem [shape: f32[1,512], index: 7, kind: input, shape index: {}]
  %s8 = inlined_call_operand.vmem [shape: bf16[16,512], index: 8, kind: output, shape index: {}]
  %s9 = sld [smem:[#allocation0]]
  $region42: #{discriminator_forward.8} parent=0
    _
  %s11 = ssub.s32 1, %s9
  %s12 = scalar_select 0, %s11, %s9
  // Predicated region
  $region2: #{discriminator_forward.8} parent=0 // pred_check
    _
  $region3: #{discriminator_forward.8} parent=0 // pred_check_branch
    %14 = sbr.rel (0) target = $region5
  $region4: #{discriminator_forward.8} parent=0 // pred_region
    _
  $region5: #{discriminator_forward.8} parent=0 // pred_fallthru
    _
  // Predicated region
  $region6: #{discriminator_forward.8} parent=0 // pred_check
    _
  $region7: #{discriminator_forward.8} parent=0 // pred_check_branch
    %16 = sbr.rel (0) target = $region9
  $region8: #{discriminator_forward.8} parent=0 // pred_region
    _
  $region9: #{discriminator_forward.8} parent=0 // pred_fallthru
    _
  // Predicated region
  $region10: #{discriminator_forward.8} parent=0 // pred_check
    _
  $region11: #{discriminator_forward.8} parent=0 // pred_check_branch
    %18 = sbr.rel (0) target = $region13
  $region12: #{discriminator_forward.8} parent=0 // pred_region
    _
  $region13: #{discriminator_forward.8} parent=0 // pred_fallthru
    _
  // Predicated region
  $region14: #{discriminator_forward.8} parent=0 // pred_check
    _
  $region15: #{discriminator_forward.8} parent=0 // pred_check_branch
    %20 = sbr.rel (0) target = $region17
  $region16: #{discriminator_forward.8} parent=0 // pred_region
    _
  $region17: #{discriminator_forward.8} parent=0 // pred_fallthru
    _
  // Predicated region
  $region18: #{discriminator_forward.8} parent=0 // pred_check
    _
  $region19: #{discriminator_forward.8} parent=0 // pred_check_branch
    %22 = sbr.rel (0) target = $region21
  $region20: #{discriminator_forward.8} parent=0 // pred_region
    _
  $region21: #{discriminator_forward.8} parent=0 // pred_fallthru
    _
  // Predicated region
  $region22: #{discriminator_forward.8} parent=0 // pred_check
    _
  $region23: #{discriminator_forward.8} parent=0 // pred_check_branch
    %24 = sbr.rel (0) target = $region25
  $region24: #{discriminator_forward.8} parent=0 // pred_region
    _
  $region25: #{discriminator_forward.8} parent=0 // pred_fallthru
    _
  // Predicated region
  $region26: #{discriminator_forward.8} parent=0 // pred_check
    _
  $region27: #{discriminator_forward.8} parent=0 // pred_check_branch
    %26 = sbr.rel (0) target = $region29
  $region28: #{discriminator_forward.8} parent=0 // pred_region
    _
  $region29: #{discriminator_forward.8} parent=0 // pred_fallthru
    _
  // Predicated region
  $region30: #{discriminator_forward.8} parent=0 // pred_check
    _
  $region31: #{discriminator_forward.8} parent=0 // pred_check_branch
    %28 = sbr.rel (0) target = $region33
  $region32: #{discriminator_forward.8} parent=0 // pred_region
    _
  $region33: #{discriminator_forward.8} parent=0 // pred_fallthru
    _
  %v30 = vld [vmem:[%s0] sm:$0xff]
  %v31 = vld [vmem:[%s0 + $0x8] sm:$0x33]
  %v32 = vld [vmem:[%s6] sm:$0xff]
  %v33 = vld [vmem:[%s6 + $0x8] sm:$0xff]
  %v34 = vld [vmem:[%s6 + $0x10] sm:$0xff]
  %v35 = vld [vmem:[%s6 + $0x18] sm:$0xff]
  %v36 = vld [vmem:[%s6 + $0x20] sm:$0xff]
  %v37 = vld [vmem:[%s6 + $0x28] sm:$0xff]
  %v38 = vld [vmem:[%s6 + $0x30] sm:$0xff]
  %v39 = vld [vmem:[%s6 + $0x38] sm:$0xff]
  %v40 = vld [vmem:[%s6 + $0x40] sm:$0xff]
  %v41 = vld [vmem:[%s6 + $0x48] sm:$0xff]
  %v42 = vld [vmem:[%s6 + $0x50] sm:$0xff]
  %v43 = vld [vmem:[%s6 + $0x58] sm:$0xff]
  %v44 = vld [vmem:[%s6 + $0x60] sm:$0xff]
  %v45 = vld [vmem:[%s6 + $0x68] sm:$0xff]
  %v46 = vld [vmem:[%s6 + $0x70] sm:$0xff]
  %v47 = vld [vmem:[%s6 + $0x78] sm:$0xff]
  %v48 = vld [vmem:[%s6 + $0x80] sm:$0xff]
  %v49 = vld [vmem:[%s6 + $0x88] sm:$0xff]
  %v50 = vld [vmem:[%s6 + $0x90] sm:$0xff]
  %v51 = vld [vmem:[%s6 + $0x98] sm:$0xff]
  %v52 = vld [vmem:[%s6 + $0xa0] sm:$0xff]
  %v53 = vld [vmem:[%s6 + $0xa8] sm:$0xff]
  %v54 = vld [vmem:[%s6 + $0xb0] sm:$0xff]
  %v55 = vld [vmem:[%s6 + $0xb8] sm:$0xff]
  %v56 = vld [vmem:[%s6 + $0xc0] sm:$0xff]
  %v57 = vld [vmem:[%s6 + $0xc8] sm:$0xff]
  %v58 = vld [vmem:[%s6 + $0xd0] sm:$0xff]
  %v59 = vld [vmem:[%s6 + $0xd8] sm:$0xff]
  %v60 = vld [vmem:[%s6 + $0xe0] sm:$0xff]
  %v61 = vld [vmem:[%s6 + $0xe8] sm:$0xff]
  %v62 = vld [vmem:[%s6 + $0xf0] sm:$0xff]
  %v63 = vld [vmem:[%s6 + $0xf8] sm:$0xff]
  %v64 = vld [vmem:[%s6 + $0x100] sm:$0xff]
  %v65 = vld [vmem:[%s6 + $0x108] sm:$0xff]
  %v66 = vld [vmem:[%s6 + $0x110] sm:$0xff]
  %v67 = vld [vmem:[%s6 + $0x118] sm:$0xff]
  %v68 = vld [vmem:[%s6 + $0x120] sm:$0xff]
  %v69 = vld [vmem:[%s6 + $0x128] sm:$0xff]
  %v70 = vld [vmem:[%s6 + $0x130] sm:$0xff]
  %v71 = vld [vmem:[%s6 + $0x138] sm:$0xff]
  %v72 = vld [vmem:[%s6 + $0x140] sm:$0xff]
  %v73 = vld [vmem:[%s6 + $0x148] sm:$0xff]
  %v74 = vld [vmem:[%s6 + $0x150] sm:$0xff]
  %v75 = vld [vmem:[%s6 + $0x158] sm:$0xff]
  %v76 = vld [vmem:[%s6 + $0x160] sm:$0xff]
  %v77 = vld [vmem:[%s6 + $0x168] sm:$0xff]
  %v78 = vld [vmem:[%s6 + $0x170] sm:$0xff]
  %v79 = vld [vmem:[%s6 + $0x178] sm:$0xff]
  %v80 = vld [vmem:[%s6 + $0x180] sm:$0xff]
  %v81 = vld [vmem:[%s6 + $0x188] sm:$0xff]
  %v82 = vld [vmem:[%s6 + $0x190] sm:$0xff]
  %v83 = vld [vmem:[%s6 + $0x198] sm:$0xff]
  %v84 = vld [vmem:[%s6 + $0x1a0] sm:$0xff]
  %v85 = vld [vmem:[%s6 + $0x1a8] sm:$0xff]
  %v86 = vld [vmem:[%s6 + $0x1b0] sm:$0xff]
  %v87 = vld [vmem:[%s6 + $0x1b8] sm:$0xff]
  %v88 = vld [vmem:[%s6 + $0x1c0] sm:$0xff]
  %v89 = vld [vmem:[%s6 + $0x1c8] sm:$0xff]
  %v90 = vld [vmem:[%s6 + $0x1d0] sm:$0xff]
  %v91 = vld [vmem:[%s6 + $0x1d8] sm:$0xff]
  %v92 = vld [vmem:[%s6 + $0x1e0] sm:$0xff]
  %v93 = vld [vmem:[%s6 + $0x1e8] sm:$0xff]
  %v94 = vld [vmem:[%s6 + $0x1f0] sm:$0xff]
  %v95 = vld [vmem:[%s6 + $0x1f8] sm:$0xff]
  %v96 = vld [vmem:[%s2] sm:$0xff]
  %v97 = vld [vmem:[%s2 + $0x8] sm:$0x33]
  %s98 = scalar_lea.vmem %s6, 512
  %v99 = vld [vmem:[%s98] sm:$0xff]
  %v100 = vld [vmem:[%s98 + $0x8] sm:$0xff]
  %v101 = vld [vmem:[%s98 + $0x10] sm:$0xff]
  %v102 = vld [vmem:[%s98 + $0x18] sm:$0xff]
  %v103 = vld [vmem:[%s98 + $0x20] sm:$0xff]
  %v104 = vld [vmem:[%s98 + $0x28] sm:$0xff]
  %v105 = vld [vmem:[%s98 + $0x30] sm:$0xff]
  %v106 = vld [vmem:[%s98 + $0x38] sm:$0xff]
  %v107 = vld [vmem:[%s98 + $0x40] sm:$0xff]
  %v108 = vld [vmem:[%s98 + $0x48] sm:$0xff]
  %v109 = vld [vmem:[%s98 + $0x50] sm:$0xff]
  %v110 = vld [vmem:[%s98 + $0x58] sm:$0xff]
  %v111 = vld [vmem:[%s98 + $0x60] sm:$0xff]
  %v112 = vld [vmem:[%s98 + $0x68] sm:$0xff]
  %v113 = vld [vmem:[%s98 + $0x70] sm:$0xff]
  %v114 = vld [vmem:[%s98 + $0x78] sm:$0xff]
  %v115 = vld [vmem:[%s98 + $0x80] sm:$0xff]
  %v116 = vld [vmem:[%s98 + $0x88] sm:$0xff]
  %v117 = vld [vmem:[%s98 + $0x90] sm:$0xff]
  %v118 = vld [vmem:[%s98 + $0x98] sm:$0xff]
  %v119 = vld [vmem:[%s98 + $0xa0] sm:$0xff]
  %v120 = vld [vmem:[%s98 + $0xa8] sm:$0xff]
  %v121 = vld [vmem:[%s98 + $0xb0] sm:$0xff]
  %v122 = vld [vmem:[%s98 + $0xb8] sm:$0xff]
  %v123 = vld [vmem:[%s98 + $0xc0] sm:$0xff]
  %v124 = vld [vmem:[%s98 + $0xc8] sm:$0xff]
  %v125 = vld [vmem:[%s98 + $0xd0] sm:$0xff]
  %v126 = vld [vmem:[%s98 + $0xd8] sm:$0xff]
  %v127 = vld [vmem:[%s98 + $0xe0] sm:$0xff]
  %v128 = vld [vmem:[%s98 + $0xe8] sm:$0xff]
  %v129 = vld [vmem:[%s98 + $0xf0] sm:$0xff]
  %v130 = vld [vmem:[%s98 + $0xf8] sm:$0xff]
  %v131 = vld [vmem:[%s98 + $0x100] sm:$0xff]
  %v132 = vld [vmem:[%s98 + $0x108] sm:$0xff]
  %v133 = vld [vmem:[%s98 + $0x110] sm:$0xff]
  %v134 = vld [vmem:[%s98 + $0x118] sm:$0xff]
  %v135 = vld [vmem:[%s98 + $0x120] sm:$0xff]
  %v136 = vld [vmem:[%s98 + $0x128] sm:$0xff]
  %v137 = vld [vmem:[%s98 + $0x130] sm:$0xff]
  %v138 = vld [vmem:[%s98 + $0x138] sm:$0xff]
  %v139 = vld [vmem:[%s98 + $0x140] sm:$0xff]
  %v140 = vld [vmem:[%s98 + $0x148] sm:$0xff]
  %v141 = vld [vmem:[%s98 + $0x150] sm:$0xff]
  %v142 = vld [vmem:[%s98 + $0x158] sm:$0xff]
  %v143 = vld [vmem:[%s98 + $0x160] sm:$0xff]
  %v144 = vld [vmem:[%s98 + $0x168] sm:$0xff]
  %v145 = vld [vmem:[%s98 + $0x170] sm:$0xff]
  %v146 = vld [vmem:[%s98 + $0x178] sm:$0xff]
  %v147 = vld [vmem:[%s98 + $0x180] sm:$0xff]
  %v148 = vld [vmem:[%s98 + $0x188] sm:$0xff]
  %v149 = vld [vmem:[%s98 + $0x190] sm:$0xff]
  %v150 = vld [vmem:[%s98 + $0x198] sm:$0xff]
  %v151 = vld [vmem:[%s98 + $0x1a0] sm:$0xff]
  %v152 = vld [vmem:[%s98 + $0x1a8] sm:$0xff]
  %v153 = vld [vmem:[%s98 + $0x1b0] sm:$0xff]
  %v154 = vld [vmem:[%s98 + $0x1b8] sm:$0xff]
  %v155 = vld [vmem:[%s98 + $0x1c0] sm:$0xff]
  %v156 = vld [vmem:[%s98 + $0x1c8] sm:$0xff]
  %v157 = vld [vmem:[%s98 + $0x1d0] sm:$0xff]
  %v158 = vld [vmem:[%s98 + $0x1d8] sm:$0xff]
  %v159 = vld [vmem:[%s98 + $0x1e0] sm:$0xff]
  %v160 = vld [vmem:[%s98 + $0x1e8] sm:$0xff]
  %v161 = vld [vmem:[%s98 + $0x1f0] sm:$0xff]
  %v162 = vld [vmem:[%s98 + $0x1f8] sm:$0xff]
  %v165 = vunpack.c.l.b16 %v96
  %v166 = vunpack.c.h.b16 %v96
  %v167 = vunpack.c.l.b16 %v97
  %v168 = vunpack.c.h.b16 %v97
  %v169 = vpack.c.b16 %v167, %v165
  %v170 = vpack.c.b16 %v168, %v166
  %v237 = vunpack.c.l.b16 %v99
  %v238 = vunpack.c.h.b16 %v99
  %v239 = vunpack.c.l.b16 %v100
  %v240 = vunpack.c.h.b16 %v100
  %v241 = vunpack.c.l.b16 %v101
  %v242 = vunpack.c.h.b16 %v101
  %v243 = vunpack.c.l.b16 %v102
  %v244 = vunpack.c.h.b16 %v102
  %v245 = vunpack.c.l.b16 %v103
  %v246 = vunpack.c.h.b16 %v103
  %v247 = vunpack.c.l.b16 %v104
  %v248 = vunpack.c.h.b16 %v104
  %v249 = vunpack.c.l.b16 %v105
  %v250 = vunpack.c.h.b16 %v105
  %v251 = vunpack.c.l.b16 %v106
  %v252 = vunpack.c.h.b16 %v106
  %v253 = vunpack.c.l.b16 %v107
  %v254 = vunpack.c.h.b16 %v107
  %v255 = vunpack.c.l.b16 %v108
  %v256 = vunpack.c.h.b16 %v108
  %v257 = vunpack.c.l.b16 %v109
  %v258 = vunpack.c.h.b16 %v109
  %v259 = vunpack.c.l.b16 %v110
  %v260 = vunpack.c.h.b16 %v110
  %v261 = vunpack.c.l.b16 %v111
  %v262 = vunpack.c.h.b16 %v111
  %v263 = vunpack.c.l.b16 %v112
  %v264 = vunpack.c.h.b16 %v112
  %v265 = vunpack.c.l.b16 %v113
  %v266 = vunpack.c.h.b16 %v113
  %v267 = vunpack.c.l.b16 %v114
  %v268 = vunpack.c.h.b16 %v114
  %v269 = vunpack.c.l.b16 %v115
  %v270 = vunpack.c.h.b16 %v115
  %v271 = vunpack.c.l.b16 %v116
  %v272 = vunpack.c.h.b16 %v116
  %v273 = vunpack.c.l.b16 %v117
  %v274 = vunpack.c.h.b16 %v117
  %v275 = vunpack.c.l.b16 %v118
  %v276 = vunpack.c.h.b16 %v118
  %v277 = vunpack.c.l.b16 %v119
  %v278 = vunpack.c.h.b16 %v119
  %v279 = vunpack.c.l.b16 %v120
  %v280 = vunpack.c.h.b16 %v120
  %v281 = vunpack.c.l.b16 %v121
  %v282 = vunpack.c.h.b16 %v121
  %v283 = vunpack.c.l.b16 %v122
  %v284 = vunpack.c.h.b16 %v122
  %v285 = vunpack.c.l.b16 %v123
  %v286 = vunpack.c.h.b16 %v123
  %v287 = vunpack.c.l.b16 %v124
  %v288 = vunpack.c.h.b16 %v124
  %v289 = vunpack.c.l.b16 %v125
  %v290 = vunpack.c.h.b16 %v125
  %v291 = vunpack.c.l.b16 %v126
  %v292 = vunpack.c.h.b16 %v126
  %v293 = vunpack.c.l.b16 %v127
  %v294 = vunpack.c.h.b16 %v127
  %v295 = vunpack.c.l.b16 %v128
  %v296 = vunpack.c.h.b16 %v128
  %v297 = vunpack.c.l.b16 %v129
  %v298 = vunpack.c.h.b16 %v129
  %v299 = vunpack.c.l.b16 %v130
  %v300 = vunpack.c.h.b16 %v130
  %v301 = vunpack.c.l.b16 %v131
  %v302 = vunpack.c.h.b16 %v131
  %v303 = vunpack.c.l.b16 %v132
  %v304 = vunpack.c.h.b16 %v132
  %v305 = vunpack.c.l.b16 %v133
  %v306 = vunpack.c.h.b16 %v133
  %v307 = vunpack.c.l.b16 %v134
  %v308 = vunpack.c.h.b16 %v134
  %v309 = vunpack.c.l.b16 %v135
  %v310 = vunpack.c.h.b16 %v135
  %v311 = vunpack.c.l.b16 %v136
  %v312 = vunpack.c.h.b16 %v136
  %v313 = vunpack.c.l.b16 %v137
  %v314 = vunpack.c.h.b16 %v137
  %v315 = vunpack.c.l.b16 %v138
  %v316 = vunpack.c.h.b16 %v138
  %v317 = vunpack.c.l.b16 %v139
  %v318 = vunpack.c.h.b16 %v139
  %v319 = vunpack.c.l.b16 %v140
  %v320 = vunpack.c.h.b16 %v140
  %v321 = vunpack.c.l.b16 %v141
  %v322 = vunpack.c.h.b16 %v141
  %v323 = vunpack.c.l.b16 %v142
  %v324 = vunpack.c.h.b16 %v142
  %v325 = vunpack.c.l.b16 %v143
  %v326 = vunpack.c.h.b16 %v143
  %v327 = vunpack.c.l.b16 %v144
  %v328 = vunpack.c.h.b16 %v144
  %v329 = vunpack.c.l.b16 %v145
  %v330 = vunpack.c.h.b16 %v145
  %v331 = vunpack.c.l.b16 %v146
  %v332 = vunpack.c.h.b16 %v146
  %v333 = vunpack.c.l.b16 %v147
  %v334 = vunpack.c.h.b16 %v147
  %v335 = vunpack.c.l.b16 %v148
  %v336 = vunpack.c.h.b16 %v148
  %v337 = vunpack.c.l.b16 %v149
  %v338 = vunpack.c.h.b16 %v149
  %v339 = vunpack.c.l.b16 %v150
  %v340 = vunpack.c.h.b16 %v150
  %v341 = vunpack.c.l.b16 %v151
  %v342 = vunpack.c.h.b16 %v151
  %v343 = vunpack.c.l.b16 %v152
  %v344 = vunpack.c.h.b16 %v152
  %v345 = vunpack.c.l.b16 %v153
  %v346 = vunpack.c.h.b16 %v153
  %v347 = vunpack.c.l.b16 %v154
  %v348 = vunpack.c.h.b16 %v154
  %v349 = vunpack.c.l.b16 %v155
  %v350 = vunpack.c.h.b16 %v155
  %v351 = vunpack.c.l.b16 %v156
  %v352 = vunpack.c.h.b16 %v156
  %v353 = vunpack.c.l.b16 %v157
  %v354 = vunpack.c.h.b16 %v157
  %v355 = vunpack.c.l.b16 %v158
  %v356 = vunpack.c.h.b16 %v158
  %v357 = vunpack.c.l.b16 %v159
  %v358 = vunpack.c.h.b16 %v159
  %v359 = vunpack.c.l.b16 %v160
  %v360 = vunpack.c.h.b16 %v160
  %v361 = vunpack.c.l.b16 %v161
  %v362 = vunpack.c.h.b16 %v161
  %v363 = vunpack.c.l.b16 %v162
  %v364 = vunpack.c.h.b16 %v162
  %v365 = vpack.c.b16 %v241, %v237
  %v366 = vpack.c.b16 %v242, %v238
  %v367 = vpack.c.b16 %v243, %v239
  %v368 = vpack.c.b16 %v244, %v240
  %v369 = vpack.c.b16 %v249, %v245
  %v370 = vpack.c.b16 %v250, %v246
  %v371 = vpack.c.b16 %v251, %v247
  %v372 = vpack.c.b16 %v252, %v248
  %v373 = vpack.c.b16 %v257, %v253
  %v374 = vpack.c.b16 %v258, %v254
  %v375 = vpack.c.b16 %v259, %v255
  %v376 = vpack.c.b16 %v260, %v256
  %v377 = vpack.c.b16 %v265, %v261
  %v378 = vpack.c.b16 %v266, %v262
  %v379 = vpack.c.b16 %v267, %v263
  %v380 = vpack.c.b16 %v268, %v264
  %v381 = vpack.c.b16 %v273, %v269
  %v382 = vpack.c.b16 %v274, %v270
  %v383 = vpack.c.b16 %v275, %v271
  %v384 = vpack.c.b16 %v276, %v272
  %v385 = vpack.c.b16 %v281, %v277
  %v386 = vpack.c.b16 %v282, %v278
  %v387 = vpack.c.b16 %v283, %v279
  %v388 = vpack.c.b16 %v284, %v280
  %v389 = vpack.c.b16 %v289, %v285
  %v390 = vpack.c.b16 %v290, %v286
  %v391 = vpack.c.b16 %v291, %v287
  %v392 = vpack.c.b16 %v292, %v288
  %v393 = vpack.c.b16 %v297, %v293
  %v394 = vpack.c.b16 %v298, %v294
  %v395 = vpack.c.b16 %v299, %v295
  %v396 = vpack.c.b16 %v300, %v296
  %v397 = vpack.c.b16 %v305, %v301
  %v398 = vpack.c.b16 %v306, %v302
  %v399 = vpack.c.b16 %v307, %v303
  %v400 = vpack.c.b16 %v308, %v304
  %v401 = vpack.c.b16 %v313, %v309
  %v402 = vpack.c.b16 %v314, %v310
  %v403 = vpack.c.b16 %v315, %v311
  %v404 = vpack.c.b16 %v316, %v312
  %v405 = vpack.c.b16 %v321, %v317
  %v406 = vpack.c.b16 %v322, %v318
  %v407 = vpack.c.b16 %v323, %v319
  %v408 = vpack.c.b16 %v324, %v320
  %v409 = vpack.c.b16 %v329, %v325
  %v410 = vpack.c.b16 %v330, %v326
  %v411 = vpack.c.b16 %v331, %v327
  %v412 = vpack.c.b16 %v332, %v328
  %v413 = vpack.c.b16 %v337, %v333
  %v414 = vpack.c.b16 %v338, %v334
  %v415 = vpack.c.b16 %v339, %v335
  %v416 = vpack.c.b16 %v340, %v336
  %v417 = vpack.c.b16 %v345, %v341
  %v418 = vpack.c.b16 %v346, %v342
  %v419 = vpack.c.b16 %v347, %v343
  %v420 = vpack.c.b16 %v348, %v344
  %v421 = vpack.c.b16 %v353, %v349
  %v422 = vpack.c.b16 %v354, %v350
  %v423 = vpack.c.b16 %v355, %v351
  %v424 = vpack.c.b16 %v356, %v352
  %v425 = vpack.c.b16 %v361, %v357
  %v426 = vpack.c.b16 %v362, %v358
  %v427 = vpack.c.b16 %v363, %v359
  %v428 = vpack.c.b16 %v364, %v360
  %493 = vmatprep.subr.bf16.mxu0 %v366
  %494 = vmatpush1.bf16.msra.mxu0 %v365
  %495 = vmatprep.subr.bf16.mxu0 %v370
  %496 = vmatpush1.bf16.msra.mxu0 %v369
  %497 = vmatprep.subr.bf16.mxu0 %v374
  %498 = vmatpush1.bf16.msra.mxu0 %v373
  %499 = vmatprep.subr.bf16.mxu0 %v378
  %500 = vmatpush1.bf16.msra.mxu0 %v377
  %501 = vmatprep.subr.bf16.mxu0 %v382
  %502 = vmatpush1.bf16.msra.mxu0 %v381
  %503 = vmatprep.subr.bf16.mxu0 %v386
  %504 = vmatpush1.bf16.msra.mxu0 %v385
  %505 = vmatprep.subr.bf16.mxu0 %v390
  %506 = vmatpush1.bf16.msra.mxu0 %v389
  %507 = vmatprep.subr.bf16.mxu0 %v394
  %508 = vmatpush1.bf16.msra.mxu0 %v393
  %509 = vmatprep.subr.bf16.mxu0 %v398
  %510 = vmatpush1.bf16.msra.mxu0 %v397
  %511 = vmatprep.subr.bf16.mxu0 %v402
  %512 = vmatpush1.bf16.msra.mxu0 %v401
  %513 = vmatprep.subr.bf16.mxu0 %v406
  %514 = vmatpush1.bf16.msra.mxu0 %v405
  %515 = vmatprep.subr.bf16.mxu0 %v410
  %516 = vmatpush1.bf16.msra.mxu0 %v409
  %517 = vmatprep.subr.bf16.mxu0 %v414
  %518 = vmatpush1.bf16.msra.mxu0 %v413
  %519 = vmatprep.subr.bf16.mxu0 %v418
  %520 = vmatpush1.bf16.msra.mxu0 %v417
  %521 = vmatprep.subr.bf16.mxu0 %v422
  %522 = vmatpush1.bf16.msra.mxu0 %v421
  %523 = vmatprep.subr.bf16.mxu0 %v426
  %524 = vmatpush1.bf16.msra.mxu0 %v425
  %525 = vmatprep.mubr.bf16.mxu0 %v170
  %526 = vmatmul.mubr.bf16.gmra.mrb[0].mxu0 %v169
  %v527 = vpop.f32.mrb[0].mxu0
  %v528 = vadd.f32 0.0, %v527
  %v529 = vpop.f32.mrb[0].mxu0
  %v530 = vadd.f32 0.0, %v529
  %v531 = vpop.f32.mrb[0].mxu0
  %v532 = vadd.f32 0.0, %v531
  %v533 = vpop.f32.mrb[0].mxu0
  %v534 = vadd.f32 0.0, %v533
  %535 = vdwg.mxu0
  %536 = vmatprep.subr.bf16.mxu0 %v368
  %537 = vmatpush1.bf16.msra.mxu0 %v367
  %538 = vmatprep.subr.bf16.mxu0 %v372
  %539 = vmatpush1.bf16.msra.mxu0 %v371
  %540 = vmatprep.subr.bf16.mxu0 %v376
  %541 = vmatpush1.bf16.msra.mxu0 %v375
  %542 = vmatprep.subr.bf16.mxu0 %v380
  %543 = vmatpush1.bf16.msra.mxu0 %v379
  %544 = vmatprep.subr.bf16.mxu0 %v384
  %545 = vmatpush1.bf16.msra.mxu0 %v383
  %546 = vmatprep.subr.bf16.mxu0 %v388
  %547 = vmatpush1.bf16.msra.mxu0 %v387
  %548 = vmatprep.subr.bf16.mxu0 %v392
  %549 = vmatpush1.bf16.msra.mxu0 %v391
  %550 = vmatprep.subr.bf16.mxu0 %v396
  %551 = vmatpush1.bf16.msra.mxu0 %v395
  %552 = vmatprep.subr.bf16.mxu0 %v400
  %553 = vmatpush1.bf16.msra.mxu0 %v399
  %554 = vmatprep.subr.bf16.mxu0 %v404
  %555 = vmatpush1.bf16.msra.mxu0 %v403
  %556 = vmatprep.subr.bf16.mxu0 %v408
  %557 = vmatpush1.bf16.msra.mxu0 %v407
  %558 = vmatprep.subr.bf16.mxu0 %v412
  %559 = vmatpush1.bf16.msra.mxu0 %v411
  %560 = vmatprep.subr.bf16.mxu0 %v416
  %561 = vmatpush1.bf16.msra.mxu0 %v415
  %562 = vmatprep.subr.bf16.mxu0 %v420
  %563 = vmatpush1.bf16.msra.mxu0 %v419
  %564 = vmatprep.subr.bf16.mxu0 %v424
  %565 = vmatpush1.bf16.msra.mxu0 %v423
  %566 = vmatprep.subr.bf16.mxu0 %v428
  %567 = vmatpush1.bf16.msra.mxu0 %v427
  %568 = vmatprep.mubr.bf16.mxu0 %v170
  %569 = vmatmul.mubr.bf16.gmra.mrb[0].mxu0 %v169
  %v570 = vpop.f32.mrb[0].mxu0
  %v571 = vadd.f32 0.0, %v570
  %v572 = vpop.f32.mrb[0].mxu0
  %v573 = vadd.f32 0.0, %v572
  %v574 = vpop.f32.mrb[0].mxu0
  %v575 = vadd.f32 0.0, %v574
  %v576 = vpop.f32.mrb[0].mxu0
  %v577 = vadd.f32 0.0, %v576
  %578 = vdwg.mxu0
  %v581 = vunpack.c.l.b16 %v30
  %v582 = vunpack.c.h.b16 %v30
  %v583 = vunpack.c.l.b16 %v31
  %v584 = vunpack.c.h.b16 %v31
  %v585 = vpack.c.b16 %v583, %v581
  %v586 = vpack.c.b16 %v584, %v582
  %v653 = vunpack.c.l.b16 %v32
  %v654 = vunpack.c.h.b16 %v32
  %v655 = vunpack.c.l.b16 %v33
  %v656 = vunpack.c.h.b16 %v33
  %v657 = vunpack.c.l.b16 %v34
  %v658 = vunpack.c.h.b16 %v34
  %v659 = vunpack.c.l.b16 %v35
  %v660 = vunpack.c.h.b16 %v35
  %v661 = vunpack.c.l.b16 %v36
  %v662 = vunpack.c.h.b16 %v36
  %v663 = vunpack.c.l.b16 %v37
  %v664 = vunpack.c.h.b16 %v37
  %v665 = vunpack.c.l.b16 %v38
  %v666 = vunpack.c.h.b16 %v38
  %v667 = vunpack.c.l.b16 %v39
  %v668 = vunpack.c.h.b16 %v39
  %v669 = vunpack.c.l.b16 %v40
  %v670 = vunpack.c.h.b16 %v40
  %v671 = vunpack.c.l.b16 %v41
  %v672 = vunpack.c.h.b16 %v41
  %v673 = vunpack.c.l.b16 %v42
  %v674 = vunpack.c.h.b16 %v42
  %v675 = vunpack.c.l.b16 %v43
  %v676 = vunpack.c.h.b16 %v43
  %v677 = vunpack.c.l.b16 %v44
  %v678 = vunpack.c.h.b16 %v44
  %v679 = vunpack.c.l.b16 %v45
  %v680 = vunpack.c.h.b16 %v45
  %v681 = vunpack.c.l.b16 %v46
  %v682 = vunpack.c.h.b16 %v46
  %v683 = vunpack.c.l.b16 %v47
  %v684 = vunpack.c.h.b16 %v47
  %v685 = vunpack.c.l.b16 %v48
  %v686 = vunpack.c.h.b16 %v48
  %v687 = vunpack.c.l.b16 %v49
  %v688 = vunpack.c.h.b16 %v49
  %v689 = vunpack.c.l.b16 %v50
  %v690 = vunpack.c.h.b16 %v50
  %v691 = vunpack.c.l.b16 %v51
  %v692 = vunpack.c.h.b16 %v51
  %v693 = vunpack.c.l.b16 %v52
  %v694 = vunpack.c.h.b16 %v52
  %v695 = vunpack.c.l.b16 %v53
  %v696 = vunpack.c.h.b16 %v53
  %v697 = vunpack.c.l.b16 %v54
  %v698 = vunpack.c.h.b16 %v54
  %v699 = vunpack.c.l.b16 %v55
  %v700 = vunpack.c.h.b16 %v55
  %v701 = vunpack.c.l.b16 %v56
  %v702 = vunpack.c.h.b16 %v56
  %v703 = vunpack.c.l.b16 %v57
  %v704 = vunpack.c.h.b16 %v57
  %v705 = vunpack.c.l.b16 %v58
  %v706 = vunpack.c.h.b16 %v58
  %v707 = vunpack.c.l.b16 %v59
  %v708 = vunpack.c.h.b16 %v59
  %v709 = vunpack.c.l.b16 %v60
  %v710 = vunpack.c.h.b16 %v60
  %v711 = vunpack.c.l.b16 %v61
  %v712 = vunpack.c.h.b16 %v61
  %v713 = vunpack.c.l.b16 %v62
  %v714 = vunpack.c.h.b16 %v62
  %v715 = vunpack.c.l.b16 %v63
  %v716 = vunpack.c.h.b16 %v63
  %v717 = vunpack.c.l.b16 %v64
  %v718 = vunpack.c.h.b16 %v64
  %v719 = vunpack.c.l.b16 %v65
  %v720 = vunpack.c.h.b16 %v65
  %v721 = vunpack.c.l.b16 %v66
  %v722 = vunpack.c.h.b16 %v66
  %v723 = vunpack.c.l.b16 %v67
  %v724 = vunpack.c.h.b16 %v67
  %v725 = vunpack.c.l.b16 %v68
  %v726 = vunpack.c.h.b16 %v68
  %v727 = vunpack.c.l.b16 %v69
  %v728 = vunpack.c.h.b16 %v69
  %v729 = vunpack.c.l.b16 %v70
  %v730 = vunpack.c.h.b16 %v70
  %v731 = vunpack.c.l.b16 %v71
  %v732 = vunpack.c.h.b16 %v71
  %v733 = vunpack.c.l.b16 %v72
  %v734 = vunpack.c.h.b16 %v72
  %v735 = vunpack.c.l.b16 %v73
  %v736 = vunpack.c.h.b16 %v73
  %v737 = vunpack.c.l.b16 %v74
  %v738 = vunpack.c.h.b16 %v74
  %v739 = vunpack.c.l.b16 %v75
  %v740 = vunpack.c.h.b16 %v75
  %v741 = vunpack.c.l.b16 %v76
  %v742 = vunpack.c.h.b16 %v76
  %v743 = vunpack.c.l.b16 %v77
  %v744 = vunpack.c.h.b16 %v77
  %v745 = vunpack.c.l.b16 %v78
  %v746 = vunpack.c.h.b16 %v78
  %v747 = vunpack.c.l.b16 %v79
  %v748 = vunpack.c.h.b16 %v79
  %v749 = vunpack.c.l.b16 %v80
  %v750 = vunpack.c.h.b16 %v80
  %v751 = vunpack.c.l.b16 %v81
  %v752 = vunpack.c.h.b16 %v81
  %v753 = vunpack.c.l.b16 %v82
  %v754 = vunpack.c.h.b16 %v82
  %v755 = vunpack.c.l.b16 %v83
  %v756 = vunpack.c.h.b16 %v83
  %v757 = vunpack.c.l.b16 %v84
  %v758 = vunpack.c.h.b16 %v84
  %v759 = vunpack.c.l.b16 %v85
  %v760 = vunpack.c.h.b16 %v85
  %v761 = vunpack.c.l.b16 %v86
  %v762 = vunpack.c.h.b16 %v86
  %v763 = vunpack.c.l.b16 %v87
  %v764 = vunpack.c.h.b16 %v87
  %v765 = vunpack.c.l.b16 %v88
  %v766 = vunpack.c.h.b16 %v88
  %v767 = vunpack.c.l.b16 %v89
  %v768 = vunpack.c.h.b16 %v89
  %v769 = vunpack.c.l.b16 %v90
  %v770 = vunpack.c.h.b16 %v90
  %v771 = vunpack.c.l.b16 %v91
  %v772 = vunpack.c.h.b16 %v91
  %v773 = vunpack.c.l.b16 %v92
  %v774 = vunpack.c.h.b16 %v92
  %v775 = vunpack.c.l.b16 %v93
  %v776 = vunpack.c.h.b16 %v93
  %v777 = vunpack.c.l.b16 %v94
  %v778 = vunpack.c.h.b16 %v94
  %v779 = vunpack.c.l.b16 %v95
  %v780 = vunpack.c.h.b16 %v95
  %v781 = vpack.c.b16 %v657, %v653
  %v782 = vpack.c.b16 %v658, %v654
  %v783 = vpack.c.b16 %v659, %v655
  %v784 = vpack.c.b16 %v660, %v656
  %v785 = vpack.c.b16 %v665, %v661
  %v786 = vpack.c.b16 %v666, %v662
  %v787 = vpack.c.b16 %v667, %v663
  %v788 = vpack.c.b16 %v668, %v664
  %v789 = vpack.c.b16 %v673, %v669
  %v790 = vpack.c.b16 %v674, %v670
  %v791 = vpack.c.b16 %v675, %v671
  %v792 = vpack.c.b16 %v676, %v672
  %v793 = vpack.c.b16 %v681, %v677
  %v794 = vpack.c.b16 %v682, %v678
  %v795 = vpack.c.b16 %v683, %v679
  %v796 = vpack.c.b16 %v684, %v680
  %v797 = vpack.c.b16 %v689, %v685
  %v798 = vpack.c.b16 %v690, %v686
  %v799 = vpack.c.b16 %v691, %v687
  %v800 = vpack.c.b16 %v692, %v688
  %v801 = vpack.c.b16 %v697, %v693
  %v802 = vpack.c.b16 %v698, %v694
  %v803 = vpack.c.b16 %v699, %v695
  %v804 = vpack.c.b16 %v700, %v696
  %v805 = vpack.c.b16 %v705, %v701
  %v806 = vpack.c.b16 %v706, %v702
  %v807 = vpack.c.b16 %v707, %v703
  %v808 = vpack.c.b16 %v708, %v704
  %v809 = vpack.c.b16 %v713, %v709
  %v810 = vpack.c.b16 %v714, %v710
  %v811 = vpack.c.b16 %v715, %v711
  %v812 = vpack.c.b16 %v716, %v712
  %v813 = vpack.c.b16 %v721, %v717
  %v814 = vpack.c.b16 %v722, %v718
  %v815 = vpack.c.b16 %v723, %v719
  %v816 = vpack.c.b16 %v724, %v720
  %v817 = vpack.c.b16 %v729, %v725
  %v818 = vpack.c.b16 %v730, %v726
  %v819 = vpack.c.b16 %v731, %v727
  %v820 = vpack.c.b16 %v732, %v728
  %v821 = vpack.c.b16 %v737, %v733
  %v822 = vpack.c.b16 %v738, %v734
  %v823 = vpack.c.b16 %v739, %v735
  %v824 = vpack.c.b16 %v740, %v736
  %v825 = vpack.c.b16 %v745, %v741
  %v826 = vpack.c.b16 %v746, %v742
  %v827 = vpack.c.b16 %v747, %v743
  %v828 = vpack.c.b16 %v748, %v744
  %v829 = vpack.c.b16 %v753, %v749
  %v830 = vpack.c.b16 %v754, %v750
  %v831 = vpack.c.b16 %v755, %v751
  %v832 = vpack.c.b16 %v756, %v752
  %v833 = vpack.c.b16 %v761, %v757
  %v834 = vpack.c.b16 %v762, %v758
  %v835 = vpack.c.b16 %v763, %v759
  %v836 = vpack.c.b16 %v764, %v760
  %v837 = vpack.c.b16 %v769, %v765
  %v838 = vpack.c.b16 %v770, %v766
  %v839 = vpack.c.b16 %v771, %v767
  %v840 = vpack.c.b16 %v772, %v768
  %v841 = vpack.c.b16 %v777, %v773
  %v842 = vpack.c.b16 %v778, %v774
  %v843 = vpack.c.b16 %v779, %v775
  %v844 = vpack.c.b16 %v780, %v776
  %909 = vmatprep.subr.bf16.mxu0 %v782
  %910 = vmatpush1.bf16.msra.mxu0 %v781
  %911 = vmatprep.subr.bf16.mxu0 %v786
  %912 = vmatpush1.bf16.msra.mxu0 %v785
  %913 = vmatprep.subr.bf16.mxu0 %v790
  %914 = vmatpush1.bf16.msra.mxu0 %v789
  %915 = vmatprep.subr.bf16.mxu0 %v794
  %916 = vmatpush1.bf16.msra.mxu0 %v793
  %917 = vmatprep.subr.bf16.mxu0 %v798
  %918 = vmatpush1.bf16.msra.mxu0 %v797
  %919 = vmatprep.subr.bf16.mxu0 %v802
  %920 = vmatpush1.bf16.msra.mxu0 %v801
  %921 = vmatprep.subr.bf16.mxu0 %v806
  %922 = vmatpush1.bf16.msra.mxu0 %v805
  %923 = vmatprep.subr.bf16.mxu0 %v810
  %924 = vmatpush1.bf16.msra.mxu0 %v809
  %925 = vmatprep.subr.bf16.mxu0 %v814
  %926 = vmatpush1.bf16.msra.mxu0 %v813
  %927 = vmatprep.subr.bf16.mxu0 %v818
  %928 = vmatpush1.bf16.msra.mxu0 %v817
  %929 = vmatprep.subr.bf16.mxu0 %v822
  %930 = vmatpush1.bf16.msra.mxu0 %v821
  %931 = vmatprep.subr.bf16.mxu0 %v826
  %932 = vmatpush1.bf16.msra.mxu0 %v825
  %933 = vmatprep.subr.bf16.mxu0 %v830
  %934 = vmatpush1.bf16.msra.mxu0 %v829
  %935 = vmatprep.subr.bf16.mxu0 %v834
  %936 = vmatpush1.bf16.msra.mxu0 %v833
  %937 = vmatprep.subr.bf16.mxu0 %v838
  %938 = vmatpush1.bf16.msra.mxu0 %v837
  %939 = vmatprep.subr.bf16.mxu0 %v842
  %940 = vmatpush1.bf16.msra.mxu0 %v841
  %941 = vmatprep.mubr.bf16.mxu0 %v586
  %942 = vmatmul.mubr.bf16.gmra.mrb[0].mxu0 %v585
  %v943 = vpop.f32.mrb[0].mxu0
  %v944 = vadd.f32 %v528, %v943
  %v945 = vpop.f32.mrb[0].mxu0
  %v946 = vadd.f32 %v530, %v945
  %v947 = vpop.f32.mrb[0].mxu0
  %v948 = vadd.f32 %v532, %v947
  %v949 = vpop.f32.mrb[0].mxu0
  %v950 = vadd.f32 %v534, %v949
  %951 = vdwg.mxu0
  %952 = vmatprep.subr.bf16.mxu0 %v784
  %953 = vmatpush1.bf16.msra.mxu0 %v783
  %954 = vmatprep.subr.bf16.mxu0 %v788
  %955 = vmatpush1.bf16.msra.mxu0 %v787
  %956 = vmatprep.subr.bf16.mxu0 %v792
  %957 = vmatpush1.bf16.msra.mxu0 %v791
  %958 = vmatprep.subr.bf16.mxu0 %v796
  %959 = vmatpush1.bf16.msra.mxu0 %v795
  %960 = vmatprep.subr.bf16.mxu0 %v800
  %961 = vmatpush1.bf16.msra.mxu0 %v799
  %962 = vmatprep.subr.bf16.mxu0 %v804
  %963 = vmatpush1.bf16.msra.mxu0 %v803
  %964 = vmatprep.subr.bf16.mxu0 %v808
  %965 = vmatpush1.bf16.msra.mxu0 %v807
  %966 = vmatprep.subr.bf16.mxu0 %v812
  %967 = vmatpush1.bf16.msra.mxu0 %v811
  %968 = vmatprep.subr.bf16.mxu0 %v816
  %969 = vmatpush1.bf16.msra.mxu0 %v815
  %970 = vmatprep.subr.bf16.mxu0 %v820
  %971 = vmatpush1.bf16.msra.mxu0 %v819
  %972 = vmatprep.subr.bf16.mxu0 %v824
  %973 = vmatpush1.bf16.msra.mxu0 %v823
  %974 = vmatprep.subr.bf16.mxu0 %v828
  %975 = vmatpush1.bf16.msra.mxu0 %v827
  %976 = vmatprep.subr.bf16.mxu0 %v832
  %977 = vmatpush1.bf16.msra.mxu0 %v831
  %978 = vmatprep.subr.bf16.mxu0 %v836
  %979 = vmatpush1.bf16.msra.mxu0 %v835
  %980 = vmatprep.subr.bf16.mxu0 %v840
  %981 = vmatpush1.bf16.msra.mxu0 %v839
  %982 = vmatprep.subr.bf16.mxu0 %v844
  %983 = vmatpush1.bf16.msra.mxu0 %v843
  %984 = vmatprep.mubr.bf16.mxu0 %v586
  %985 = vmatmul.mubr.bf16.gmra.mrb[0].mxu0 %v585
  %v986 = vpop.f32.mrb[0].mxu0
  %v987 = vadd.f32 %v571, %v986
  %v988 = vpop.f32.mrb[0].mxu0
  %v989 = vadd.f32 %v573, %v988
  %v990 = vpop.f32.mrb[0].mxu0
  %v991 = vadd.f32 %v575, %v990
  %v992 = vpop.f32.mrb[0].mxu0
  %v993 = vadd.f32 %v577, %v992
  %994 = vdwg.mxu0
  %v995 = vld [vmem:[%s1] sm:$0xff]
  %v996 = vld [vmem:[%s1 + $0x8] sm:$0x33]
  %s997 = scalar_lea.vmem %s6, 1024
  %v998 = vld [vmem:[%s997] sm:$0xff]
  %v999 = vld [vmem:[%s997 + $0x8] sm:$0xff]
  %v1000 = vld [vmem:[%s997 + $0x10] sm:$0xff]
  %v1001 = vld [vmem:[%s997 + $0x18] sm:$0xff]
  %v1002 = vld [vmem:[%s997 + $0x20] sm:$0xff]
  %v1003 = vld [vmem:[%s997 + $0x28] sm:$0xff]
  %v1004 = vld [vmem:[%s997 + $0x30] sm:$0xff]
  %v1005 = vld [vmem:[%s997 + $0x38] sm:$0xff]
  %v1006 = vld [vmem:[%s997 + $0x40] sm:$0xff]
  %v1007 = vld [vmem:[%s997 + $0x48] sm:$0xff]
  %v1008 = vld [vmem:[%s997 + $0x50] sm:$0xff]
  %v1009 = vld [vmem:[%s997 + $0x58] sm:$0xff]
  %v1010 = vld [vmem:[%s997 + $0x60] sm:$0xff]
  %v1011 = vld [vmem:[%s997 + $0x68] sm:$0xff]
  %v1012 = vld [vmem:[%s997 + $0x70] sm:$0xff]
  %v1013 = vld [vmem:[%s997 + $0x78] sm:$0xff]
  %v1014 = vld [vmem:[%s997 + $0x80] sm:$0xff]
  %v1015 = vld [vmem:[%s997 + $0x88] sm:$0xff]
  %v1016 = vld [vmem:[%s997 + $0x90] sm:$0xff]
  %v1017 = vld [vmem:[%s997 + $0x98] sm:$0xff]
  %v1018 = vld [vmem:[%s997 + $0xa0] sm:$0xff]
  %v1019 = vld [vmem:[%s997 + $0xa8] sm:$0xff]
  %v1020 = vld [vmem:[%s997 + $0xb0] sm:$0xff]
  %v1021 = vld [vmem:[%s997 + $0xb8] sm:$0xff]
  %v1022 = vld [vmem:[%s997 + $0xc0] sm:$0xff]
  %v1023 = vld [vmem:[%s997 + $0xc8] sm:$0xff]
  %v1024 = vld [vmem:[%s997 + $0xd0] sm:$0xff]
  %v1025 = vld [vmem:[%s997 + $0xd8] sm:$0xff]
  %v1026 = vld [vmem:[%s997 + $0xe0] sm:$0xff]
  %v1027 = vld [vmem:[%s997 + $0xe8] sm:$0xff]
  %v1028 = vld [vmem:[%s997 + $0xf0] sm:$0xff]
  %v1029 = vld [vmem:[%s997 + $0xf8] sm:$0xff]
  %v1030 = vld [vmem:[%s997 + $0x100] sm:$0xff]
  %v1031 = vld [vmem:[%s997 + $0x108] sm:$0xff]
  %v1032 = vld [vmem:[%s997 + $0x110] sm:$0xff]
  %v1033 = vld [vmem:[%s997 + $0x118] sm:$0xff]
  %v1034 = vld [vmem:[%s997 + $0x120] sm:$0xff]
  %v1035 = vld [vmem:[%s997 + $0x128] sm:$0xff]
  %v1036 = vld [vmem:[%s997 + $0x130] sm:$0xff]
  %v1037 = vld [vmem:[%s997 + $0x138] sm:$0xff]
  %v1038 = vld [vmem:[%s997 + $0x140] sm:$0xff]
  %v1039 = vld [vmem:[%s997 + $0x148] sm:$0xff]
  %v1040 = vld [vmem:[%s997 + $0x150] sm:$0xff]
  %v1041 = vld [vmem:[%s997 + $0x158] sm:$0xff]
  %v1042 = vld [vmem:[%s997 + $0x160] sm:$0xff]
  %v1043 = vld [vmem:[%s997 + $0x168] sm:$0xff]
  %v1044 = vld [vmem:[%s997 + $0x170] sm:$0xff]
  %v1045 = vld [vmem:[%s997 + $0x178] sm:$0xff]
  %v1046 = vld [vmem:[%s997 + $0x180] sm:$0xff]
  %v1047 = vld [vmem:[%s997 + $0x188] sm:$0xff]
  %v1048 = vld [vmem:[%s997 + $0x190] sm:$0xff]
  %v1049 = vld [vmem:[%s997 + $0x198] sm:$0xff]
  %v1050 = vld [vmem:[%s997 + $0x1a0] sm:$0xff]
  %v1051 = vld [vmem:[%s997 + $0x1a8] sm:$0xff]
  %v1052 = vld [vmem:[%s997 + $0x1b0] sm:$0xff]
  %v1053 = vld [vmem:[%s997 + $0x1b8] sm:$0xff]
  %v1054 = vld [vmem:[%s997 + $0x1c0] sm:$0xff]
  %v1055 = vld [vmem:[%s997 + $0x1c8] sm:$0xff]
  %v1056 = vld [vmem:[%s997 + $0x1d0] sm:$0xff]
  %v1057 = vld [vmem:[%s997 + $0x1d8] sm:$0xff]
  %v1058 = vld [vmem:[%s997 + $0x1e0] sm:$0xff]
  %v1059 = vld [vmem:[%s997 + $0x1e8] sm:$0xff]
  %v1060 = vld [vmem:[%s997 + $0x1f0] sm:$0xff]
  %v1061 = vld [vmem:[%s997 + $0x1f8] sm:$0xff]
  %v1064 = vunpack.c.l.b16 %v995
  %v1065 = vunpack.c.h.b16 %v995
  %v1066 = vunpack.c.l.b16 %v996
  %v1067 = vunpack.c.h.b16 %v996
  %v1068 = vpack.c.b16 %v1066, %v1064
  %v1069 = vpack.c.b16 %v1067, %v1065
  %v1136 = vunpack.c.l.b16 %v998
  %v1137 = vunpack.c.h.b16 %v998
  %v1138 = vunpack.c.l.b16 %v999
  %v1139 = vunpack.c.h.b16 %v999
  %v1140 = vunpack.c.l.b16 %v1000
  %v1141 = vunpack.c.h.b16 %v1000
  %v1142 = vunpack.c.l.b16 %v1001
  %v1143 = vunpack.c.h.b16 %v1001
  %v1144 = vunpack.c.l.b16 %v1002
  %v1145 = vunpack.c.h.b16 %v1002
  %v1146 = vunpack.c.l.b16 %v1003
  %v1147 = vunpack.c.h.b16 %v1003
  %v1148 = vunpack.c.l.b16 %v1004
  %v1149 = vunpack.c.h.b16 %v1004
  %v1150 = vunpack.c.l.b16 %v1005
  %v1151 = vunpack.c.h.b16 %v1005
  %v1152 = vunpack.c.l.b16 %v1006
  %v1153 = vunpack.c.h.b16 %v1006
  %v1154 = vunpack.c.l.b16 %v1007
  %v1155 = vunpack.c.h.b16 %v1007
  %v1156 = vunpack.c.l.b16 %v1008
  %v1157 = vunpack.c.h.b16 %v1008
  %v1158 = vunpack.c.l.b16 %v1009
  %v1159 = vunpack.c.h.b16 %v1009
  %v1160 = vunpack.c.l.b16 %v1010
  %v1161 = vunpack.c.h.b16 %v1010
  %v1162 = vunpack.c.l.b16 %v1011
  %v1163 = vunpack.c.h.b16 %v1011
  %v1164 = vunpack.c.l.b16 %v1012
  %v1165 = vunpack.c.h.b16 %v1012
  %v1166 = vunpack.c.l.b16 %v1013
  %v1167 = vunpack.c.h.b16 %v1013
  %v1168 = vunpack.c.l.b16 %v1014
  %v1169 = vunpack.c.h.b16 %v1014
  %v1170 = vunpack.c.l.b16 %v1015
  %v1171 = vunpack.c.h.b16 %v1015
  %v1172 = vunpack.c.l.b16 %v1016
  %v1173 = vunpack.c.h.b16 %v1016
  %v1174 = vunpack.c.l.b16 %v1017
  %v1175 = vunpack.c.h.b16 %v1017
  %v1176 = vunpack.c.l.b16 %v1018
  %v1177 = vunpack.c.h.b16 %v1018
  %v1178 = vunpack.c.l.b16 %v1019
  %v1179 = vunpack.c.h.b16 %v1019
  %v1180 = vunpack.c.l.b16 %v1020
  %v1181 = vunpack.c.h.b16 %v1020
  %v1182 = vunpack.c.l.b16 %v1021
  %v1183 = vunpack.c.h.b16 %v1021
  %v1184 = vunpack.c.l.b16 %v1022
  %v1185 = vunpack.c.h.b16 %v1022
  %v1186 = vunpack.c.l.b16 %v1023
  %v1187 = vunpack.c.h.b16 %v1023
  %v1188 = vunpack.c.l.b16 %v1024
  %v1189 = vunpack.c.h.b16 %v1024
  %v1190 = vunpack.c.l.b16 %v1025
  %v1191 = vunpack.c.h.b16 %v1025
  %v1192 = vunpack.c.l.b16 %v1026
  %v1193 = vunpack.c.h.b16 %v1026
  %v1194 = vunpack.c.l.b16 %v1027
  %v1195 = vunpack.c.h.b16 %v1027
  %v1196 = vunpack.c.l.b16 %v1028
  %v1197 = vunpack.c.h.b16 %v1028
  %v1198 = vunpack.c.l.b16 %v1029
  %v1199 = vunpack.c.h.b16 %v1029
  %v1200 = vunpack.c.l.b16 %v1030
  %v1201 = vunpack.c.h.b16 %v1030
  %v1202 = vunpack.c.l.b16 %v1031
  %v1203 = vunpack.c.h.b16 %v1031
  %v1204 = vunpack.c.l.b16 %v1032
  %v1205 = vunpack.c.h.b16 %v1032
  %v1206 = vunpack.c.l.b16 %v1033
  %v1207 = vunpack.c.h.b16 %v1033
  %v1208 = vunpack.c.l.b16 %v1034
  %v1209 = vunpack.c.h.b16 %v1034
  %v1210 = vunpack.c.l.b16 %v1035
  %v1211 = vunpack.c.h.b16 %v1035
  %v1212 = vunpack.c.l.b16 %v1036
  %v1213 = vunpack.c.h.b16 %v1036
  %v1214 = vunpack.c.l.b16 %v1037
  %v1215 = vunpack.c.h.b16 %v1037
  %v1216 = vunpack.c.l.b16 %v1038
  %v1217 = vunpack.c.h.b16 %v1038
  %v1218 = vunpack.c.l.b16 %v1039
  %v1219 = vunpack.c.h.b16 %v1039
  %v1220 = vunpack.c.l.b16 %v1040
  %v1221 = vunpack.c.h.b16 %v1040
  %v1222 = vunpack.c.l.b16 %v1041
  %v1223 = vunpack.c.h.b16 %v1041
  %v1224 = vunpack.c.l.b16 %v1042
  %v1225 = vunpack.c.h.b16 %v1042
  %v1226 = vunpack.c.l.b16 %v1043
  %v1227 = vunpack.c.h.b16 %v1043
  %v1228 = vunpack.c.l.b16 %v1044
  %v1229 = vunpack.c.h.b16 %v1044
  %v1230 = vunpack.c.l.b16 %v1045
  %v1231 = vunpack.c.h.b16 %v1045
  %v1232 = vunpack.c.l.b16 %v1046
  %v1233 = vunpack.c.h.b16 %v1046
  %v1234 = vunpack.c.l.b16 %v1047
  %v1235 = vunpack.c.h.b16 %v1047
  %v1236 = vunpack.c.l.b16 %v1048
  %v1237 = vunpack.c.h.b16 %v1048
  %v1238 = vunpack.c.l.b16 %v1049
  %v1239 = vunpack.c.h.b16 %v1049
  %v1240 = vunpack.c.l.b16 %v1050
  %v1241 = vunpack.c.h.b16 %v1050
  %v1242 = vunpack.c.l.b16 %v1051
  %v1243 = vunpack.c.h.b16 %v1051
  %v1244 = vunpack.c.l.b16 %v1052
  %v1245 = vunpack.c.h.b16 %v1052
  %v1246 = vunpack.c.l.b16 %v1053
  %v1247 = vunpack.c.h.b16 %v1053
  %v1248 = vunpack.c.l.b16 %v1054
  %v1249 = vunpack.c.h.b16 %v1054
  %v1250 = vunpack.c.l.b16 %v1055
  %v1251 = vunpack.c.h.b16 %v1055
  %v1252 = vunpack.c.l.b16 %v1056
  %v1253 = vunpack.c.h.b16 %v1056
  %v1254 = vunpack.c.l.b16 %v1057
  %v1255 = vunpack.c.h.b16 %v1057
  %v1256 = vunpack.c.l.b16 %v1058
  %v1257 = vunpack.c.h.b16 %v1058
  %v1258 = vunpack.c.l.b16 %v1059
  %v1259 = vunpack.c.h.b16 %v1059
  %v1260 = vunpack.c.l.b16 %v1060
  %v1261 = vunpack.c.h.b16 %v1060
  %v1262 = vunpack.c.l.b16 %v1061
  %v1263 = vunpack.c.h.b16 %v1061
  %v1264 = vpack.c.b16 %v1140, %v1136
  %v1265 = vpack.c.b16 %v1141, %v1137
  %v1266 = vpack.c.b16 %v1142, %v1138
  %v1267 = vpack.c.b16 %v1143, %v1139
  %v1268 = vpack.c.b16 %v1148, %v1144
  %v1269 = vpack.c.b16 %v1149, %v1145
  %v1270 = vpack.c.b16 %v1150, %v1146
  %v1271 = vpack.c.b16 %v1151, %v1147
  %v1272 = vpack.c.b16 %v1156, %v1152
  %v1273 = vpack.c.b16 %v1157, %v1153
  %v1274 = vpack.c.b16 %v1158, %v1154
  %v1275 = vpack.c.b16 %v1159, %v1155
  %v1276 = vpack.c.b16 %v1164, %v1160
  %v1277 = vpack.c.b16 %v1165, %v1161
  %v1278 = vpack.c.b16 %v1166, %v1162
  %v1279 = vpack.c.b16 %v1167, %v1163
  %v1280 = vpack.c.b16 %v1172, %v1168
  %v1281 = vpack.c.b16 %v1173, %v1169
  %v1282 = vpack.c.b16 %v1174, %v1170
  %v1283 = vpack.c.b16 %v1175, %v1171
  %v1284 = vpack.c.b16 %v1180, %v1176
  %v1285 = vpack.c.b16 %v1181, %v1177
  %v1286 = vpack.c.b16 %v1182, %v1178
  %v1287 = vpack.c.b16 %v1183, %v1179
  %v1288 = vpack.c.b16 %v1188, %v1184
  %v1289 = vpack.c.b16 %v1189, %v1185
  %v1290 = vpack.c.b16 %v1190, %v1186
  %v1291 = vpack.c.b16 %v1191, %v1187
  %v1292 = vpack.c.b16 %v1196, %v1192
  %v1293 = vpack.c.b16 %v1197, %v1193
  %v1294 = vpack.c.b16 %v1198, %v1194
  %v1295 = vpack.c.b16 %v1199, %v1195
  %v1296 = vpack.c.b16 %v1204, %v1200
  %v1297 = vpack.c.b16 %v1205, %v1201
  %v1298 = vpack.c.b16 %v1206, %v1202
  %v1299 = vpack.c.b16 %v1207, %v1203
  %v1300 = vpack.c.b16 %v1212, %v1208
  %v1301 = vpack.c.b16 %v1213, %v1209
  %v1302 = vpack.c.b16 %v1214, %v1210
  %v1303 = vpack.c.b16 %v1215, %v1211
  %v1304 = vpack.c.b16 %v1220, %v1216
  %v1305 = vpack.c.b16 %v1221, %v1217
  %v1306 = vpack.c.b16 %v1222, %v1218
  %v1307 = vpack.c.b16 %v1223, %v1219
  %v1308 = vpack.c.b16 %v1228, %v1224
  %v1309 = vpack.c.b16 %v1229, %v1225
  %v1310 = vpack.c.b16 %v1230, %v1226
  %v1311 = vpack.c.b16 %v1231, %v1227
  %v1312 = vpack.c.b16 %v1236, %v1232
  %v1313 = vpack.c.b16 %v1237, %v1233
  %v1314 = vpack.c.b16 %v1238, %v1234
  %v1315 = vpack.c.b16 %v1239, %v1235
  %v1316 = vpack.c.b16 %v1244, %v1240
  %v1317 = vpack.c.b16 %v1245, %v1241
  %v1318 = vpack.c.b16 %v1246, %v1242
  %v1319 = vpack.c.b16 %v1247, %v1243
  %v1320 = vpack.c.b16 %v1252, %v1248
  %v1321 = vpack.c.b16 %v1253, %v1249
  %v1322 = vpack.c.b16 %v1254, %v1250
  %v1323 = vpack.c.b16 %v1255, %v1251
  %v1324 = vpack.c.b16 %v1260, %v1256
  %v1325 = vpack.c.b16 %v1261, %v1257
  %v1326 = vpack.c.b16 %v1262, %v1258
  %v1327 = vpack.c.b16 %v1263, %v1259
  %1392 = vmatprep.subr.bf16.mxu0 %v1265
  %1393 = vmatpush1.bf16.msra.mxu0 %v1264
  %1394 = vmatprep.subr.bf16.mxu0 %v1269
  %1395 = vmatpush1.bf16.msra.mxu0 %v1268
  %1396 = vmatprep.subr.bf16.mxu0 %v1273
  %1397 = vmatpush1.bf16.msra.mxu0 %v1272
  %1398 = vmatprep.subr.bf16.mxu0 %v1277
  %1399 = vmatpush1.bf16.msra.mxu0 %v1276
  %1400 = vmatprep.subr.bf16.mxu0 %v1281
  %1401 = vmatpush1.bf16.msra.mxu0 %v1280
  %1402 = vmatprep.subr.bf16.mxu0 %v1285
  %1403 = vmatpush1.bf16.msra.mxu0 %v1284
  %1404 = vmatprep.subr.bf16.mxu0 %v1289
  %1405 = vmatpush1.bf16.msra.mxu0 %v1288
  %1406 = vmatprep.subr.bf16.mxu0 %v1293
  %1407 = vmatpush1.bf16.msra.mxu0 %v1292
  %1408 = vmatprep.subr.bf16.mxu0 %v1297
  %1409 = vmatpush1.bf16.msra.mxu0 %v1296
  %1410 = vmatprep.subr.bf16.mxu0 %v1301
  %1411 = vmatpush1.bf16.msra.mxu0 %v1300
  %1412 = vmatprep.subr.bf16.mxu0 %v1305
  %1413 = vmatpush1.bf16.msra.mxu0 %v1304
  %1414 = vmatprep.subr.bf16.mxu0 %v1309
  %1415 = vmatpush1.bf16.msra.mxu0 %v1308
  %1416 = vmatprep.subr.bf16.mxu0 %v1313
  %1417 = vmatpush1.bf16.msra.mxu0 %v1312
  %1418 = vmatprep.subr.bf16.mxu0 %v1317
  %1419 = vmatpush1.bf16.msra.mxu0 %v1316
  %1420 = vmatprep.subr.bf16.mxu0 %v1321
  %1421 = vmatpush1.bf16.msra.mxu0 %v1320
  %1422 = vmatprep.subr.bf16.mxu0 %v1325
  %1423 = vmatpush1.bf16.msra.mxu0 %v1324
  %1424 = vmatprep.mubr.bf16.mxu0 %v1069
  %1425 = vmatmul.mubr.bf16.gmra.mrb[0].mxu0 %v1068
  %v1426 = vpop.f32.mrb[0].mxu0
  %v1427 = vadd.f32 0.0, %v1426
  %v1428 = vpop.f32.mrb[0].mxu0
  %v1429 = vadd.f32 0.0, %v1428
  %v1430 = vpop.f32.mrb[0].mxu0
  %v1431 = vadd.f32 0.0, %v1430
  %v1432 = vpop.f32.mrb[0].mxu0
  %v1433 = vadd.f32 0.0, %v1432
  %1434 = vdwg.mxu0
  %1435 = vmatprep.subr.bf16.mxu0 %v1267
  %1436 = vmatpush1.bf16.msra.mxu0 %v1266
  %1437 = vmatprep.subr.bf16.mxu0 %v1271
  %1438 = vmatpush1.bf16.msra.mxu0 %v1270
  %1439 = vmatprep.subr.bf16.mxu0 %v1275
  %1440 = vmatpush1.bf16.msra.mxu0 %v1274
  %1441 = vmatprep.subr.bf16.mxu0 %v1279
  %1442 = vmatpush1.bf16.msra.mxu0 %v1278
  %1443 = vmatprep.subr.bf16.mxu0 %v1283
  %1444 = vmatpush1.bf16.msra.mxu0 %v1282
  %1445 = vmatprep.subr.bf16.mxu0 %v1287
  %1446 = vmatpush1.bf16.msra.mxu0 %v1286
  %1447 = vmatprep.subr.bf16.mxu0 %v1291
  %1448 = vmatpush1.bf16.msra.mxu0 %v1290
  %1449 = vmatprep.subr.bf16.mxu0 %v1295
  %1450 = vmatpush1.bf16.msra.mxu0 %v1294
  %1451 = vmatprep.subr.bf16.mxu0 %v1299
  %1452 = vmatpush1.bf16.msra.mxu0 %v1298
  %1453 = vmatprep.subr.bf16.mxu0 %v1303
  %1454 = vmatpush1.bf16.msra.mxu0 %v1302
  %1455 = vmatprep.subr.bf16.mxu0 %v1307
  %1456 = vmatpush1.bf16.msra.mxu0 %v1306
  %1457 = vmatprep.subr.bf16.mxu0 %v1311
  %1458 = vmatpush1.bf16.msra.mxu0 %v1310
  %1459 = vmatprep.subr.bf16.mxu0 %v1315
  %1460 = vmatpush1.bf16.msra.mxu0 %v1314
  %1461 = vmatprep.subr.bf16.mxu0 %v1319
  %1462 = vmatpush1.bf16.msra.mxu0 %v1318
  %1463 = vmatprep.subr.bf16.mxu0 %v1323
  %1464 = vmatpush1.bf16.msra.mxu0 %v1322
  %1465 = vmatprep.subr.bf16.mxu0 %v1327
  %1466 = vmatpush1.bf16.msra.mxu0 %v1326
  %1467 = vmatprep.mubr.bf16.mxu0 %v1069
  %1468 = vmatmul.mubr.bf16.gmra.mrb[0].mxu0 %v1068
  %v1469 = vpop.f32.mrb[0].mxu0
  %v1470 = vadd.f32 0.0, %v1469
  %v1471 = vpop.f32.mrb[0].mxu0
  %v1472 = vadd.f32 0.0, %v1471
  %v1473 = vpop.f32.mrb[0].mxu0
  %v1474 = vadd.f32 0.0, %v1473
  %v1475 = vpop.f32.mrb[0].mxu0
  %v1476 = vadd.f32 0.0, %v1475
  %1477 = vdwg.mxu0
  %v1478 = vadd.f32 %v944, %v1427
  %v1479 = vadd.f32 %v946, %v1429
  %v1480 = vadd.f32 %v987, %v1470
  %v1481 = vadd.f32 %v989, %v1472
  %v1482 = vadd.f32 %v948, %v1431
  %v1483 = vadd.f32 %v950, %v1433
  %v1484 = vadd.f32 %v991, %v1474
  %v1485 = vadd.f32 %v993, %v1476
  %v1486 = vld [vmem:[%s3] sm:$0xff]
  %v1487 = vld [vmem:[%s3 + $0x8] sm:$0x33]
  %s1488 = scalar_lea.vmem %s6, 1536
  %v1489 = vld [vmem:[%s1488] sm:$0xff]
  %v1490 = vld [vmem:[%s1488 + $0x8] sm:$0xff]
  %v1491 = vld [vmem:[%s1488 + $0x10] sm:$0xff]
  %v1492 = vld [vmem:[%s1488 + $0x18] sm:$0xff]
  %v1493 = vld [vmem:[%s1488 + $0x20] sm:$0xff]
  %v1494 = vld [vmem:[%s1488 + $0x28] sm:$0xff]
  %v1495 = vld [vmem:[%s1488 + $0x30] sm:$0xff]
  %v1496 = vld [vmem:[%s1488 + $0x38] sm:$0xff]
  %v1497 = vld [vmem:[%s1488 + $0x40] sm:$0xff]
  %v1498 = vld [vmem:[%s1488 + $0x48] sm:$0xff]
  %v1499 = vld [vmem:[%s1488 + $0x50] sm:$0xff]
  %v1500 = vld [vmem:[%s1488 + $0x58] sm:$0xff]
  %v1501 = vld [vmem:[%s1488 + $0x60] sm:$0xff]
  %v1502 = vld [vmem:[%s1488 + $0x68] sm:$0xff]
  %v1503 = vld [vmem:[%s1488 + $0x70] sm:$0xff]
  %v1504 = vld [vmem:[%s1488 + $0x78] sm:$0xff]
  %v1505 = vld [vmem:[%s1488 + $0x80] sm:$0xff]
  %v1506 = vld [vmem:[%s1488 + $0x88] sm:$0xff]
  %v1507 = vld [vmem:[%s1488 + $0x90] sm:$0xff]
  %v1508 = vld [vmem:[%s1488 + $0x98] sm:$0xff]
  %v1509 = vld [vmem:[%s1488 + $0xa0] sm:$0xff]
  %v1510 = vld [vmem:[%s1488 + $0xa8] sm:$0xff]
  %v1511 = vld [vmem:[%s1488 + $0xb0] sm:$0xff]
  %v1512 = vld [vmem:[%s1488 + $0xb8] sm:$0xff]
  %v1513 = vld [vmem:[%s1488 + $0xc0] sm:$0xff]
  %v1514 = vld [vmem:[%s1488 + $0xc8] sm:$0xff]
  %v1515 = vld [vmem:[%s1488 + $0xd0] sm:$0xff]
  %v1516 = vld [vmem:[%s1488 + $0xd8] sm:$0xff]
  %v1517 = vld [vmem:[%s1488 + $0xe0] sm:$0xff]
  %v1518 = vld [vmem:[%s1488 + $0xe8] sm:$0xff]
  %v1519 = vld [vmem:[%s1488 + $0xf0] sm:$0xff]
  %v1520 = vld [vmem:[%s1488 + $0xf8] sm:$0xff]
  %v1521 = vld [vmem:[%s1488 + $0x100] sm:$0xff]
  %v1522 = vld [vmem:[%s1488 + $0x108] sm:$0xff]
  %v1523 = vld [vmem:[%s1488 + $0x110] sm:$0xff]
  %v1524 = vld [vmem:[%s1488 + $0x118] sm:$0xff]
  %v1525 = vld [vmem:[%s1488 + $0x120] sm:$0xff]
  %v1526 = vld [vmem:[%s1488 + $0x128] sm:$0xff]
  %v1527 = vld [vmem:[%s1488 + $0x130] sm:$0xff]
  %v1528 = vld [vmem:[%s1488 + $0x138] sm:$0xff]
  %v1529 = vld [vmem:[%s1488 + $0x140] sm:$0xff]
  %v1530 = vld [vmem:[%s1488 + $0x148] sm:$0xff]
  %v1531 = vld [vmem:[%s1488 + $0x150] sm:$0xff]
  %v1532 = vld [vmem:[%s1488 + $0x158] sm:$0xff]
  %v1533 = vld [vmem:[%s1488 + $0x160] sm:$0xff]
  %v1534 = vld [vmem:[%s1488 + $0x168] sm:$0xff]
  %v1535 = vld [vmem:[%s1488 + $0x170] sm:$0xff]
  %v1536 = vld [vmem:[%s1488 + $0x178] sm:$0xff]
  %v1537 = vld [vmem:[%s1488 + $0x180] sm:$0xff]
  %v1538 = vld [vmem:[%s1488 + $0x188] sm:$0xff]
  %v1539 = vld [vmem:[%s1488 + $0x190] sm:$0xff]
  %v1540 = vld [vmem:[%s1488 + $0x198] sm:$0xff]
  %v1541 = vld [vmem:[%s1488 + $0x1a0] sm:$0xff]
  %v1542 = vld [vmem:[%s1488 + $0x1a8] sm:$0xff]
  %v1543 = vld [vmem:[%s1488 + $0x1b0] sm:$0xff]
  %v1544 = vld [vmem:[%s1488 + $0x1b8] sm:$0xff]
  %v1545 = vld [vmem:[%s1488 + $0x1c0] sm:$0xff]
  %v1546 = vld [vmem:[%s1488 + $0x1c8] sm:$0xff]
  %v1547 = vld [vmem:[%s1488 + $0x1d0] sm:$0xff]
  %v1548 = vld [vmem:[%s1488 + $0x1d8] sm:$0xff]
  %v1549 = vld [vmem:[%s1488 + $0x1e0] sm:$0xff]
  %v1550 = vld [vmem:[%s1488 + $0x1e8] sm:$0xff]
  %v1551 = vld [vmem:[%s1488 + $0x1f0] sm:$0xff]
  %v1552 = vld [vmem:[%s1488 + $0x1f8] sm:$0xff]
  %v1555 = vunpack.c.l.b16 %v1486
  %v1556 = vunpack.c.h.b16 %v1486
  %v1557 = vunpack.c.l.b16 %v1487
  %v1558 = vunpack.c.h.b16 %v1487
  %v1559 = vpack.c.b16 %v1557, %v1555
  %v1560 = vpack.c.b16 %v1558, %v1556
  %v1627 = vunpack.c.l.b16 %v1489
  %v1628 = vunpack.c.h.b16 %v1489
  %v1629 = vunpack.c.l.b16 %v1490
  %v1630 = vunpack.c.h.b16 %v1490
  %v1631 = vunpack.c.l.b16 %v1491
  %v1632 = vunpack.c.h.b16 %v1491
  %v1633 = vunpack.c.l.b16 %v1492
  %v1634 = vunpack.c.h.b16 %v1492
  %v1635 = vunpack.c.l.b16 %v1493
  %v1636 = vunpack.c.h.b16 %v1493
  %v1637 = vunpack.c.l.b16 %v1494
  %v1638 = vunpack.c.h.b16 %v1494
  %v1639 = vunpack.c.l.b16 %v1495
  %v1640 = vunpack.c.h.b16 %v1495
  %v1641 = vunpack.c.l.b16 %v1496
  %v1642 = vunpack.c.h.b16 %v1496
  %v1643 = vunpack.c.l.b16 %v1497
  %v1644 = vunpack.c.h.b16 %v1497
  %v1645 = vunpack.c.l.b16 %v1498
  %v1646 = vunpack.c.h.b16 %v1498
  %v1647 = vunpack.c.l.b16 %v1499
  %v1648 = vunpack.c.h.b16 %v1499
  %v1649 = vunpack.c.l.b16 %v1500
  %v1650 = vunpack.c.h.b16 %v1500
  %v1651 = vunpack.c.l.b16 %v1501
  %v1652 = vunpack.c.h.b16 %v1501
  %v1653 = vunpack.c.l.b16 %v1502
  %v1654 = vunpack.c.h.b16 %v1502
  %v1655 = vunpack.c.l.b16 %v1503
  %v1656 = vunpack.c.h.b16 %v1503
  %v1657 = vunpack.c.l.b16 %v1504
  %v1658 = vunpack.c.h.b16 %v1504
  %v1659 = vunpack.c.l.b16 %v1505
  %v1660 = vunpack.c.h.b16 %v1505
  %v1661 = vunpack.c.l.b16 %v1506
  %v1662 = vunpack.c.h.b16 %v1506
  %v1663 = vunpack.c.l.b16 %v1507
  %v1664 = vunpack.c.h.b16 %v1507
  %v1665 = vunpack.c.l.b16 %v1508
  %v1666 = vunpack.c.h.b16 %v1508
  %v1667 = vunpack.c.l.b16 %v1509
  %v1668 = vunpack.c.h.b16 %v1509
  %v1669 = vunpack.c.l.b16 %v1510
  %v1670 = vunpack.c.h.b16 %v1510
  %v1671 = vunpack.c.l.b16 %v1511
  %v1672 = vunpack.c.h.b16 %v1511
  %v1673 = vunpack.c.l.b16 %v1512
  %v1674 = vunpack.c.h.b16 %v1512
  %v1675 = vunpack.c.l.b16 %v1513
  %v1676 = vunpack.c.h.b16 %v1513
  %v1677 = vunpack.c.l.b16 %v1514
  %v1678 = vunpack.c.h.b16 %v1514
  %v1679 = vunpack.c.l.b16 %v1515
  %v1680 = vunpack.c.h.b16 %v1515
  %v1681 = vunpack.c.l.b16 %v1516
  %v1682 = vunpack.c.h.b16 %v1516
  %v1683 = vunpack.c.l.b16 %v1517
  %v1684 = vunpack.c.h.b16 %v1517
  %v1685 = vunpack.c.l.b16 %v1518
  %v1686 = vunpack.c.h.b16 %v1518
  %v1687 = vunpack.c.l.b16 %v1519
  %v1688 = vunpack.c.h.b16 %v1519
  %v1689 = vunpack.c.l.b16 %v1520
  %v1690 = vunpack.c.h.b16 %v1520
  %v1691 = vunpack.c.l.b16 %v1521
  %v1692 = vunpack.c.h.b16 %v1521
  %v1693 = vunpack.c.l.b16 %v1522
  %v1694 = vunpack.c.h.b16 %v1522
  %v1695 = vunpack.c.l.b16 %v1523
  %v1696 = vunpack.c.h.b16 %v1523
  %v1697 = vunpack.c.l.b16 %v1524
  %v1698 = vunpack.c.h.b16 %v1524
  %v1699 = vunpack.c.l.b16 %v1525
  %v1700 = vunpack.c.h.b16 %v1525
  %v1701 = vunpack.c.l.b16 %v1526
  %v1702 = vunpack.c.h.b16 %v1526
  %v1703 = vunpack.c.l.b16 %v1527
  %v1704 = vunpack.c.h.b16 %v1527
  %v1705 = vunpack.c.l.b16 %v1528
  %v1706 = vunpack.c.h.b16 %v1528
  %v1707 = vunpack.c.l.b16 %v1529
  %v1708 = vunpack.c.h.b16 %v1529
  %v1709 = vunpack.c.l.b16 %v1530
  %v1710 = vunpack.c.h.b16 %v1530
  %v1711 = vunpack.c.l.b16 %v1531
  %v1712 = vunpack.c.h.b16 %v1531
  %v1713 = vunpack.c.l.b16 %v1532
  %v1714 = vunpack.c.h.b16 %v1532
  %v1715 = vunpack.c.l.b16 %v1533
  %v1716 = vunpack.c.h.b16 %v1533
  %v1717 = vunpack.c.l.b16 %v1534
  %v1718 = vunpack.c.h.b16 %v1534
  %v1719 = vunpack.c.l.b16 %v1535
  %v1720 = vunpack.c.h.b16 %v1535
  %v1721 = vunpack.c.l.b16 %v1536
  %v1722 = vunpack.c.h.b16 %v1536
  %v1723 = vunpack.c.l.b16 %v1537
  %v1724 = vunpack.c.h.b16 %v1537
  %v1725 = vunpack.c.l.b16 %v1538
  %v1726 = vunpack.c.h.b16 %v1538
  %v1727 = vunpack.c.l.b16 %v1539
  %v1728 = vunpack.c.h.b16 %v1539
  %v1729 = vunpack.c.l.b16 %v1540
  %v1730 = vunpack.c.h.b16 %v1540
  %v1731 = vunpack.c.l.b16 %v1541
  %v1732 = vunpack.c.h.b16 %v1541
  %v1733 = vunpack.c.l.b16 %v1542
  %v1734 = vunpack.c.h.b16 %v1542
  %v1735 = vunpack.c.l.b16 %v1543
  %v1736 = vunpack.c.h.b16 %v1543
  %v1737 = vunpack.c.l.b16 %v1544
  %v1738 = vunpack.c.h.b16 %v1544
  %v1739 = vunpack.c.l.b16 %v1545
  %v1740 = vunpack.c.h.b16 %v1545
  %v1741 = vunpack.c.l.b16 %v1546
  %v1742 = vunpack.c.h.b16 %v1546
  %v1743 = vunpack.c.l.b16 %v1547
  %v1744 = vunpack.c.h.b16 %v1547
  %v1745 = vunpack.c.l.b16 %v1548
  %v1746 = vunpack.c.h.b16 %v1548
  %v1747 = vunpack.c.l.b16 %v1549
  %v1748 = vunpack.c.h.b16 %v1549
  %v1749 = vunpack.c.l.b16 %v1550
  %v1750 = vunpack.c.h.b16 %v1550
  %v1751 = vunpack.c.l.b16 %v1551
  %v1752 = vunpack.c.h.b16 %v1551
  %v1753 = vunpack.c.l.b16 %v1552
  %v1754 = vunpack.c.h.b16 %v1552
  %v1755 = vpack.c.b16 %v1631, %v1627
  %v1756 = vpack.c.b16 %v1632, %v1628
  %v1757 = vpack.c.b16 %v1633, %v1629
  %v1758 = vpack.c.b16 %v1634, %v1630
  %v1759 = vpack.c.b16 %v1639, %v1635
  %v1760 = vpack.c.b16 %v1640, %v1636
  %v1761 = vpack.c.b16 %v1641, %v1637
  %v1762 = vpack.c.b16 %v1642, %v1638
  %v1763 = vpack.c.b16 %v1647, %v1643
  %v1764 = vpack.c.b16 %v1648, %v1644
  %v1765 = vpack.c.b16 %v1649, %v1645
  %v1766 = vpack.c.b16 %v1650, %v1646
  %v1767 = vpack.c.b16 %v1655, %v1651
  %v1768 = vpack.c.b16 %v1656, %v1652
  %v1769 = vpack.c.b16 %v1657, %v1653
  %v1770 = vpack.c.b16 %v1658, %v1654
  %v1771 = vpack.c.b16 %v1663, %v1659
  %v1772 = vpack.c.b16 %v1664, %v1660
  %v1773 = vpack.c.b16 %v1665, %v1661
  %v1774 = vpack.c.b16 %v1666, %v1662
  %v1775 = vpack.c.b16 %v1671, %v1667
  %v1776 = vpack.c.b16 %v1672, %v1668
  %v1777 = vpack.c.b16 %v1673, %v1669
  %v1778 = vpack.c.b16 %v1674, %v1670
  %v1779 = vpack.c.b16 %v1679, %v1675
  %v1780 = vpack.c.b16 %v1680, %v1676
  %v1781 = vpack.c.b16 %v1681, %v1677
  %v1782 = vpack.c.b16 %v1682, %v1678
  %v1783 = vpack.c.b16 %v1687, %v1683
  %v1784 = vpack.c.b16 %v1688, %v1684
  %v1785 = vpack.c.b16 %v1689, %v1685
  %v1786 = vpack.c.b16 %v1690, %v1686
  %v1787 = vpack.c.b16 %v1695, %v1691
  %v1788 = vpack.c.b16 %v1696, %v1692
  %v1789 = vpack.c.b16 %v1697, %v1693
  %v1790 = vpack.c.b16 %v1698, %v1694
  %v1791 = vpack.c.b16 %v1703, %v1699
  %v1792 = vpack.c.b16 %v1704, %v1700
  %v1793 = vpack.c.b16 %v1705, %v1701
  %v1794 = vpack.c.b16 %v1706, %v1702
  %v1795 = vpack.c.b16 %v1711, %v1707
  %v1796 = vpack.c.b16 %v1712, %v1708
  %v1797 = vpack.c.b16 %v1713, %v1709
  %v1798 = vpack.c.b16 %v1714, %v1710
  %v1799 = vpack.c.b16 %v1719, %v1715
  %v1800 = vpack.c.b16 %v1720, %v1716
  %v1801 = vpack.c.b16 %v1721, %v1717
  %v1802 = vpack.c.b16 %v1722, %v1718
  %v1803 = vpack.c.b16 %v1727, %v1723
  %v1804 = vpack.c.b16 %v1728, %v1724
  %v1805 = vpack.c.b16 %v1729, %v1725
  %v1806 = vpack.c.b16 %v1730, %v1726
  %v1807 = vpack.c.b16 %v1735, %v1731
  %v1808 = vpack.c.b16 %v1736, %v1732
  %v1809 = vpack.c.b16 %v1737, %v1733
  %v1810 = vpack.c.b16 %v1738, %v1734
  %v1811 = vpack.c.b16 %v1743, %v1739
  %v1812 = vpack.c.b16 %v1744, %v1740
  %v1813 = vpack.c.b16 %v1745, %v1741
  %v1814 = vpack.c.b16 %v1746, %v1742
  %v1815 = vpack.c.b16 %v1751, %v1747
  %v1816 = vpack.c.b16 %v1752, %v1748
  %v1817 = vpack.c.b16 %v1753, %v1749
  %v1818 = vpack.c.b16 %v1754, %v1750
  %1883 = vmatprep.subr.bf16.mxu0 %v1756
  %1884 = vmatpush1.bf16.msra.mxu0 %v1755
  %1885 = vmatprep.subr.bf16.mxu0 %v1760
  %1886 = vmatpush1.bf16.msra.mxu0 %v1759
  %1887 = vmatprep.subr.bf16.mxu0 %v1764
  %1888 = vmatpush1.bf16.msra.mxu0 %v1763
  %1889 = vmatprep.subr.bf16.mxu0 %v1768
  %1890 = vmatpush1.bf16.msra.mxu0 %v1767
  %1891 = vmatprep.subr.bf16.mxu0 %v1772
  %1892 = vmatpush1.bf16.msra.mxu0 %v1771
  %1893 = vmatprep.subr.bf16.mxu0 %v1776
  %1894 = vmatpush1.bf16.msra.mxu0 %v1775
  %1895 = vmatprep.subr.bf16.mxu0 %v1780
  %1896 = vmatpush1.bf16.msra.mxu0 %v1779
  %1897 = vmatprep.subr.bf16.mxu0 %v1784
  %1898 = vmatpush1.bf16.msra.mxu0 %v1783
  %1899 = vmatprep.subr.bf16.mxu0 %v1788
  %1900 = vmatpush1.bf16.msra.mxu0 %v1787
  %1901 = vmatprep.subr.bf16.mxu0 %v1792
  %1902 = vmatpush1.bf16.msra.mxu0 %v1791
  %1903 = vmatprep.subr.bf16.mxu0 %v1796
  %1904 = vmatpush1.bf16.msra.mxu0 %v1795
  %1905 = vmatprep.subr.bf16.mxu0 %v1800
  %1906 = vmatpush1.bf16.msra.mxu0 %v1799
  %1907 = vmatprep.subr.bf16.mxu0 %v1804
  %1908 = vmatpush1.bf16.msra.mxu0 %v1803
  %1909 = vmatprep.subr.bf16.mxu0 %v1808
  %1910 = vmatpush1.bf16.msra.mxu0 %v1807
  %1911 = vmatprep.subr.bf16.mxu0 %v1812
  %1912 = vmatpush1.bf16.msra.mxu0 %v1811
  %1913 = vmatprep.subr.bf16.mxu0 %v1816
  %1914 = vmatpush1.bf16.msra.mxu0 %v1815
  %1915 = vmatprep.mubr.bf16.mxu0 %v1560
  %1916 = vmatmul.mubr.bf16.gmra.mrb[0].mxu0 %v1559
  %v1917 = vpop.f32.mrb[0].mxu0
  %v1918 = vadd.f32 0.0, %v1917
  %v1919 = vpop.f32.mrb[0].mxu0
  %v1920 = vadd.f32 0.0, %v1919
  %v1921 = vpop.f32.mrb[0].mxu0
  %v1922 = vadd.f32 0.0, %v1921
  %v1923 = vpop.f32.mrb[0].mxu0
  %v1924 = vadd.f32 0.0, %v1923
  %1925 = vdwg.mxu0
  %1926 = vmatprep.subr.bf16.mxu0 %v1758
  %1927 = vmatpush1.bf16.msra.mxu0 %v1757
  %1928 = vmatprep.subr.bf16.mxu0 %v1762
  %1929 = vmatpush1.bf16.msra.mxu0 %v1761
  %1930 = vmatprep.subr.bf16.mxu0 %v1766
  %1931 = vmatpush1.bf16.msra.mxu0 %v1765
  %1932 = vmatprep.subr.bf16.mxu0 %v1770
  %1933 = vmatpush1.bf16.msra.mxu0 %v1769
  %1934 = vmatprep.subr.bf16.mxu0 %v1774
  %1935 = vmatpush1.bf16.msra.mxu0 %v1773
  %1936 = vmatprep.subr.bf16.mxu0 %v1778
  %1937 = vmatpush1.bf16.msra.mxu0 %v1777
  %1938 = vmatprep.subr.bf16.mxu0 %v1782
  %1939 = vmatpush1.bf16.msra.mxu0 %v1781
  %1940 = vmatprep.subr.bf16.mxu0 %v1786
  %1941 = vmatpush1.bf16.msra.mxu0 %v1785
  %1942 = vmatprep.subr.bf16.mxu0 %v1790
  %1943 = vmatpush1.bf16.msra.mxu0 %v1789
  %1944 = vmatprep.subr.bf16.mxu0 %v1794
  %1945 = vmatpush1.bf16.msra.mxu0 %v1793
  %1946 = vmatprep.subr.bf16.mxu0 %v1798
  %1947 = vmatpush1.bf16.msra.mxu0 %v1797
  %1948 = vmatprep.subr.bf16.mxu0 %v1802
  %1949 = vmatpush1.bf16.msra.mxu0 %v1801
  %1950 = vmatprep.subr.bf16.mxu0 %v1806
  %1951 = vmatpush1.bf16.msra.mxu0 %v1805
  %1952 = vmatprep.subr.bf16.mxu0 %v1810
  %1953 = vmatpush1.bf16.msra.mxu0 %v1809
  %1954 = vmatprep.subr.bf16.mxu0 %v1814
  %1955 = vmatpush1.bf16.msra.mxu0 %v1813
  %1956 = vmatprep.subr.bf16.mxu0 %v1818
  %1957 = vmatpush1.bf16.msra.mxu0 %v1817
  %1958 = vmatprep.mubr.bf16.mxu0 %v1560
  %1959 = vmatmul.mubr.bf16.gmra.mrb[0].mxu0 %v1559
  %v1960 = vpop.f32.mrb[0].mxu0
  %v1961 = vadd.f32 0.0, %v1960
  %v1962 = vpop.f32.mrb[0].mxu0
  %v1963 = vadd.f32 0.0, %v1962
  %v1964 = vpop.f32.mrb[0].mxu0
  %v1965 = vadd.f32 0.0, %v1964
  %v1966 = vpop.f32.mrb[0].mxu0
  %v1967 = vadd.f32 0.0, %v1966
  %1968 = vdwg.mxu0
  %v1969 = vadd.f32 %v1478, %v1918
  %v1970 = vadd.f32 %v1479, %v1920
  %v1971 = vadd.f32 %v1480, %v1961
  %v1972 = vadd.f32 %v1481, %v1963
  %v1973 = vadd.f32 %v1482, %v1922
  %v1974 = vadd.f32 %v1483, %v1924
  %v1975 = vadd.f32 %v1484, %v1965
  %v1976 = vadd.f32 %v1485, %v1967
  %v1977 = vld [vmem:[%s5] sm:$0xff]
  %v1978 = vld [vmem:[%s5 + $0x8] sm:$0x33]
  %s1979 = scalar_lea.vmem %s6, 2048
  %v1980 = vld [vmem:[%s1979] sm:$0xff]
  %v1981 = vld [vmem:[%s1979 + $0x8] sm:$0xff]
  %v1982 = vld [vmem:[%s1979 + $0x10] sm:$0xff]
  %v1983 = vld [vmem:[%s1979 + $0x18] sm:$0xff]
  %v1984 = vld [vmem:[%s1979 + $0x20] sm:$0xff]
  %v1985 = vld [vmem:[%s1979 + $0x28] sm:$0xff]
  %v1986 = vld [vmem:[%s1979 + $0x30] sm:$0xff]
  %v1987 = vld [vmem:[%s1979 + $0x38] sm:$0xff]
  %v1988 = vld [vmem:[%s1979 + $0x40] sm:$0xff]
  %v1989 = vld [vmem:[%s1979 + $0x48] sm:$0xff]
  %v1990 = vld [vmem:[%s1979 + $0x50] sm:$0xff]
  %v1991 = vld [vmem:[%s1979 + $0x58] sm:$0xff]
  %v1992 = vld [vmem:[%s1979 + $0x60] sm:$0xff]
  %v1993 = vld [vmem:[%s1979 + $0x68] sm:$0xff]
  %v1994 = vld [vmem:[%s1979 + $0x70] sm:$0xff]
  %v1995 = vld [vmem:[%s1979 + $0x78] sm:$0xff]
  %v1996 = vld [vmem:[%s1979 + $0x80] sm:$0xff]
  %v1997 = vld [vmem:[%s1979 + $0x88] sm:$0xff]
  %v1998 = vld [vmem:[%s1979 + $0x90] sm:$0xff]
  %v1999 = vld [vmem:[%s1979 + $0x98] sm:$0xff]
  %v2000 = vld [vmem:[%s1979 + $0xa0] sm:$0xff]
  %v2001 = vld [vmem:[%s1979 + $0xa8] sm:$0xff]
  %v2002 = vld [vmem:[%s1979 + $0xb0] sm:$0xff]
  %v2003 = vld [vmem:[%s1979 + $0xb8] sm:$0xff]
  %v2004 = vld [vmem:[%s1979 + $0xc0] sm:$0xff]
  %v2005 = vld [vmem:[%s1979 + $0xc8] sm:$0xff]
  %v2006 = vld [vmem:[%s1979 + $0xd0] sm:$0xff]
  %v2007 = vld [vmem:[%s1979 + $0xd8] sm:$0xff]
  %v2008 = vld [vmem:[%s1979 + $0xe0] sm:$0xff]
  %v2009 = vld [vmem:[%s1979 + $0xe8] sm:$0xff]
  %v2010 = vld [vmem:[%s1979 + $0xf0] sm:$0xff]
  %v2011 = vld [vmem:[%s1979 + $0xf8] sm:$0xff]
  %v2012 = vld [vmem:[%s1979 + $0x100] sm:$0xff]
  %v2013 = vld [vmem:[%s1979 + $0x108] sm:$0xff]
  %v2014 = vld [vmem:[%s1979 + $0x110] sm:$0xff]
  %v2015 = vld [vmem:[%s1979 + $0x118] sm:$0xff]
  %v2016 = vld [vmem:[%s1979 + $0x120] sm:$0xff]
  %v2017 = vld [vmem:[%s1979 + $0x128] sm:$0xff]
  %v2018 = vld [vmem:[%s1979 + $0x130] sm:$0xff]
  %v2019 = vld [vmem:[%s1979 + $0x138] sm:$0xff]
  %v2020 = vld [vmem:[%s1979 + $0x140] sm:$0xff]
  %v2021 = vld [vmem:[%s1979 + $0x148] sm:$0xff]
  %v2022 = vld [vmem:[%s1979 + $0x150] sm:$0xff]
  %v2023 = vld [vmem:[%s1979 + $0x158] sm:$0xff]
  %v2024 = vld [vmem:[%s1979 + $0x160] sm:$0xff]
  %v2025 = vld [vmem:[%s1979 + $0x168] sm:$0xff]
  %v2026 = vld [vmem:[%s1979 + $0x170] sm:$0xff]
  %v2027 = vld [vmem:[%s1979 + $0x178] sm:$0xff]
  %v2028 = vld [vmem:[%s1979 + $0x180] sm:$0xff]
  %v2029 = vld [vmem:[%s1979 + $0x188] sm:$0xff]
  %v2030 = vld [vmem:[%s1979 + $0x190] sm:$0xff]
  %v2031 = vld [vmem:[%s1979 + $0x198] sm:$0xff]
  %v2032 = vld [vmem:[%s1979 + $0x1a0] sm:$0xff]
  %v2033 = vld [vmem:[%s1979 + $0x1a8] sm:$0xff]
  %v2034 = vld [vmem:[%s1979 + $0x1b0] sm:$0xff]
  %v2035 = vld [vmem:[%s1979 + $0x1b8] sm:$0xff]
  %v2036 = vld [vmem:[%s1979 + $0x1c0] sm:$0xff]
  %v2037 = vld [vmem:[%s1979 + $0x1c8] sm:$0xff]
  %v2038 = vld [vmem:[%s1979 + $0x1d0] sm:$0xff]
  %v2039 = vld [vmem:[%s1979 + $0x1d8] sm:$0xff]
  %v2040 = vld [vmem:[%s1979 + $0x1e0] sm:$0xff]
  %v2041 = vld [vmem:[%s1979 + $0x1e8] sm:$0xff]
  %v2042 = vld [vmem:[%s1979 + $0x1f0] sm:$0xff]
  %v2043 = vld [vmem:[%s1979 + $0x1f8] sm:$0xff]
  %v2046 = vunpack.c.l.b16 %v1977
  %v2047 = vunpack.c.h.b16 %v1977
  %v2048 = vunpack.c.l.b16 %v1978
  %v2049 = vunpack.c.h.b16 %v1978
  %v2050 = vpack.c.b16 %v2048, %v2046
  %v2051 = vpack.c.b16 %v2049, %v2047
  %v2118 = vunpack.c.l.b16 %v1980
  %v2119 = vunpack.c.h.b16 %v1980
  %v2120 = vunpack.c.l.b16 %v1981
  %v2121 = vunpack.c.h.b16 %v1981
  %v2122 = vunpack.c.l.b16 %v1982
  %v2123 = vunpack.c.h.b16 %v1982
  %v2124 = vunpack.c.l.b16 %v1983
  %v2125 = vunpack.c.h.b16 %v1983
  %v2126 = vunpack.c.l.b16 %v1984
  %v2127 = vunpack.c.h.b16 %v1984
  %v2128 = vunpack.c.l.b16 %v1985
  %v2129 = vunpack.c.h.b16 %v1985
  %v2130 = vunpack.c.l.b16 %v1986
  %v2131 = vunpack.c.h.b16 %v1986
  %v2132 = vunpack.c.l.b16 %v1987
  %v2133 = vunpack.c.h.b16 %v1987
  %v2134 = vunpack.c.l.b16 %v1988
  %v2135 = vunpack.c.h.b16 %v1988
  %v2136 = vunpack.c.l.b16 %v1989
  %v2137 = vunpack.c.h.b16 %v1989
  %v2138 = vunpack.c.l.b16 %v1990
  %v2139 = vunpack.c.h.b16 %v1990
  %v2140 = vunpack.c.l.b16 %v1991
  %v2141 = vunpack.c.h.b16 %v1991
  %v2142 = vunpack.c.l.b16 %v1992
  %v2143 = vunpack.c.h.b16 %v1992
  %v2144 = vunpack.c.l.b16 %v1993
  %v2145 = vunpack.c.h.b16 %v1993
  %v2146 = vunpack.c.l.b16 %v1994
  %v2147 = vunpack.c.h.b16 %v1994
  %v2148 = vunpack.c.l.b16 %v1995
  %v2149 = vunpack.c.h.b16 %v1995
  %v2150 = vunpack.c.l.b16 %v1996
  %v2151 = vunpack.c.h.b16 %v1996
  %v2152 = vunpack.c.l.b16 %v1997
  %v2153 = vunpack.c.h.b16 %v1997
  %v2154 = vunpack.c.l.b16 %v1998
  %v2155 = vunpack.c.h.b16 %v1998
  %v2156 = vunpack.c.l.b16 %v1999
  %v2157 = vunpack.c.h.b16 %v1999
  %v2158 = vunpack.c.l.b16 %v2000
  %v2159 = vunpack.c.h.b16 %v2000
  %v2160 = vunpack.c.l.b16 %v2001
  %v2161 = vunpack.c.h.b16 %v2001
  %v2162 = vunpack.c.l.b16 %v2002
  %v2163 = vunpack.c.h.b16 %v2002
  %v2164 = vunpack.c.l.b16 %v2003
  %v2165 = vunpack.c.h.b16 %v2003
  %v2166 = vunpack.c.l.b16 %v2004
  %v2167 = vunpack.c.h.b16 %v2004
  %v2168 = vunpack.c.l.b16 %v2005
  %v2169 = vunpack.c.h.b16 %v2005
  %v2170 = vunpack.c.l.b16 %v2006
  %v2171 = vunpack.c.h.b16 %v2006
  %v2172 = vunpack.c.l.b16 %v2007
  %v2173 = vunpack.c.h.b16 %v2007
  %v2174 = vunpack.c.l.b16 %v2008
  %v2175 = vunpack.c.h.b16 %v2008
  %v2176 = vunpack.c.l.b16 %v2009
  %v2177 = vunpack.c.h.b16 %v2009
  %v2178 = vunpack.c.l.b16 %v2010
  %v2179 = vunpack.c.h.b16 %v2010
  %v2180 = vunpack.c.l.b16 %v2011
  %v2181 = vunpack.c.h.b16 %v2011
  %v2182 = vunpack.c.l.b16 %v2012
  %v2183 = vunpack.c.h.b16 %v2012
  %v2184 = vunpack.c.l.b16 %v2013
  %v2185 = vunpack.c.h.b16 %v2013
  %v2186 = vunpack.c.l.b16 %v2014
  %v2187 = vunpack.c.h.b16 %v2014
  %v2188 = vunpack.c.l.b16 %v2015
  %v2189 = vunpack.c.h.b16 %v2015
  %v2190 = vunpack.c.l.b16 %v2016
  %v2191 = vunpack.c.h.b16 %v2016
  %v2192 = vunpack.c.l.b16 %v2017
  %v2193 = vunpack.c.h.b16 %v2017
  %v2194 = vunpack.c.l.b16 %v2018
  %v2195 = vunpack.c.h.b16 %v2018
  %v2196 = vunpack.c.l.b16 %v2019
  %v2197 = vunpack.c.h.b16 %v2019
  %v2198 = vunpack.c.l.b16 %v2020
  %v2199 = vunpack.c.h.b16 %v2020
  %v2200 = vunpack.c.l.b16 %v2021
  %v2201 = vunpack.c.h.b16 %v2021
  %v2202 = vunpack.c.l.b16 %v2022
  %v2203 = vunpack.c.h.b16 %v2022
  %v2204 = vunpack.c.l.b16 %v2023
  %v2205 = vunpack.c.h.b16 %v2023
  %v2206 = vunpack.c.l.b16 %v2024
  %v2207 = vunpack.c.h.b16 %v2024
  %v2208 = vunpack.c.l.b16 %v2025
  %v2209 = vunpack.c.h.b16 %v2025
  %v2210 = vunpack.c.l.b16 %v2026
  %v2211 = vunpack.c.h.b16 %v2026
  %v2212 = vunpack.c.l.b16 %v2027
  %v2213 = vunpack.c.h.b16 %v2027
  %v2214 = vunpack.c.l.b16 %v2028
  %v2215 = vunpack.c.h.b16 %v2028
  %v2216 = vunpack.c.l.b16 %v2029
  %v2217 = vunpack.c.h.b16 %v2029
  %v2218 = vunpack.c.l.b16 %v2030
  %v2219 = vunpack.c.h.b16 %v2030
  %v2220 = vunpack.c.l.b16 %v2031
  %v2221 = vunpack.c.h.b16 %v2031
  %v2222 = vunpack.c.l.b16 %v2032
  %v2223 = vunpack.c.h.b16 %v2032
  %v2224 = vunpack.c.l.b16 %v2033
  %v2225 = vunpack.c.h.b16 %v2033
  %v2226 = vunpack.c.l.b16 %v2034
  %v2227 = vunpack.c.h.b16 %v2034
  %v2228 = vunpack.c.l.b16 %v2035
  %v2229 = vunpack.c.h.b16 %v2035
  %v2230 = vunpack.c.l.b16 %v2036
  %v2231 = vunpack.c.h.b16 %v2036
  %v2232 = vunpack.c.l.b16 %v2037
  %v2233 = vunpack.c.h.b16 %v2037
  %v2234 = vunpack.c.l.b16 %v2038
  %v2235 = vunpack.c.h.b16 %v2038
  %v2236 = vunpack.c.l.b16 %v2039
  %v2237 = vunpack.c.h.b16 %v2039
  %v2238 = vunpack.c.l.b16 %v2040
  %v2239 = vunpack.c.h.b16 %v2040
  %v2240 = vunpack.c.l.b16 %v2041
  %v2241 = vunpack.c.h.b16 %v2041
  %v2242 = vunpack.c.l.b16 %v2042
  %v2243 = vunpack.c.h.b16 %v2042
  %v2244 = vunpack.c.l.b16 %v2043
  %v2245 = vunpack.c.h.b16 %v2043
  %v2246 = vpack.c.b16 %v2122, %v2118
  %v2247 = vpack.c.b16 %v2123, %v2119
  %v2248 = vpack.c.b16 %v2124, %v2120
  %v2249 = vpack.c.b16 %v2125, %v2121
  %v2250 = vpack.c.b16 %v2130, %v2126
  %v2251 = vpack.c.b16 %v2131, %v2127
  %v2252 = vpack.c.b16 %v2132, %v2128
  %v2253 = vpack.c.b16 %v2133, %v2129
  %v2254 = vpack.c.b16 %v2138, %v2134
  %v2255 = vpack.c.b16 %v2139, %v2135
  %v2256 = vpack.c.b16 %v2140, %v2136
  %v2257 = vpack.c.b16 %v2141, %v2137
  %v2258 = vpack.c.b16 %v2146, %v2142
  %v2259 = vpack.c.b16 %v2147, %v2143
  %v2260 = vpack.c.b16 %v2148, %v2144
  %v2261 = vpack.c.b16 %v2149, %v2145
  %v2262 = vpack.c.b16 %v2154, %v2150
  %v2263 = vpack.c.b16 %v2155, %v2151
  %v2264 = vpack.c.b16 %v2156, %v2152
  %v2265 = vpack.c.b16 %v2157, %v2153
  %v2266 = vpack.c.b16 %v2162, %v2158
  %v2267 = vpack.c.b16 %v2163, %v2159
  %v2268 = vpack.c.b16 %v2164, %v2160
  %v2269 = vpack.c.b16 %v2165, %v2161
  %v2270 = vpack.c.b16 %v2170, %v2166
  %v2271 = vpack.c.b16 %v2171, %v2167
  %v2272 = vpack.c.b16 %v2172, %v2168
  %v2273 = vpack.c.b16 %v2173, %v2169
  %v2274 = vpack.c.b16 %v2178, %v2174
  %v2275 = vpack.c.b16 %v2179, %v2175
  %v2276 = vpack.c.b16 %v2180, %v2176
  %v2277 = vpack.c.b16 %v2181, %v2177
  %v2278 = vpack.c.b16 %v2186, %v2182
  %v2279 = vpack.c.b16 %v2187, %v2183
  %v2280 = vpack.c.b16 %v2188, %v2184
  %v2281 = vpack.c.b16 %v2189, %v2185
  %v2282 = vpack.c.b16 %v2194, %v2190
  %v2283 = vpack.c.b16 %v2195, %v2191
  %v2284 = vpack.c.b16 %v2196, %v2192
  %v2285 = vpack.c.b16 %v2197, %v2193
  %v2286 = vpack.c.b16 %v2202, %v2198
  %v2287 = vpack.c.b16 %v2203, %v2199
  %v2288 = vpack.c.b16 %v2204, %v2200
  %v2289 = vpack.c.b16 %v2205, %v2201
  %v2290 = vpack.c.b16 %v2210, %v2206
  %v2291 = vpack.c.b16 %v2211, %v2207
  %v2292 = vpack.c.b16 %v2212, %v2208
  %v2293 = vpack.c.b16 %v2213, %v2209
  %v2294 = vpack.c.b16 %v2218, %v2214
  %v2295 = vpack.c.b16 %v2219, %v2215
  %v2296 = vpack.c.b16 %v2220, %v2216
  %v2297 = vpack.c.b16 %v2221, %v2217
  %v2298 = vpack.c.b16 %v2226, %v2222
  %v2299 = vpack.c.b16 %v2227, %v2223
  %v2300 = vpack.c.b16 %v2228, %v2224
  %v2301 = vpack.c.b16 %v2229, %v2225
  %v2302 = vpack.c.b16 %v2234, %v2230
  %v2303 = vpack.c.b16 %v2235, %v2231
  %v2304 = vpack.c.b16 %v2236, %v2232
  %v2305 = vpack.c.b16 %v2237, %v2233
  %v2306 = vpack.c.b16 %v2242, %v2238
  %v2307 = vpack.c.b16 %v2243, %v2239
  %v2308 = vpack.c.b16 %v2244, %v2240
  %v2309 = vpack.c.b16 %v2245, %v2241
  %2374 = vmatprep.subr.bf16.mxu0 %v2247
  %2375 = vmatpush1.bf16.msra.mxu0 %v2246
  %2376 = vmatprep.subr.bf16.mxu0 %v2251
  %2377 = vmatpush1.bf16.msra.mxu0 %v2250
  %2378 = vmatprep.subr.bf16.mxu0 %v2255
  %2379 = vmatpush1.bf16.msra.mxu0 %v2254
  %2380 = vmatprep.subr.bf16.mxu0 %v2259
  %2381 = vmatpush1.bf16.msra.mxu0 %v2258
  %2382 = vmatprep.subr.bf16.mxu0 %v2263
  %2383 = vmatpush1.bf16.msra.mxu0 %v2262
  %2384 = vmatprep.subr.bf16.mxu0 %v2267
  %2385 = vmatpush1.bf16.msra.mxu0 %v2266
  %2386 = vmatprep.subr.bf16.mxu0 %v2271
  %2387 = vmatpush1.bf16.msra.mxu0 %v2270
  %2388 = vmatprep.subr.bf16.mxu0 %v2275
  %2389 = vmatpush1.bf16.msra.mxu0 %v2274
  %2390 = vmatprep.subr.bf16.mxu0 %v2279
  %2391 = vmatpush1.bf16.msra.mxu0 %v2278
  %2392 = vmatprep.subr.bf16.mxu0 %v2283
  %2393 = vmatpush1.bf16.msra.mxu0 %v2282
  %2394 = vmatprep.subr.bf16.mxu0 %v2287
  %2395 = vmatpush1.bf16.msra.mxu0 %v2286
  %2396 = vmatprep.subr.bf16.mxu0 %v2291
  %2397 = vmatpush1.bf16.msra.mxu0 %v2290
  %2398 = vmatprep.subr.bf16.mxu0 %v2295
  %2399 = vmatpush1.bf16.msra.mxu0 %v2294
  %2400 = vmatprep.subr.bf16.mxu0 %v2299
  %2401 = vmatpush1.bf16.msra.mxu0 %v2298
  %2402 = vmatprep.subr.bf16.mxu0 %v2303
  %2403 = vmatpush1.bf16.msra.mxu0 %v2302
  %2404 = vmatprep.subr.bf16.mxu0 %v2307
  %2405 = vmatpush1.bf16.msra.mxu0 %v2306
  %2406 = vmatprep.mubr.bf16.mxu0 %v2051
  %2407 = vmatmul.mubr.bf16.gmra.mrb[0].mxu0 %v2050
  %v2408 = vpop.f32.mrb[0].mxu0
  %v2409 = vadd.f32 0.0, %v2408
  %v2410 = vpop.f32.mrb[0].mxu0
  %v2411 = vadd.f32 0.0, %v2410
  %v2412 = vpop.f32.mrb[0].mxu0
  %v2413 = vadd.f32 0.0, %v2412
  %v2414 = vpop.f32.mrb[0].mxu0
  %v2415 = vadd.f32 0.0, %v2414
  %2416 = vdwg.mxu0
  %2417 = vmatprep.subr.bf16.mxu0 %v2249
  %2418 = vmatpush1.bf16.msra.mxu0 %v2248
  %2419 = vmatprep.subr.bf16.mxu0 %v2253
  %2420 = vmatpush1.bf16.msra.mxu0 %v2252
  %2421 = vmatprep.subr.bf16.mxu0 %v2257
  %2422 = vmatpush1.bf16.msra.mxu0 %v2256
  %2423 = vmatprep.subr.bf16.mxu0 %v2261
  %2424 = vmatpush1.bf16.msra.mxu0 %v2260
  %2425 = vmatprep.subr.bf16.mxu0 %v2265
  %2426 = vmatpush1.bf16.msra.mxu0 %v2264
  %2427 = vmatprep.subr.bf16.mxu0 %v2269
  %2428 = vmatpush1.bf16.msra.mxu0 %v2268
  %2429 = vmatprep.subr.bf16.mxu0 %v2273
  %2430 = vmatpush1.bf16.msra.mxu0 %v2272
  %2431 = vmatprep.subr.bf16.mxu0 %v2277
  %2432 = vmatpush1.bf16.msra.mxu0 %v2276
  %2433 = vmatprep.subr.bf16.mxu0 %v2281
  %2434 = vmatpush1.bf16.msra.mxu0 %v2280
  %2435 = vmatprep.subr.bf16.mxu0 %v2285
  %2436 = vmatpush1.bf16.msra.mxu0 %v2284
  %2437 = vmatprep.subr.bf16.mxu0 %v2289
  %2438 = vmatpush1.bf16.msra.mxu0 %v2288
  %2439 = vmatprep.subr.bf16.mxu0 %v2293
  %2440 = vmatpush1.bf16.msra.mxu0 %v2292
  %2441 = vmatprep.subr.bf16.mxu0 %v2297
  %2442 = vmatpush1.bf16.msra.mxu0 %v2296
  %2443 = vmatprep.subr.bf16.mxu0 %v2301
  %2444 = vmatpush1.bf16.msra.mxu0 %v2300
  %2445 = vmatprep.subr.bf16.mxu0 %v2305
  %2446 = vmatpush1.bf16.msra.mxu0 %v2304
  %2447 = vmatprep.subr.bf16.mxu0 %v2309
  %2448 = vmatpush1.bf16.msra.mxu0 %v2308
  %2449 = vmatprep.mubr.bf16.mxu0 %v2051
  %2450 = vmatmul.mubr.bf16.gmra.mrb[0].mxu0 %v2050
  %v2451 = vpop.f32.mrb[0].mxu0
  %v2452 = vadd.f32 0.0, %v2451
  %v2453 = vpop.f32.mrb[0].mxu0
  %v2454 = vadd.f32 0.0, %v2453
  %v2455 = vpop.f32.mrb[0].mxu0
  %v2456 = vadd.f32 0.0, %v2455
  %v2457 = vpop.f32.mrb[0].mxu0
  %v2458 = vadd.f32 0.0, %v2457
  %2459 = vdwg.mxu0
  %v2460 = vadd.f32 %v1969, %v2409
  %v2461 = vadd.f32 %v1970, %v2411
  %v2462 = vadd.f32 %v1971, %v2452
  %v2463 = vadd.f32 %v1972, %v2454
  %v2464 = vadd.f32 %v1973, %v2413
  %v2465 = vadd.f32 %v1974, %v2415
  %v2466 = vadd.f32 %v1975, %v2456
  %v2467 = vadd.f32 %v1976, %v2458
  %v2468 = vld [vmem:[%s4] sm:$0xff]
  %v2469 = vld [vmem:[%s4 + $0x8] sm:$0x33]
  %s2470 = scalar_lea.vmem %s6, 2560
  %v2471 = vld [vmem:[%s2470] sm:$0xff]
  %v2472 = vld [vmem:[%s2470 + $0x8] sm:$0xff]
  %v2473 = vld [vmem:[%s2470 + $0x10] sm:$0xff]
  %v2474 = vld [vmem:[%s2470 + $0x18] sm:$0xff]
  %v2475 = vld [vmem:[%s2470 + $0x20] sm:$0xff]
  %v2476 = vld [vmem:[%s2470 + $0x28] sm:$0xff]
  %v2477 = vld [vmem:[%s2470 + $0x30] sm:$0xff]
  %v2478 = vld [vmem:[%s2470 + $0x38] sm:$0xff]
  %v2479 = vld [vmem:[%s2470 + $0x40] sm:$0xff]
  %v2480 = vld [vmem:[%s2470 + $0x48] sm:$0xff]
  %v2481 = vld [vmem:[%s2470 + $0x50] sm:$0xff]
  %v2482 = vld [vmem:[%s2470 + $0x58] sm:$0xff]
  %v2483 = vld [vmem:[%s2470 + $0x60] sm:$0xff]
  %v2484 = vld [vmem:[%s2470 + $0x68] sm:$0xff]
  %v2485 = vld [vmem:[%s2470 + $0x70] sm:$0xff]
  %v2486 = vld [vmem:[%s2470 + $0x78] sm:$0xff]
  %v2487 = vld [vmem:[%s2470 + $0x80] sm:$0xff]
  %v2488 = vld [vmem:[%s2470 + $0x88] sm:$0xff]
  %v2489 = vld [vmem:[%s2470 + $0x90] sm:$0xff]
  %v2490 = vld [vmem:[%s2470 + $0x98] sm:$0xff]
  %v2491 = vld [vmem:[%s2470 + $0xa0] sm:$0xff]
  %v2492 = vld [vmem:[%s2470 + $0xa8] sm:$0xff]
  %v2493 = vld [vmem:[%s2470 + $0xb0] sm:$0xff]
  %v2494 = vld [vmem:[%s2470 + $0xb8] sm:$0xff]
  %v2495 = vld [vmem:[%s2470 + $0xc0] sm:$0xff]
  %v2496 = vld [vmem:[%s2470 + $0xc8] sm:$0xff]
  %v2497 = vld [vmem:[%s2470 + $0xd0] sm:$0xff]
  %v2498 = vld [vmem:[%s2470 + $0xd8] sm:$0xff]
  %v2499 = vld [vmem:[%s2470 + $0xe0] sm:$0xff]
  %v2500 = vld [vmem:[%s2470 + $0xe8] sm:$0xff]
  %v2501 = vld [vmem:[%s2470 + $0xf0] sm:$0xff]
  %v2502 = vld [vmem:[%s2470 + $0xf8] sm:$0xff]
  %v2503 = vld [vmem:[%s2470 + $0x100] sm:$0xff]
  %v2504 = vld [vmem:[%s2470 + $0x108] sm:$0xff]
  %v2505 = vld [vmem:[%s2470 + $0x110] sm:$0xff]
  %v2506 = vld [vmem:[%s2470 + $0x118] sm:$0xff]
  %v2507 = vld [vmem:[%s2470 + $0x120] sm:$0xff]
  %v2508 = vld [vmem:[%s2470 + $0x128] sm:$0xff]
  %v2509 = vld [vmem:[%s2470 + $0x130] sm:$0xff]
  %v2510 = vld [vmem:[%s2470 + $0x138] sm:$0xff]
  %v2511 = vld [vmem:[%s2470 + $0x140] sm:$0xff]
  %v2512 = vld [vmem:[%s2470 + $0x148] sm:$0xff]
  %v2513 = vld [vmem:[%s2470 + $0x150] sm:$0xff]
  %v2514 = vld [vmem:[%s2470 + $0x158] sm:$0xff]
  %v2515 = vld [vmem:[%s2470 + $0x160] sm:$0xff]
  %v2516 = vld [vmem:[%s2470 + $0x168] sm:$0xff]
  %v2517 = vld [vmem:[%s2470 + $0x170] sm:$0xff]
  %v2518 = vld [vmem:[%s2470 + $0x178] sm:$0xff]
  %v2519 = vld [vmem:[%s2470 + $0x180] sm:$0xff]
  %v2520 = vld [vmem:[%s2470 + $0x188] sm:$0xff]
  %v2521 = vld [vmem:[%s2470 + $0x190] sm:$0xff]
  %v2522 = vld [vmem:[%s2470 + $0x198] sm:$0xff]
  %v2523 = vld [vmem:[%s2470 + $0x1a0] sm:$0xff]
  %v2524 = vld [vmem:[%s2470 + $0x1a8] sm:$0xff]
  %v2525 = vld [vmem:[%s2470 + $0x1b0] sm:$0xff]
  %v2526 = vld [vmem:[%s2470 + $0x1b8] sm:$0xff]
  %v2527 = vld [vmem:[%s2470 + $0x1c0] sm:$0xff]
  %v2528 = vld [vmem:[%s2470 + $0x1c8] sm:$0xff]
  %v2529 = vld [vmem:[%s2470 + $0x1d0] sm:$0xff]
  %v2530 = vld [vmem:[%s2470 + $0x1d8] sm:$0xff]
  %v2531 = vld [vmem:[%s2470 + $0x1e0] sm:$0xff]
  %v2532 = vld [vmem:[%s2470 + $0x1e8] sm:$0xff]
  %v2533 = vld [vmem:[%s2470 + $0x1f0] sm:$0xff]
  %v2534 = vld [vmem:[%s2470 + $0x1f8] sm:$0xff]
  %v2537 = vunpack.c.l.b16 %v2468
  %v2538 = vunpack.c.h.b16 %v2468
  %v2539 = vunpack.c.l.b16 %v2469
  %v2540 = vunpack.c.h.b16 %v2469
  %v2541 = vpack.c.b16 %v2539, %v2537
  %v2542 = vpack.c.b16 %v2540, %v2538
  %v2609 = vunpack.c.l.b16 %v2471
  %v2610 = vunpack.c.h.b16 %v2471
  %v2611 = vunpack.c.l.b16 %v2472
  %v2612 = vunpack.c.h.b16 %v2472
  %v2613 = vunpack.c.l.b16 %v2473
  %v2614 = vunpack.c.h.b16 %v2473
  %v2615 = vunpack.c.l.b16 %v2474
  %v2616 = vunpack.c.h.b16 %v2474
  %v2617 = vunpack.c.l.b16 %v2475
  %v2618 = vunpack.c.h.b16 %v2475
  %v2619 = vunpack.c.l.b16 %v2476
  %v2620 = vunpack.c.h.b16 %v2476
  %v2621 = vunpack.c.l.b16 %v2477
  %v2622 = vunpack.c.h.b16 %v2477
  %v2623 = vunpack.c.l.b16 %v2478
  %v2624 = vunpack.c.h.b16 %v2478
  %v2625 = vunpack.c.l.b16 %v2479
  %v2626 = vunpack.c.h.b16 %v2479
  %v2627 = vunpack.c.l.b16 %v2480
  %v2628 = vunpack.c.h.b16 %v2480
  %v2629 = vunpack.c.l.b16 %v2481
  %v2630 = vunpack.c.h.b16 %v2481
  %v2631 = vunpack.c.l.b16 %v2482
  %v2632 = vunpack.c.h.b16 %v2482
  %v2633 = vunpack.c.l.b16 %v2483
  %v2634 = vunpack.c.h.b16 %v2483
  %v2635 = vunpack.c.l.b16 %v2484
  %v2636 = vunpack.c.h.b16 %v2484
  %v2637 = vunpack.c.l.b16 %v2485
  %v2638 = vunpack.c.h.b16 %v2485
  %v2639 = vunpack.c.l.b16 %v2486
  %v2640 = vunpack.c.h.b16 %v2486
  %v2641 = vunpack.c.l.b16 %v2487
  %v2642 = vunpack.c.h.b16 %v2487
  %v2643 = vunpack.c.l.b16 %v2488
  %v2644 = vunpack.c.h.b16 %v2488
  %v2645 = vunpack.c.l.b16 %v2489
  %v2646 = vunpack.c.h.b16 %v2489
  %v2647 = vunpack.c.l.b16 %v2490
  %v2648 = vunpack.c.h.b16 %v2490
  %v2649 = vunpack.c.l.b16 %v2491
  %v2650 = vunpack.c.h.b16 %v2491
  %v2651 = vunpack.c.l.b16 %v2492
  %v2652 = vunpack.c.h.b16 %v2492
  %v2653 = vunpack.c.l.b16 %v2493
  %v2654 = vunpack.c.h.b16 %v2493
  %v2655 = vunpack.c.l.b16 %v2494
  %v2656 = vunpack.c.h.b16 %v2494
  %v2657 = vunpack.c.l.b16 %v2495
  %v2658 = vunpack.c.h.b16 %v2495
  %v2659 = vunpack.c.l.b16 %v2496
  %v2660 = vunpack.c.h.b16 %v2496
  %v2661 = vunpack.c.l.b16 %v2497
  %v2662 = vunpack.c.h.b16 %v2497
  %v2663 = vunpack.c.l.b16 %v2498
  %v2664 = vunpack.c.h.b16 %v2498
  %v2665 = vunpack.c.l.b16 %v2499
  %v2666 = vunpack.c.h.b16 %v2499
  %v2667 = vunpack.c.l.b16 %v2500
  %v2668 = vunpack.c.h.b16 %v2500
  %v2669 = vunpack.c.l.b16 %v2501
  %v2670 = vunpack.c.h.b16 %v2501
  %v2671 = vunpack.c.l.b16 %v2502
  %v2672 = vunpack.c.h.b16 %v2502
  %v2673 = vunpack.c.l.b16 %v2503
  %v2674 = vunpack.c.h.b16 %v2503
  %v2675 = vunpack.c.l.b16 %v2504
  %v2676 = vunpack.c.h.b16 %v2504
  %v2677 = vunpack.c.l.b16 %v2505
  %v2678 = vunpack.c.h.b16 %v2505
  %v2679 = vunpack.c.l.b16 %v2506
  %v2680 = vunpack.c.h.b16 %v2506
  %v2681 = vunpack.c.l.b16 %v2507
  %v2682 = vunpack.c.h.b16 %v2507
  %v2683 = vunpack.c.l.b16 %v2508
  %v2684 = vunpack.c.h.b16 %v2508
  %v2685 = vunpack.c.l.b16 %v2509
  %v2686 = vunpack.c.h.b16 %v2509
  %v2687 = vunpack.c.l.b16 %v2510
  %v2688 = vunpack.c.h.b16 %v2510
  %v2689 = vunpack.c.l.b16 %v2511
  %v2690 = vunpack.c.h.b16 %v2511
  %v2691 = vunpack.c.l.b16 %v2512
  %v2692 = vunpack.c.h.b16 %v2512
  %v2693 = vunpack.c.l.b16 %v2513
  %v2694 = vunpack.c.h.b16 %v2513
  %v2695 = vunpack.c.l.b16 %v2514
  %v2696 = vunpack.c.h.b16 %v2514
  %v2697 = vunpack.c.l.b16 %v2515
  %v2698 = vunpack.c.h.b16 %v2515
  %v2699 = vunpack.c.l.b16 %v2516
  %v2700 = vunpack.c.h.b16 %v2516
  %v2701 = vunpack.c.l.b16 %v2517
  %v2702 = vunpack.c.h.b16 %v2517
  %v2703 = vunpack.c.l.b16 %v2518
  %v2704 = vunpack.c.h.b16 %v2518
  %v2705 = vunpack.c.l.b16 %v2519
  %v2706 = vunpack.c.h.b16 %v2519
  %v2707 = vunpack.c.l.b16 %v2520
  %v2708 = vunpack.c.h.b16 %v2520
  %v2709 = vunpack.c.l.b16 %v2521
  %v2710 = vunpack.c.h.b16 %v2521
  %v2711 = vunpack.c.l.b16 %v2522
  %v2712 = vunpack.c.h.b16 %v2522
  %v2713 = vunpack.c.l.b16 %v2523
  %v2714 = vunpack.c.h.b16 %v2523
  %v2715 = vunpack.c.l.b16 %v2524
  %v2716 = vunpack.c.h.b16 %v2524
  %v2717 = vunpack.c.l.b16 %v2525
  %v2718 = vunpack.c.h.b16 %v2525
  %v2719 = vunpack.c.l.b16 %v2526
  %v2720 = vunpack.c.h.b16 %v2526
  %v2721 = vunpack.c.l.b16 %v2527
  %v2722 = vunpack.c.h.b16 %v2527
  %v2723 = vunpack.c.l.b16 %v2528
  %v2724 = vunpack.c.h.b16 %v2528
  %v2725 = vunpack.c.l.b16 %v2529
  %v2726 = vunpack.c.h.b16 %v2529
  %v2727 = vunpack.c.l.b16 %v2530
  %v2728 = vunpack.c.h.b16 %v2530
  %v2729 = vunpack.c.l.b16 %v2531
  %v2730 = vunpack.c.h.b16 %v2531
  %v2731 = vunpack.c.l.b16 %v2532
  %v2732 = vunpack.c.h.b16 %v2532
  %v2733 = vunpack.c.l.b16 %v2533
  %v2734 = vunpack.c.h.b16 %v2533
  %v2735 = vunpack.c.l.b16 %v2534
  %v2736 = vunpack.c.h.b16 %v2534
  %v2737 = vpack.c.b16 %v2613, %v2609
  %v2738 = vpack.c.b16 %v2614, %v2610
  %v2739 = vpack.c.b16 %v2615, %v2611
  %v2740 = vpack.c.b16 %v2616, %v2612
  %v2741 = vpack.c.b16 %v2621, %v2617
  %v2742 = vpack.c.b16 %v2622, %v2618
  %v2743 = vpack.c.b16 %v2623, %v2619
  %v2744 = vpack.c.b16 %v2624, %v2620
  %v2745 = vpack.c.b16 %v2629, %v2625
  %v2746 = vpack.c.b16 %v2630, %v2626
  %v2747 = vpack.c.b16 %v2631, %v2627
  %v2748 = vpack.c.b16 %v2632, %v2628
  %v2749 = vpack.c.b16 %v2637, %v2633
  %v2750 = vpack.c.b16 %v2638, %v2634
  %v2751 = vpack.c.b16 %v2639, %v2635
  %v2752 = vpack.c.b16 %v2640, %v2636
  %v2753 = vpack.c.b16 %v2645, %v2641
  %v2754 = vpack.c.b16 %v2646, %v2642
  %v2755 = vpack.c.b16 %v2647, %v2643
  %v2756 = vpack.c.b16 %v2648, %v2644
  %v2757 = vpack.c.b16 %v2653, %v2649
  %v2758 = vpack.c.b16 %v2654, %v2650
  %v2759 = vpack.c.b16 %v2655, %v2651
  %v2760 = vpack.c.b16 %v2656, %v2652
  %v2761 = vpack.c.b16 %v2661, %v2657
  %v2762 = vpack.c.b16 %v2662, %v2658
  %v2763 = vpack.c.b16 %v2663, %v2659
  %v2764 = vpack.c.b16 %v2664, %v2660
  %v2765 = vpack.c.b16 %v2669, %v2665
  %v2766 = vpack.c.b16 %v2670, %v2666
  %v2767 = vpack.c.b16 %v2671, %v2667
  %v2768 = vpack.c.b16 %v2672, %v2668
  %v2769 = vpack.c.b16 %v2677, %v2673
  %v2770 = vpack.c.b16 %v2678, %v2674
  %v2771 = vpack.c.b16 %v2679, %v2675
  %v2772 = vpack.c.b16 %v2680, %v2676
  %v2773 = vpack.c.b16 %v2685, %v2681
  %v2774 = vpack.c.b16 %v2686, %v2682
  %v2775 = vpack.c.b16 %v2687, %v2683
  %v2776 = vpack.c.b16 %v2688, %v2684
  %v2777 = vpack.c.b16 %v2693, %v2689
  %v2778 = vpack.c.b16 %v2694, %v2690
  %v2779 = vpack.c.b16 %v2695, %v2691
  %v2780 = vpack.c.b16 %v2696, %v2692
  %v2781 = vpack.c.b16 %v2701, %v2697
  %v2782 = vpack.c.b16 %v2702, %v2698
  %v2783 = vpack.c.b16 %v2703, %v2699
  %v2784 = vpack.c.b16 %v2704, %v2700
  %v2785 = vpack.c.b16 %v2709, %v2705
  %v2786 = vpack.c.b16 %v2710, %v2706
  %v2787 = vpack.c.b16 %v2711, %v2707
  %v2788 = vpack.c.b16 %v2712, %v2708
  %v2789 = vpack.c.b16 %v2717, %v2713
  %v2790 = vpack.c.b16 %v2718, %v2714
  %v2791 = vpack.c.b16 %v2719, %v2715
  %v2792 = vpack.c.b16 %v2720, %v2716
  %v2793 = vpack.c.b16 %v2725, %v2721
  %v2794 = vpack.c.b16 %v2726, %v2722
  %v2795 = vpack.c.b16 %v2727, %v2723
  %v2796 = vpack.c.b16 %v2728, %v2724
  %v2797 = vpack.c.b16 %v2733, %v2729
  %v2798 = vpack.c.b16 %v2734, %v2730
  %v2799 = vpack.c.b16 %v2735, %v2731
  %v2800 = vpack.c.b16 %v2736, %v2732
  %2865 = vmatprep.subr.bf16.mxu0 %v2738
  %2866 = vmatpush1.bf16.msra.mxu0 %v2737
  %2867 = vmatprep.subr.bf16.mxu0 %v2742
  %2868 = vmatpush1.bf16.msra.mxu0 %v2741
  %2869 = vmatprep.subr.bf16.mxu0 %v2746
  %2870 = vmatpush1.bf16.msra.mxu0 %v2745
  %2871 = vmatprep.subr.bf16.mxu0 %v2750
  %2872 = vmatpush1.bf16.msra.mxu0 %v2749
  %2873 = vmatprep.subr.bf16.mxu0 %v2754
  %2874 = vmatpush1.bf16.msra.mxu0 %v2753
  %2875 = vmatprep.subr.bf16.mxu0 %v2758
  %2876 = vmatpush1.bf16.msra.mxu0 %v2757
  %2877 = vmatprep.subr.bf16.mxu0 %v2762
  %2878 = vmatpush1.bf16.msra.mxu0 %v2761
  %2879 = vmatprep.subr.bf16.mxu0 %v2766
  %2880 = vmatpush1.bf16.msra.mxu0 %v2765
  %2881 = vmatprep.subr.bf16.mxu0 %v2770
  %2882 = vmatpush1.bf16.msra.mxu0 %v2769
  %2883 = vmatprep.subr.bf16.mxu0 %v2774
  %2884 = vmatpush1.bf16.msra.mxu0 %v2773
  %2885 = vmatprep.subr.bf16.mxu0 %v2778
  %2886 = vmatpush1.bf16.msra.mxu0 %v2777
  %2887 = vmatprep.subr.bf16.mxu0 %v2782
  %2888 = vmatpush1.bf16.msra.mxu0 %v2781
  %2889 = vmatprep.subr.bf16.mxu0 %v2786
  %2890 = vmatpush1.bf16.msra.mxu0 %v2785
  %2891 = vmatprep.subr.bf16.mxu0 %v2790
  %2892 = vmatpush1.bf16.msra.mxu0 %v2789
  %2893 = vmatprep.subr.bf16.mxu0 %v2794
  %2894 = vmatpush1.bf16.msra.mxu0 %v2793
  %2895 = vmatprep.subr.bf16.mxu0 %v2798
  %2896 = vmatpush1.bf16.msra.mxu0 %v2797
  %2897 = vmatprep.mubr.bf16.mxu0 %v2542
  %2898 = vmatmul.mubr.bf16.gmra.mrb[0].mxu0 %v2541
  %v2899 = vpop.f32.mrb[0].mxu0
  %v2900 = vadd.f32 0.0, %v2899
  %v2901 = vpop.f32.mrb[0].mxu0
  %v2902 = vadd.f32 0.0, %v2901
  %v2903 = vpop.f32.mrb[0].mxu0
  %v2904 = vadd.f32 0.0, %v2903
  %v2905 = vpop.f32.mrb[0].mxu0
  %v2906 = vadd.f32 0.0, %v2905
  %2907 = vdwg.mxu0
  %2908 = vmatprep.subr.bf16.mxu0 %v2740
  %2909 = vmatpush1.bf16.msra.mxu0 %v2739
  %2910 = vmatprep.subr.bf16.mxu0 %v2744
  %2911 = vmatpush1.bf16.msra.mxu0 %v2743
  %2912 = vmatprep.subr.bf16.mxu0 %v2748
  %2913 = vmatpush1.bf16.msra.mxu0 %v2747
  %2914 = vmatprep.subr.bf16.mxu0 %v2752
  %2915 = vmatpush1.bf16.msra.mxu0 %v2751
  %2916 = vmatprep.subr.bf16.mxu0 %v2756
  %2917 = vmatpush1.bf16.msra.mxu0 %v2755
  %2918 = vmatprep.subr.bf16.mxu0 %v2760
  %2919 = vmatpush1.bf16.msra.mxu0 %v2759
  %2920 = vmatprep.subr.bf16.mxu0 %v2764
  %2921 = vmatpush1.bf16.msra.mxu0 %v2763
  %2922 = vmatprep.subr.bf16.mxu0 %v2768
  %2923 = vmatpush1.bf16.msra.mxu0 %v2767
  %2924 = vmatprep.subr.bf16.mxu0 %v2772
  %2925 = vmatpush1.bf16.msra.mxu0 %v2771
  %2926 = vmatprep.subr.bf16.mxu0 %v2776
  %2927 = vmatpush1.bf16.msra.mxu0 %v2775
  %2928 = vmatprep.subr.bf16.mxu0 %v2780
  %2929 = vmatpush1.bf16.msra.mxu0 %v2779
  %2930 = vmatprep.subr.bf16.mxu0 %v2784
  %2931 = vmatpush1.bf16.msra.mxu0 %v2783
  %2932 = vmatprep.subr.bf16.mxu0 %v2788
  %2933 = vmatpush1.bf16.msra.mxu0 %v2787
  %2934 = vmatprep.subr.bf16.mxu0 %v2792
  %2935 = vmatpush1.bf16.msra.mxu0 %v2791
  %2936 = vmatprep.subr.bf16.mxu0 %v2796
  %2937 = vmatpush1.bf16.msra.mxu0 %v2795
  %2938 = vmatprep.subr.bf16.mxu0 %v2800
  %2939 = vmatpush1.bf16.msra.mxu0 %v2799
  %2940 = vmatprep.mubr.bf16.mxu0 %v2542
  %2941 = vmatmul.mubr.bf16.gmra.mrb[0].mxu0 %v2541
  %v2942 = vpop.f32.mrb[0].mxu0
  %v2943 = vadd.f32 0.0, %v2942
  %v2944 = vpop.f32.mrb[0].mxu0
  %v2945 = vadd.f32 0.0, %v2944
  %v2946 = vpop.f32.mrb[0].mxu0
  %v2947 = vadd.f32 0.0, %v2946
  %v2948 = vpop.f32.mrb[0].mxu0
  %v2949 = vadd.f32 0.0, %v2948
  %2950 = vdwg.mxu0
  %v2951 = vadd.f32 %v2460, %v2900
  %v2952 = vadd.f32 %v2461, %v2902
  %v2953 = vadd.f32 %v2462, %v2943
  %v2954 = vadd.f32 %v2463, %v2945
  %v2955 = vadd.f32 %v2464, %v2904
  %v2956 = vadd.f32 %v2465, %v2906
  %v2957 = vadd.f32 %v2466, %v2947
  %v2958 = vadd.f32 %v2467, %v2949
  %v2959 = vld [vmem:[%s0] sm:$0xee]
  %v2960 = vld [vmem:[%s0 + $0x8] sm:$0x77]
  %s2961 = scalar_lea.vmem %s6, 3072
  %v2962 = vld [vmem:[%s2961] sm:$0xff]
  %v2963 = vld [vmem:[%s2961 + $0x8] sm:$0xff]
  %v2964 = vld [vmem:[%s2961 + $0x10] sm:$0xff]
  %v2965 = vld [vmem:[%s2961 + $0x18] sm:$0xff]
  %v2966 = vld [vmem:[%s2961 + $0x20] sm:$0xff]
  %v2967 = vld [vmem:[%s2961 + $0x28] sm:$0xff]
  %v2968 = vld [vmem:[%s2961 + $0x30] sm:$0xff]
  %v2969 = vld [vmem:[%s2961 + $0x38] sm:$0xff]
  %v2970 = vld [vmem:[%s2961 + $0x40] sm:$0xff]
  %v2971 = vld [vmem:[%s2961 + $0x48] sm:$0xff]
  %v2972 = vld [vmem:[%s2961 + $0x50] sm:$0xff]
  %v2973 = vld [vmem:[%s2961 + $0x58] sm:$0xff]
  %v2974 = vld [vmem:[%s2961 + $0x60] sm:$0xff]
  %v2975 = vld [vmem:[%s2961 + $0x68] sm:$0xff]
  %v2976 = vld [vmem:[%s2961 + $0x70] sm:$0xff]
  %v2977 = vld [vmem:[%s2961 + $0x78] sm:$0xff]
  %v2978 = vld [vmem:[%s2961 + $0x80] sm:$0xff]
  %v2979 = vld [vmem:[%s2961 + $0x88] sm:$0xff]
  %v2980 = vld [vmem:[%s2961 + $0x90] sm:$0xff]
  %v2981 = vld [vmem:[%s2961 + $0x98] sm:$0xff]
  %v2982 = vld [vmem:[%s2961 + $0xa0] sm:$0xff]
  %v2983 = vld [vmem:[%s2961 + $0xa8] sm:$0xff]
  %v2984 = vld [vmem:[%s2961 + $0xb0] sm:$0xff]
  %v2985 = vld [vmem:[%s2961 + $0xb8] sm:$0xff]
  %v2986 = vld [vmem:[%s2961 + $0xc0] sm:$0xff]
  %v2987 = vld [vmem:[%s2961 + $0xc8] sm:$0xff]
  %v2988 = vld [vmem:[%s2961 + $0xd0] sm:$0xff]
  %v2989 = vld [vmem:[%s2961 + $0xd8] sm:$0xff]
  %v2990 = vld [vmem:[%s2961 + $0xe0] sm:$0xff]
  %v2991 = vld [vmem:[%s2961 + $0xe8] sm:$0xff]
  %v2992 = vld [vmem:[%s2961 + $0xf0] sm:$0xff]
  %v2993 = vld [vmem:[%s2961 + $0xf8] sm:$0xff]
  %v2994 = vld [vmem:[%s2961 + $0x100] sm:$0xff]
  %v2995 = vld [vmem:[%s2961 + $0x108] sm:$0xff]
  %v2996 = vld [vmem:[%s2961 + $0x110] sm:$0xff]
  %v2997 = vld [vmem:[%s2961 + $0x118] sm:$0xff]
  %v2998 = vld [vmem:[%s2961 + $0x120] sm:$0xff]
  %v2999 = vld [vmem:[%s2961 + $0x128] sm:$0xff]
  %v3000 = vld [vmem:[%s2961 + $0x130] sm:$0xff]
  %v3001 = vld [vmem:[%s2961 + $0x138] sm:$0xff]
  %v3002 = vld [vmem:[%s2961 + $0x140] sm:$0xff]
  %v3003 = vld [vmem:[%s2961 + $0x148] sm:$0xff]
  %v3004 = vld [vmem:[%s2961 + $0x150] sm:$0xff]
  %v3005 = vld [vmem:[%s2961 + $0x158] sm:$0xff]
  %v3006 = vld [vmem:[%s2961 + $0x160] sm:$0xff]
  %v3007 = vld [vmem:[%s2961 + $0x168] sm:$0xff]
  %v3008 = vld [vmem:[%s2961 + $0x170] sm:$0xff]
  %v3009 = vld [vmem:[%s2961 + $0x178] sm:$0xff]
  %v3010 = vld [vmem:[%s2961 + $0x180] sm:$0xff]
  %v3011 = vld [vmem:[%s2961 + $0x188] sm:$0xff]
  %v3012 = vld [vmem:[%s2961 + $0x190] sm:$0xff]
  %v3013 = vld [vmem:[%s2961 + $0x198] sm:$0xff]
  %v3014 = vld [vmem:[%s2961 + $0x1a0] sm:$0xff]
  %v3015 = vld [vmem:[%s2961 + $0x1a8] sm:$0xff]
  %v3016 = vld [vmem:[%s2961 + $0x1b0] sm:$0xff]
  %v3017 = vld [vmem:[%s2961 + $0x1b8] sm:$0xff]
  %v3018 = vld [vmem:[%s2961 + $0x1c0] sm:$0xff]
  %v3019 = vld [vmem:[%s2961 + $0x1c8] sm:$0xff]
  %v3020 = vld [vmem:[%s2961 + $0x1d0] sm:$0xff]
  %v3021 = vld [vmem:[%s2961 + $0x1d8] sm:$0xff]
  %v3022 = vld [vmem:[%s2961 + $0x1e0] sm:$0xff]
  %v3023 = vld [vmem:[%s2961 + $0x1e8] sm:$0xff]
  %v3024 = vld [vmem:[%s2961 + $0x1f0] sm:$0xff]
  %v3025 = vld [vmem:[%s2961 + $0x1f8] sm:$0xff]
  %v3028 = vunpack.c.l.b16 %v2959
  %v3029 = vunpack.c.h.b16 %v2959
  %v3030 = vunpack.c.l.b16 %v2960
  %v3031 = vunpack.c.h.b16 %v2960
  %v3032 = vpack.c.b16 %v3030, %v3028
  %v3033 = vpack.c.b16 %v3031, %v3029
  %v3034 = vrot.slane %v3032, 1
  %v3035 = vrot.slane %v3033, 1
  %v3102 = vunpack.c.l.b16 %v2962
  %v3103 = vunpack.c.h.b16 %v2962
  %v3104 = vunpack.c.l.b16 %v2963
  %v3105 = vunpack.c.h.b16 %v2963
  %v3106 = vunpack.c.l.b16 %v2964
  %v3107 = vunpack.c.h.b16 %v2964
  %v3108 = vunpack.c.l.b16 %v2965
  %v3109 = vunpack.c.h.b16 %v2965
  %v3110 = vunpack.c.l.b16 %v2966
  %v3111 = vunpack.c.h.b16 %v2966
  %v3112 = vunpack.c.l.b16 %v2967
  %v3113 = vunpack.c.h.b16 %v2967
  %v3114 = vunpack.c.l.b16 %v2968
  %v3115 = vunpack.c.h.b16 %v2968
  %v3116 = vunpack.c.l.b16 %v2969
  %v3117 = vunpack.c.h.b16 %v2969
  %v3118 = vunpack.c.l.b16 %v2970
  %v3119 = vunpack.c.h.b16 %v2970
  %v3120 = vunpack.c.l.b16 %v2971
  %v3121 = vunpack.c.h.b16 %v2971
  %v3122 = vunpack.c.l.b16 %v2972
  %v3123 = vunpack.c.h.b16 %v2972
  %v3124 = vunpack.c.l.b16 %v2973
  %v3125 = vunpack.c.h.b16 %v2973
  %v3126 = vunpack.c.l.b16 %v2974
  %v3127 = vunpack.c.h.b16 %v2974
  %v3128 = vunpack.c.l.b16 %v2975
  %v3129 = vunpack.c.h.b16 %v2975
  %v3130 = vunpack.c.l.b16 %v2976
  %v3131 = vunpack.c.h.b16 %v2976
  %v3132 = vunpack.c.l.b16 %v2977
  %v3133 = vunpack.c.h.b16 %v2977
  %v3134 = vunpack.c.l.b16 %v2978
  %v3135 = vunpack.c.h.b16 %v2978
  %v3136 = vunpack.c.l.b16 %v2979
  %v3137 = vunpack.c.h.b16 %v2979
  %v3138 = vunpack.c.l.b16 %v2980
  %v3139 = vunpack.c.h.b16 %v2980
  %v3140 = vunpack.c.l.b16 %v2981
  %v3141 = vunpack.c.h.b16 %v2981
  %v3142 = vunpack.c.l.b16 %v2982
  %v3143 = vunpack.c.h.b16 %v2982
  %v3144 = vunpack.c.l.b16 %v2983
  %v3145 = vunpack.c.h.b16 %v2983
  %v3146 = vunpack.c.l.b16 %v2984
  %v3147 = vunpack.c.h.b16 %v2984
  %v3148 = vunpack.c.l.b16 %v2985
  %v3149 = vunpack.c.h.b16 %v2985
  %v3150 = vunpack.c.l.b16 %v2986
  %v3151 = vunpack.c.h.b16 %v2986
  %v3152 = vunpack.c.l.b16 %v2987
  %v3153 = vunpack.c.h.b16 %v2987
  %v3154 = vunpack.c.l.b16 %v2988
  %v3155 = vunpack.c.h.b16 %v2988
  %v3156 = vunpack.c.l.b16 %v2989
  %v3157 = vunpack.c.h.b16 %v2989
  %v3158 = vunpack.c.l.b16 %v2990
  %v3159 = vunpack.c.h.b16 %v2990
  %v3160 = vunpack.c.l.b16 %v2991
  %v3161 = vunpack.c.h.b16 %v2991
  %v3162 = vunpack.c.l.b16 %v2992
  %v3163 = vunpack.c.h.b16 %v2992
  %v3164 = vunpack.c.l.b16 %v2993
  %v3165 = vunpack.c.h.b16 %v2993
  %v3166 = vunpack.c.l.b16 %v2994
  %v3167 = vunpack.c.h.b16 %v2994
  %v3168 = vunpack.c.l.b16 %v2995
  %v3169 = vunpack.c.h.b16 %v2995
  %v3170 = vunpack.c.l.b16 %v2996
  %v3171 = vunpack.c.h.b16 %v2996
  %v3172 = vunpack.c.l.b16 %v2997
  %v3173 = vunpack.c.h.b16 %v2997
  %v3174 = vunpack.c.l.b16 %v2998
  %v3175 = vunpack.c.h.b16 %v2998
  %v3176 = vunpack.c.l.b16 %v2999
  %v3177 = vunpack.c.h.b16 %v2999
  %v3178 = vunpack.c.l.b16 %v3000
  %v3179 = vunpack.c.h.b16 %v3000
  %v3180 = vunpack.c.l.b16 %v3001
  %v3181 = vunpack.c.h.b16 %v3001
  %v3182 = vunpack.c.l.b16 %v3002
  %v3183 = vunpack.c.h.b16 %v3002
  %v3184 = vunpack.c.l.b16 %v3003
  %v3185 = vunpack.c.h.b16 %v3003
  %v3186 = vunpack.c.l.b16 %v3004
  %v3187 = vunpack.c.h.b16 %v3004
  %v3188 = vunpack.c.l.b16 %v3005
  %v3189 = vunpack.c.h.b16 %v3005
  %v3190 = vunpack.c.l.b16 %v3006
  %v3191 = vunpack.c.h.b16 %v3006
  %v3192 = vunpack.c.l.b16 %v3007
  %v3193 = vunpack.c.h.b16 %v3007
  %v3194 = vunpack.c.l.b16 %v3008
  %v3195 = vunpack.c.h.b16 %v3008
  %v3196 = vunpack.c.l.b16 %v3009
  %v3197 = vunpack.c.h.b16 %v3009
  %v3198 = vunpack.c.l.b16 %v3010
  %v3199 = vunpack.c.h.b16 %v3010
  %v3200 = vunpack.c.l.b16 %v3011
  %v3201 = vunpack.c.h.b16 %v3011
  %v3202 = vunpack.c.l.b16 %v3012
  %v3203 = vunpack.c.h.b16 %v3012
  %v3204 = vunpack.c.l.b16 %v3013
  %v3205 = vunpack.c.h.b16 %v3013
  %v3206 = vunpack.c.l.b16 %v3014
  %v3207 = vunpack.c.h.b16 %v3014
  %v3208 = vunpack.c.l.b16 %v3015
  %v3209 = vunpack.c.h.b16 %v3015
  %v3210 = vunpack.c.l.b16 %v3016
  %v3211 = vunpack.c.h.b16 %v3016
  %v3212 = vunpack.c.l.b16 %v3017
  %v3213 = vunpack.c.h.b16 %v3017
  %v3214 = vunpack.c.l.b16 %v3018
  %v3215 = vunpack.c.h.b16 %v3018
  %v3216 = vunpack.c.l.b16 %v3019
  %v3217 = vunpack.c.h.b16 %v3019
  %v3218 = vunpack.c.l.b16 %v3020
  %v3219 = vunpack.c.h.b16 %v3020
  %v3220 = vunpack.c.l.b16 %v3021
  %v3221 = vunpack.c.h.b16 %v3021
  %v3222 = vunpack.c.l.b16 %v3022
  %v3223 = vunpack.c.h.b16 %v3022
  %v3224 = vunpack.c.l.b16 %v3023
  %v3225 = vunpack.c.h.b16 %v3023
  %v3226 = vunpack.c.l.b16 %v3024
  %v3227 = vunpack.c.h.b16 %v3024
  %v3228 = vunpack.c.l.b16 %v3025
  %v3229 = vunpack.c.h.b16 %v3025
  %v3230 = vpack.c.b16 %v3106, %v3102
  %v3231 = vpack.c.b16 %v3107, %v3103
  %v3232 = vpack.c.b16 %v3108, %v3104
  %v3233 = vpack.c.b16 %v3109, %v3105
  %v3234 = vpack.c.b16 %v3114, %v3110
  %v3235 = vpack.c.b16 %v3115, %v3111
  %v3236 = vpack.c.b16 %v3116, %v3112
  %v3237 = vpack.c.b16 %v3117, %v3113
  %v3238 = vpack.c.b16 %v3122, %v3118
  %v3239 = vpack.c.b16 %v3123, %v3119
  %v3240 = vpack.c.b16 %v3124, %v3120
  %v3241 = vpack.c.b16 %v3125, %v3121
  %v3242 = vpack.c.b16 %v3130, %v3126
  %v3243 = vpack.c.b16 %v3131, %v3127
  %v3244 = vpack.c.b16 %v3132, %v3128
  %v3245 = vpack.c.b16 %v3133, %v3129
  %v3246 = vpack.c.b16 %v3138, %v3134
  %v3247 = vpack.c.b16 %v3139, %v3135
  %v3248 = vpack.c.b16 %v3140, %v3136
  %v3249 = vpack.c.b16 %v3141, %v3137
  %v3250 = vpack.c.b16 %v3146, %v3142
  %v3251 = vpack.c.b16 %v3147, %v3143
  %v3252 = vpack.c.b16 %v3148, %v3144
  %v3253 = vpack.c.b16 %v3149, %v3145
  %v3254 = vpack.c.b16 %v3154, %v3150
  %v3255 = vpack.c.b16 %v3155, %v3151
  %v3256 = vpack.c.b16 %v3156, %v3152
  %v3257 = vpack.c.b16 %v3157, %v3153
  %v3258 = vpack.c.b16 %v3162, %v3158
  %v3259 = vpack.c.b16 %v3163, %v3159
  %v3260 = vpack.c.b16 %v3164, %v3160
  %v3261 = vpack.c.b16 %v3165, %v3161
  %v3262 = vpack.c.b16 %v3170, %v3166
  %v3263 = vpack.c.b16 %v3171, %v3167
  %v3264 = vpack.c.b16 %v3172, %v3168
  %v3265 = vpack.c.b16 %v3173, %v3169
  %v3266 = vpack.c.b16 %v3178, %v3174
  %v3267 = vpack.c.b16 %v3179, %v3175
  %v3268 = vpack.c.b16 %v3180, %v3176
  %v3269 = vpack.c.b16 %v3181, %v3177
  %v3270 = vpack.c.b16 %v3186, %v3182
  %v3271 = vpack.c.b16 %v3187, %v3183
  %v3272 = vpack.c.b16 %v3188, %v3184
  %v3273 = vpack.c.b16 %v3189, %v3185
  %v3274 = vpack.c.b16 %v3194, %v3190
  %v3275 = vpack.c.b16 %v3195, %v3191
  %v3276 = vpack.c.b16 %v3196, %v3192
  %v3277 = vpack.c.b16 %v3197, %v3193
  %v3278 = vpack.c.b16 %v3202, %v3198
  %v3279 = vpack.c.b16 %v3203, %v3199
  %v3280 = vpack.c.b16 %v3204, %v3200
  %v3281 = vpack.c.b16 %v3205, %v3201
  %v3282 = vpack.c.b16 %v3210, %v3206
  %v3283 = vpack.c.b16 %v3211, %v3207
  %v3284 = vpack.c.b16 %v3212, %v3208
  %v3285 = vpack.c.b16 %v3213, %v3209
  %v3286 = vpack.c.b16 %v3218, %v3214
  %v3287 = vpack.c.b16 %v3219, %v3215
  %v3288 = vpack.c.b16 %v3220, %v3216
  %v3289 = vpack.c.b16 %v3221, %v3217
  %v3290 = vpack.c.b16 %v3226, %v3222
  %v3291 = vpack.c.b16 %v3227, %v3223
  %v3292 = vpack.c.b16 %v3228, %v3224
  %v3293 = vpack.c.b16 %v3229, %v3225
  %3358 = vmatprep.subr.bf16.mxu0 %v3231
  %3359 = vmatpush1.bf16.msra.mxu0 %v3230
  %3360 = vmatprep.subr.bf16.mxu0 %v3235
  %3361 = vmatpush1.bf16.msra.mxu0 %v3234
  %3362 = vmatprep.subr.bf16.mxu0 %v3239
  %3363 = vmatpush1.bf16.msra.mxu0 %v3238
  %3364 = vmatprep.subr.bf16.mxu0 %v3243
  %3365 = vmatpush1.bf16.msra.mxu0 %v3242
  %3366 = vmatprep.subr.bf16.mxu0 %v3247
  %3367 = vmatpush1.bf16.msra.mxu0 %v3246
  %3368 = vmatprep.subr.bf16.mxu0 %v3251
  %3369 = vmatpush1.bf16.msra.mxu0 %v3250
  %3370 = vmatprep.subr.bf16.mxu0 %v3255
  %3371 = vmatpush1.bf16.msra.mxu0 %v3254
  %3372 = vmatprep.subr.bf16.mxu0 %v3259
  %3373 = vmatpush1.bf16.msra.mxu0 %v3258
  %3374 = vmatprep.subr.bf16.mxu0 %v3263
  %3375 = vmatpush1.bf16.msra.mxu0 %v3262
  %3376 = vmatprep.subr.bf16.mxu0 %v3267
  %3377 = vmatpush1.bf16.msra.mxu0 %v3266
  %3378 = vmatprep.subr.bf16.mxu0 %v3271
  %3379 = vmatpush1.bf16.msra.mxu0 %v3270
  %3380 = vmatprep.subr.bf16.mxu0 %v3275
  %3381 = vmatpush1.bf16.msra.mxu0 %v3274
  %3382 = vmatprep.subr.bf16.mxu0 %v3279
  %3383 = vmatpush1.bf16.msra.mxu0 %v3278
  %3384 = vmatprep.subr.bf16.mxu0 %v3283
  %3385 = vmatpush1.bf16.msra.mxu0 %v3282
  %3386 = vmatprep.subr.bf16.mxu0 %v3287
  %3387 = vmatpush1.bf16.msra.mxu0 %v3286
  %3388 = vmatprep.subr.bf16.mxu0 %v3291
  %3389 = vmatpush1.bf16.msra.mxu0 %v3290
  %3390 = vmatprep.mubr.bf16.mxu0 %v3035
  %3391 = vmatmul.mubr.bf16.gmra.mrb[0].mxu0 %v3034
  %v3392 = vpop.f32.mrb[0].mxu0
  %v3393 = vadd.f32 0.0, %v3392
  %v3394 = vpop.f32.mrb[0].mxu0
  %v3395 = vadd.f32 0.0, %v3394
  %v3396 = vpop.f32.mrb[0].mxu0
  %v3397 = vadd.f32 0.0, %v3396
  %v3398 = vpop.f32.mrb[0].mxu0
  %v3399 = vadd.f32 0.0, %v3398
  %3400 = vdwg.mxu0
  %3401 = vmatprep.subr.bf16.mxu0 %v3233
  %3402 = vmatpush1.bf16.msra.mxu0 %v3232
  %3403 = vmatprep.subr.bf16.mxu0 %v3237
  %3404 = vmatpush1.bf16.msra.mxu0 %v3236
  %3405 = vmatprep.subr.bf16.mxu0 %v3241
  %3406 = vmatpush1.bf16.msra.mxu0 %v3240
  %3407 = vmatprep.subr.bf16.mxu0 %v3245
  %3408 = vmatpush1.bf16.msra.mxu0 %v3244
  %3409 = vmatprep.subr.bf16.mxu0 %v3249
  %3410 = vmatpush1.bf16.msra.mxu0 %v3248
  %3411 = vmatprep.subr.bf16.mxu0 %v3253
  %3412 = vmatpush1.bf16.msra.mxu0 %v3252
  %3413 = vmatprep.subr.bf16.mxu0 %v3257
  %3414 = vmatpush1.bf16.msra.mxu0 %v3256
  %3415 = vmatprep.subr.bf16.mxu0 %v3261
  %3416 = vmatpush1.bf16.msra.mxu0 %v3260
  %3417 = vmatprep.subr.bf16.mxu0 %v3265
  %3418 = vmatpush1.bf16.msra.mxu0 %v3264
  %3419 = vmatprep.subr.bf16.mxu0 %v3269
  %3420 = vmatpush1.bf16.msra.mxu0 %v3268
  %3421 = vmatprep.subr.bf16.mxu0 %v3273
  %3422 = vmatpush1.bf16.msra.mxu0 %v3272
  %3423 = vmatprep.subr.bf16.mxu0 %v3277
  %3424 = vmatpush1.bf16.msra.mxu0 %v3276
  %3425 = vmatprep.subr.bf16.mxu0 %v3281
  %3426 = vmatpush1.bf16.msra.mxu0 %v3280
  %3427 = vmatprep.subr.bf16.mxu0 %v3285
  %3428 = vmatpush1.bf16.msra.mxu0 %v3284
  %3429 = vmatprep.subr.bf16.mxu0 %v3289
  %3430 = vmatpush1.bf16.msra.mxu0 %v3288
  %3431 = vmatprep.subr.bf16.mxu0 %v3293
  %3432 = vmatpush1.bf16.msra.mxu0 %v3292
  %3433 = vmatprep.mubr.bf16.mxu0 %v3035
  %3434 = vmatmul.mubr.bf16.gmra.mrb[0].mxu0 %v3034
  %v3435 = vpop.f32.mrb[0].mxu0
  %v3436 = vadd.f32 0.0, %v3435
  %v3437 = vpop.f32.mrb[0].mxu0
  %v3438 = vadd.f32 0.0, %v3437
  %v3439 = vpop.f32.mrb[0].mxu0
  %v3440 = vadd.f32 0.0, %v3439
  %v3441 = vpop.f32.mrb[0].mxu0
  %v3442 = vadd.f32 0.0, %v3441
  %3443 = vdwg.mxu0
  %v3444 = vadd.f32 %v2951, %v3393
  %v3445 = vadd.f32 %v2952, %v3395
  %v3446 = vadd.f32 %v2953, %v3436
  %v3447 = vadd.f32 %v2954, %v3438
  %v3448 = vadd.f32 %v2955, %v3397
  %v3449 = vadd.f32 %v2956, %v3399
  %v3450 = vadd.f32 %v2957, %v3440
  %v3451 = vadd.f32 %v2958, %v3442
  %v3452 = vld [vmem:[%s2] sm:$0xee]
  %v3453 = vld [vmem:[%s2 + $0x8] sm:$0x77]
  %s3454 = scalar_lea.vmem %s6, 3584
  %v3455 = vld [vmem:[%s3454] sm:$0xff]
  %v3456 = vld [vmem:[%s3454 + $0x8] sm:$0xff]
  %v3457 = vld [vmem:[%s3454 + $0x10] sm:$0xff]
  %v3458 = vld [vmem:[%s3454 + $0x18] sm:$0xff]
  %v3459 = vld [vmem:[%s3454 + $0x20] sm:$0xff]
  %v3460 = vld [vmem:[%s3454 + $0x28] sm:$0xff]
  %v3461 = vld [vmem:[%s3454 + $0x30] sm:$0xff]
  %v3462 = vld [vmem:[%s3454 + $0x38] sm:$0xff]
  %v3463 = vld [vmem:[%s3454 + $0x40] sm:$0xff]
  %v3464 = vld [vmem:[%s3454 + $0x48] sm:$0xff]
  %v3465 = vld [vmem:[%s3454 + $0x50] sm:$0xff]
  %v3466 = vld [vmem:[%s3454 + $0x58] sm:$0xff]
  %v3467 = vld [vmem:[%s3454 + $0x60] sm:$0xff]
  %v3468 = vld [vmem:[%s3454 + $0x68] sm:$0xff]
  %v3469 = vld [vmem:[%s3454 + $0x70] sm:$0xff]
  %v3470 = vld [vmem:[%s3454 + $0x78] sm:$0xff]
  %v3471 = vld [vmem:[%s3454 + $0x80] sm:$0xff]
  %v3472 = vld [vmem:[%s3454 + $0x88] sm:$0xff]
  %v3473 = vld [vmem:[%s3454 + $0x90] sm:$0xff]
  %v3474 = vld [vmem:[%s3454 + $0x98] sm:$0xff]
  %v3475 = vld [vmem:[%s3454 + $0xa0] sm:$0xff]
  %v3476 = vld [vmem:[%s3454 + $0xa8] sm:$0xff]
  %v3477 = vld [vmem:[%s3454 + $0xb0] sm:$0xff]
  %v3478 = vld [vmem:[%s3454 + $0xb8] sm:$0xff]
  %v3479 = vld [vmem:[%s3454 + $0xc0] sm:$0xff]
  %v3480 = vld [vmem:[%s3454 + $0xc8] sm:$0xff]
  %v3481 = vld [vmem:[%s3454 + $0xd0] sm:$0xff]
  %v3482 = vld [vmem:[%s3454 + $0xd8] sm:$0xff]
  %v3483 = vld [vmem:[%s3454 + $0xe0] sm:$0xff]
  %v3484 = vld [vmem:[%s3454 + $0xe8] sm:$0xff]
  %v3485 = vld [vmem:[%s3454 + $0xf0] sm:$0xff]
  %v3486 = vld [vmem:[%s3454 + $0xf8] sm:$0xff]
  %v3487 = vld [vmem:[%s3454 + $0x100] sm:$0xff]
  %v3488 = vld [vmem:[%s3454 + $0x108] sm:$0xff]
  %v3489 = vld [vmem:[%s3454 + $0x110] sm:$0xff]
  %v3490 = vld [vmem:[%s3454 + $0x118] sm:$0xff]
  %v3491 = vld [vmem:[%s3454 + $0x120] sm:$0xff]
  %v3492 = vld [vmem:[%s3454 + $0x128] sm:$0xff]
  %v3493 = vld [vmem:[%s3454 + $0x130] sm:$0xff]
  %v3494 = vld [vmem:[%s3454 + $0x138] sm:$0xff]
  %v3495 = vld [vmem:[%s3454 + $0x140] sm:$0xff]
  %v3496 = vld [vmem:[%s3454 + $0x148] sm:$0xff]
  %v3497 = vld [vmem:[%s3454 + $0x150] sm:$0xff]
  %v3498 = vld [vmem:[%s3454 + $0x158] sm:$0xff]
  %v3499 = vld [vmem:[%s3454 + $0x160] sm:$0xff]
  %v3500 = vld [vmem:[%s3454 + $0x168] sm:$0xff]
  %v3501 = vld [vmem:[%s3454 + $0x170] sm:$0xff]
  %v3502 = vld [vmem:[%s3454 + $0x178] sm:$0xff]
  %v3503 = vld [vmem:[%s3454 + $0x180] sm:$0xff]
  %v3504 = vld [vmem:[%s3454 + $0x188] sm:$0xff]
  %v3505 = vld [vmem:[%s3454 + $0x190] sm:$0xff]
  %v3506 = vld [vmem:[%s3454 + $0x198] sm:$0xff]
  %v3507 = vld [vmem:[%s3454 + $0x1a0] sm:$0xff]
  %v3508 = vld [vmem:[%s3454 + $0x1a8] sm:$0xff]
  %v3509 = vld [vmem:[%s3454 + $0x1b0] sm:$0xff]
  %v3510 = vld [vmem:[%s3454 + $0x1b8] sm:$0xff]
  %v3511 = vld [vmem:[%s3454 + $0x1c0] sm:$0xff]
  %v3512 = vld [vmem:[%s3454 + $0x1c8] sm:$0xff]
  %v3513 = vld [vmem:[%s3454 + $0x1d0] sm:$0xff]
  %v3514 = vld [vmem:[%s3454 + $0x1d8] sm:$0xff]
  %v3515 = vld [vmem:[%s3454 + $0x1e0] sm:$0xff]
  %v3516 = vld [vmem:[%s3454 + $0x1e8] sm:$0xff]
  %v3517 = vld [vmem:[%s3454 + $0x1f0] sm:$0xff]
  %v3518 = vld [vmem:[%s3454 + $0x1f8] sm:$0xff]
  %v3521 = vunpack.c.l.b16 %v3452
  %v3522 = vunpack.c.h.b16 %v3452
  %v3523 = vunpack.c.l.b16 %v3453
  %v3524 = vunpack.c.h.b16 %v3453
  %v3525 = vpack.c.b16 %v3523, %v3521
  %v3526 = vpack.c.b16 %v3524, %v3522
  %v3527 = vrot.slane %v3525, 1
  %v3528 = vrot.slane %v3526, 1
  %v3595 = vunpack.c.l.b16 %v3455
  %v3596 = vunpack.c.h.b16 %v3455
  %v3597 = vunpack.c.l.b16 %v3456
  %v3598 = vunpack.c.h.b16 %v3456
  %v3599 = vunpack.c.l.b16 %v3457
  %v3600 = vunpack.c.h.b16 %v3457
  %v3601 = vunpack.c.l.b16 %v3458
  %v3602 = vunpack.c.h.b16 %v3458
  %v3603 = vunpack.c.l.b16 %v3459
  %v3604 = vunpack.c.h.b16 %v3459
  %v3605 = vunpack.c.l.b16 %v3460
  %v3606 = vunpack.c.h.b16 %v3460
  %v3607 = vunpack.c.l.b16 %v3461
  %v3608 = vunpack.c.h.b16 %v3461
  %v3609 = vunpack.c.l.b16 %v3462
  %v3610 = vunpack.c.h.b16 %v3462
  %v3611 = vunpack.c.l.b16 %v3463
  %v3612 = vunpack.c.h.b16 %v3463
  %v3613 = vunpack.c.l.b16 %v3464
  %v3614 = vunpack.c.h.b16 %v3464
  %v3615 = vunpack.c.l.b16 %v3465
  %v3616 = vunpack.c.h.b16 %v3465
  %v3617 = vunpack.c.l.b16 %v3466
  %v3618 = vunpack.c.h.b16 %v3466
  %v3619 = vunpack.c.l.b16 %v3467
  %v3620 = vunpack.c.h.b16 %v3467
  %v3621 = vunpack.c.l.b16 %v3468
  %v3622 = vunpack.c.h.b16 %v3468
  %v3623 = vunpack.c.l.b16 %v3469
  %v3624 = vunpack.c.h.b16 %v3469
  %v3625 = vunpack.c.l.b16 %v3470
  %v3626 = vunpack.c.h.b16 %v3470
  %v3627 = vunpack.c.l.b16 %v3471
  %v3628 = vunpack.c.h.b16 %v3471
  %v3629 = vunpack.c.l.b16 %v3472
  %v3630 = vunpack.c.h.b16 %v3472
  %v3631 = vunpack.c.l.b16 %v3473
  %v3632 = vunpack.c.h.b16 %v3473
  %v3633 = vunpack.c.l.b16 %v3474
  %v3634 = vunpack.c.h.b16 %v3474
  %v3635 = vunpack.c.l.b16 %v3475
  %v3636 = vunpack.c.h.b16 %v3475
  %v3637 = vunpack.c.l.b16 %v3476
  %v3638 = vunpack.c.h.b16 %v3476
  %v3639 = vunpack.c.l.b16 %v3477
  %v3640 = vunpack.c.h.b16 %v3477
  %v3641 = vunpack.c.l.b16 %v3478
  %v3642 = vunpack.c.h.b16 %v3478
  %v3643 = vunpack.c.l.b16 %v3479
  %v3644 = vunpack.c.h.b16 %v3479
  %v3645 = vunpack.c.l.b16 %v3480
  %v3646 = vunpack.c.h.b16 %v3480
  %v3647 = vunpack.c.l.b16 %v3481
  %v3648 = vunpack.c.h.b16 %v3481
  %v3649 = vunpack.c.l.b16 %v3482
  %v3650 = vunpack.c.h.b16 %v3482
  %v3651 = vunpack.c.l.b16 %v3483
  %v3652 = vunpack.c.h.b16 %v3483
  %v3653 = vunpack.c.l.b16 %v3484
  %v3654 = vunpack.c.h.b16 %v3484
  %v3655 = vunpack.c.l.b16 %v3485
  %v3656 = vunpack.c.h.b16 %v3485
  %v3657 = vunpack.c.l.b16 %v3486
  %v3658 = vunpack.c.h.b16 %v3486
  %v3659 = vunpack.c.l.b16 %v3487
  %v3660 = vunpack.c.h.b16 %v3487
  %v3661 = vunpack.c.l.b16 %v3488
  %v3662 = vunpack.c.h.b16 %v3488
  %v3663 = vunpack.c.l.b16 %v3489
  %v3664 = vunpack.c.h.b16 %v3489
  %v3665 = vunpack.c.l.b16 %v3490
  %v3666 = vunpack.c.h.b16 %v3490
  %v3667 = vunpack.c.l.b16 %v3491
  %v3668 = vunpack.c.h.b16 %v3491
  %v3669 = vunpack.c.l.b16 %v3492
  %v3670 = vunpack.c.h.b16 %v3492
  %v3671 = vunpack.c.l.b16 %v3493
  %v3672 = vunpack.c.h.b16 %v3493
  %v3673 = vunpack.c.l.b16 %v3494
  %v3674 = vunpack.c.h.b16 %v3494
  %v3675 = vunpack.c.l.b16 %v3495
  %v3676 = vunpack.c.h.b16 %v3495
  %v3677 = vunpack.c.l.b16 %v3496
  %v3678 = vunpack.c.h.b16 %v3496
  %v3679 = vunpack.c.l.b16 %v3497
  %v3680 = vunpack.c.h.b16 %v3497
  %v3681 = vunpack.c.l.b16 %v3498
  %v3682 = vunpack.c.h.b16 %v3498
  %v3683 = vunpack.c.l.b16 %v3499
  %v3684 = vunpack.c.h.b16 %v3499
  %v3685 = vunpack.c.l.b16 %v3500
  %v3686 = vunpack.c.h.b16 %v3500
  %v3687 = vunpack.c.l.b16 %v3501
  %v3688 = vunpack.c.h.b16 %v3501
  %v3689 = vunpack.c.l.b16 %v3502
  %v3690 = vunpack.c.h.b16 %v3502
  %v3691 = vunpack.c.l.b16 %v3503
  %v3692 = vunpack.c.h.b16 %v3503
  %v3693 = vunpack.c.l.b16 %v3504
  %v3694 = vunpack.c.h.b16 %v3504
  %v3695 = vunpack.c.l.b16 %v3505
  %v3696 = vunpack.c.h.b16 %v3505
  %v3697 = vunpack.c.l.b16 %v3506
  %v3698 = vunpack.c.h.b16 %v3506
  %v3699 = vunpack.c.l.b16 %v3507
  %v3700 = vunpack.c.h.b16 %v3507
  %v3701 = vunpack.c.l.b16 %v3508
  %v3702 = vunpack.c.h.b16 %v3508
  %v3703 = vunpack.c.l.b16 %v3509
  %v3704 = vunpack.c.h.b16 %v3509
  %v3705 = vunpack.c.l.b16 %v3510
  %v3706 = vunpack.c.h.b16 %v3510
  %v3707 = vunpack.c.l.b16 %v3511
  %v3708 = vunpack.c.h.b16 %v3511
  %v3709 = vunpack.c.l.b16 %v3512
  %v3710 = vunpack.c.h.b16 %v3512
  %v3711 = vunpack.c.l.b16 %v3513
  %v3712 = vunpack.c.h.b16 %v3513
  %v3713 = vunpack.c.l.b16 %v3514
  %v3714 = vunpack.c.h.b16 %v3514
  %v3715 = vunpack.c.l.b16 %v3515
  %v3716 = vunpack.c.h.b16 %v3515
  %v3717 = vunpack.c.l.b16 %v3516
  %v3718 = vunpack.c.h.b16 %v3516
  %v3719 = vunpack.c.l.b16 %v3517
  %v3720 = vunpack.c.h.b16 %v3517
  %v3721 = vunpack.c.l.b16 %v3518
  %v3722 = vunpack.c.h.b16 %v3518
  %v3723 = vpack.c.b16 %v3599, %v3595
  %v3724 = vpack.c.b16 %v3600, %v3596
  %v3725 = vpack.c.b16 %v3601, %v3597
  %v3726 = vpack.c.b16 %v3602, %v3598
  %v3727 = vpack.c.b16 %v3607, %v3603
  %v3728 = vpack.c.b16 %v3608, %v3604
  %v3729 = vpack.c.b16 %v3609, %v3605
  %v3730 = vpack.c.b16 %v3610, %v3606
  %v3731 = vpack.c.b16 %v3615, %v3611
  %v3732 = vpack.c.b16 %v3616, %v3612
  %v3733 = vpack.c.b16 %v3617, %v3613
  %v3734 = vpack.c.b16 %v3618, %v3614
  %v3735 = vpack.c.b16 %v3623, %v3619
  %v3736 = vpack.c.b16 %v3624, %v3620
  %v3737 = vpack.c.b16 %v3625, %v3621
  %v3738 = vpack.c.b16 %v3626, %v3622
  %v3739 = vpack.c.b16 %v3631, %v3627
  %v3740 = vpack.c.b16 %v3632, %v3628
  %v3741 = vpack.c.b16 %v3633, %v3629
  %v3742 = vpack.c.b16 %v3634, %v3630
  %v3743 = vpack.c.b16 %v3639, %v3635
  %v3744 = vpack.c.b16 %v3640, %v3636
  %v3745 = vpack.c.b16 %v3641, %v3637
  %v3746 = vpack.c.b16 %v3642, %v3638
  %v3747 = vpack.c.b16 %v3647, %v3643
  %v3748 = vpack.c.b16 %v3648, %v3644
  %v3749 = vpack.c.b16 %v3649, %v3645
  %v3750 = vpack.c.b16 %v3650, %v3646
  %v3751 = vpack.c.b16 %v3655, %v3651
  %v3752 = vpack.c.b16 %v3656, %v3652
  %v3753 = vpack.c.b16 %v3657, %v3653
  %v3754 = vpack.c.b16 %v3658, %v3654
  %v3755 = vpack.c.b16 %v3663, %v3659
  %v3756 = vpack.c.b16 %v3664, %v3660
  %v3757 = vpack.c.b16 %v3665, %v3661
  %v3758 = vpack.c.b16 %v3666, %v3662
  %v3759 = vpack.c.b16 %v3671, %v3667
  %v3760 = vpack.c.b16 %v3672, %v3668
  %v3761 = vpack.c.b16 %v3673, %v3669
  %v3762 = vpack.c.b16 %v3674, %v3670
  %v3763 = vpack.c.b16 %v3679, %v3675
  %v3764 = vpack.c.b16 %v3680, %v3676
  %v3765 = vpack.c.b16 %v3681, %v3677
  %v3766 = vpack.c.b16 %v3682, %v3678
  %v3767 = vpack.c.b16 %v3687, %v3683
  %v3768 = vpack.c.b16 %v3688, %v3684
  %v3769 = vpack.c.b16 %v3689, %v3685
  %v3770 = vpack.c.b16 %v3690, %v3686
  %v3771 = vpack.c.b16 %v3695, %v3691
  %v3772 = vpack.c.b16 %v3696, %v3692
  %v3773 = vpack.c.b16 %v3697, %v3693
  %v3774 = vpack.c.b16 %v3698, %v3694
  %v3775 = vpack.c.b16 %v3703, %v3699
  %v3776 = vpack.c.b16 %v3704, %v3700
  %v3777 = vpack.c.b16 %v3705, %v3701
  %v3778 = vpack.c.b16 %v3706, %v3702
  %v3779 = vpack.c.b16 %v3711, %v3707
  %v3780 = vpack.c.b16 %v3712, %v3708
  %v3781 = vpack.c.b16 %v3713, %v3709
  %v3782 = vpack.c.b16 %v3714, %v3710
  %v3783 = vpack.c.b16 %v3719, %v3715
  %v3784 = vpack.c.b16 %v3720, %v3716
  %v3785 = vpack.c.b16 %v3721, %v3717
  %v3786 = vpack.c.b16 %v3722, %v3718
  %3851 = vmatprep.subr.bf16.mxu0 %v3724
  %3852 = vmatpush1.bf16.msra.mxu0 %v3723
  %3853 = vmatprep.subr.bf16.mxu0 %v3728
  %3854 = vmatpush1.bf16.msra.mxu0 %v3727
  %3855 = vmatprep.subr.bf16.mxu0 %v3732
  %3856 = vmatpush1.bf16.msra.mxu0 %v3731
  %3857 = vmatprep.subr.bf16.mxu0 %v3736
  %3858 = vmatpush1.bf16.msra.mxu0 %v3735
  %3859 = vmatprep.subr.bf16.mxu0 %v3740
  %3860 = vmatpush1.bf16.msra.mxu0 %v3739
  %3861 = vmatprep.subr.bf16.mxu0 %v3744
  %3862 = vmatpush1.bf16.msra.mxu0 %v3743
  %3863 = vmatprep.subr.bf16.mxu0 %v3748
  %3864 = vmatpush1.bf16.msra.mxu0 %v3747
  %3865 = vmatprep.subr.bf16.mxu0 %v3752
  %3866 = vmatpush1.bf16.msra.mxu0 %v3751
  %3867 = vmatprep.subr.bf16.mxu0 %v3756
  %3868 = vmatpush1.bf16.msra.mxu0 %v3755
  %3869 = vmatprep.subr.bf16.mxu0 %v3760
  %3870 = vmatpush1.bf16.msra.mxu0 %v3759
  %3871 = vmatprep.subr.bf16.mxu0 %v3764
  %3872 = vmatpush1.bf16.msra.mxu0 %v3763
  %3873 = vmatprep.subr.bf16.mxu0 %v3768
  %3874 = vmatpush1.bf16.msra.mxu0 %v3767
  %3875 = vmatprep.subr.bf16.mxu0 %v3772
  %3876 = vmatpush1.bf16.msra.mxu0 %v3771
  %3877 = vmatprep.subr.bf16.mxu0 %v3776
  %3878 = vmatpush1.bf16.msra.mxu0 %v3775
  %3879 = vmatprep.subr.bf16.mxu0 %v3780
  %3880 = vmatpush1.bf16.msra.mxu0 %v3779
  %3881 = vmatprep.subr.bf16.mxu0 %v3784
  %3882 = vmatpush1.bf16.msra.mxu0 %v3783
  %3883 = vmatprep.mubr.bf16.mxu0 %v3528
  %3884 = vmatmul.mubr.bf16.gmra.mrb[0].mxu0 %v3527
  %v3885 = vpop.f32.mrb[0].mxu0
  %v3886 = vadd.f32 0.0, %v3885
  %v3887 = vpop.f32.mrb[0].mxu0
  %v3888 = vadd.f32 0.0, %v3887
  %v3889 = vpop.f32.mrb[0].mxu0
  %v3890 = vadd.f32 0.0, %v3889
  %v3891 = vpop.f32.mrb[0].mxu0
  %v3892 = vadd.f32 0.0, %v3891
  %3893 = vdwg.mxu0
  %3894 = vmatprep.subr.bf16.mxu0 %v3726
  %3895 = vmatpush1.bf16.msra.mxu0 %v3725
  %3896 = vmatprep.subr.bf16.mxu0 %v3730
  %3897 = vmatpush1.bf16.msra.mxu0 %v3729
  %3898 = vmatprep.subr.bf16.mxu0 %v3734
  %3899 = vmatpush1.bf16.msra.mxu0 %v3733
  %3900 = vmatprep.subr.bf16.mxu0 %v3738
  %3901 = vmatpush1.bf16.msra.mxu0 %v3737
  %3902 = vmatprep.subr.bf16.mxu0 %v3742
  %3903 = vmatpush1.bf16.msra.mxu0 %v3741
  %3904 = vmatprep.subr.bf16.mxu0 %v3746
  %3905 = vmatpush1.bf16.msra.mxu0 %v3745
  %3906 = vmatprep.subr.bf16.mxu0 %v3750
  %3907 = vmatpush1.bf16.msra.mxu0 %v3749
  %3908 = vmatprep.subr.bf16.mxu0 %v3754
  %3909 = vmatpush1.bf16.msra.mxu0 %v3753
  %3910 = vmatprep.subr.bf16.mxu0 %v3758
  %3911 = vmatpush1.bf16.msra.mxu0 %v3757
  %3912 = vmatprep.subr.bf16.mxu0 %v3762
  %3913 = vmatpush1.bf16.msra.mxu0 %v3761
  %3914 = vmatprep.subr.bf16.mxu0 %v3766
  %3915 = vmatpush1.bf16.msra.mxu0 %v3765
  %3916 = vmatprep.subr.bf16.mxu0 %v3770
  %3917 = vmatpush1.bf16.msra.mxu0 %v3769
  %3918 = vmatprep.subr.bf16.mxu0 %v3774
  %3919 = vmatpush1.bf16.msra.mxu0 %v3773
  %3920 = vmatprep.subr.bf16.mxu0 %v3778
  %3921 = vmatpush1.bf16.msra.mxu0 %v3777
  %3922 = vmatprep.subr.bf16.mxu0 %v3782
  %3923 = vmatpush1.bf16.msra.mxu0 %v3781
  %3924 = vmatprep.subr.bf16.mxu0 %v3786
  %3925 = vmatpush1.bf16.msra.mxu0 %v3785
  %3926 = vmatprep.mubr.bf16.mxu0 %v3528
  %3927 = vmatmul.mubr.bf16.gmra.mrb[0].mxu0 %v3527
  %v3928 = vpop.f32.mrb[0].mxu0
  %v3929 = vadd.f32 0.0, %v3928
  %v3930 = vpop.f32.mrb[0].mxu0
  %v3931 = vadd.f32 0.0, %v3930
  %v3932 = vpop.f32.mrb[0].mxu0
  %v3933 = vadd.f32 0.0, %v3932
  %v3934 = vpop.f32.mrb[0].mxu0
  %v3935 = vadd.f32 0.0, %v3934
  %3936 = vdwg.mxu0
  %v3937 = vadd.f32 %v3444, %v3886
  %v3938 = vadd.f32 %v3445, %v3888
  %v3939 = vadd.f32 %v3446, %v3929
  %v3940 = vadd.f32 %v3447, %v3931
  %v3941 = vadd.f32 %v3448, %v3890
  %v3942 = vadd.f32 %v3449, %v3892
  %v3943 = vadd.f32 %v3450, %v3933
  %v3944 = vadd.f32 %v3451, %v3935
  %v3945 = vld [vmem:[%s1] sm:$0xee]
  %v3946 = vld [vmem:[%s1 + $0x8] sm:$0x77]
  %s3947 = scalar_lea.vmem %s6, 4096
  %v3948 = vld [vmem:[%s3947] sm:$0xff]
  %v3949 = vld [vmem:[%s3947 + $0x8] sm:$0xff]
  %v3950 = vld [vmem:[%s3947 + $0x10] sm:$0xff]
  %v3951 = vld [vmem:[%s3947 + $0x18] sm:$0xff]
  %v3952 = vld [vmem:[%s3947 + $0x20] sm:$0xff]
  %v3953 = vld [vmem:[%s3947 + $0x28] sm:$0xff]
  %v3954 = vld [vmem:[%s3947 + $0x30] sm:$0xff]
  %v3955 = vld [vmem:[%s3947 + $0x38] sm:$0xff]
  %v3956 = vld [vmem:[%s3947 + $0x40] sm:$0xff]
  %v3957 = vld [vmem:[%s3947 + $0x48] sm:$0xff]
  %v3958 = vld [vmem:[%s3947 + $0x50] sm:$0xff]
  %v3959 = vld [vmem:[%s3947 + $0x58] sm:$0xff]
  %v3960 = vld [vmem:[%s3947 + $0x60] sm:$0xff]
  %v3961 = vld [vmem:[%s3947 + $0x68] sm:$0xff]
  %v3962 = vld [vmem:[%s3947 + $0x70] sm:$0xff]
  %v3963 = vld [vmem:[%s3947 + $0x78] sm:$0xff]
  %v3964 = vld [vmem:[%s3947 + $0x80] sm:$0xff]
  %v3965 = vld [vmem:[%s3947 + $0x88] sm:$0xff]
  %v3966 = vld [vmem:[%s3947 + $0x90] sm:$0xff]
  %v3967 = vld [vmem:[%s3947 + $0x98] sm:$0xff]
  %v3968 = vld [vmem:[%s3947 + $0xa0] sm:$0xff]
  %v3969 = vld [vmem:[%s3947 + $0xa8] sm:$0xff]
  %v3970 = vld [vmem:[%s3947 + $0xb0] sm:$0xff]
  %v3971 = vld [vmem:[%s3947 + $0xb8] sm:$0xff]
  %v3972 = vld [vmem:[%s3947 + $0xc0] sm:$0xff]
  %v3973 = vld [vmem:[%s3947 + $0xc8] sm:$0xff]
  %v3974 = vld [vmem:[%s3947 + $0xd0] sm:$0xff]
  %v3975 = vld [vmem:[%s3947 + $0xd8] sm:$0xff]
  %v3976 = vld [vmem:[%s3947 + $0xe0] sm:$0xff]
  %v3977 = vld [vmem:[%s3947 + $0xe8] sm:$0xff]
  %v3978 = vld [vmem:[%s3947 + $0xf0] sm:$0xff]
  %v3979 = vld [vmem:[%s3947 + $0xf8] sm:$0xff]
  %v3980 = vld [vmem:[%s3947 + $0x100] sm:$0xff]
  %v3981 = vld [vmem:[%s3947 + $0x108] sm:$0xff]
  %v3982 = vld [vmem:[%s3947 + $0x110] sm:$0xff]
  %v3983 = vld [vmem:[%s3947 + $0x118] sm:$0xff]
  %v3984 = vld [vmem:[%s3947 + $0x120] sm:$0xff]
  %v3985 = vld [vmem:[%s3947 + $0x128] sm:$0xff]
  %v3986 = vld [vmem:[%s3947 + $0x130] sm:$0xff]
  %v3987 = vld [vmem:[%s3947 + $0x138] sm:$0xff]
  %v3988 = vld [vmem:[%s3947 + $0x140] sm:$0xff]
  %v3989 = vld [vmem:[%s3947 + $0x148] sm:$0xff]
  %v3990 = vld [vmem:[%s3947 + $0x150] sm:$0xff]
  %v3991 = vld [vmem:[%s3947 + $0x158] sm:$0xff]
  %v3992 = vld [vmem:[%s3947 + $0x160] sm:$0xff]
  %v3993 = vld [vmem:[%s3947 + $0x168] sm:$0xff]
  %v3994 = vld [vmem:[%s3947 + $0x170] sm:$0xff]
  %v3995 = vld [vmem:[%s3947 + $0x178] sm:$0xff]
  %v3996 = vld [vmem:[%s3947 + $0x180] sm:$0xff]
  %v3997 = vld [vmem:[%s3947 + $0x188] sm:$0xff]
  %v3998 = vld [vmem:[%s3947 + $0x190] sm:$0xff]
  %v3999 = vld [vmem:[%s3947 + $0x198] sm:$0xff]
  %v4000 = vld [vmem:[%s3947 + $0x1a0] sm:$0xff]
  %v4001 = vld [vmem:[%s3947 + $0x1a8] sm:$0xff]
  %v4002 = vld [vmem:[%s3947 + $0x1b0] sm:$0xff]
  %v4003 = vld [vmem:[%s3947 + $0x1b8] sm:$0xff]
  %v4004 = vld [vmem:[%s3947 + $0x1c0] sm:$0xff]
  %v4005 = vld [vmem:[%s3947 + $0x1c8] sm:$0xff]
  %v4006 = vld [vmem:[%s3947 + $0x1d0] sm:$0xff]
  %v4007 = vld [vmem:[%s3947 + $0x1d8] sm:$0xff]
  %v4008 = vld [vmem:[%s3947 + $0x1e0] sm:$0xff]
  %v4009 = vld [vmem:[%s3947 + $0x1e8] sm:$0xff]
  %v4010 = vld [vmem:[%s3947 + $0x1f0] sm:$0xff]
  %v4011 = vld [vmem:[%s3947 + $0x1f8] sm:$0xff]
  %v4014 = vunpack.c.l.b16 %v3945
  %v4015 = vunpack.c.h.b16 %v3945
  %v4016 = vunpack.c.l.b16 %v3946
  %v4017 = vunpack.c.h.b16 %v3946
  %v4018 = vpack.c.b16 %v4016, %v4014
  %v4019 = vpack.c.b16 %v4017, %v4015
  %v4020 = vrot.slane %v4018, 1
  %v4021 = vrot.slane %v4019, 1
  %v4088 = vunpack.c.l.b16 %v3948
  %v4089 = vunpack.c.h.b16 %v3948
  %v4090 = vunpack.c.l.b16 %v3949
  %v4091 = vunpack.c.h.b16 %v3949
  %v4092 = vunpack.c.l.b16 %v3950
  %v4093 = vunpack.c.h.b16 %v3950
  %v4094 = vunpack.c.l.b16 %v3951
  %v4095 = vunpack.c.h.b16 %v3951
  %v4096 = vunpack.c.l.b16 %v3952
  %v4097 = vunpack.c.h.b16 %v3952
  %v4098 = vunpack.c.l.b16 %v3953
  %v4099 = vunpack.c.h.b16 %v3953
  %v4100 = vunpack.c.l.b16 %v3954
  %v4101 = vunpack.c.h.b16 %v3954
  %v4102 = vunpack.c.l.b16 %v3955
  %v4103 = vunpack.c.h.b16 %v3955
  %v4104 = vunpack.c.l.b16 %v3956
  %v4105 = vunpack.c.h.b16 %v3956
  %v4106 = vunpack.c.l.b16 %v3957
  %v4107 = vunpack.c.h.b16 %v3957
  %v4108 = vunpack.c.l.b16 %v3958
  %v4109 = vunpack.c.h.b16 %v3958
  %v4110 = vunpack.c.l.b16 %v3959
  %v4111 = vunpack.c.h.b16 %v3959
  %v4112 = vunpack.c.l.b16 %v3960
  %v4113 = vunpack.c.h.b16 %v3960
  %v4114 = vunpack.c.l.b16 %v3961
  %v4115 = vunpack.c.h.b16 %v3961
  %v4116 = vunpack.c.l.b16 %v3962
  %v4117 = vunpack.c.h.b16 %v3962
  %v4118 = vunpack.c.l.b16 %v3963
  %v4119 = vunpack.c.h.b16 %v3963
  %v4120 = vunpack.c.l.b16 %v3964
  %v4121 = vunpack.c.h.b16 %v3964
  %v4122 = vunpack.c.l.b16 %v3965
  %v4123 = vunpack.c.h.b16 %v3965
  %v4124 = vunpack.c.l.b16 %v3966
  %v4125 = vunpack.c.h.b16 %v3966
  %v4126 = vunpack.c.l.b16 %v3967
  %v4127 = vunpack.c.h.b16 %v3967
  %v4128 = vunpack.c.l.b16 %v3968
  %v4129 = vunpack.c.h.b16 %v3968
  %v4130 = vunpack.c.l.b16 %v3969
  %v4131 = vunpack.c.h.b16 %v3969
  %v4132 = vunpack.c.l.b16 %v3970
  %v4133 = vunpack.c.h.b16 %v3970
  %v4134 = vunpack.c.l.b16 %v3971
  %v4135 = vunpack.c.h.b16 %v3971
  %v4136 = vunpack.c.l.b16 %v3972
  %v4137 = vunpack.c.h.b16 %v3972
  %v4138 = vunpack.c.l.b16 %v3973
  %v4139 = vunpack.c.h.b16 %v3973
  %v4140 = vunpack.c.l.b16 %v3974
  %v4141 = vunpack.c.h.b16 %v3974
  %v4142 = vunpack.c.l.b16 %v3975
  %v4143 = vunpack.c.h.b16 %v3975
  %v4144 = vunpack.c.l.b16 %v3976
  %v4145 = vunpack.c.h.b16 %v3976
  %v4146 = vunpack.c.l.b16 %v3977
  %v4147 = vunpack.c.h.b16 %v3977
  %v4148 = vunpack.c.l.b16 %v3978
  %v4149 = vunpack.c.h.b16 %v3978
  %v4150 = vunpack.c.l.b16 %v3979
  %v4151 = vunpack.c.h.b16 %v3979
  %v4152 = vunpack.c.l.b16 %v3980
  %v4153 = vunpack.c.h.b16 %v3980
  %v4154 = vunpack.c.l.b16 %v3981
  %v4155 = vunpack.c.h.b16 %v3981
  %v4156 = vunpack.c.l.b16 %v3982
  %v4157 = vunpack.c.h.b16 %v3982
  %v4158 = vunpack.c.l.b16 %v3983
  %v4159 = vunpack.c.h.b16 %v3983
  %v4160 = vunpack.c.l.b16 %v3984
  %v4161 = vunpack.c.h.b16 %v3984
  %v4162 = vunpack.c.l.b16 %v3985
  %v4163 = vunpack.c.h.b16 %v3985
  %v4164 = vunpack.c.l.b16 %v3986
  %v4165 = vunpack.c.h.b16 %v3986
  %v4166 = vunpack.c.l.b16 %v3987
  %v4167 = vunpack.c.h.b16 %v3987
  %v4168 = vunpack.c.l.b16 %v3988
  %v4169 = vunpack.c.h.b16 %v3988
  %v4170 = vunpack.c.l.b16 %v3989
  %v4171 = vunpack.c.h.b16 %v3989
  %v4172 = vunpack.c.l.b16 %v3990
  %v4173 = vunpack.c.h.b16 %v3990
  %v4174 = vunpack.c.l.b16 %v3991
  %v4175 = vunpack.c.h.b16 %v3991
  %v4176 = vunpack.c.l.b16 %v3992
  %v4177 = vunpack.c.h.b16 %v3992
  %v4178 = vunpack.c.l.b16 %v3993
  %v4179 = vunpack.c.h.b16 %v3993
  %v4180 = vunpack.c.l.b16 %v3994
  %v4181 = vunpack.c.h.b16 %v3994
  %v4182 = vunpack.c.l.b16 %v3995
  %v4183 = vunpack.c.h.b16 %v3995
  %v4184 = vunpack.c.l.b16 %v3996
  %v4185 = vunpack.c.h.b16 %v3996
  %v4186 = vunpack.c.l.b16 %v3997
  %v4187 = vunpack.c.h.b16 %v3997
  %v4188 = vunpack.c.l.b16 %v3998
  %v4189 = vunpack.c.h.b16 %v3998
  %v4190 = vunpack.c.l.b16 %v3999
  %v4191 = vunpack.c.h.b16 %v3999
  %v4192 = vunpack.c.l.b16 %v4000
  %v4193 = vunpack.c.h.b16 %v4000
  %v4194 = vunpack.c.l.b16 %v4001
  %v4195 = vunpack.c.h.b16 %v4001
  %v4196 = vunpack.c.l.b16 %v4002
  %v4197 = vunpack.c.h.b16 %v4002
  %v4198 = vunpack.c.l.b16 %v4003
  %v4199 = vunpack.c.h.b16 %v4003
  %v4200 = vunpack.c.l.b16 %v4004
  %v4201 = vunpack.c.h.b16 %v4004
  %v4202 = vunpack.c.l.b16 %v4005
  %v4203 = vunpack.c.h.b16 %v4005
  %v4204 = vunpack.c.l.b16 %v4006
  %v4205 = vunpack.c.h.b16 %v4006
  %v4206 = vunpack.c.l.b16 %v4007
  %v4207 = vunpack.c.h.b16 %v4007
  %v4208 = vunpack.c.l.b16 %v4008
  %v4209 = vunpack.c.h.b16 %v4008
  %v4210 = vunpack.c.l.b16 %v4009
  %v4211 = vunpack.c.h.b16 %v4009
  %v4212 = vunpack.c.l.b16 %v4010
  %v4213 = vunpack.c.h.b16 %v4010
  %v4214 = vunpack.c.l.b16 %v4011
  %v4215 = vunpack.c.h.b16 %v4011
  %v4216 = vpack.c.b16 %v4092, %v4088
  %v4217 = vpack.c.b16 %v4093, %v4089
  %v4218 = vpack.c.b16 %v4094, %v4090
  %v4219 = vpack.c.b16 %v4095, %v4091
  %v4220 = vpack.c.b16 %v4100, %v4096
  %v4221 = vpack.c.b16 %v4101, %v4097
  %v4222 = vpack.c.b16 %v4102, %v4098
  %v4223 = vpack.c.b16 %v4103, %v4099
  %v4224 = vpack.c.b16 %v4108, %v4104
  %v4225 = vpack.c.b16 %v4109, %v4105
  %v4226 = vpack.c.b16 %v4110, %v4106
  %v4227 = vpack.c.b16 %v4111, %v4107
  %v4228 = vpack.c.b16 %v4116, %v4112
  %v4229 = vpack.c.b16 %v4117, %v4113
  %v4230 = vpack.c.b16 %v4118, %v4114
  %v4231 = vpack.c.b16 %v4119, %v4115
  %v4232 = vpack.c.b16 %v4124, %v4120
  %v4233 = vpack.c.b16 %v4125, %v4121
  %v4234 = vpack.c.b16 %v4126, %v4122
  %v4235 = vpack.c.b16 %v4127, %v4123
  %v4236 = vpack.c.b16 %v4132, %v4128
  %v4237 = vpack.c.b16 %v4133, %v4129
  %v4238 = vpack.c.b16 %v4134, %v4130
  %v4239 = vpack.c.b16 %v4135, %v4131
  %v4240 = vpack.c.b16 %v4140, %v4136
  %v4241 = vpack.c.b16 %v4141, %v4137
  %v4242 = vpack.c.b16 %v4142, %v4138
  %v4243 = vpack.c.b16 %v4143, %v4139
  %v4244 = vpack.c.b16 %v4148, %v4144
  %v4245 = vpack.c.b16 %v4149, %v4145
  %v4246 = vpack.c.b16 %v4150, %v4146
  %v4247 = vpack.c.b16 %v4151, %v4147
  %v4248 = vpack.c.b16 %v4156, %v4152
  %v4249 = vpack.c.b16 %v4157, %v4153
  %v4250 = vpack.c.b16 %v4158, %v4154
  %v4251 = vpack.c.b16 %v4159, %v4155
  %v4252 = vpack.c.b16 %v4164, %v4160
  %v4253 = vpack.c.b16 %v4165, %v4161
  %v4254 = vpack.c.b16 %v4166, %v4162
  %v4255 = vpack.c.b16 %v4167, %v4163
  %v4256 = vpack.c.b16 %v4172, %v4168
  %v4257 = vpack.c.b16 %v4173, %v4169
  %v4258 = vpack.c.b16 %v4174, %v4170
  %v4259 = vpack.c.b16 %v4175, %v4171
  %v4260 = vpack.c.b16 %v4180, %v4176
  %v4261 = vpack.c.b16 %v4181, %v4177
  %v4262 = vpack.c.b16 %v4182, %v4178
  %v4263 = vpack.c.b16 %v4183, %v4179
  %v4264 = vpack.c.b16 %v4188, %v4184
  %v4265 = vpack.c.b16 %v4189, %v4185
  %v4266 = vpack.c.b16 %v4190, %v4186
  %v4267 = vpack.c.b16 %v4191, %v4187
  %v4268 = vpack.c.b16 %v4196, %v4192
  %v4269 = vpack.c.b16 %v4197, %v4193
  %v4270 = vpack.c.b16 %v4198, %v4194
  %v4271 = vpack.c.b16 %v4199, %v4195
  %v4272 = vpack.c.b16 %v4204, %v4200
  %v4273 = vpack.c.b16 %v4205, %v4201
  %v4274 = vpack.c.b16 %v4206, %v4202
  %v4275 = vpack.c.b16 %v4207, %v4203
  %v4276 = vpack.c.b16 %v4212, %v4208
  %v4277 = vpack.c.b16 %v4213, %v4209
  %v4278 = vpack.c.b16 %v4214, %v4210
  %v4279 = vpack.c.b16 %v4215, %v4211
  %4344 = vmatprep.subr.bf16.mxu0 %v4217
  %4345 = vmatpush1.bf16.msra.mxu0 %v4216
  %4346 = vmatprep.subr.bf16.mxu0 %v4221
  %4347 = vmatpush1.bf16.msra.mxu0 %v4220
  %4348 = vmatprep.subr.bf16.mxu0 %v4225
  %4349 = vmatpush1.bf16.msra.mxu0 %v4224
  %4350 = vmatprep.subr.bf16.mxu0 %v4229
  %4351 = vmatpush1.bf16.msra.mxu0 %v4228
  %4352 = vmatprep.subr.bf16.mxu0 %v4233
  %4353 = vmatpush1.bf16.msra.mxu0 %v4232
  %4354 = vmatprep.subr.bf16.mxu0 %v4237
  %4355 = vmatpush1.bf16.msra.mxu0 %v4236
  %4356 = vmatprep.subr.bf16.mxu0 %v4241
  %4357 = vmatpush1.bf16.msra.mxu0 %v4240
  %4358 = vmatprep.subr.bf16.mxu0 %v4245
  %4359 = vmatpush1.bf16.msra.mxu0 %v4244
  %4360 = vmatprep.subr.bf16.mxu0 %v4249
  %4361 = vmatpush1.bf16.msra.mxu0 %v4248
  %4362 = vmatprep.subr.bf16.mxu0 %v4253
  %4363 = vmatpush1.bf16.msra.mxu0 %v4252
  %4364 = vmatprep.subr.bf16.mxu0 %v4257
  %4365 = vmatpush1.bf16.msra.mxu0 %v4256
  %4366 = vmatprep.subr.bf16.mxu0 %v4261
  %4367 = vmatpush1.bf16.msra.mxu0 %v4260
  %4368 = vmatprep.subr.bf16.mxu0 %v4265
  %4369 = vmatpush1.bf16.msra.mxu0 %v4264
  %4370 = vmatprep.subr.bf16.mxu0 %v4269
  %4371 = vmatpush1.bf16.msra.mxu0 %v4268
  %4372 = vmatprep.subr.bf16.mxu0 %v4273
  %4373 = vmatpush1.bf16.msra.mxu0 %v4272
  %4374 = vmatprep.subr.bf16.mxu0 %v4277
  %4375 = vmatpush1.bf16.msra.mxu0 %v4276
  %4376 = vmatprep.mubr.bf16.mxu0 %v4021
  %4377 = vmatmul.mubr.bf16.gmra.mrb[0].mxu0 %v4020
  %v4378 = vpop.f32.mrb[0].mxu0
  %v4379 = vadd.f32 0.0, %v4378
  %v4380 = vpop.f32.mrb[0].mxu0
  %v4381 = vadd.f32 0.0, %v4380
  %v4382 = vpop.f32.mrb[0].mxu0
  %v4383 = vadd.f32 0.0, %v4382
  %v4384 = vpop.f32.mrb[0].mxu0
  %v4385 = vadd.f32 0.0, %v4384
  %4386 = vdwg.mxu0
  %4387 = vmatprep.subr.bf16.mxu0 %v4219
  %4388 = vmatpush1.bf16.msra.mxu0 %v4218
  %4389 = vmatprep.subr.bf16.mxu0 %v4223
  %4390 = vmatpush1.bf16.msra.mxu0 %v4222
  %4391 = vmatprep.subr.bf16.mxu0 %v4227
  %4392 = vmatpush1.bf16.msra.mxu0 %v4226
  %4393 = vmatprep.subr.bf16.mxu0 %v4231
  %4394 = vmatpush1.bf16.msra.mxu0 %v4230
  %4395 = vmatprep.subr.bf16.mxu0 %v4235
  %4396 = vmatpush1.bf16.msra.mxu0 %v4234
  %4397 = vmatprep.subr.bf16.mxu0 %v4239
  %4398 = vmatpush1.bf16.msra.mxu0 %v4238
  %4399 = vmatprep.subr.bf16.mxu0 %v4243
  %4400 = vmatpush1.bf16.msra.mxu0 %v4242
  %4401 = vmatprep.subr.bf16.mxu0 %v4247
  %4402 = vmatpush1.bf16.msra.mxu0 %v4246
  %4403 = vmatprep.subr.bf16.mxu0 %v4251
  %4404 = vmatpush1.bf16.msra.mxu0 %v4250
  %4405 = vmatprep.subr.bf16.mxu0 %v4255
  %4406 = vmatpush1.bf16.msra.mxu0 %v4254
  %4407 = vmatprep.subr.bf16.mxu0 %v4259
  %4408 = vmatpush1.bf16.msra.mxu0 %v4258
  %4409 = vmatprep.subr.bf16.mxu0 %v4263
  %4410 = vmatpush1.bf16.msra.mxu0 %v4262
  %4411 = vmatprep.subr.bf16.mxu0 %v4267
  %4412 = vmatpush1.bf16.msra.mxu0 %v4266
  %4413 = vmatprep.subr.bf16.mxu0 %v4271
  %4414 = vmatpush1.bf16.msra.mxu0 %v4270
  %4415 = vmatprep.subr.bf16.mxu0 %v4275
  %4416 = vmatpush1.bf16.msra.mxu0 %v4274
  %4417 = vmatprep.subr.bf16.mxu0 %v4279
  %4418 = vmatpush1.bf16.msra.mxu0 %v4278
  %4419 = vmatprep.mubr.bf16.mxu0 %v4021
  %4420 = vmatmul.mubr.bf16.gmra.mrb[0].mxu0 %v4020
  %v4421 = vpop.f32.mrb[0].mxu0
  %v4422 = vadd.f32 0.0, %v4421
  %v4423 = vpop.f32.mrb[0].mxu0
  %v4424 = vadd.f32 0.0, %v4423
  %v4425 = vpop.f32.mrb[0].mxu0
  %v4426 = vadd.f32 0.0, %v4425
  %v4427 = vpop.f32.mrb[0].mxu0
  %v4428 = vadd.f32 0.0, %v4427
  %4429 = vdwg.mxu0
  %v4430 = vadd.f32 %v3937, %v4379
  %v4431 = vadd.f32 %v3938, %v4381
  %v4432 = vadd.f32 %v3939, %v4422
  %v4433 = vadd.f32 %v3940, %v4424
  %v4434 = vadd.f32 %v3941, %v4383
  %v4435 = vadd.f32 %v3942, %v4385
  %v4436 = vadd.f32 %v3943, %v4426
  %v4437 = vadd.f32 %v3944, %v4428
  %v4438 = vld [vmem:[%s7] sm:$0xf]
  %v4440 = vlaneseq
  %v4441 = vshrl.u32 %v4440, 7
  %v4442 = vsub.s32 0, %v4441
  %v4443 = vrot.slane %v4438, %v4442
  %v4444 = vlaneseq
  %v4445 = vshrl.u32 %v4444, 7
  %v4446 = vsub.s32 1, %v4445
  %v4447 = vrot.slane %v4438, %v4446
  %v4448 = vlaneseq
  %v4449 = vshrl.u32 %v4448, 7
  %v4450 = vsub.s32 2, %v4449
  %v4451 = vrot.slane %v4438, %v4450
  %v4452 = vlaneseq
  %v4453 = vshrl.u32 %v4452, 7
  %v4454 = vsub.s32 3, %v4453
  %v4455 = vrot.slane %v4438, %v4454
  %v4460 = vadd.f32 %v4430, %v4443
  %v4461 = vadd.f32 %v4431, %v4447
  %v4462 = vadd.f32 %v4432, %v4451
  %v4463 = vadd.f32 %v4433, %v4455
  %v4464 = vadd.f32 %v4434, %v4443
  %v4465 = vadd.f32 %v4435, %v4447
  %v4466 = vadd.f32 %v4436, %v4451
  %v4467 = vadd.f32 %v4437, %v4455
  %vm4468 = vcmp.gt.f32.partialorder %v4460, 0.0
  %vm4469 = vcmp.gt.f32.partialorder %v4461, 0.0
  %vm4470 = vcmp.gt.f32.partialorder %v4462, 0.0
  %vm4471 = vcmp.gt.f32.partialorder %v4463, 0.0
  %vm4472 = vcmp.gt.f32.partialorder %v4464, 0.0
  %vm4473 = vcmp.gt.f32.partialorder %v4465, 0.0
  %vm4474 = vcmp.gt.f32.partialorder %v4466, 0.0
  %vm4475 = vcmp.gt.f32.partialorder %v4467, 0.0
  %v4476 = vmul.f32 %v4460, 0.2
  %v4477 = vmul.f32 %v4461, 0.2
  %v4478 = vmul.f32 %v4462, 0.2
  %v4479 = vmul.f32 %v4463, 0.2
  %v4480 = vmul.f32 %v4464, 0.2
  %v4481 = vmul.f32 %v4465, 0.2
  %v4482 = vmul.f32 %v4466, 0.2
  %v4483 = vmul.f32 %v4467, 0.2
  %v4484 = vsel %vm4468, %v4460, %v4476
  %v4485 = vsel %vm4469, %v4461, %v4477
  %v4486 = vsel %vm4470, %v4462, %v4478
  %v4487 = vsel %vm4471, %v4463, %v4479
  %v4488 = vsel %vm4472, %v4464, %v4480
  %v4489 = vsel %vm4473, %v4465, %v4481
  %v4490 = vsel %vm4474, %v4466, %v4482
  %v4491 = vsel %vm4475, %v4467, %v4483
  %vm4492 = vcmask 1043456
  %v4493 = vsel %vm4492, %v4484, 0.0
  %v4494 = vrot.slane %v4493, 4
  %v4495 = vadd.f32 %v4493, %v4494
  %v4496 = vrot.slane %v4495, 2
  %v4497 = vadd.f32 %v4495, %v4496
  %v4498 = vrot.slane %v4497, 1
  %v4499 = vadd.f32 %v4497, %v4498
  %v4500 = vsel %vm4492, %v4485, 0.0
  %v4501 = vrot.slane %v4500, 4
  %v4502 = vadd.f32 %v4500, %v4501
  %v4503 = vrot.slane %v4502, 2
  %v4504 = vadd.f32 %v4502, %v4503
  %v4505 = vrot.slane %v4504, 1
  %v4506 = vadd.f32 %v4504, %v4505
  %v4507 = vsel %vm4492, %v4486, 0.0
  %v4508 = vrot.slane %v4507, 4
  %v4509 = vadd.f32 %v4507, %v4508
  %v4510 = vrot.slane %v4509, 2
  %v4511 = vadd.f32 %v4509, %v4510
  %v4512 = vrot.slane %v4511, 1
  %v4513 = vadd.f32 %v4511, %v4512
  %v4514 = vsel %vm4492, %v4487, 0.0
  %v4515 = vrot.slane %v4514, 4
  %v4516 = vadd.f32 %v4514, %v4515
  %v4517 = vrot.slane %v4516, 2
  %v4518 = vadd.f32 %v4516, %v4517
  %v4519 = vrot.slane %v4518, 1
  %v4520 = vadd.f32 %v4518, %v4519
  %v4521 = vmul.f32 %v4499, 0.25
  %v4522 = vmul.f32 %v4506, 0.25
  %v4523 = vmul.f32 %v4513, 0.25
  %v4524 = vmul.f32 %v4520, 0.25
  %v4525 = vmul.f32 %v4484, %v4484
  %v4526 = vmul.f32 %v4485, %v4485
  %v4527 = vmul.f32 %v4486, %v4486
  %v4528 = vmul.f32 %v4487, %v4487
  %v4529 = vsel %vm4492, %v4525, 0.0
  %v4530 = vrot.slane %v4529, 4
  %v4531 = vadd.f32 %v4529, %v4530
  %v4532 = vrot.slane %v4531, 2
  %v4533 = vadd.f32 %v4531, %v4532
  %v4534 = vrot.slane %v4533, 1
  %v4535 = vadd.f32 %v4533, %v4534
  %v4536 = vsel %vm4492, %v4526, 0.0
  %v4537 = vrot.slane %v4536, 4
  %v4538 = vadd.f32 %v4536, %v4537
  %v4539 = vrot.slane %v4538, 2
  %v4540 = vadd.f32 %v4538, %v4539
  %v4541 = vrot.slane %v4540, 1
  %v4542 = vadd.f32 %v4540, %v4541
  %v4543 = vsel %vm4492, %v4527, 0.0
  %v4544 = vrot.slane %v4543, 4
  %v4545 = vadd.f32 %v4543, %v4544
  %v4546 = vrot.slane %v4545, 2
  %v4547 = vadd.f32 %v4545, %v4546
  %v4548 = vrot.slane %v4547, 1
  %v4549 = vadd.f32 %v4547, %v4548
  %v4550 = vsel %vm4492, %v4528, 0.0
  %v4551 = vrot.slane %v4550, 4
  %v4552 = vadd.f32 %v4550, %v4551
  %v4553 = vrot.slane %v4552, 2
  %v4554 = vadd.f32 %v4552, %v4553
  %v4555 = vrot.slane %v4554, 1
  %v4556 = vadd.f32 %v4554, %v4555
  %v4557 = vmul.f32 %v4535, 0.25
  %v4558 = vmul.f32 %v4542, 0.25
  %v4559 = vmul.f32 %v4549, 0.25
  %v4560 = vmul.f32 %v4556, 0.25
  %v4561 = vmul.f32 %v4521, %v4521
  %v4562 = vmul.f32 %v4522, %v4522
  %v4563 = vmul.f32 %v4523, %v4523
  %v4564 = vmul.f32 %v4524, %v4524
  %v4565 = vsub.f32 %v4557, %v4561
  %v4566 = vsub.f32 %v4558, %v4562
  %v4567 = vsub.f32 %v4559, %v4563
  %v4568 = vsub.f32 %v4560, %v4564
  %v4569 = vmax.f32 %v4565, 0.0
  %v4570 = vmax.f32 %v4566, 0.0
  %v4571 = vmax.f32 %v4567, 0.0
  %v4572 = vmax.f32 %v4568, 0.0
  %v4573 = vadd.f32 %v4569, 1e-05
  %v4574 = vadd.f32 %v4570, 1e-05
  %v4575 = vadd.f32 %v4571, 1e-05
  %v4576 = vadd.f32 %v4572, 1e-05
  %v4577 = vrsqrt.pop %v4573
  %v4578 = vrsqrt.pop %v4574
  %v4579 = vrsqrt.pop %v4575
  %v4580 = vrsqrt.pop %v4576
  %v4581 = vsub.f32 %v4484, %v4521
  %v4582 = vsub.f32 %v4485, %v4522
  %v4583 = vsub.f32 %v4486, %v4523
  %v4584 = vsub.f32 %v4487, %v4524
  %v4585 = vmul.f32 %v4581, %v4577
  %v4586 = vmul.f32 %v4582, %v4578
  %v4587 = vmul.f32 %v4583, %v4579
  %v4588 = vmul.f32 %v4584, %v4580
  %v4589 = vpack.c.bf16 %v4585, %v4585
  %v4590 = vpack.c.bf16 %v4586, %v4586
  %v4591 = vpack.c.bf16 %v4587, %v4587
  %v4592 = vpack.c.bf16 %v4588, %v4588
  %v4597 = vunpack.c.l.b16 %v4589
  %v4598 = vunpack.c.l.b16 %v4590
  %v4599 = vunpack.c.l.b16 %v4591
  %v4600 = vunpack.c.l.b16 %v4592
  %v4601 = vpack.c.b16 %v4598, %v4597
  %v4602 = vpack.c.b16 %v4600, %v4599
  %4605 = vst [vmem:[%s8] sm:$0x33] %v4601
  %4606 = vst [vmem:[%s8 + $0x8] sm:$0x33] %v4602
  %4607 = vst [vmem:[%s8] sm:$0xcc] 0
  %4608 = vst [vmem:[%s8 + $0x8] sm:$0xcc] 0
  %v4609 = vsel %vm4492, %v4488, 0.0
  %v4610 = vrot.slane %v4609, 4
  %v4611 = vadd.f32 %v4609, %v4610
  %v4612 = vrot.slane %v4611, 2
  %v4613 = vadd.f32 %v4611, %v4612
  %v4614 = vrot.slane %v4613, 1
  %v4615 = vadd.f32 %v4613, %v4614
  %v4616 = vsel %vm4492, %v4489, 0.0
  %v4617 = vrot.slane %v4616, 4
  %v4618 = vadd.f32 %v4616, %v4617
  %v4619 = vrot.slane %v4618, 2
  %v4620 = vadd.f32 %v4618, %v4619
  %v4621 = vrot.slane %v4620, 1
  %v4622 = vadd.f32 %v4620, %v4621
  %v4623 = vsel %vm4492, %v4490, 0.0
  %v4624 = vrot.slane %v4623, 4
  %v4625 = vadd.f32 %v4623, %v4624
  %v4626 = vrot.slane %v4625, 2
  %v4627 = vadd.f32 %v4625, %v4626
  %v4628 = vrot.slane %v4627, 1
  %v4629 = vadd.f32 %v4627, %v4628
  %v4630 = vsel %vm4492, %v4491, 0.0
  %v4631 = vrot.slane %v4630, 4
  %v4632 = vadd.f32 %v4630, %v4631
  %v4633 = vrot.slane %v4632, 2
  %v4634 = vadd.f32 %v4632, %v4633
  %v4635 = vrot.slane %v4634, 1
  %v4636 = vadd.f32 %v4634, %v4635
  %v4637 = vmul.f32 %v4615, 0.25
  %v4638 = vmul.f32 %v4622, 0.25
  %v4639 = vmul.f32 %v4629, 0.25
  %v4640 = vmul.f32 %v4636, 0.25
  %v4641 = vmul.f32 %v4488, %v4488
  %v4642 = vmul.f32 %v4489, %v4489
  %v4643 = vmul.f32 %v4490, %v4490
  %v4644 = vmul.f32 %v4491, %v4491
  %v4645 = vsel %vm4492, %v4641, 0.0
  %v4646 = vrot.slane %v4645, 4
  %v4647 = vadd.f32 %v4645, %v4646
  %v4648 = vrot.slane %v4647, 2
  %v4649 = vadd.f32 %v4647, %v4648
  %v4650 = vrot.slane %v4649, 1
  %v4651 = vadd.f32 %v4649, %v4650
  %v4652 = vsel %vm4492, %v4642, 0.0
  %v4653 = vrot.slane %v4652, 4
  %v4654 = vadd.f32 %v4652, %v4653
  %v4655 = vrot.slane %v4654, 2
  %v4656 = vadd.f32 %v4654, %v4655
  %v4657 = vrot.slane %v4656, 1
  %v4658 = vadd.f32 %v4656, %v4657
  %v4659 = vsel %vm4492, %v4643, 0.0
  %v4660 = vrot.slane %v4659, 4
  %v4661 = vadd.f32 %v4659, %v4660
  %v4662 = vrot.slane %v4661, 2
  %v4663 = vadd.f32 %v4661, %v4662
  %v4664 = vrot.slane %v4663, 1
  %v4665 = vadd.f32 %v4663, %v4664
  %v4666 = vsel %vm4492, %v4644, 0.0
  %v4667 = vrot.slane %v4666, 4
  %v4668 = vadd.f32 %v4666, %v4667
  %v4669 = vrot.slane %v4668, 2
  %v4670 = vadd.f32 %v4668, %v4669
  %v4671 = vrot.slane %v4670, 1
  %v4672 = vadd.f32 %v4670, %v4671
  %v4673 = vmul.f32 %v4651, 0.25
  %v4674 = vmul.f32 %v4658, 0.25
  %v4675 = vmul.f32 %v4665, 0.25
  %v4676 = vmul.f32 %v4672, 0.25
  %v4677 = vmul.f32 %v4637, %v4637
  %v4678 = vmul.f32 %v4638, %v4638
  %v4679 = vmul.f32 %v4639, %v4639
  %v4680 = vmul.f32 %v4640, %v4640
  %v4681 = vsub.f32 %v4673, %v4677
  %v4682 = vsub.f32 %v4674, %v4678
  %v4683 = vsub.f32 %v4675, %v4679
  %v4684 = vsub.f32 %v4676, %v4680
  %v4685 = vmax.f32 %v4681, 0.0
  %v4686 = vmax.f32 %v4682, 0.0
  %v4687 = vmax.f32 %v4683, 0.0
  %v4688 = vmax.f32 %v4684, 0.0
  %v4689 = vadd.f32 %v4685, 1e-05
  %v4690 = vadd.f32 %v4686, 1e-05
  %v4691 = vadd.f32 %v4687, 1e-05
  %v4692 = vadd.f32 %v4688, 1e-05
  %v4693 = vrsqrt.pop %v4689
  %v4694 = vrsqrt.pop %v4690
  %v4695 = vrsqrt.pop %v4691
  %v4696 = vrsqrt.pop %v4692
  %v4697 = vsub.f32 %v4488, %v4637
  %v4698 = vsub.f32 %v4489, %v4638
  %v4699 = vsub.f32 %v4490, %v4639
  %v4700 = vsub.f32 %v4491, %v4640
  %v4701 = vmul.f32 %v4697, %v4693
  %v4702 = vmul.f32 %v4698, %v4694
  %v4703 = vmul.f32 %v4699, %v4695
  %v4704 = vmul.f32 %v4700, %v4696
  %v4705 = vpack.c.bf16 %v4701, %v4701
  %v4706 = vpack.c.bf16 %v4702, %v4702
  %v4707 = vpack.c.bf16 %v4703, %v4703
  %v4708 = vpack.c.bf16 %v4704, %v4704
  %v4713 = vunpack.c.l.b16 %v4705
  %v4714 = vunpack.c.l.b16 %v4706
  %v4715 = vunpack.c.l.b16 %v4707
  %v4716 = vunpack.c.l.b16 %v4708
  %v4717 = vpack.c.b16 %v4714, %v4713
  %v4718 = vpack.c.b16 %v4716, %v4715
  %4721 = vst [vmem:[%s8 + $0x10] sm:$0x33] %v4717
  %4722 = vst [vmem:[%s8 + $0x18] sm:$0x33] %v4718
  %4723 = vst [vmem:[%s8 + $0x10] sm:$0xcc] 0
  %4724 = vst [vmem:[%s8 + $0x18] sm:$0xcc] 0
  // Predicated region
  $region34: #{discriminator_forward.8} parent=0 // pred_check
    _
  $region35: #{discriminator_forward.8} parent=0 // pred_check_branch
    %4726 = sbr.rel (0) target = $region37
  $region36: #{discriminator_forward.8} parent=0 // pred_region
    _
  $region37: #{discriminator_forward.8} parent=0 // pred_fallthru
    _
  // Predicated region
  $region38: #{discriminator_forward.8} parent=0 // pred_check
    _
  $region39: #{discriminator_forward.8} parent=0 // pred_check_branch
    %4728 = sbr.rel (0) target = $region41
  $region40: #{discriminator_forward.8} parent=0 // pred_region
    _
  $region41: #{discriminator_forward.8} parent=0 // pred_fallthru
    _

</llo_original>
